<compile_context>
chip_gen: v7x
topology: tpu7x:2x2x1
jax: 0.10.0
libtpu: 0.0.40
codegen_flags: <defaults>
</compile_context>

<pallas_src>
import functools

import jax
import jax.numpy as jnp
from jax.experimental import pallas as pl
from jax.experimental.pallas import tpu as pltpu

KSIZE = 5
PAD = 2
BN_EPS = 1e-5
LEAKY_SLOPE = 0.01  # torch.nn.LeakyReLU default


def _my_net2_kernel(x_ref, mask_ref, wstack_ref, gamma_ref, beta_ref,
                    wf_ref, bf_ref, out_ref, xbuf_ref, col_ref,
                    *, N, H, W, Hp, Wp, margin):
    """Fused forward pass.

    x_ref:      [Cin, F]           flattened zero-padded input, F = N*Hp*Wp
    mask_ref:   [1,   F]           1.0 at valid (non-pad) positions else 0.0
    wstack_ref: [4, Cin, 25*Cin]   conv1..4 weights, flattened & transposed
    gamma_ref:  [4, Cin, 1]        BN scale per layer
    beta_ref:   [4, Cin, 1]        BN shift per layer
    wf_ref:     [Cout_f, 25*Cin]   final conv weight
    bf_ref:     [Cout_f, 1]        final conv bias
    out_ref:    [Cout_f, F]        sigmoid output on the padded flat layout
                                   (halo columns are junk; wrapper slices them off)
    xbuf_ref:   [Cin, F + 2*margin] VMEM: resident padded activation + shift margin
    col_ref:    [25*Cin, F]         VMEM: im2col buffer
    """
    Cin, F = x_ref.shape
    n_layers = wstack_ref.shape[0]
    inv_count = 1.0 / float(N * H * W)
    mask = mask_ref[...]                                   # [1, F]

    # Zero-fill the activation buffer once; halo / margin columns stay zero.
    xbuf_ref[...] = jnp.zeros_like(xbuf_ref)
    xbuf_ref[:, margin:margin + F] = x_ref[...]

    def build_im2col():
        # 25 shifted taps -> im2col matrix [25*Cin, F].  Each tap is a static
        # lane-offset slice of the padded flat activation (no reshapes).
        for kh in range(KSIZE):
            for kw in range(KSIZE):
                t = kh * KSIZE + kw
                off = margin + (kh - PAD) * Wp + (kw - PAD)   # in [0, 2*margin]
                col_ref[t * Cin:(t + 1) * Cin, :] = xbuf_ref[:, off:off + F]

    # conv1 .. conv4 : Conv5x5 -> BatchNorm (batch stats) -> LeakyReLU
    for layer in range(n_layers):
        build_im2col()
        w_l = wstack_ref[layer]                               # [Cin, 25*Cin]
        y = jnp.dot(w_l, col_ref[...],
                    preferred_element_type=jnp.float32)       # [Cin, F]

        # BatchNorm2d (training-mode statistics) over the valid positions only.
        # The conv bias is omitted: it is exactly cancelled by the mean
        # subtraction below.
        mean = jnp.sum(y * mask, axis=1, keepdims=True) * inv_count   # [Cin,1]
        centered = (y - mean) * mask
        var = jnp.sum(centered * centered, axis=1, keepdims=True) * inv_count
        y = centered * jax.lax.rsqrt(var + BN_EPS) * gamma_ref[layer] \
            + beta_ref[layer]

        # LeakyReLU, then re-zero the halo positions before writing back so the
        # next layer sees correct zero padding.
        y = jnp.where(y >= 0, y, LEAKY_SLOPE * y)
        xbuf_ref[:, margin:margin + F] = y * mask

    # final: Conv5x5 -> Sigmoid   (lane-dense [Cout_f, F] output)
    build_im2col()
    yf = jnp.dot(wf_ref[...], col_ref[...],
                 preferred_element_type=jnp.float32) + bf_ref[...]
    out_ref[...] = jax.nn.sigmoid(yf).astype(out_ref.dtype)


def _flatten_weight(w):
    """[5,5,Cin,Cout] (HWIO) -> [Cout, 25*Cin] matching the im2col row order."""
    k2cin = KSIZE * KSIZE * w.shape[2]
    return w.reshape(k2cin, w.shape[3]).T


@jax.jit
def my_net2_forward(x_nchw, params):
    N, Cin, H, W = x_nchw.shape
    Hp, Wp = H + 2 * PAD, W + 2 * PAD
    F = N * Hp * Wp
    margin = PAD * Wp + PAD                      # max |tap offset| on the flat axis
    cout_f = params["final"]["w"].shape[-1]

    # NCHW -> [C, N, Hp, Wp] (zero pad once, tiny) -> flattened [C, F]
    x = jnp.transpose(x_nchw, (1, 0, 2, 3)).astype(jnp.float32)
    xflat = jnp.pad(x, ((0, 0), (0, 0), (PAD, PAD), (PAD, PAD))).reshape(Cin, F)

    # validity mask over the padded flat layout (1 at interior, 0 at halo)
    mask2d = jnp.zeros((Hp, Wp), jnp.float32).at[PAD:PAD + H, PAD:PAD + W].set(1.0)
    mask = jnp.tile(mask2d[None], (N, 1, 1)).reshape(1, F)

    # stack & flatten the four identical-shape conv blocks
    wstack = jnp.stack([_flatten_weight(params[f"conv{i}"]["w"])
                        for i in range(1, 5)], axis=0)          # [4, Cin, 25*Cin]
    gstack = jnp.stack([params[f"conv{i}"]["gamma"]
                        for i in range(1, 5)], axis=0)[:, :, None]
    bstack = jnp.stack([params[f"conv{i}"]["beta"]
                        for i in range(1, 5)], axis=0)[:, :, None]
    wf = _flatten_weight(params["final"]["w"])                  # [Cout_f, 25*Cin]
    bf = params["final"]["b"][:, None]                          # [Cout_f, 1]

    kernel = functools.partial(_my_net2_kernel, N=N, H=H, W=W,
                               Hp=Hp, Wp=Wp, margin=margin)

    out_flat = pl.pallas_call(
        kernel,
        out_shape=jax.ShapeDtypeStruct((cout_f, F), jnp.float32),
        scratch_shapes=[
            pltpu.VMEM((Cin, F + 2 * margin), jnp.float32),        # resident activation
            pltpu.VMEM((KSIZE * KSIZE * Cin, F), jnp.float32),     # im2col buffer
        ],
    )(xflat, mask, wstack, gstack, bstack, wf, bf)

    # drop halo columns, back to NCHW
    out = out_flat.reshape(cout_f, N, Hp, Wp)[:, :, PAD:PAD + H, PAD:PAD + W]
    return jnp.transpose(out, (1, 0, 2, 3))


# ----------------------------- pure-JAX reference ---------------------------

@jax.jit
def _reference_forward(x_nchw, params):
    x = x_nchw.astype(jnp.float32)

    def conv(x, w, b):
        y = jax.lax.conv_general_dilated(
            x, w, window_strides=(1, 1),
            padding=((PAD, PAD), (PAD, PAD)),
            dimension_numbers=("NCHW", "HWIO", "NCHW"))
        return y + b[None, :, None, None]

    for i in range(1, 5):
        p = params[f"conv{i}"]
        y = conv(x, p["w"], p["b"])
        mean = jnp.mean(y, axis=(0, 2, 3), keepdims=True)
        var = jnp.mean((y - mean) ** 2, axis=(0, 2, 3), keepdims=True)
        y = (y - mean) * jax.lax.rsqrt(var + BN_EPS)
        y = y * p["gamma"][None, :, None, None] + p["beta"][None, :, None, None]
        x = jnp.where(y >= 0, y, LEAKY_SLOPE * y)
    pf = params["final"]
    return jax.nn.sigmoid(conv(x, pf["w"], pf["b"]))


# ------------------------------- parameters ---------------------------------

def init_params(key, in_channel, out_channel):
    """Deterministic synthetic parameters matching My_Net2's shapes (HWIO)."""
    params = {}
    keys = jax.random.split(key, 10)
    k_idx = 0
    fan_in = in_channel * KSIZE * KSIZE
    for i in range(1, 5):  # conv1..conv4: Conv2d(Cin, Cin, 5) + BN(Cin)
        w = jax.random.normal(keys[k_idx], (KSIZE, KSIZE, in_channel, in_channel),
                              jnp.float32) * (1.0 / jnp.sqrt(fan_in))
        b = jax.random.normal(keys[k_idx + 1], (in_channel,), jnp.float32) * 0.01
        k_idx += 2
        params[f"conv{i}"] = {
            "w": w, "b": b,
            "gamma": jnp.ones((in_channel,), jnp.float32),   # BN default init
            "beta": jnp.zeros((in_channel,), jnp.float32),
        }
    wf = jax.random.normal(keys[8], (KSIZE, KSIZE, in_channel, out_channel),
                           jnp.float32) * (1.0 / jnp.sqrt(fan_in))
    bf = jax.random.normal(keys[9], (out_channel,), jnp.float32) * 0.01
    params["final"] = {"w": wf, "b": bf}
    return params


if __name__ == "__main__":
    in_channel, out_channel = 4, 2
    N, H, W = 2, 16, 16

    key = jax.random.PRNGKey(0)
    k_x, k_p = jax.random.split(key)
    x = jax.random.normal(k_x, (N, in_channel, H, W), jnp.float32)
    params = init_params(k_p, in_channel, out_channel)

    out = my_net2_forward(x, params)
    jax.block_until_ready(out)

    assert out.shape == (N, out_channel, H, W), out.shape
    assert bool(jnp.all(jnp.isfinite(out)))
    assert bool(jnp.all((out >= 0.0) & (out <= 1.0)))  # sigmoid output range

    # correctness vs. a pure-JAX reference of the PyTorch module (train-mode BN)
    ref = _reference_forward(x, params)
    max_err = float(jnp.max(jnp.abs(out - ref)))
    assert max_err < 5e-4, f"max abs err vs reference: {max_err}"

    print("KERNEL_OK")
</pallas_src>

<mosaic_0001>
module attributes {stable_mosaic.version = 11 : i64} {
  func.func @_my_net2_kernel(%arg0: memref<4x800xf32, #tpu.memory_space<vmem>>, %arg1: memref<1x800xf32, #tpu.memory_space<vmem>>, %arg2: memref<4x4x100xf32, #tpu.memory_space<vmem>>, %arg3: memref<4x4x1xf32, #tpu.memory_space<vmem>>, %arg4: memref<4x4x1xf32, #tpu.memory_space<vmem>>, %arg5: memref<2x100xf32, #tpu.memory_space<vmem>>, %arg6: memref<2x1xf32, #tpu.memory_space<vmem>>, %arg7: memref<2x800xf32, #tpu.memory_space<vmem>>, %arg8: memref<4x884xf32, #tpu.memory_space<vmem>>, %arg9: memref<100x800xf32, #tpu.memory_space<vmem>>) attributes {dimension_semantics = [], scalar_prefetch = 0 : i64, scratch_operands = 2 : i64, tpu.core_type = #tpu.core_type<tc>} {
    %c0 = arith.constant 0 : index
    %c0_0 = arith.constant 0 : index
    %0 = vector.load %arg1[%c0, %c0_0] : memref<1x800xf32, #tpu.memory_space<vmem>>, vector<1x800xf32>
    %cst = arith.constant 0.000000e+00 : f32
    %1 = vector.broadcast %cst : f32 to vector<4x884xf32>
    %c0_1 = arith.constant 0 : index
    %c0_2 = arith.constant 0 : index
    %2 = vector.load %arg8[%c0_1, %c0_2] : memref<4x884xf32, #tpu.memory_space<vmem>>, vector<4x884xf32>
    tpu.vector_store %arg8[%c0_1, %c0_2], %1 {strides = array<i32>} : memref<4x884xf32, #tpu.memory_space<vmem>>, vector<4x884xf32>,
    %c0_3 = arith.constant 0 : index
    %c0_4 = arith.constant 0 : index
    %3 = vector.load %arg0[%c0_3, %c0_4] : memref<4x800xf32, #tpu.memory_space<vmem>>, vector<4x800xf32>
    %c0_5 = arith.constant 0 : index
    %c42 = arith.constant 42 : index
    %4 = vector.load %arg8[%c0_5, %c42] : memref<4x884xf32, #tpu.memory_space<vmem>>, vector<4x800xf32>
    tpu.vector_store %arg8[%c0_5, %c42], %3 {strides = array<i32>} : memref<4x884xf32, #tpu.memory_space<vmem>>, vector<4x800xf32>,
    %c0_6 = arith.constant 0 : index
    %c0_7 = arith.constant 0 : index
    %5 = vector.load %arg8[%c0_6, %c0_7] : memref<4x884xf32, #tpu.memory_space<vmem>>, vector<4x800xf32>
    %c0_8 = arith.constant 0 : index
    %c0_9 = arith.constant 0 : index
    %6 = vector.load %arg9[%c0_8, %c0_9] : memref<100x800xf32, #tpu.memory_space<vmem>>, vector<4x800xf32>
    tpu.vector_store %arg9[%c0_8, %c0_9], %5 {strides = array<i32>} : memref<100x800xf32, #tpu.memory_space<vmem>>, vector<4x800xf32>,
    %c0_10 = arith.constant 0 : index
    %c1 = arith.constant 1 : index
    %7 = vector.load %arg8[%c0_10, %c1] : memref<4x884xf32, #tpu.memory_space<vmem>>, vector<4x800xf32>
    %c4 = arith.constant 4 : index
    %c0_11 = arith.constant 0 : index
    %8 = vector.load %arg9[%c4, %c0_11] : memref<100x800xf32, #tpu.memory_space<vmem>>, vector<4x800xf32>
    tpu.vector_store %arg9[%c4, %c0_11], %7 {strides = array<i32>} : memref<100x800xf32, #tpu.memory_space<vmem>>, vector<4x800xf32>,
    %c0_12 = arith.constant 0 : index
    %c2 = arith.constant 2 : index
    %9 = vector.load %arg8[%c0_12, %c2] : memref<4x884xf32, #tpu.memory_space<vmem>>, vector<4x800xf32>
    %c8 = arith.constant 8 : index
    %c0_13 = arith.constant 0 : index
    %10 = vector.load %arg9[%c8, %c0_13] : memref<100x800xf32, #tpu.memory_space<vmem>>, vector<4x800xf32>
    tpu.vector_store %arg9[%c8, %c0_13], %9 {strides = array<i32>} : memref<100x800xf32, #tpu.memory_space<vmem>>, vector<4x800xf32>,
    %c0_14 = arith.constant 0 : index
    %c3 = arith.constant 3 : index
    %11 = vector.load %arg8[%c0_14, %c3] : memref<4x884xf32, #tpu.memory_space<vmem>>, vector<4x800xf32>
    %c12 = arith.constant 12 : index
    %c0_15 = arith.constant 0 : index
    %12 = vector.load %arg9[%c12, %c0_15] : memref<100x800xf32, #tpu.memory_space<vmem>>, vector<4x800xf32>
    tpu.vector_store %arg9[%c12, %c0_15], %11 {strides = array<i32>} : memref<100x800xf32, #tpu.memory_space<vmem>>, vector<4x800xf32>,
    %c0_16 = arith.constant 0 : index
    %c4_17 = arith.constant 4 : index
    %13 = vector.load %arg8[%c0_16, %c4_17] : memref<4x884xf32, #tpu.memory_space<vmem>>, vector<4x800xf32>
    %c16 = arith.constant 16 : index
    %c0_18 = arith.constant 0 : index
    %14 = vector.load %arg9[%c16, %c0_18] : memref<100x800xf32, #tpu.memory_space<vmem>>, vector<4x800xf32>
    tpu.vector_store %arg9[%c16, %c0_18], %13 {strides = array<i32>} : memref<100x800xf32, #tpu.memory_space<vmem>>, vector<4x800xf32>,
    %c0_19 = arith.constant 0 : index
    %c20 = arith.constant 20 : index
    %15 = vector.load %arg8[%c0_19, %c20] : memref<4x884xf32, #tpu.memory_space<vmem>>, vector<4x800xf32>
    %c20_20 = arith.constant 20 : index
    %c0_21 = arith.constant 0 : index
    %16 = vector.load %arg9[%c20_20, %c0_21] : memref<100x800xf32, #tpu.memory_space<vmem>>, vector<4x800xf32>
    tpu.vector_store %arg9[%c20_20, %c0_21], %15 {strides = array<i32>} : memref<100x800xf32, #tpu.memory_space<vmem>>, vector<4x800xf32>,
    %c0_22 = arith.constant 0 : index
    %c21 = arith.constant 21 : index
    %17 = vector.load %arg8[%c0_22, %c21] : memref<4x884xf32, #tpu.memory_space<vmem>>, vector<4x800xf32>
    %c24 = arith.constant 24 : index
    %c0_23 = arith.constant 0 : index
    %18 = vector.load %arg9[%c24, %c0_23] : memref<100x800xf32, #tpu.memory_space<vmem>>, vector<4x800xf32>
    tpu.vector_store %arg9[%c24, %c0_23], %17 {strides = array<i32>} : memref<100x800xf32, #tpu.memory_space<vmem>>, vector<4x800xf32>,
    %c0_24 = arith.constant 0 : index
    %c22 = arith.constant 22 : index
    %19 = vector.load %arg8[%c0_24, %c22] : memref<4x884xf32, #tpu.memory_space<vmem>>, vector<4x800xf32>
    %c28 = arith.constant 28 : index
    %c0_25 = arith.constant 0 : index
    %20 = vector.load %arg9[%c28, %c0_25] : memref<100x800xf32, #tpu.memory_space<vmem>>, vector<4x800xf32>
    tpu.vector_store %arg9[%c28, %c0_25], %19 {strides = array<i32>} : memref<100x800xf32, #tpu.memory_space<vmem>>, vector<4x800xf32>,
    %c0_26 = arith.constant 0 : index
    %c23 = arith.constant 23 : index
    %21 = vector.load %arg8[%c0_26, %c23] : memref<4x884xf32, #tpu.memory_space<vmem>>, vector<4x800xf32>
    %c32 = arith.constant 32 : index
    %c0_27 = arith.constant 0 : index
    %22 = vector.load %arg9[%c32, %c0_27] : memref<100x800xf32, #tpu.memory_space<vmem>>, vector<4x800xf32>
    tpu.vector_store %arg9[%c32, %c0_27], %21 {strides = array<i32>} : memref<100x800xf32, #tpu.memory_space<vmem>>, vector<4x800xf32>,
    %c0_28 = arith.constant 0 : index
    %c24_29 = arith.constant 24 : index
    %23 = vector.load %arg8[%c0_28, %c24_29] : memref<4x884xf32, #tpu.memory_space<vmem>>, vector<4x800xf32>
    %c36 = arith.constant 36 : index
    %c0_30 = arith.constant 0 : index
    %24 = vector.load %arg9[%c36, %c0_30] : memref<100x800xf32, #tpu.memory_space<vmem>>, vector<4x800xf32>
    tpu.vector_store %arg9[%c36, %c0_30], %23 {strides = array<i32>} : memref<100x800xf32, #tpu.memory_space<vmem>>, vector<4x800xf32>,
    %c0_31 = arith.constant 0 : index
    %c40 = arith.constant 40 : index
    %25 = vector.load %arg8[%c0_31, %c40] : memref<4x884xf32, #tpu.memory_space<vmem>>, vector<4x800xf32>
    %c40_32 = arith.constant 40 : index
    %c0_33 = arith.constant 0 : index
    %26 = vector.load %arg9[%c40_32, %c0_33] : memref<100x800xf32, #tpu.memory_space<vmem>>, vector<4x800xf32>
    tpu.vector_store %arg9[%c40_32, %c0_33], %25 {strides = array<i32>} : memref<100x800xf32, #tpu.memory_space<vmem>>, vector<4x800xf32>,
    %c0_34 = arith.constant 0 : index
    %c41 = arith.constant 41 : index
    %27 = vector.load %arg8[%c0_34, %c41] : memref<4x884xf32, #tpu.memory_space<vmem>>, vector<4x800xf32>
    %c44 = arith.constant 44 : index
    %c0_35 = arith.constant 0 : index
    %28 = vector.load %arg9[%c44, %c0_35] : memref<100x800xf32, #tpu.memory_space<vmem>>, vector<4x800xf32>
    tpu.vector_store %arg9[%c44, %c0_35], %27 {strides = array<i32>} : memref<100x800xf32, #tpu.memory_space<vmem>>, vector<4x800xf32>,
    %c0_36 = arith.constant 0 : index
    %c42_37 = arith.constant 42 : index
    %29 = vector.load %arg8[%c0_36, %c42_37] : memref<4x884xf32, #tpu.memory_space<vmem>>, vector<4x800xf32>
    %c48 = arith.constant 48 : index
    %c0_38 = arith.constant 0 : index
    %30 = vector.load %arg9[%c48, %c0_38] : memref<100x800xf32, #tpu.memory_space<vmem>>, vector<4x800xf32>
    tpu.vector_store %arg9[%c48, %c0_38], %29 {strides = array<i32>} : memref<100x800xf32, #tpu.memory_space<vmem>>, vector<4x800xf32>,
    %c0_39 = arith.constant 0 : index
    %c43 = arith.constant 43 : index
    %31 = vector.load %arg8[%c0_39, %c43] : memref<4x884xf32, #tpu.memory_space<vmem>>, vector<4x800xf32>
    %c52 = arith.constant 52 : index
    %c0_40 = arith.constant 0 : index
    %32 = vector.load %arg9[%c52, %c0_40] : memref<100x800xf32, #tpu.memory_space<vmem>>, vector<4x800xf32>
    tpu.vector_store %arg9[%c52, %c0_40], %31 {strides = array<i32>} : memref<100x800xf32, #tpu.memory_space<vmem>>, vector<4x800xf32>,
    %c0_41 = arith.constant 0 : index
    %c44_42 = arith.constant 44 : index
    %33 = vector.load %arg8[%c0_41, %c44_42] : memref<4x884xf32, #tpu.memory_space<vmem>>, vector<4x800xf32>
    %c56 = arith.constant 56 : index
    %c0_43 = arith.constant 0 : index
    %34 = vector.load %arg9[%c56, %c0_43] : memref<100x800xf32, #tpu.memory_space<vmem>>, vector<4x800xf32>
    tpu.vector_store %arg9[%c56, %c0_43], %33 {strides = array<i32>} : memref<100x800xf32, #tpu.memory_space<vmem>>, vector<4x800xf32>,
    %c0_44 = arith.constant 0 : index
    %c60 = arith.constant 60 : index
    %35 = vector.load %arg8[%c0_44, %c60] : memref<4x884xf32, #tpu.memory_space<vmem>>, vector<4x800xf32>
    %c60_45 = arith.constant 60 : index
    %c0_46 = arith.constant 0 : index
    %36 = vector.load %arg9[%c60_45, %c0_46] : memref<100x800xf32, #tpu.memory_space<vmem>>, vector<4x800xf32>
    tpu.vector_store %arg9[%c60_45, %c0_46], %35 {strides = array<i32>} : memref<100x800xf32, #tpu.memory_space<vmem>>, vector<4x800xf32>,
    %c0_47 = arith.constant 0 : index
    %c61 = arith.constant 61 : index
    %37 = vector.load %arg8[%c0_47, %c61] : memref<4x884xf32, #tpu.memory_space<vmem>>, vector<4x800xf32>
    %c64 = arith.constant 64 : index
    %c0_48 = arith.constant 0 : index
    %38 = vector.load %arg9[%c64, %c0_48] : memref<100x800xf32, #tpu.memory_space<vmem>>, vector<4x800xf32>
    tpu.vector_store %arg9[%c64, %c0_48], %37 {strides = array<i32>} : memref<100x800xf32, #tpu.memory_space<vmem>>, vector<4x800xf32>,
    %c0_49 = arith.constant 0 : index
    %c62 = arith.constant 62 : index
    %39 = vector.load %arg8[%c0_49, %c62] : memref<4x884xf32, #tpu.memory_space<vmem>>, vector<4x800xf32>
    %c68 = arith.constant 68 : index
    %c0_50 = arith.constant 0 : index
    %40 = vector.load %arg9[%c68, %c0_50] : memref<100x800xf32, #tpu.memory_space<vmem>>, vector<4x800xf32>
    tpu.vector_store %arg9[%c68, %c0_50], %39 {strides = array<i32>} : memref<100x800xf32, #tpu.memory_space<vmem>>, vector<4x800xf32>,
    %c0_51 = arith.constant 0 : index
    %c63 = arith.constant 63 : index
    %41 = vector.load %arg8[%c0_51, %c63] : memref<4x884xf32, #tpu.memory_space<vmem>>, vector<4x800xf32>
    %c72 = arith.constant 72 : index
    %c0_52 = arith.constant 0 : index
    %42 = vector.load %arg9[%c72, %c0_52] : memref<100x800xf32, #tpu.memory_space<vmem>>, vector<4x800xf32>
    tpu.vector_store %arg9[%c72, %c0_52], %41 {strides = array<i32>} : memref<100x800xf32, #tpu.memory_space<vmem>>, vector<4x800xf32>,
    %c0_53 = arith.constant 0 : index
    %c64_54 = arith.constant 64 : index
    %43 = vector.load %arg8[%c0_53, %c64_54] : memref<4x884xf32, #tpu.memory_space<vmem>>, vector<4x800xf32>
    %c76 = arith.constant 76 : index
    %c0_55 = arith.constant 0 : index
    %44 = vector.load %arg9[%c76, %c0_55] : memref<100x800xf32, #tpu.memory_space<vmem>>, vector<4x800xf32>
    tpu.vector_store %arg9[%c76, %c0_55], %43 {strides = array<i32>} : memref<100x800xf32, #tpu.memory_space<vmem>>, vector<4x800xf32>,
    %c0_56 = arith.constant 0 : index
    %c80 = arith.constant 80 : index
    %45 = vector.load %arg8[%c0_56, %c80] : memref<4x884xf32, #tpu.memory_space<vmem>>, vector<4x800xf32>
    %c80_57 = arith.constant 80 : index
    %c0_58 = arith.constant 0 : index
    %46 = vector.load %arg9[%c80_57, %c0_58] : memref<100x800xf32, #tpu.memory_space<vmem>>, vector<4x800xf32>
    tpu.vector_store %arg9[%c80_57, %c0_58], %45 {strides = array<i32>} : memref<100x800xf32, #tpu.memory_space<vmem>>, vector<4x800xf32>,
    %c0_59 = arith.constant 0 : index
    %c81 = arith.constant 81 : index
    %47 = vector.load %arg8[%c0_59, %c81] : memref<4x884xf32, #tpu.memory_space<vmem>>, vector<4x800xf32>
    %c84 = arith.constant 84 : index
    %c0_60 = arith.constant 0 : index
    %48 = vector.load %arg9[%c84, %c0_60] : memref<100x800xf32, #tpu.memory_space<vmem>>, vector<4x800xf32>
    tpu.vector_store %arg9[%c84, %c0_60], %47 {strides = array<i32>} : memref<100x800xf32, #tpu.memory_space<vmem>>, vector<4x800xf32>,
    %c0_61 = arith.constant 0 : index
    %c82 = arith.constant 82 : index
    %49 = vector.load %arg8[%c0_61, %c82] : memref<4x884xf32, #tpu.memory_space<vmem>>, vector<4x800xf32>
    %c88 = arith.constant 88 : index
    %c0_62 = arith.constant 0 : index
    %50 = vector.load %arg9[%c88, %c0_62] : memref<100x800xf32, #tpu.memory_space<vmem>>, vector<4x800xf32>
    tpu.vector_store %arg9[%c88, %c0_62], %49 {strides = array<i32>} : memref<100x800xf32, #tpu.memory_space<vmem>>, vector<4x800xf32>,
    %c0_63 = arith.constant 0 : index
    %c83 = arith.constant 83 : index
    %51 = vector.load %arg8[%c0_63, %c83] : memref<4x884xf32, #tpu.memory_space<vmem>>, vector<4x800xf32>
    %c92 = arith.constant 92 : index
    %c0_64 = arith.constant 0 : index
    %52 = vector.load %arg9[%c92, %c0_64] : memref<100x800xf32, #tpu.memory_space<vmem>>, vector<4x800xf32>
    tpu.vector_store %arg9[%c92, %c0_64], %51 {strides = array<i32>} : memref<100x800xf32, #tpu.memory_space<vmem>>, vector<4x800xf32>,
    %c0_65 = arith.constant 0 : index
    %c84_66 = arith.constant 84 : index
    %53 = vector.load %arg8[%c0_65, %c84_66] : memref<4x884xf32, #tpu.memory_space<vmem>>, vector<4x800xf32>
    %c96 = arith.constant 96 : index
    %c0_67 = arith.constant 0 : index
    %54 = vector.load %arg9[%c96, %c0_67] : memref<100x800xf32, #tpu.memory_space<vmem>>, vector<4x800xf32>
    tpu.vector_store %arg9[%c96, %c0_67], %53 {strides = array<i32>} : memref<100x800xf32, #tpu.memory_space<vmem>>, vector<4x800xf32>,
    %c0_68 = arith.constant 0 : index
    %c0_69 = arith.constant 0 : index
    %c0_70 = arith.constant 0 : index
    %55 = vector.load %arg2[%c0_68, %c0_69, %c0_70] : memref<4x4x100xf32, #tpu.memory_space<vmem>>, vector<1x4x100xf32>
    %56 = vector.shape_cast %55 : vector<1x4x100xf32> to vector<4x100xf32>
    %c0_71 = arith.constant 0 : index
    %c0_72 = arith.constant 0 : index
    %57 = vector.load %arg9[%c0_71, %c0_72] : memref<100x800xf32, #tpu.memory_space<vmem>>, vector<100x800xf32>
    %cst_73 = arith.constant dense<0.000000e+00> : vector<4x800xf32>
    %58 = tpu.matmul %56, %57, %cst_73 {dimension_numbers = #tpu.dot_dimension_numbers<[1], [0], [0], [1], [0, 0, 1, 1], [], []>} : vector<4x100xf32>, vector<100x800xf32>, vector<4x800xf32> -> vector<4x800xf32>
    %59 = vector.broadcast %0 : vector<1x800xf32> to vector<4x800xf32>
    %60 = arith.mulf %58, %59 : vector<4x800xf32>
    %cst_74 = arith.constant dense<0.000000e+00> : vector<4xf32>
    %61 = vector.multi_reduction <add>, %60, %cst_74 [1] : vector<4x800xf32> to vector<4xf32>
    %62 = vector.shape_cast %61 : vector<4xf32> to vector<4x1xf32>
    %cst_75 = arith.constant 0.001953125 : f32
    %63 = vector.broadcast %cst_75 : f32 to vector<4x1xf32>
    %64 = arith.mulf %62, %63 : vector<4x1xf32>
    %65 = vector.broadcast %64 : vector<4x1xf32> to vector<4x800xf32>
    %66 = arith.subf %58, %65 : vector<4x800xf32>
    %67 = vector.broadcast %0 : vector<1x800xf32> to vector<4x800xf32>
    %68 = arith.mulf %66, %67 : vector<4x800xf32>
    %69 = arith.mulf %68, %68 : vector<4x800xf32>
    %cst_76 = arith.constant dense<0.000000e+00> : vector<4xf32>
    %70 = vector.multi_reduction <add>, %69, %cst_76 [1] : vector<4x800xf32> to vector<4xf32>
    %71 = vector.shape_cast %70 : vector<4xf32> to vector<4x1xf32>
    %cst_77 = arith.constant 0.001953125 : f32
    %72 = vector.broadcast %cst_77 : f32 to vector<4x1xf32>
    %73 = arith.mulf %71, %72 : vector<4x1xf32>
    %cst_78 = arith.constant 9.99999974E-6 : f32
    %74 = vector.broadcast %cst_78 : f32 to vector<4x1xf32>
    %75 = arith.addf %73, %74 : vector<4x1xf32>
    %76 = math.rsqrt %75 : vector<4x1xf32>
    %77 = vector.broadcast %76 : vector<4x1xf32> to vector<4x800xf32>
    %78 = arith.mulf %68, %77 : vector<4x800xf32>
    %c0_79 = arith.constant 0 : index
    %c0_80 = arith.constant 0 : index
    %c0_81 = arith.constant 0 : index
    %79 = vector.load %arg3[%c0_79, %c0_80, %c0_81] : memref<4x4x1xf32, #tpu.memory_space<vmem>>, vector<1x4x1xf32>
    %80 = vector.shape_cast %79 : vector<1x4x1xf32> to vector<4x1xf32>
    %81 = vector.broadcast %80 : vector<4x1xf32> to vector<4x800xf32>
    %82 = arith.mulf %78, %81 : vector<4x800xf32>
    %c0_82 = arith.constant 0 : index
    %c0_83 = arith.constant 0 : index
    %c0_84 = arith.constant 0 : index
    %83 = vector.load %arg4[%c0_82, %c0_83, %c0_84] : memref<4x4x1xf32, #tpu.memory_space<vmem>>, vector<1x4x1xf32>
    %84 = vector.shape_cast %83 : vector<1x4x1xf32> to vector<4x1xf32>
    %85 = vector.broadcast %84 : vector<4x1xf32> to vector<4x800xf32>
    %86 = arith.addf %82, %85 : vector<4x800xf32>
    %cst_85 = arith.constant 0.000000e+00 : f32
    %87 = vector.broadcast %cst_85 : f32 to vector<4x800xf32>
    %88 = arith.cmpf oge, %86, %87 : vector<4x800xf32>
    %cst_86 = arith.constant 0.00999999977 : f32
    %89 = vector.broadcast %cst_86 : f32 to vector<4x800xf32>
    %90 = arith.mulf %89, %86 : vector<4x800xf32>
    %91 = arith.select %88, %86, %90 : vector<4x800xi1>, vector<4x800xf32>
    %92 = vector.broadcast %0 : vector<1x800xf32> to vector<4x800xf32>
    %93 = arith.mulf %91, %92 : vector<4x800xf32>
    %c0_87 = arith.constant 0 : index
    %c42_88 = arith.constant 42 : index
    %94 = vector.load %arg8[%c0_87, %c42_88] : memref<4x884xf32, #tpu.memory_space<vmem>>, vector<4x800xf32>
    tpu.vector_store %arg8[%c0_87, %c42_88], %93 {strides = array<i32>} : memref<4x884xf32, #tpu.memory_space<vmem>>, vector<4x800xf32>,
    %c0_89 = arith.constant 0 : index
    %c0_90 = arith.constant 0 : index
    %95 = vector.load %arg8[%c0_89, %c0_90] : memref<4x884xf32, #tpu.memory_space<vmem>>, vector<4x800xf32>
    %c0_91 = arith.constant 0 : index
    %c0_92 = arith.constant 0 : index
    %96 = vector.load %arg9[%c0_91, %c0_92] : memref<100x800xf32, #tpu.memory_space<vmem>>, vector<4x800xf32>
    tpu.vector_store %arg9[%c0_91, %c0_92], %95 {strides = array<i32>} : memref<100x800xf32, #tpu.memory_space<vmem>>, vector<4x800xf32>,
    %c0_93 = arith.constant 0 : index
    %c1_94 = arith.constant 1 : index
    %97 = vector.load %arg8[%c0_93, %c1_94] : memref<4x884xf32, #tpu.memory_space<vmem>>, vector<4x800xf32>
    %c4_95 = arith.constant 4 : index
    %c0_96 = arith.constant 0 : index
    %98 = vector.load %arg9[%c4_95, %c0_96] : memref<100x800xf32, #tpu.memory_space<vmem>>, vector<4x800xf32>
    tpu.vector_store %arg9[%c4_95, %c0_96], %97 {strides = array<i32>} : memref<100x800xf32, #tpu.memory_space<vmem>>, vector<4x800xf32>,
    %c0_97 = arith.constant 0 : index
    %c2_98 = arith.constant 2 : index
    %99 = vector.load %arg8[%c0_97, %c2_98] : memref<4x884xf32, #tpu.memory_space<vmem>>, vector<4x800xf32>
    %c8_99 = arith.constant 8 : index
    %c0_100 = arith.constant 0 : index
    %100 = vector.load %arg9[%c8_99, %c0_100] : memref<100x800xf32, #tpu.memory_space<vmem>>, vector<4x800xf32>
    tpu.vector_store %arg9[%c8_99, %c0_100], %99 {strides = array<i32>} : memref<100x800xf32, #tpu.memory_space<vmem>>, vector<4x800xf32>,
    %c0_101 = arith.constant 0 : index
    %c3_102 = arith.constant 3 : index
    %101 = vector.load %arg8[%c0_101, %c3_102] : memref<4x884xf32, #tpu.memory_space<vmem>>, vector<4x800xf32>
    %c12_103 = arith.constant 12 : index
    %c0_104 = arith.constant 0 : index
    %102 = vector.load %arg9[%c12_103, %c0_104] : memref<100x800xf32, #tpu.memory_space<vmem>>, vector<4x800xf32>
    tpu.vector_store %arg9[%c12_103, %c0_104], %101 {strides = array<i32>} : memref<100x800xf32, #tpu.memory_space<vmem>>, vector<4x800xf32>,
    %c0_105 = arith.constant 0 : index
    %c4_106 = arith.constant 4 : index
    %103 = vector.load %arg8[%c0_105, %c4_106] : memref<4x884xf32, #tpu.memory_space<vmem>>, vector<4x800xf32>
    %c16_107 = arith.constant 16 : index
    %c0_108 = arith.constant 0 : index
    %104 = vector.load %arg9[%c16_107, %c0_108] : memref<100x800xf32, #tpu.memory_space<vmem>>, vector<4x800xf32>
    tpu.vector_store %arg9[%c16_107, %c0_108], %103 {strides = array<i32>} : memref<100x800xf32, #tpu.memory_space<vmem>>, vector<4x800xf32>,
    %c0_109 = arith.constant 0 : index
    %c20_110 = arith.constant 20 : index
    %105 = vector.load %arg8[%c0_109, %c20_110] : memref<4x884xf32, #tpu.memory_space<vmem>>, vector<4x800xf32>
    %c20_111 = arith.constant 20 : index
    %c0_112 = arith.constant 0 : index
    %106 = vector.load %arg9[%c20_111, %c0_112] : memref<100x800xf32, #tpu.memory_space<vmem>>, vector<4x800xf32>
    tpu.vector_store %arg9[%c20_111, %c0_112], %105 {strides = array<i32>} : memref<100x800xf32, #tpu.memory_space<vmem>>, vector<4x800xf32>,
    %c0_113 = arith.constant 0 : index
    %c21_114 = arith.constant 21 : index
    %107 = vector.load %arg8[%c0_113, %c21_114] : memref<4x884xf32, #tpu.memory_space<vmem>>, vector<4x800xf32>
    %c24_115 = arith.constant 24 : index
    %c0_116 = arith.constant 0 : index
    %108 = vector.load %arg9[%c24_115, %c0_116] : memref<100x800xf32, #tpu.memory_space<vmem>>, vector<4x800xf32>
    tpu.vector_store %arg9[%c24_115, %c0_116], %107 {strides = array<i32>} : memref<100x800xf32, #tpu.memory_space<vmem>>, vector<4x800xf32>,
    %c0_117 = arith.constant 0 : index
    %c22_118 = arith.constant 22 : index
    %109 = vector.load %arg8[%c0_117, %c22_118] : memref<4x884xf32, #tpu.memory_space<vmem>>, vector<4x800xf32>
    %c28_119 = arith.constant 28 : index
    %c0_120 = arith.constant 0 : index
    %110 = vector.load %arg9[%c28_119, %c0_120] : memref<100x800xf32, #tpu.memory_space<vmem>>, vector<4x800xf32>
    tpu.vector_store %arg9[%c28_119, %c0_120], %109 {strides = array<i32>} : memref<100x800xf32, #tpu.memory_space<vmem>>, vector<4x800xf32>,
    %c0_121 = arith.constant 0 : index
    %c23_122 = arith.constant 23 : index
    %111 = vector.load %arg8[%c0_121, %c23_122] : memref<4x884xf32, #tpu.memory_space<vmem>>, vector<4x800xf32>
    %c32_123 = arith.constant 32 : index
    %c0_124 = arith.constant 0 : index
    %112 = vector.load %arg9[%c32_123, %c0_124] : memref<100x800xf32, #tpu.memory_space<vmem>>, vector<4x800xf32>
    tpu.vector_store %arg9[%c32_123, %c0_124], %111 {strides = array<i32>} : memref<100x800xf32, #tpu.memory_space<vmem>>, vector<4x800xf32>,
    %c0_125 = arith.constant 0 : index
    %c24_126 = arith.constant 24 : index
    %113 = vector.load %arg8[%c0_125, %c24_126] : memref<4x884xf32, #tpu.memory_space<vmem>>, vector<4x800xf32>
    %c36_127 = arith.constant 36 : index
    %c0_128 = arith.constant 0 : index
    %114 = vector.load %arg9[%c36_127, %c0_128] : memref<100x800xf32, #tpu.memory_space<vmem>>, vector<4x800xf32>
    tpu.vector_store %arg9[%c36_127, %c0_128], %113 {strides = array<i32>} : memref<100x800xf32, #tpu.memory_space<vmem>>, vector<4x800xf32>,
    %c0_129 = arith.constant 0 : index
    %c40_130 = arith.constant 40 : index
    %115 = vector.load %arg8[%c0_129, %c40_130] : memref<4x884xf32, #tpu.memory_space<vmem>>, vector<4x800xf32>
    %c40_131 = arith.constant 40 : index
    %c0_132 = arith.constant 0 : index
    %116 = vector.load %arg9[%c40_131, %c0_132] : memref<100x800xf32, #tpu.memory_space<vmem>>, vector<4x800xf32>
    tpu.vector_store %arg9[%c40_131, %c0_132], %115 {strides = array<i32>} : memref<100x800xf32, #tpu.memory_space<vmem>>, vector<4x800xf32>,
    %c0_133 = arith.constant 0 : index
    %c41_134 = arith.constant 41 : index
    %117 = vector.load %arg8[%c0_133, %c41_134] : memref<4x884xf32, #tpu.memory_space<vmem>>, vector<4x800xf32>
    %c44_135 = arith.constant 44 : index
    %c0_136 = arith.constant 0 : index
    %118 = vector.load %arg9[%c44_135, %c0_136] : memref<100x800xf32, #tpu.memory_space<vmem>>, vector<4x800xf32>
    tpu.vector_store %arg9[%c44_135, %c0_136], %117 {strides = array<i32>} : memref<100x800xf32, #tpu.memory_space<vmem>>, vector<4x800xf32>,
    %c0_137 = arith.constant 0 : index
    %c42_138 = arith.constant 42 : index
    %119 = vector.load %arg8[%c0_137, %c42_138] : memref<4x884xf32, #tpu.memory_space<vmem>>, vector<4x800xf32>
    %c48_139 = arith.constant 48 : index
    %c0_140 = arith.constant 0 : index
    %120 = vector.load %arg9[%c48_139, %c0_140] : memref<100x800xf32, #tpu.memory_space<vmem>>, vector<4x800xf32>
    tpu.vector_store %arg9[%c48_139, %c0_140], %119 {strides = array<i32>} : memref<100x800xf32, #tpu.memory_space<vmem>>, vector<4x800xf32>,
    %c0_141 = arith.constant 0 : index
    %c43_142 = arith.constant 43 : index
    %121 = vector.load %arg8[%c0_141, %c43_142] : memref<4x884xf32, #tpu.memory_space<vmem>>, vector<4x800xf32>
    %c52_143 = arith.constant 52 : index
    %c0_144 = arith.constant 0 : index
    %122 = vector.load %arg9[%c52_143, %c0_144] : memref<100x800xf32, #tpu.memory_space<vmem>>, vector<4x800xf32>
    tpu.vector_store %arg9[%c52_143, %c0_144], %121 {strides = array<i32>} : memref<100x800xf32, #tpu.memory_space<vmem>>, vector<4x800xf32>,
    %c0_145 = arith.constant 0 : index
    %c44_146 = arith.constant 44 : index
    %123 = vector.load %arg8[%c0_145, %c44_146] : memref<4x884xf32, #tpu.memory_space<vmem>>, vector<4x800xf32>
    %c56_147 = arith.constant 56 : index
    %c0_148 = arith.constant 0 : index
    %124 = vector.load %arg9[%c56_147, %c0_148] : memref<100x800xf32, #tpu.memory_space<vmem>>, vector<4x800xf32>
    tpu.vector_store %arg9[%c56_147, %c0_148], %123 {strides = array<i32>} : memref<100x800xf32, #tpu.memory_space<vmem>>, vector<4x800xf32>,
    %c0_149 = arith.constant 0 : index
    %c60_150 = arith.constant 60 : index
    %125 = vector.load %arg8[%c0_149, %c60_150] : memref<4x884xf32, #tpu.memory_space<vmem>>, vector<4x800xf32>
    %c60_151 = arith.constant 60 : index
    %c0_152 = arith.constant 0 : index
    %126 = vector.load %arg9[%c60_151, %c0_152] : memref<100x800xf32, #tpu.memory_space<vmem>>, vector<4x800xf32>
    tpu.vector_store %arg9[%c60_151, %c0_152], %125 {strides = array<i32>} : memref<100x800xf32, #tpu.memory_space<vmem>>, vector<4x800xf32>,
    %c0_153 = arith.constant 0 : index
    %c61_154 = arith.constant 61 : index
    %127 = vector.load %arg8[%c0_153, %c61_154] : memref<4x884xf32, #tpu.memory_space<vmem>>, vector<4x800xf32>
    %c64_155 = arith.constant 64 : index
    %c0_156 = arith.constant 0 : index
    %128 = vector.load %arg9[%c64_155, %c0_156] : memref<100x800xf32, #tpu.memory_space<vmem>>, vector<4x800xf32>
    tpu.vector_store %arg9[%c64_155, %c0_156], %127 {strides = array<i32>} : memref<100x800xf32, #tpu.memory_space<vmem>>, vector<4x800xf32>,
    %c0_157 = arith.constant 0 : index
    %c62_158 = arith.constant 62 : index
    %129 = vector.load %arg8[%c0_157, %c62_158] : memref<4x884xf32, #tpu.memory_space<vmem>>, vector<4x800xf32>
    %c68_159 = arith.constant 68 : index
    %c0_160 = arith.constant 0 : index
    %130 = vector.load %arg9[%c68_159, %c0_160] : memref<100x800xf32, #tpu.memory_space<vmem>>, vector<4x800xf32>
    tpu.vector_store %arg9[%c68_159, %c0_160], %129 {strides = array<i32>} : memref<100x800xf32, #tpu.memory_space<vmem>>, vector<4x800xf32>,
    %c0_161 = arith.constant 0 : index
    %c63_162 = arith.constant 63 : index
    %131 = vector.load %arg8[%c0_161, %c63_162] : memref<4x884xf32, #tpu.memory_space<vmem>>, vector<4x800xf32>
    %c72_163 = arith.constant 72 : index
    %c0_164 = arith.constant 0 : index
    %132 = vector.load %arg9[%c72_163, %c0_164] : memref<100x800xf32, #tpu.memory_space<vmem>>, vector<4x800xf32>
    tpu.vector_store %arg9[%c72_163, %c0_164], %131 {strides = array<i32>} : memref<100x800xf32, #tpu.memory_space<vmem>>, vector<4x800xf32>,
    %c0_165 = arith.constant 0 : index
    %c64_166 = arith.constant 64 : index
    %133 = vector.load %arg8[%c0_165, %c64_166] : memref<4x884xf32, #tpu.memory_space<vmem>>, vector<4x800xf32>
    %c76_167 = arith.constant 76 : index
    %c0_168 = arith.constant 0 : index
    %134 = vector.load %arg9[%c76_167, %c0_168] : memref<100x800xf32, #tpu.memory_space<vmem>>, vector<4x800xf32>
    tpu.vector_store %arg9[%c76_167, %c0_168], %133 {strides = array<i32>} : memref<100x800xf32, #tpu.memory_space<vmem>>, vector<4x800xf32>,
    %c0_169 = arith.constant 0 : index
    %c80_170 = arith.constant 80 : index
    %135 = vector.load %arg8[%c0_169, %c80_170] : memref<4x884xf32, #tpu.memory_space<vmem>>, vector<4x800xf32>
    %c80_171 = arith.constant 80 : index
    %c0_172 = arith.constant 0 : index
    %136 = vector.load %arg9[%c80_171, %c0_172] : memref<100x800xf32, #tpu.memory_space<vmem>>, vector<4x800xf32>
    tpu.vector_store %arg9[%c80_171, %c0_172], %135 {strides = array<i32>} : memref<100x800xf32, #tpu.memory_space<vmem>>, vector<4x800xf32>,
    %c0_173 = arith.constant 0 : index
    %c81_174 = arith.constant 81 : index
    %137 = vector.load %arg8[%c0_173, %c81_174] : memref<4x884xf32, #tpu.memory_space<vmem>>, vector<4x800xf32>
    %c84_175 = arith.constant 84 : index
    %c0_176 = arith.constant 0 : index
    %138 = vector.load %arg9[%c84_175, %c0_176] : memref<100x800xf32, #tpu.memory_space<vmem>>, vector<4x800xf32>
    tpu.vector_store %arg9[%c84_175, %c0_176], %137 {strides = array<i32>} : memref<100x800xf32, #tpu.memory_space<vmem>>, vector<4x800xf32>,
    %c0_177 = arith.constant 0 : index
    %c82_178 = arith.constant 82 : index
    %139 = vector.load %arg8[%c0_177, %c82_178] : memref<4x884xf32, #tpu.memory_space<vmem>>, vector<4x800xf32>
    %c88_179 = arith.constant 88 : index
    %c0_180 = arith.constant 0 : index
    %140 = vector.load %arg9[%c88_179, %c0_180] : memref<100x800xf32, #tpu.memory_space<vmem>>, vector<4x800xf32>
    tpu.vector_store %arg9[%c88_179, %c0_180], %139 {strides = array<i32>} : memref<100x800xf32, #tpu.memory_space<vmem>>, vector<4x800xf32>,
    %c0_181 = arith.constant 0 : index
    %c83_182 = arith.constant 83 : index
    %141 = vector.load %arg8[%c0_181, %c83_182] : memref<4x884xf32, #tpu.memory_space<vmem>>, vector<4x800xf32>
    %c92_183 = arith.constant 92 : index
    %c0_184 = arith.constant 0 : index
    %142 = vector.load %arg9[%c92_183, %c0_184] : memref<100x800xf32, #tpu.memory_space<vmem>>, vector<4x800xf32>
    tpu.vector_store %arg9[%c92_183, %c0_184], %141 {strides = array<i32>} : memref<100x800xf32, #tpu.memory_space<vmem>>, vector<4x800xf32>,
    %c0_185 = arith.constant 0 : index
    %c84_186 = arith.constant 84 : index
    %143 = vector.load %arg8[%c0_185, %c84_186] : memref<4x884xf32, #tpu.memory_space<vmem>>, vector<4x800xf32>
    %c96_187 = arith.constant 96 : index
    %c0_188 = arith.constant 0 : index
    %144 = vector.load %arg9[%c96_187, %c0_188] : memref<100x800xf32, #tpu.memory_space<vmem>>, vector<4x800xf32>
    tpu.vector_store %arg9[%c96_187, %c0_188], %143 {strides = array<i32>} : memref<100x800xf32, #tpu.memory_space<vmem>>, vector<4x800xf32>,
    %c1_189 = arith.constant 1 : index
    %c0_190 = arith.constant 0 : index
    %c0_191 = arith.constant 0 : index
    %145 = vector.load %arg2[%c1_189, %c0_190, %c0_191] : memref<4x4x100xf32, #tpu.memory_space<vmem>>, vector<1x4x100xf32>
    %146 = vector.shape_cast %145 : vector<1x4x100xf32> to vector<4x100xf32>
    %c0_192 = arith.constant 0 : index
    %c0_193 = arith.constant 0 : index
    %147 = vector.load %arg9[%c0_192, %c0_193] : memref<100x800xf32, #tpu.memory_space<vmem>>, vector<100x800xf32>
    %cst_194 = arith.constant dense<0.000000e+00> : vector<4x800xf32>
    %148 = tpu.matmul %146, %147, %cst_194 {dimension_numbers = #tpu.dot_dimension_numbers<[1], [0], [0], [1], [0, 0, 1, 1], [], []>} : vector<4x100xf32>, vector<100x800xf32>, vector<4x800xf32> -> vector<4x800xf32>
    %149 = vector.broadcast %0 : vector<1x800xf32> to vector<4x800xf32>
    %150 = arith.mulf %148, %149 : vector<4x800xf32>
    %cst_195 = arith.constant dense<0.000000e+00> : vector<4xf32>
    %151 = vector.multi_reduction <add>, %150, %cst_195 [1] : vector<4x800xf32> to vector<4xf32>
    %152 = vector.shape_cast %151 : vector<4xf32> to vector<4x1xf32>
    %cst_196 = arith.constant 0.001953125 : f32
    %153 = vector.broadcast %cst_196 : f32 to vector<4x1xf32>
    %154 = arith.mulf %152, %153 : vector<4x1xf32>
    %155 = vector.broadcast %154 : vector<4x1xf32> to vector<4x800xf32>
    %156 = arith.subf %148, %155 : vector<4x800xf32>
    %157 = vector.broadcast %0 : vector<1x800xf32> to vector<4x800xf32>
    %158 = arith.mulf %156, %157 : vector<4x800xf32>
    %159 = arith.mulf %158, %158 : vector<4x800xf32>
    %cst_197 = arith.constant dense<0.000000e+00> : vector<4xf32>
    %160 = vector.multi_reduction <add>, %159, %cst_197 [1] : vector<4x800xf32> to vector<4xf32>
    %161 = vector.shape_cast %160 : vector<4xf32> to vector<4x1xf32>
    %cst_198 = arith.constant 0.001953125 : f32
    %162 = vector.broadcast %cst_198 : f32 to vector<4x1xf32>
    %163 = arith.mulf %161, %162 : vector<4x1xf32>
    %cst_199 = arith.constant 9.99999974E-6 : f32
    %164 = vector.broadcast %cst_199 : f32 to vector<4x1xf32>
    %165 = arith.addf %163, %164 : vector<4x1xf32>
    %166 = math.rsqrt %165 : vector<4x1xf32>
    %167 = vector.broadcast %166 : vector<4x1xf32> to vector<4x800xf32>
    %168 = arith.mulf %158, %167 : vector<4x800xf32>
    %c1_200 = arith.constant 1 : index
    %c0_201 = arith.constant 0 : index
    %c0_202 = arith.constant 0 : index
    %169 = vector.load %arg3[%c1_200, %c0_201, %c0_202] : memref<4x4x1xf32, #tpu.memory_space<vmem>>, vector<1x4x1xf32>
    %170 = vector.shape_cast %169 : vector<1x4x1xf32> to vector<4x1xf32>
    %171 = vector.broadcast %170 : vector<4x1xf32> to vector<4x800xf32>
    %172 = arith.mulf %168, %171 : vector<4x800xf32>
    %c1_203 = arith.constant 1 : index
    %c0_204 = arith.constant 0 : index
    %c0_205 = arith.constant 0 : index
    %173 = vector.load %arg4[%c1_203, %c0_204, %c0_205] : memref<4x4x1xf32, #tpu.memory_space<vmem>>, vector<1x4x1xf32>
    %174 = vector.shape_cast %173 : vector<1x4x1xf32> to vector<4x1xf32>
    %175 = vector.broadcast %174 : vector<4x1xf32> to vector<4x800xf32>
    %176 = arith.addf %172, %175 : vector<4x800xf32>
    %cst_206 = arith.constant 0.000000e+00 : f32
    %177 = vector.broadcast %cst_206 : f32 to vector<4x800xf32>
    %178 = arith.cmpf oge, %176, %177 : vector<4x800xf32>
    %cst_207 = arith.constant 0.00999999977 : f32
    %179 = vector.broadcast %cst_207 : f32 to vector<4x800xf32>
    %180 = arith.mulf %179, %176 : vector<4x800xf32>
    %181 = arith.select %178, %176, %180 : vector<4x800xi1>, vector<4x800xf32>
    %182 = vector.broadcast %0 : vector<1x800xf32> to vector<4x800xf32>
    %183 = arith.mulf %181, %182 : vector<4x800xf32>
    %c0_208 = arith.constant 0 : index
    %c42_209 = arith.constant 42 : index
    %184 = vector.load %arg8[%c0_208, %c42_209] : memref<4x884xf32, #tpu.memory_space<vmem>>, vector<4x800xf32>
    tpu.vector_store %arg8[%c0_208, %c42_209], %183 {strides = array<i32>} : memref<4x884xf32, #tpu.memory_space<vmem>>, vector<4x800xf32>,
    %c0_210 = arith.constant 0 : index
    %c0_211 = arith.constant 0 : index
    %185 = vector.load %arg8[%c0_210, %c0_211] : memref<4x884xf32, #tpu.memory_space<vmem>>, vector<4x800xf32>
    %c0_212 = arith.constant 0 : index
    %c0_213 = arith.constant 0 : index
    %186 = vector.load %arg9[%c0_212, %c0_213] : memref<100x800xf32, #tpu.memory_space<vmem>>, vector<4x800xf32>
    tpu.vector_store %arg9[%c0_212, %c0_213], %185 {strides = array<i32>} : memref<100x800xf32, #tpu.memory_space<vmem>>, vector<4x800xf32>,
    %c0_214 = arith.constant 0 : index
    %c1_215 = arith.constant 1 : index
    %187 = vector.load %arg8[%c0_214, %c1_215] : memref<4x884xf32, #tpu.memory_space<vmem>>, vector<4x800xf32>
    %c4_216 = arith.constant 4 : index
    %c0_217 = arith.constant 0 : index
    %188 = vector.load %arg9[%c4_216, %c0_217] : memref<100x800xf32, #tpu.memory_space<vmem>>, vector<4x800xf32>
    tpu.vector_store %arg9[%c4_216, %c0_217], %187 {strides = array<i32>} : memref<100x800xf32, #tpu.memory_space<vmem>>, vector<4x800xf32>,
    %c0_218 = arith.constant 0 : index
    %c2_219 = arith.constant 2 : index
    %189 = vector.load %arg8[%c0_218, %c2_219] : memref<4x884xf32, #tpu.memory_space<vmem>>, vector<4x800xf32>
    %c8_220 = arith.constant 8 : index
    %c0_221 = arith.constant 0 : index
    %190 = vector.load %arg9[%c8_220, %c0_221] : memref<100x800xf32, #tpu.memory_space<vmem>>, vector<4x800xf32>
    tpu.vector_store %arg9[%c8_220, %c0_221], %189 {strides = array<i32>} : memref<100x800xf32, #tpu.memory_space<vmem>>, vector<4x800xf32>,
    %c0_222 = arith.constant 0 : index
    %c3_223 = arith.constant 3 : index
    %191 = vector.load %arg8[%c0_222, %c3_223] : memref<4x884xf32, #tpu.memory_space<vmem>>, vector<4x800xf32>
    %c12_224 = arith.constant 12 : index
    %c0_225 = arith.constant 0 : index
    %192 = vector.load %arg9[%c12_224, %c0_225] : memref<100x800xf32, #tpu.memory_space<vmem>>, vector<4x800xf32>
    tpu.vector_store %arg9[%c12_224, %c0_225], %191 {strides = array<i32>} : memref<100x800xf32, #tpu.memory_space<vmem>>, vector<4x800xf32>,
    %c0_226 = arith.constant 0 : index
    %c4_227 = arith.constant 4 : index
    %193 = vector.load %arg8[%c0_226, %c4_227] : memref<4x884xf32, #tpu.memory_space<vmem>>, vector<4x800xf32>
    %c16_228 = arith.constant 16 : index
    %c0_229 = arith.constant 0 : index
    %194 = vector.load %arg9[%c16_228, %c0_229] : memref<100x800xf32, #tpu.memory_space<vmem>>, vector<4x800xf32>
    tpu.vector_store %arg9[%c16_228, %c0_229], %193 {strides = array<i32>} : memref<100x800xf32, #tpu.memory_space<vmem>>, vector<4x800xf32>,
    %c0_230 = arith.constant 0 : index
    %c20_231 = arith.constant 20 : index
    %195 = vector.load %arg8[%c0_230, %c20_231] : memref<4x884xf32, #tpu.memory_space<vmem>>, vector<4x800xf32>
    %c20_232 = arith.constant 20 : index
    %c0_233 = arith.constant 0 : index
    %196 = vector.load %arg9[%c20_232, %c0_233] : memref<100x800xf32, #tpu.memory_space<vmem>>, vector<4x800xf32>
    tpu.vector_store %arg9[%c20_232, %c0_233], %195 {strides = array<i32>} : memref<100x800xf32, #tpu.memory_space<vmem>>, vector<4x800xf32>,
    %c0_234 = arith.constant 0 : index
    %c21_235 = arith.constant 21 : index
    %197 = vector.load %arg8[%c0_234, %c21_235] : memref<4x884xf32, #tpu.memory_space<vmem>>, vector<4x800xf32>
    %c24_236 = arith.constant 24 : index
    %c0_237 = arith.constant 0 : index
    %198 = vector.load %arg9[%c24_236, %c0_237] : memref<100x800xf32, #tpu.memory_space<vmem>>, vector<4x800xf32>
    tpu.vector_store %arg9[%c24_236, %c0_237], %197 {strides = array<i32>} : memref<100x800xf32, #tpu.memory_space<vmem>>, vector<4x800xf32>,
    %c0_238 = arith.constant 0 : index
    %c22_239 = arith.constant 22 : index
    %199 = vector.load %arg8[%c0_238, %c22_239] : memref<4x884xf32, #tpu.memory_space<vmem>>, vector<4x800xf32>
    %c28_240 = arith.constant 28 : index
    %c0_241 = arith.constant 0 : index
    %200 = vector.load %arg9[%c28_240, %c0_241] : memref<100x800xf32, #tpu.memory_space<vmem>>, vector<4x800xf32>
    tpu.vector_store %arg9[%c28_240, %c0_241], %199 {strides = array<i32>} : memref<100x800xf32, #tpu.memory_space<vmem>>, vector<4x800xf32>,
    %c0_242 = arith.constant 0 : index
    %c23_243 = arith.constant 23 : index
    %201 = vector.load %arg8[%c0_242, %c23_243] : memref<4x884xf32, #tpu.memory_space<vmem>>, vector<4x800xf32>
    %c32_244 = arith.constant 32 : index
    %c0_245 = arith.constant 0 : index
    %202 = vector.load %arg9[%c32_244, %c0_245] : memref<100x800xf32, #tpu.memory_space<vmem>>, vector<4x800xf32>
    tpu.vector_store %arg9[%c32_244, %c0_245], %201 {strides = array<i32>} : memref<100x800xf32, #tpu.memory_space<vmem>>, vector<4x800xf32>,
    %c0_246 = arith.constant 0 : index
    %c24_247 = arith.constant 24 : index
    %203 = vector.load %arg8[%c0_246, %c24_247] : memref<4x884xf32, #tpu.memory_space<vmem>>, vector<4x800xf32>
    %c36_248 = arith.constant 36 : index
    %c0_249 = arith.constant 0 : index
    %204 = vector.load %arg9[%c36_248, %c0_249] : memref<100x800xf32, #tpu.memory_space<vmem>>, vector<4x800xf32>
    tpu.vector_store %arg9[%c36_248, %c0_249], %203 {strides = array<i32>} : memref<100x800xf32, #tpu.memory_space<vmem>>, vector<4x800xf32>,
    %c0_250 = arith.constant 0 : index
    %c40_251 = arith.constant 40 : index
    %205 = vector.load %arg8[%c0_250, %c40_251] : memref<4x884xf32, #tpu.memory_space<vmem>>, vector<4x800xf32>
    %c40_252 = arith.constant 40 : index
    %c0_253 = arith.constant 0 : index
    %206 = vector.load %arg9[%c40_252, %c0_253] : memref<100x800xf32, #tpu.memory_space<vmem>>, vector<4x800xf32>
    tpu.vector_store %arg9[%c40_252, %c0_253], %205 {strides = array<i32>} : memref<100x800xf32, #tpu.memory_space<vmem>>, vector<4x800xf32>,
    %c0_254 = arith.constant 0 : index
    %c41_255 = arith.constant 41 : index
    %207 = vector.load %arg8[%c0_254, %c41_255] : memref<4x884xf32, #tpu.memory_space<vmem>>, vector<4x800xf32>
    %c44_256 = arith.constant 44 : index
    %c0_257 = arith.constant 0 : index
    %208 = vector.load %arg9[%c44_256, %c0_257] : memref<100x800xf32, #tpu.memory_space<vmem>>, vector<4x800xf32>
    tpu.vector_store %arg9[%c44_256, %c0_257], %207 {strides = array<i32>} : memref<100x800xf32, #tpu.memory_space<vmem>>, vector<4x800xf32>,
    %c0_258 = arith.constant 0 : index
    %c42_259 = arith.constant 42 : index
    %209 = vector.load %arg8[%c0_258, %c42_259] : memref<4x884xf32, #tpu.memory_space<vmem>>, vector<4x800xf32>
    %c48_260 = arith.constant 48 : index
    %c0_261 = arith.constant 0 : index
    %210 = vector.load %arg9[%c48_260, %c0_261] : memref<100x800xf32, #tpu.memory_space<vmem>>, vector<4x800xf32>
    tpu.vector_store %arg9[%c48_260, %c0_261], %209 {strides = array<i32>} : memref<100x800xf32, #tpu.memory_space<vmem>>, vector<4x800xf32>,
    %c0_262 = arith.constant 0 : index
    %c43_263 = arith.constant 43 : index
    %211 = vector.load %arg8[%c0_262, %c43_263] : memref<4x884xf32, #tpu.memory_space<vmem>>, vector<4x800xf32>
    %c52_264 = arith.constant 52 : index
    %c0_265 = arith.constant 0 : index
    %212 = vector.load %arg9[%c52_264, %c0_265] : memref<100x800xf32, #tpu.memory_space<vmem>>, vector<4x800xf32>
    tpu.vector_store %arg9[%c52_264, %c0_265], %211 {strides = array<i32>} : memref<100x800xf32, #tpu.memory_space<vmem>>, vector<4x800xf32>,
    %c0_266 = arith.constant 0 : index
    %c44_267 = arith.constant 44 : index
    %213 = vector.load %arg8[%c0_266, %c44_267] : memref<4x884xf32, #tpu.memory_space<vmem>>, vector<4x800xf32>
    %c56_268 = arith.constant 56 : index
    %c0_269 = arith.constant 0 : index
    %214 = vector.load %arg9[%c56_268, %c0_269] : memref<100x800xf32, #tpu.memory_space<vmem>>, vector<4x800xf32>
    tpu.vector_store %arg9[%c56_268, %c0_269], %213 {strides = array<i32>} : memref<100x800xf32, #tpu.memory_space<vmem>>, vector<4x800xf32>,
    %c0_270 = arith.constant 0 : index
    %c60_271 = arith.constant 60 : index
    %215 = vector.load %arg8[%c0_270, %c60_271] : memref<4x884xf32, #tpu.memory_space<vmem>>, vector<4x800xf32>
    %c60_272 = arith.constant 60 : index
    %c0_273 = arith.constant 0 : index
    %216 = vector.load %arg9[%c60_272, %c0_273] : memref<100x800xf32, #tpu.memory_space<vmem>>, vector<4x800xf32>
    tpu.vector_store %arg9[%c60_272, %c0_273], %215 {strides = array<i32>} : memref<100x800xf32, #tpu.memory_space<vmem>>, vector<4x800xf32>,
    %c0_274 = arith.constant 0 : index
    %c61_275 = arith.constant 61 : index
    %217 = vector.load %arg8[%c0_274, %c61_275] : memref<4x884xf32, #tpu.memory_space<vmem>>, vector<4x800xf32>
    %c64_276 = arith.constant 64 : index
    %c0_277 = arith.constant 0 : index
    %218 = vector.load %arg9[%c64_276, %c0_277] : memref<100x800xf32, #tpu.memory_space<vmem>>, vector<4x800xf32>
    tpu.vector_store %arg9[%c64_276, %c0_277], %217 {strides = array<i32>} : memref<100x800xf32, #tpu.memory_space<vmem>>, vector<4x800xf32>,
    %c0_278 = arith.constant 0 : index
    %c62_279 = arith.constant 62 : index
    %219 = vector.load %arg8[%c0_278, %c62_279] : memref<4x884xf32, #tpu.memory_space<vmem>>, vector<4x800xf32>
    %c68_280 = arith.constant 68 : index
    %c0_281 = arith.constant 0 : index
    %220 = vector.load %arg9[%c68_280, %c0_281] : memref<100x800xf32, #tpu.memory_space<vmem>>, vector<4x800xf32>
    tpu.vector_store %arg9[%c68_280, %c0_281], %219 {strides = array<i32>} : memref<100x800xf32, #tpu.memory_space<vmem>>, vector<4x800xf32>,
    %c0_282 = arith.constant 0 : index
    %c63_283 = arith.constant 63 : index
    %221 = vector.load %arg8[%c0_282, %c63_283] : memref<4x884xf32, #tpu.memory_space<vmem>>, vector<4x800xf32>
    %c72_284 = arith.constant 72 : index
    %c0_285 = arith.constant 0 : index
    %222 = vector.load %arg9[%c72_284, %c0_285] : memref<100x800xf32, #tpu.memory_space<vmem>>, vector<4x800xf32>
    tpu.vector_store %arg9[%c72_284, %c0_285], %221 {strides = array<i32>} : memref<100x800xf32, #tpu.memory_space<vmem>>, vector<4x800xf32>,
    %c0_286 = arith.constant 0 : index
    %c64_287 = arith.constant 64 : index
    %223 = vector.load %arg8[%c0_286, %c64_287] : memref<4x884xf32, #tpu.memory_space<vmem>>, vector<4x800xf32>
    %c76_288 = arith.constant 76 : index
    %c0_289 = arith.constant 0 : index
    %224 = vector.load %arg9[%c76_288, %c0_289] : memref<100x800xf32, #tpu.memory_space<vmem>>, vector<4x800xf32>
    tpu.vector_store %arg9[%c76_288, %c0_289], %223 {strides = array<i32>} : memref<100x800xf32, #tpu.memory_space<vmem>>, vector<4x800xf32>,
    %c0_290 = arith.constant 0 : index
    %c80_291 = arith.constant 80 : index
    %225 = vector.load %arg8[%c0_290, %c80_291] : memref<4x884xf32, #tpu.memory_space<vmem>>, vector<4x800xf32>
    %c80_292 = arith.constant 80 : index
    %c0_293 = arith.constant 0 : index
    %226 = vector.load %arg9[%c80_292, %c0_293] : memref<100x800xf32, #tpu.memory_space<vmem>>, vector<4x800xf32>
    tpu.vector_store %arg9[%c80_292, %c0_293], %225 {strides = array<i32>} : memref<100x800xf32, #tpu.memory_space<vmem>>, vector<4x800xf32>,
    %c0_294 = arith.constant 0 : index
    %c81_295 = arith.constant 81 : index
    %227 = vector.load %arg8[%c0_294, %c81_295] : memref<4x884xf32, #tpu.memory_space<vmem>>, vector<4x800xf32>
    %c84_296 = arith.constant 84 : index
    %c0_297 = arith.constant 0 : index
    %228 = vector.load %arg9[%c84_296, %c0_297] : memref<100x800xf32, #tpu.memory_space<vmem>>, vector<4x800xf32>
    tpu.vector_store %arg9[%c84_296, %c0_297], %227 {strides = array<i32>} : memref<100x800xf32, #tpu.memory_space<vmem>>, vector<4x800xf32>,
    %c0_298 = arith.constant 0 : index
    %c82_299 = arith.constant 82 : index
    %229 = vector.load %arg8[%c0_298, %c82_299] : memref<4x884xf32, #tpu.memory_space<vmem>>, vector<4x800xf32>
    %c88_300 = arith.constant 88 : index
    %c0_301 = arith.constant 0 : index
    %230 = vector.load %arg9[%c88_300, %c0_301] : memref<100x800xf32, #tpu.memory_space<vmem>>, vector<4x800xf32>
    tpu.vector_store %arg9[%c88_300, %c0_301], %229 {strides = array<i32>} : memref<100x800xf32, #tpu.memory_space<vmem>>, vector<4x800xf32>,
    %c0_302 = arith.constant 0 : index
    %c83_303 = arith.constant 83 : index
    %231 = vector.load %arg8[%c0_302, %c83_303] : memref<4x884xf32, #tpu.memory_space<vmem>>, vector<4x800xf32>
    %c92_304 = arith.constant 92 : index
    %c0_305 = arith.constant 0 : index
    %232 = vector.load %arg9[%c92_304, %c0_305] : memref<100x800xf32, #tpu.memory_space<vmem>>, vector<4x800xf32>
    tpu.vector_store %arg9[%c92_304, %c0_305], %231 {strides = array<i32>} : memref<100x800xf32, #tpu.memory_space<vmem>>, vector<4x800xf32>,
    %c0_306 = arith.constant 0 : index
    %c84_307 = arith.constant 84 : index
    %233 = vector.load %arg8[%c0_306, %c84_307] : memref<4x884xf32, #tpu.memory_space<vmem>>, vector<4x800xf32>
    %c96_308 = arith.constant 96 : index
    %c0_309 = arith.constant 0 : index
    %234 = vector.load %arg9[%c96_308, %c0_309] : memref<100x800xf32, #tpu.memory_space<vmem>>, vector<4x800xf32>
    tpu.vector_store %arg9[%c96_308, %c0_309], %233 {strides = array<i32>} : memref<100x800xf32, #tpu.memory_space<vmem>>, vector<4x800xf32>,
    %c2_310 = arith.constant 2 : index
    %c0_311 = arith.constant 0 : index
    %c0_312 = arith.constant 0 : index
    %235 = vector.load %arg2[%c2_310, %c0_311, %c0_312] : memref<4x4x100xf32, #tpu.memory_space<vmem>>, vector<1x4x100xf32>
    %236 = vector.shape_cast %235 : vector<1x4x100xf32> to vector<4x100xf32>
    %c0_313 = arith.constant 0 : index
    %c0_314 = arith.constant 0 : index
    %237 = vector.load %arg9[%c0_313, %c0_314] : memref<100x800xf32, #tpu.memory_space<vmem>>, vector<100x800xf32>
    %cst_315 = arith.constant dense<0.000000e+00> : vector<4x800xf32>
    %238 = tpu.matmul %236, %237, %cst_315 {dimension_numbers = #tpu.dot_dimension_numbers<[1], [0], [0], [1], [0, 0, 1, 1], [], []>} : vector<4x100xf32>, vector<100x800xf32>, vector<4x800xf32> -> vector<4x800xf32>
    %239 = vector.broadcast %0 : vector<1x800xf32> to vector<4x800xf32>
    %240 = arith.mulf %238, %239 : vector<4x800xf32>
    %cst_316 = arith.constant dense<0.000000e+00> : vector<4xf32>
    %241 = vector.multi_reduction <add>, %240, %cst_316 [1] : vector<4x800xf32> to vector<4xf32>
    %242 = vector.shape_cast %241 : vector<4xf32> to vector<4x1xf32>
    %cst_317 = arith.constant 0.001953125 : f32
    %243 = vector.broadcast %cst_317 : f32 to vector<4x1xf32>
    %244 = arith.mulf %242, %243 : vector<4x1xf32>
    %245 = vector.broadcast %244 : vector<4x1xf32> to vector<4x800xf32>
    %246 = arith.subf %238, %245 : vector<4x800xf32>
    %247 = vector.broadcast %0 : vector<1x800xf32> to vector<4x800xf32>
    %248 = arith.mulf %246, %247 : vector<4x800xf32>
    %249 = arith.mulf %248, %248 : vector<4x800xf32>
    %cst_318 = arith.constant dense<0.000000e+00> : vector<4xf32>
    %250 = vector.multi_reduction <add>, %249, %cst_318 [1] : vector<4x800xf32> to vector<4xf32>
    %251 = vector.shape_cast %250 : vector<4xf32> to vector<4x1xf32>
    %cst_319 = arith.constant 0.001953125 : f32
    %252 = vector.broadcast %cst_319 : f32 to vector<4x1xf32>
    %253 = arith.mulf %251, %252 : vector<4x1xf32>
    %cst_320 = arith.constant 9.99999974E-6 : f32
    %254 = vector.broadcast %cst_320 : f32 to vector<4x1xf32>
    %255 = arith.addf %253, %254 : vector<4x1xf32>
    %256 = math.rsqrt %255 : vector<4x1xf32>
    %257 = vector.broadcast %256 : vector<4x1xf32> to vector<4x800xf32>
    %258 = arith.mulf %248, %257 : vector<4x800xf32>
    %c2_321 = arith.constant 2 : index
    %c0_322 = arith.constant 0 : index
    %c0_323 = arith.constant 0 : index
    %259 = vector.load %arg3[%c2_321, %c0_322, %c0_323] : memref<4x4x1xf32, #tpu.memory_space<vmem>>, vector<1x4x1xf32>
    %260 = vector.shape_cast %259 : vector<1x4x1xf32> to vector<4x1xf32>
    %261 = vector.broadcast %260 : vector<4x1xf32> to vector<4x800xf32>
    %262 = arith.mulf %258, %261 : vector<4x800xf32>
    %c2_324 = arith.constant 2 : index
    %c0_325 = arith.constant 0 : index
    %c0_326 = arith.constant 0 : index
    %263 = vector.load %arg4[%c2_324, %c0_325, %c0_326] : memref<4x4x1xf32, #tpu.memory_space<vmem>>, vector<1x4x1xf32>
    %264 = vector.shape_cast %263 : vector<1x4x1xf32> to vector<4x1xf32>
    %265 = vector.broadcast %264 : vector<4x1xf32> to vector<4x800xf32>
    %266 = arith.addf %262, %265 : vector<4x800xf32>
    %cst_327 = arith.constant 0.000000e+00 : f32
    %267 = vector.broadcast %cst_327 : f32 to vector<4x800xf32>
    %268 = arith.cmpf oge, %266, %267 : vector<4x800xf32>
    %cst_328 = arith.constant 0.00999999977 : f32
    %269 = vector.broadcast %cst_328 : f32 to vector<4x800xf32>
    %270 = arith.mulf %269, %266 : vector<4x800xf32>
    %271 = arith.select %268, %266, %270 : vector<4x800xi1>, vector<4x800xf32>
    %272 = vector.broadcast %0 : vector<1x800xf32> to vector<4x800xf32>
    %273 = arith.mulf %271, %272 : vector<4x800xf32>
    %c0_329 = arith.constant 0 : index
    %c42_330 = arith.constant 42 : index
    %274 = vector.load %arg8[%c0_329, %c42_330] : memref<4x884xf32, #tpu.memory_space<vmem>>, vector<4x800xf32>
    tpu.vector_store %arg8[%c0_329, %c42_330], %273 {strides = array<i32>} : memref<4x884xf32, #tpu.memory_space<vmem>>, vector<4x800xf32>,
    %c0_331 = arith.constant 0 : index
    %c0_332 = arith.constant 0 : index
    %275 = vector.load %arg8[%c0_331, %c0_332] : memref<4x884xf32, #tpu.memory_space<vmem>>, vector<4x800xf32>
    %c0_333 = arith.constant 0 : index
    %c0_334 = arith.constant 0 : index
    %276 = vector.load %arg9[%c0_333, %c0_334] : memref<100x800xf32, #tpu.memory_space<vmem>>, vector<4x800xf32>
    tpu.vector_store %arg9[%c0_333, %c0_334], %275 {strides = array<i32>} : memref<100x800xf32, #tpu.memory_space<vmem>>, vector<4x800xf32>,
    %c0_335 = arith.constant 0 : index
    %c1_336 = arith.constant 1 : index
    %277 = vector.load %arg8[%c0_335, %c1_336] : memref<4x884xf32, #tpu.memory_space<vmem>>, vector<4x800xf32>
    %c4_337 = arith.constant 4 : index
    %c0_338 = arith.constant 0 : index
    %278 = vector.load %arg9[%c4_337, %c0_338] : memref<100x800xf32, #tpu.memory_space<vmem>>, vector<4x800xf32>
    tpu.vector_store %arg9[%c4_337, %c0_338], %277 {strides = array<i32>} : memref<100x800xf32, #tpu.memory_space<vmem>>, vector<4x800xf32>,
    %c0_339 = arith.constant 0 : index
    %c2_340 = arith.constant 2 : index
    %279 = vector.load %arg8[%c0_339, %c2_340] : memref<4x884xf32, #tpu.memory_space<vmem>>, vector<4x800xf32>
    %c8_341 = arith.constant 8 : index
    %c0_342 = arith.constant 0 : index
    %280 = vector.load %arg9[%c8_341, %c0_342] : memref<100x800xf32, #tpu.memory_space<vmem>>, vector<4x800xf32>
    tpu.vector_store %arg9[%c8_341, %c0_342], %279 {strides = array<i32>} : memref<100x800xf32, #tpu.memory_space<vmem>>, vector<4x800xf32>,
    %c0_343 = arith.constant 0 : index
    %c3_344 = arith.constant 3 : index
    %281 = vector.load %arg8[%c0_343, %c3_344] : memref<4x884xf32, #tpu.memory_space<vmem>>, vector<4x800xf32>
    %c12_345 = arith.constant 12 : index
    %c0_346 = arith.constant 0 : index
    %282 = vector.load %arg9[%c12_345, %c0_346] : memref<100x800xf32, #tpu.memory_space<vmem>>, vector<4x800xf32>
    tpu.vector_store %arg9[%c12_345, %c0_346], %281 {strides = array<i32>} : memref<100x800xf32, #tpu.memory_space<vmem>>, vector<4x800xf32>,
    %c0_347 = arith.constant 0 : index
    %c4_348 = arith.constant 4 : index
    %283 = vector.load %arg8[%c0_347, %c4_348] : memref<4x884xf32, #tpu.memory_space<vmem>>, vector<4x800xf32>
    %c16_349 = arith.constant 16 : index
    %c0_350 = arith.constant 0 : index
    %284 = vector.load %arg9[%c16_349, %c0_350] : memref<100x800xf32, #tpu.memory_space<vmem>>, vector<4x800xf32>
    tpu.vector_store %arg9[%c16_349, %c0_350], %283 {strides = array<i32>} : memref<100x800xf32, #tpu.memory_space<vmem>>, vector<4x800xf32>,
    %c0_351 = arith.constant 0 : index
    %c20_352 = arith.constant 20 : index
    %285 = vector.load %arg8[%c0_351, %c20_352] : memref<4x884xf32, #tpu.memory_space<vmem>>, vector<4x800xf32>
    %c20_353 = arith.constant 20 : index
    %c0_354 = arith.constant 0 : index
    %286 = vector.load %arg9[%c20_353, %c0_354] : memref<100x800xf32, #tpu.memory_space<vmem>>, vector<4x800xf32>
    tpu.vector_store %arg9[%c20_353, %c0_354], %285 {strides = array<i32>} : memref<100x800xf32, #tpu.memory_space<vmem>>, vector<4x800xf32>,
    %c0_355 = arith.constant 0 : index
    %c21_356 = arith.constant 21 : index
    %287 = vector.load %arg8[%c0_355, %c21_356] : memref<4x884xf32, #tpu.memory_space<vmem>>, vector<4x800xf32>
    %c24_357 = arith.constant 24 : index
    %c0_358 = arith.constant 0 : index
    %288 = vector.load %arg9[%c24_357, %c0_358] : memref<100x800xf32, #tpu.memory_space<vmem>>, vector<4x800xf32>
    tpu.vector_store %arg9[%c24_357, %c0_358], %287 {strides = array<i32>} : memref<100x800xf32, #tpu.memory_space<vmem>>, vector<4x800xf32>,
    %c0_359 = arith.constant 0 : index
    %c22_360 = arith.constant 22 : index
    %289 = vector.load %arg8[%c0_359, %c22_360] : memref<4x884xf32, #tpu.memory_space<vmem>>, vector<4x800xf32>
    %c28_361 = arith.constant 28 : index
    %c0_362 = arith.constant 0 : index
    %290 = vector.load %arg9[%c28_361, %c0_362] : memref<100x800xf32, #tpu.memory_space<vmem>>, vector<4x800xf32>
    tpu.vector_store %arg9[%c28_361, %c0_362], %289 {strides = array<i32>} : memref<100x800xf32, #tpu.memory_space<vmem>>, vector<4x800xf32>,
    %c0_363 = arith.constant 0 : index
    %c23_364 = arith.constant 23 : index
    %291 = vector.load %arg8[%c0_363, %c23_364] : memref<4x884xf32, #tpu.memory_space<vmem>>, vector<4x800xf32>
    %c32_365 = arith.constant 32 : index
    %c0_366 = arith.constant 0 : index
    %292 = vector.load %arg9[%c32_365, %c0_366] : memref<100x800xf32, #tpu.memory_space<vmem>>, vector<4x800xf32>
    tpu.vector_store %arg9[%c32_365, %c0_366], %291 {strides = array<i32>} : memref<100x800xf32, #tpu.memory_space<vmem>>, vector<4x800xf32>,
    %c0_367 = arith.constant 0 : index
    %c24_368 = arith.constant 24 : index
    %293 = vector.load %arg8[%c0_367, %c24_368] : memref<4x884xf32, #tpu.memory_space<vmem>>, vector<4x800xf32>
    %c36_369 = arith.constant 36 : index
    %c0_370 = arith.constant 0 : index
    %294 = vector.load %arg9[%c36_369, %c0_370] : memref<100x800xf32, #tpu.memory_space<vmem>>, vector<4x800xf32>
    tpu.vector_store %arg9[%c36_369, %c0_370], %293 {strides = array<i32>} : memref<100x800xf32, #tpu.memory_space<vmem>>, vector<4x800xf32>,
    %c0_371 = arith.constant 0 : index
    %c40_372 = arith.constant 40 : index
    %295 = vector.load %arg8[%c0_371, %c40_372] : memref<4x884xf32, #tpu.memory_space<vmem>>, vector<4x800xf32>
    %c40_373 = arith.constant 40 : index
    %c0_374 = arith.constant 0 : index
    %296 = vector.load %arg9[%c40_373, %c0_374] : memref<100x800xf32, #tpu.memory_space<vmem>>, vector<4x800xf32>
    tpu.vector_store %arg9[%c40_373, %c0_374], %295 {strides = array<i32>} : memref<100x800xf32, #tpu.memory_space<vmem>>, vector<4x800xf32>,
    %c0_375 = arith.constant 0 : index
    %c41_376 = arith.constant 41 : index
    %297 = vector.load %arg8[%c0_375, %c41_376] : memref<4x884xf32, #tpu.memory_space<vmem>>, vector<4x800xf32>
    %c44_377 = arith.constant 44 : index
    %c0_378 = arith.constant 0 : index
    %298 = vector.load %arg9[%c44_377, %c0_378] : memref<100x800xf32, #tpu.memory_space<vmem>>, vector<4x800xf32>
    tpu.vector_store %arg9[%c44_377, %c0_378], %297 {strides = array<i32>} : memref<100x800xf32, #tpu.memory_space<vmem>>, vector<4x800xf32>,
    %c0_379 = arith.constant 0 : index
    %c42_380 = arith.constant 42 : index
    %299 = vector.load %arg8[%c0_379, %c42_380] : memref<4x884xf32, #tpu.memory_space<vmem>>, vector<4x800xf32>
    %c48_381 = arith.constant 48 : index
    %c0_382 = arith.constant 0 : index
    %300 = vector.load %arg9[%c48_381, %c0_382] : memref<100x800xf32, #tpu.memory_space<vmem>>, vector<4x800xf32>
    tpu.vector_store %arg9[%c48_381, %c0_382], %299 {strides = array<i32>} : memref<100x800xf32, #tpu.memory_space<vmem>>, vector<4x800xf32>,
    %c0_383 = arith.constant 0 : index
    %c43_384 = arith.constant 43 : index
    %301 = vector.load %arg8[%c0_383, %c43_384] : memref<4x884xf32, #tpu.memory_space<vmem>>, vector<4x800xf32>
    %c52_385 = arith.constant 52 : index
    %c0_386 = arith.constant 0 : index
    %302 = vector.load %arg9[%c52_385, %c0_386] : memref<100x800xf32, #tpu.memory_space<vmem>>, vector<4x800xf32>
    tpu.vector_store %arg9[%c52_385, %c0_386], %301 {strides = array<i32>} : memref<100x800xf32, #tpu.memory_space<vmem>>, vector<4x800xf32>,
    %c0_387 = arith.constant 0 : index
    %c44_388 = arith.constant 44 : index
    %303 = vector.load %arg8[%c0_387, %c44_388] : memref<4x884xf32, #tpu.memory_space<vmem>>, vector<4x800xf32>
    %c56_389 = arith.constant 56 : index
    %c0_390 = arith.constant 0 : index
    %304 = vector.load %arg9[%c56_389, %c0_390] : memref<100x800xf32, #tpu.memory_space<vmem>>, vector<4x800xf32>
    tpu.vector_store %arg9[%c56_389, %c0_390], %303 {strides = array<i32>} : memref<100x800xf32, #tpu.memory_space<vmem>>, vector<4x800xf32>,
    %c0_391 = arith.constant 0 : index
    %c60_392 = arith.constant 60 : index
    %305 = vector.load %arg8[%c0_391, %c60_392] : memref<4x884xf32, #tpu.memory_space<vmem>>, vector<4x800xf32>
    %c60_393 = arith.constant 60 : index
    %c0_394 = arith.constant 0 : index
    %306 = vector.load %arg9[%c60_393, %c0_394] : memref<100x800xf32, #tpu.memory_space<vmem>>, vector<4x800xf32>
    tpu.vector_store %arg9[%c60_393, %c0_394], %305 {strides = array<i32>} : memref<100x800xf32, #tpu.memory_space<vmem>>, vector<4x800xf32>,
    %c0_395 = arith.constant 0 : index
    %c61_396 = arith.constant 61 : index
    %307 = vector.load %arg8[%c0_395, %c61_396] : memref<4x884xf32, #tpu.memory_space<vmem>>, vector<4x800xf32>
    %c64_397 = arith.constant 64 : index
    %c0_398 = arith.constant 0 : index
    %308 = vector.load %arg9[%c64_397, %c0_398] : memref<100x800xf32, #tpu.memory_space<vmem>>, vector<4x800xf32>
    tpu.vector_store %arg9[%c64_397, %c0_398], %307 {strides = array<i32>} : memref<100x800xf32, #tpu.memory_space<vmem>>, vector<4x800xf32>,
    %c0_399 = arith.constant 0 : index
    %c62_400 = arith.constant 62 : index
    %309 = vector.load %arg8[%c0_399, %c62_400] : memref<4x884xf32, #tpu.memory_space<vmem>>, vector<4x800xf32>
    %c68_401 = arith.constant 68 : index
    %c0_402 = arith.constant 0 : index
    %310 = vector.load %arg9[%c68_401, %c0_402] : memref<100x800xf32, #tpu.memory_space<vmem>>, vector<4x800xf32>
    tpu.vector_store %arg9[%c68_401, %c0_402], %309 {strides = array<i32>} : memref<100x800xf32, #tpu.memory_space<vmem>>, vector<4x800xf32>,
    %c0_403 = arith.constant 0 : index
    %c63_404 = arith.constant 63 : index
    %311 = vector.load %arg8[%c0_403, %c63_404] : memref<4x884xf32, #tpu.memory_space<vmem>>, vector<4x800xf32>
    %c72_405 = arith.constant 72 : index
    %c0_406 = arith.constant 0 : index
    %312 = vector.load %arg9[%c72_405, %c0_406] : memref<100x800xf32, #tpu.memory_space<vmem>>, vector<4x800xf32>
    tpu.vector_store %arg9[%c72_405, %c0_406], %311 {strides = array<i32>} : memref<100x800xf32, #tpu.memory_space<vmem>>, vector<4x800xf32>,
    %c0_407 = arith.constant 0 : index
    %c64_408 = arith.constant 64 : index
    %313 = vector.load %arg8[%c0_407, %c64_408] : memref<4x884xf32, #tpu.memory_space<vmem>>, vector<4x800xf32>
    %c76_409 = arith.constant 76 : index
    %c0_410 = arith.constant 0 : index
    %314 = vector.load %arg9[%c76_409, %c0_410] : memref<100x800xf32, #tpu.memory_space<vmem>>, vector<4x800xf32>
    tpu.vector_store %arg9[%c76_409, %c0_410], %313 {strides = array<i32>} : memref<100x800xf32, #tpu.memory_space<vmem>>, vector<4x800xf32>,
    %c0_411 = arith.constant 0 : index
    %c80_412 = arith.constant 80 : index
    %315 = vector.load %arg8[%c0_411, %c80_412] : memref<4x884xf32, #tpu.memory_space<vmem>>, vector<4x800xf32>
    %c80_413 = arith.constant 80 : index
    %c0_414 = arith.constant 0 : index
    %316 = vector.load %arg9[%c80_413, %c0_414] : memref<100x800xf32, #tpu.memory_space<vmem>>, vector<4x800xf32>
    tpu.vector_store %arg9[%c80_413, %c0_414], %315 {strides = array<i32>} : memref<100x800xf32, #tpu.memory_space<vmem>>, vector<4x800xf32>,
    %c0_415 = arith.constant 0 : index
    %c81_416 = arith.constant 81 : index
    %317 = vector.load %arg8[%c0_415, %c81_416] : memref<4x884xf32, #tpu.memory_space<vmem>>, vector<4x800xf32>
    %c84_417 = arith.constant 84 : index
    %c0_418 = arith.constant 0 : index
    %318 = vector.load %arg9[%c84_417, %c0_418] : memref<100x800xf32, #tpu.memory_space<vmem>>, vector<4x800xf32>
    tpu.vector_store %arg9[%c84_417, %c0_418], %317 {strides = array<i32>} : memref<100x800xf32, #tpu.memory_space<vmem>>, vector<4x800xf32>,
    %c0_419 = arith.constant 0 : index
    %c82_420 = arith.constant 82 : index
    %319 = vector.load %arg8[%c0_419, %c82_420] : memref<4x884xf32, #tpu.memory_space<vmem>>, vector<4x800xf32>
    %c88_421 = arith.constant 88 : index
    %c0_422 = arith.constant 0 : index
    %320 = vector.load %arg9[%c88_421, %c0_422] : memref<100x800xf32, #tpu.memory_space<vmem>>, vector<4x800xf32>
    tpu.vector_store %arg9[%c88_421, %c0_422], %319 {strides = array<i32>} : memref<100x800xf32, #tpu.memory_space<vmem>>, vector<4x800xf32>,
    %c0_423 = arith.constant 0 : index
    %c83_424 = arith.constant 83 : index
    %321 = vector.load %arg8[%c0_423, %c83_424] : memref<4x884xf32, #tpu.memory_space<vmem>>, vector<4x800xf32>
    %c92_425 = arith.constant 92 : index
    %c0_426 = arith.constant 0 : index
    %322 = vector.load %arg9[%c92_425, %c0_426] : memref<100x800xf32, #tpu.memory_space<vmem>>, vector<4x800xf32>
    tpu.vector_store %arg9[%c92_425, %c0_426], %321 {strides = array<i32>} : memref<100x800xf32, #tpu.memory_space<vmem>>, vector<4x800xf32>,
    %c0_427 = arith.constant 0 : index
    %c84_428 = arith.constant 84 : index
    %323 = vector.load %arg8[%c0_427, %c84_428] : memref<4x884xf32, #tpu.memory_space<vmem>>, vector<4x800xf32>
    %c96_429 = arith.constant 96 : index
    %c0_430 = arith.constant 0 : index
    %324 = vector.load %arg9[%c96_429, %c0_430] : memref<100x800xf32, #tpu.memory_space<vmem>>, vector<4x800xf32>
    tpu.vector_store %arg9[%c96_429, %c0_430], %323 {strides = array<i32>} : memref<100x800xf32, #tpu.memory_space<vmem>>, vector<4x800xf32>,
    %c3_431 = arith.constant 3 : index
    %c0_432 = arith.constant 0 : index
    %c0_433 = arith.constant 0 : index
    %325 = vector.load %arg2[%c3_431, %c0_432, %c0_433] : memref<4x4x100xf32, #tpu.memory_space<vmem>>, vector<1x4x100xf32>
    %326 = vector.shape_cast %325 : vector<1x4x100xf32> to vector<4x100xf32>
    %c0_434 = arith.constant 0 : index
    %c0_435 = arith.constant 0 : index
    %327 = vector.load %arg9[%c0_434, %c0_435] : memref<100x800xf32, #tpu.memory_space<vmem>>, vector<100x800xf32>
    %cst_436 = arith.constant dense<0.000000e+00> : vector<4x800xf32>
    %328 = tpu.matmul %326, %327, %cst_436 {dimension_numbers = #tpu.dot_dimension_numbers<[1], [0], [0], [1], [0, 0, 1, 1], [], []>} : vector<4x100xf32>, vector<100x800xf32>, vector<4x800xf32> -> vector<4x800xf32>
    %329 = vector.broadcast %0 : vector<1x800xf32> to vector<4x800xf32>
    %330 = arith.mulf %328, %329 : vector<4x800xf32>
    %cst_437 = arith.constant dense<0.000000e+00> : vector<4xf32>
    %331 = vector.multi_reduction <add>, %330, %cst_437 [1] : vector<4x800xf32> to vector<4xf32>
    %332 = vector.shape_cast %331 : vector<4xf32> to vector<4x1xf32>
    %cst_438 = arith.constant 0.001953125 : f32
    %333 = vector.broadcast %cst_438 : f32 to vector<4x1xf32>
    %334 = arith.mulf %332, %333 : vector<4x1xf32>
    %335 = vector.broadcast %334 : vector<4x1xf32> to vector<4x800xf32>
    %336 = arith.subf %328, %335 : vector<4x800xf32>
    %337 = vector.broadcast %0 : vector<1x800xf32> to vector<4x800xf32>
    %338 = arith.mulf %336, %337 : vector<4x800xf32>
    %339 = arith.mulf %338, %338 : vector<4x800xf32>
    %cst_439 = arith.constant dense<0.000000e+00> : vector<4xf32>
    %340 = vector.multi_reduction <add>, %339, %cst_439 [1] : vector<4x800xf32> to vector<4xf32>
    %341 = vector.shape_cast %340 : vector<4xf32> to vector<4x1xf32>
    %cst_440 = arith.constant 0.001953125 : f32
    %342 = vector.broadcast %cst_440 : f32 to vector<4x1xf32>
    %343 = arith.mulf %341, %342 : vector<4x1xf32>
    %cst_441 = arith.constant 9.99999974E-6 : f32
    %344 = vector.broadcast %cst_441 : f32 to vector<4x1xf32>
    %345 = arith.addf %343, %344 : vector<4x1xf32>
    %346 = math.rsqrt %345 : vector<4x1xf32>
    %347 = vector.broadcast %346 : vector<4x1xf32> to vector<4x800xf32>
    %348 = arith.mulf %338, %347 : vector<4x800xf32>
    %c3_442 = arith.constant 3 : index
    %c0_443 = arith.constant 0 : index
    %c0_444 = arith.constant 0 : index
    %349 = vector.load %arg3[%c3_442, %c0_443, %c0_444] : memref<4x4x1xf32, #tpu.memory_space<vmem>>, vector<1x4x1xf32>
    %350 = vector.shape_cast %349 : vector<1x4x1xf32> to vector<4x1xf32>
    %351 = vector.broadcast %350 : vector<4x1xf32> to vector<4x800xf32>
    %352 = arith.mulf %348, %351 : vector<4x800xf32>
    %c3_445 = arith.constant 3 : index
    %c0_446 = arith.constant 0 : index
    %c0_447 = arith.constant 0 : index
    %353 = vector.load %arg4[%c3_445, %c0_446, %c0_447] : memref<4x4x1xf32, #tpu.memory_space<vmem>>, vector<1x4x1xf32>
    %354 = vector.shape_cast %353 : vector<1x4x1xf32> to vector<4x1xf32>
    %355 = vector.broadcast %354 : vector<4x1xf32> to vector<4x800xf32>
    %356 = arith.addf %352, %355 : vector<4x800xf32>
    %cst_448 = arith.constant 0.000000e+00 : f32
    %357 = vector.broadcast %cst_448 : f32 to vector<4x800xf32>
    %358 = arith.cmpf oge, %356, %357 : vector<4x800xf32>
    %cst_449 = arith.constant 0.00999999977 : f32
    %359 = vector.broadcast %cst_449 : f32 to vector<4x800xf32>
    %360 = arith.mulf %359, %356 : vector<4x800xf32>
    %361 = arith.select %358, %356, %360 : vector<4x800xi1>, vector<4x800xf32>
    %362 = vector.broadcast %0 : vector<1x800xf32> to vector<4x800xf32>
    %363 = arith.mulf %361, %362 : vector<4x800xf32>
    %c0_450 = arith.constant 0 : index
    %c42_451 = arith.constant 42 : index
    %364 = vector.load %arg8[%c0_450, %c42_451] : memref<4x884xf32, #tpu.memory_space<vmem>>, vector<4x800xf32>
    tpu.vector_store %arg8[%c0_450, %c42_451], %363 {strides = array<i32>} : memref<4x884xf32, #tpu.memory_space<vmem>>, vector<4x800xf32>,
    %c0_452 = arith.constant 0 : index
    %c0_453 = arith.constant 0 : index
    %365 = vector.load %arg8[%c0_452, %c0_453] : memref<4x884xf32, #tpu.memory_space<vmem>>, vector<4x800xf32>
    %c0_454 = arith.constant 0 : index
    %c0_455 = arith.constant 0 : index
    %366 = vector.load %arg9[%c0_454, %c0_455] : memref<100x800xf32, #tpu.memory_space<vmem>>, vector<4x800xf32>
    tpu.vector_store %arg9[%c0_454, %c0_455], %365 {strides = array<i32>} : memref<100x800xf32, #tpu.memory_space<vmem>>, vector<4x800xf32>,
    %c0_456 = arith.constant 0 : index
    %c1_457 = arith.constant 1 : index
    %367 = vector.load %arg8[%c0_456, %c1_457] : memref<4x884xf32, #tpu.memory_space<vmem>>, vector<4x800xf32>
    %c4_458 = arith.constant 4 : index
    %c0_459 = arith.constant 0 : index
    %368 = vector.load %arg9[%c4_458, %c0_459] : memref<100x800xf32, #tpu.memory_space<vmem>>, vector<4x800xf32>
    tpu.vector_store %arg9[%c4_458, %c0_459], %367 {strides = array<i32>} : memref<100x800xf32, #tpu.memory_space<vmem>>, vector<4x800xf32>,
    %c0_460 = arith.constant 0 : index
    %c2_461 = arith.constant 2 : index
    %369 = vector.load %arg8[%c0_460, %c2_461] : memref<4x884xf32, #tpu.memory_space<vmem>>, vector<4x800xf32>
    %c8_462 = arith.constant 8 : index
    %c0_463 = arith.constant 0 : index
    %370 = vector.load %arg9[%c8_462, %c0_463] : memref<100x800xf32, #tpu.memory_space<vmem>>, vector<4x800xf32>
    tpu.vector_store %arg9[%c8_462, %c0_463], %369 {strides = array<i32>} : memref<100x800xf32, #tpu.memory_space<vmem>>, vector<4x800xf32>,
    %c0_464 = arith.constant 0 : index
    %c3_465 = arith.constant 3 : index
    %371 = vector.load %arg8[%c0_464, %c3_465] : memref<4x884xf32, #tpu.memory_space<vmem>>, vector<4x800xf32>
    %c12_466 = arith.constant 12 : index
    %c0_467 = arith.constant 0 : index
    %372 = vector.load %arg9[%c12_466, %c0_467] : memref<100x800xf32, #tpu.memory_space<vmem>>, vector<4x800xf32>
    tpu.vector_store %arg9[%c12_466, %c0_467], %371 {strides = array<i32>} : memref<100x800xf32, #tpu.memory_space<vmem>>, vector<4x800xf32>,
    %c0_468 = arith.constant 0 : index
    %c4_469 = arith.constant 4 : index
    %373 = vector.load %arg8[%c0_468, %c4_469] : memref<4x884xf32, #tpu.memory_space<vmem>>, vector<4x800xf32>
    %c16_470 = arith.constant 16 : index
    %c0_471 = arith.constant 0 : index
    %374 = vector.load %arg9[%c16_470, %c0_471] : memref<100x800xf32, #tpu.memory_space<vmem>>, vector<4x800xf32>
    tpu.vector_store %arg9[%c16_470, %c0_471], %373 {strides = array<i32>} : memref<100x800xf32, #tpu.memory_space<vmem>>, vector<4x800xf32>,
    %c0_472 = arith.constant 0 : index
    %c20_473 = arith.constant 20 : index
    %375 = vector.load %arg8[%c0_472, %c20_473] : memref<4x884xf32, #tpu.memory_space<vmem>>, vector<4x800xf32>
    %c20_474 = arith.constant 20 : index
    %c0_475 = arith.constant 0 : index
    %376 = vector.load %arg9[%c20_474, %c0_475] : memref<100x800xf32, #tpu.memory_space<vmem>>, vector<4x800xf32>
    tpu.vector_store %arg9[%c20_474, %c0_475], %375 {strides = array<i32>} : memref<100x800xf32, #tpu.memory_space<vmem>>, vector<4x800xf32>,
    %c0_476 = arith.constant 0 : index
    %c21_477 = arith.constant 21 : index
    %377 = vector.load %arg8[%c0_476, %c21_477] : memref<4x884xf32, #tpu.memory_space<vmem>>, vector<4x800xf32>
    %c24_478 = arith.constant 24 : index
    %c0_479 = arith.constant 0 : index
    %378 = vector.load %arg9[%c24_478, %c0_479] : memref<100x800xf32, #tpu.memory_space<vmem>>, vector<4x800xf32>
    tpu.vector_store %arg9[%c24_478, %c0_479], %377 {strides = array<i32>} : memref<100x800xf32, #tpu.memory_space<vmem>>, vector<4x800xf32>,
    %c0_480 = arith.constant 0 : index
    %c22_481 = arith.constant 22 : index
    %379 = vector.load %arg8[%c0_480, %c22_481] : memref<4x884xf32, #tpu.memory_space<vmem>>, vector<4x800xf32>
    %c28_482 = arith.constant 28 : index
    %c0_483 = arith.constant 0 : index
    %380 = vector.load %arg9[%c28_482, %c0_483] : memref<100x800xf32, #tpu.memory_space<vmem>>, vector<4x800xf32>
    tpu.vector_store %arg9[%c28_482, %c0_483], %379 {strides = array<i32>} : memref<100x800xf32, #tpu.memory_space<vmem>>, vector<4x800xf32>,
    %c0_484 = arith.constant 0 : index
    %c23_485 = arith.constant 23 : index
    %381 = vector.load %arg8[%c0_484, %c23_485] : memref<4x884xf32, #tpu.memory_space<vmem>>, vector<4x800xf32>
    %c32_486 = arith.constant 32 : index
    %c0_487 = arith.constant 0 : index
    %382 = vector.load %arg9[%c32_486, %c0_487] : memref<100x800xf32, #tpu.memory_space<vmem>>, vector<4x800xf32>
    tpu.vector_store %arg9[%c32_486, %c0_487], %381 {strides = array<i32>} : memref<100x800xf32, #tpu.memory_space<vmem>>, vector<4x800xf32>,
    %c0_488 = arith.constant 0 : index
    %c24_489 = arith.constant 24 : index
    %383 = vector.load %arg8[%c0_488, %c24_489] : memref<4x884xf32, #tpu.memory_space<vmem>>, vector<4x800xf32>
    %c36_490 = arith.constant 36 : index
    %c0_491 = arith.constant 0 : index
    %384 = vector.load %arg9[%c36_490, %c0_491] : memref<100x800xf32, #tpu.memory_space<vmem>>, vector<4x800xf32>
    tpu.vector_store %arg9[%c36_490, %c0_491], %383 {strides = array<i32>} : memref<100x800xf32, #tpu.memory_space<vmem>>, vector<4x800xf32>,
    %c0_492 = arith.constant 0 : index
    %c40_493 = arith.constant 40 : index
    %385 = vector.load %arg8[%c0_492, %c40_493] : memref<4x884xf32, #tpu.memory_space<vmem>>, vector<4x800xf32>
    %c40_494 = arith.constant 40 : index
    %c0_495 = arith.constant 0 : index
    %386 = vector.load %arg9[%c40_494, %c0_495] : memref<100x800xf32, #tpu.memory_space<vmem>>, vector<4x800xf32>
    tpu.vector_store %arg9[%c40_494, %c0_495], %385 {strides = array<i32>} : memref<100x800xf32, #tpu.memory_space<vmem>>, vector<4x800xf32>,
    %c0_496 = arith.constant 0 : index
    %c41_497 = arith.constant 41 : index
    %387 = vector.load %arg8[%c0_496, %c41_497] : memref<4x884xf32, #tpu.memory_space<vmem>>, vector<4x800xf32>
    %c44_498 = arith.constant 44 : index
    %c0_499 = arith.constant 0 : index
    %388 = vector.load %arg9[%c44_498, %c0_499] : memref<100x800xf32, #tpu.memory_space<vmem>>, vector<4x800xf32>
    tpu.vector_store %arg9[%c44_498, %c0_499], %387 {strides = array<i32>} : memref<100x800xf32, #tpu.memory_space<vmem>>, vector<4x800xf32>,
    %c0_500 = arith.constant 0 : index
    %c42_501 = arith.constant 42 : index
    %389 = vector.load %arg8[%c0_500, %c42_501] : memref<4x884xf32, #tpu.memory_space<vmem>>, vector<4x800xf32>
    %c48_502 = arith.constant 48 : index
    %c0_503 = arith.constant 0 : index
    %390 = vector.load %arg9[%c48_502, %c0_503] : memref<100x800xf32, #tpu.memory_space<vmem>>, vector<4x800xf32>
    tpu.vector_store %arg9[%c48_502, %c0_503], %389 {strides = array<i32>} : memref<100x800xf32, #tpu.memory_space<vmem>>, vector<4x800xf32>,
    %c0_504 = arith.constant 0 : index
    %c43_505 = arith.constant 43 : index
    %391 = vector.load %arg8[%c0_504, %c43_505] : memref<4x884xf32, #tpu.memory_space<vmem>>, vector<4x800xf32>
    %c52_506 = arith.constant 52 : index
    %c0_507 = arith.constant 0 : index
    %392 = vector.load %arg9[%c52_506, %c0_507] : memref<100x800xf32, #tpu.memory_space<vmem>>, vector<4x800xf32>
    tpu.vector_store %arg9[%c52_506, %c0_507], %391 {strides = array<i32>} : memref<100x800xf32, #tpu.memory_space<vmem>>, vector<4x800xf32>,
    %c0_508 = arith.constant 0 : index
    %c44_509 = arith.constant 44 : index
    %393 = vector.load %arg8[%c0_508, %c44_509] : memref<4x884xf32, #tpu.memory_space<vmem>>, vector<4x800xf32>
    %c56_510 = arith.constant 56 : index
    %c0_511 = arith.constant 0 : index
    %394 = vector.load %arg9[%c56_510, %c0_511] : memref<100x800xf32, #tpu.memory_space<vmem>>, vector<4x800xf32>
    tpu.vector_store %arg9[%c56_510, %c0_511], %393 {strides = array<i32>} : memref<100x800xf32, #tpu.memory_space<vmem>>, vector<4x800xf32>,
    %c0_512 = arith.constant 0 : index
    %c60_513 = arith.constant 60 : index
    %395 = vector.load %arg8[%c0_512, %c60_513] : memref<4x884xf32, #tpu.memory_space<vmem>>, vector<4x800xf32>
    %c60_514 = arith.constant 60 : index
    %c0_515 = arith.constant 0 : index
    %396 = vector.load %arg9[%c60_514, %c0_515] : memref<100x800xf32, #tpu.memory_space<vmem>>, vector<4x800xf32>
    tpu.vector_store %arg9[%c60_514, %c0_515], %395 {strides = array<i32>} : memref<100x800xf32, #tpu.memory_space<vmem>>, vector<4x800xf32>,
    %c0_516 = arith.constant 0 : index
    %c61_517 = arith.constant 61 : index
    %397 = vector.load %arg8[%c0_516, %c61_517] : memref<4x884xf32, #tpu.memory_space<vmem>>, vector<4x800xf32>
    %c64_518 = arith.constant 64 : index
    %c0_519 = arith.constant 0 : index
    %398 = vector.load %arg9[%c64_518, %c0_519] : memref<100x800xf32, #tpu.memory_space<vmem>>, vector<4x800xf32>
    tpu.vector_store %arg9[%c64_518, %c0_519], %397 {strides = array<i32>} : memref<100x800xf32, #tpu.memory_space<vmem>>, vector<4x800xf32>,
    %c0_520 = arith.constant 0 : index
    %c62_521 = arith.constant 62 : index
    %399 = vector.load %arg8[%c0_520, %c62_521] : memref<4x884xf32, #tpu.memory_space<vmem>>, vector<4x800xf32>
    %c68_522 = arith.constant 68 : index
    %c0_523 = arith.constant 0 : index
    %400 = vector.load %arg9[%c68_522, %c0_523] : memref<100x800xf32, #tpu.memory_space<vmem>>, vector<4x800xf32>
    tpu.vector_store %arg9[%c68_522, %c0_523], %399 {strides = array<i32>} : memref<100x800xf32, #tpu.memory_space<vmem>>, vector<4x800xf32>,
    %c0_524 = arith.constant 0 : index
    %c63_525 = arith.constant 63 : index
    %401 = vector.load %arg8[%c0_524, %c63_525] : memref<4x884xf32, #tpu.memory_space<vmem>>, vector<4x800xf32>
    %c72_526 = arith.constant 72 : index
    %c0_527 = arith.constant 0 : index
    %402 = vector.load %arg9[%c72_526, %c0_527] : memref<100x800xf32, #tpu.memory_space<vmem>>, vector<4x800xf32>
    tpu.vector_store %arg9[%c72_526, %c0_527], %401 {strides = array<i32>} : memref<100x800xf32, #tpu.memory_space<vmem>>, vector<4x800xf32>,
    %c0_528 = arith.constant 0 : index
    %c64_529 = arith.constant 64 : index
    %403 = vector.load %arg8[%c0_528, %c64_529] : memref<4x884xf32, #tpu.memory_space<vmem>>, vector<4x800xf32>
    %c76_530 = arith.constant 76 : index
    %c0_531 = arith.constant 0 : index
    %404 = vector.load %arg9[%c76_530, %c0_531] : memref<100x800xf32, #tpu.memory_space<vmem>>, vector<4x800xf32>
    tpu.vector_store %arg9[%c76_530, %c0_531], %403 {strides = array<i32>} : memref<100x800xf32, #tpu.memory_space<vmem>>, vector<4x800xf32>,
    %c0_532 = arith.constant 0 : index
    %c80_533 = arith.constant 80 : index
    %405 = vector.load %arg8[%c0_532, %c80_533] : memref<4x884xf32, #tpu.memory_space<vmem>>, vector<4x800xf32>
    %c80_534 = arith.constant 80 : index
    %c0_535 = arith.constant 0 : index
    %406 = vector.load %arg9[%c80_534, %c0_535] : memref<100x800xf32, #tpu.memory_space<vmem>>, vector<4x800xf32>
    tpu.vector_store %arg9[%c80_534, %c0_535], %405 {strides = array<i32>} : memref<100x800xf32, #tpu.memory_space<vmem>>, vector<4x800xf32>,
    %c0_536 = arith.constant 0 : index
    %c81_537 = arith.constant 81 : index
    %407 = vector.load %arg8[%c0_536, %c81_537] : memref<4x884xf32, #tpu.memory_space<vmem>>, vector<4x800xf32>
    %c84_538 = arith.constant 84 : index
    %c0_539 = arith.constant 0 : index
    %408 = vector.load %arg9[%c84_538, %c0_539] : memref<100x800xf32, #tpu.memory_space<vmem>>, vector<4x800xf32>
    tpu.vector_store %arg9[%c84_538, %c0_539], %407 {strides = array<i32>} : memref<100x800xf32, #tpu.memory_space<vmem>>, vector<4x800xf32>,
    %c0_540 = arith.constant 0 : index
    %c82_541 = arith.constant 82 : index
    %409 = vector.load %arg8[%c0_540, %c82_541] : memref<4x884xf32, #tpu.memory_space<vmem>>, vector<4x800xf32>
    %c88_542 = arith.constant 88 : index
    %c0_543 = arith.constant 0 : index
    %410 = vector.load %arg9[%c88_542, %c0_543] : memref<100x800xf32, #tpu.memory_space<vmem>>, vector<4x800xf32>
    tpu.vector_store %arg9[%c88_542, %c0_543], %409 {strides = array<i32>} : memref<100x800xf32, #tpu.memory_space<vmem>>, vector<4x800xf32>,
    %c0_544 = arith.constant 0 : index
    %c83_545 = arith.constant 83 : index
    %411 = vector.load %arg8[%c0_544, %c83_545] : memref<4x884xf32, #tpu.memory_space<vmem>>, vector<4x800xf32>
    %c92_546 = arith.constant 92 : index
    %c0_547 = arith.constant 0 : index
    %412 = vector.load %arg9[%c92_546, %c0_547] : memref<100x800xf32, #tpu.memory_space<vmem>>, vector<4x800xf32>
    tpu.vector_store %arg9[%c92_546, %c0_547], %411 {strides = array<i32>} : memref<100x800xf32, #tpu.memory_space<vmem>>, vector<4x800xf32>,
    %c0_548 = arith.constant 0 : index
    %c84_549 = arith.constant 84 : index
    %413 = vector.load %arg8[%c0_548, %c84_549] : memref<4x884xf32, #tpu.memory_space<vmem>>, vector<4x800xf32>
    %c96_550 = arith.constant 96 : index
    %c0_551 = arith.constant 0 : index
    %414 = vector.load %arg9[%c96_550, %c0_551] : memref<100x800xf32, #tpu.memory_space<vmem>>, vector<4x800xf32>
    tpu.vector_store %arg9[%c96_550, %c0_551], %413 {strides = array<i32>} : memref<100x800xf32, #tpu.memory_space<vmem>>, vector<4x800xf32>,
    %c0_552 = arith.constant 0 : index
    %c0_553 = arith.constant 0 : index
    %415 = vector.load %arg5[%c0_552, %c0_553] : memref<2x100xf32, #tpu.memory_space<vmem>>, vector<2x100xf32>
    %c0_554 = arith.constant 0 : index
    %c0_555 = arith.constant 0 : index
    %416 = vector.load %arg9[%c0_554, %c0_555] : memref<100x800xf32, #tpu.memory_space<vmem>>, vector<100x800xf32>
    %cst_556 = arith.constant dense<0.000000e+00> : vector<2x800xf32>
    %417 = tpu.matmul %415, %416, %cst_556 {dimension_numbers = #tpu.dot_dimension_numbers<[1], [0], [0], [1], [0, 0, 1, 1], [], []>} : vector<2x100xf32>, vector<100x800xf32>, vector<2x800xf32> -> vector<2x800xf32>
    %c0_557 = arith.constant 0 : index
    %c0_558 = arith.constant 0 : index
    %418 = vector.load %arg6[%c0_557, %c0_558] : memref<2x1xf32, #tpu.memory_space<vmem>>, vector<2x1xf32>
    %419 = vector.broadcast %418 : vector<2x1xf32> to vector<2x800xf32>
    %420 = arith.addf %417, %419 : vector<2x800xf32>
    %421 = arith.negf %420 : vector<2x800xf32>
    %422 = math.exp %421 : vector<2x800xf32>
    %cst_559 = arith.constant 1.000000e+00 : f32
    %423 = vector.broadcast %cst_559 : f32 to vector<2x800xf32>
    %424 = arith.addf %423, %422 : vector<2x800xf32>
    %425 = arith.divf %423, %424 : vector<2x800xf32>
    %c0_560 = arith.constant 0 : index
    %c0_561 = arith.constant 0 : index
    %426 = vector.load %arg7[%c0_560, %c0_561] : memref<2x800xf32, #tpu.memory_space<vmem>>, vector<2x800xf32>
    tpu.vector_store %arg7[%c0_560, %c0_561], %425 {strides = array<i32>} : memref<2x800xf32, #tpu.memory_space<vmem>>, vector<2x800xf32>,
    return
  }
}

</mosaic_0001>

<llo_original>
// kernel: tile.6
$region0: #{tile.6}
  #allocation0 [shape = 's32[1]{0}', space=sflag, size = 0x4, scoped, tag = 'scoped memory for tile.6']
  %s0 = inlined_call_operand.vmem [shape: f32[20,20], index: 0, kind: input, shape index: {}]
  %s1 = inlined_call_operand.vmem [shape: f32[2,1,1,20,1,20], index: 1, kind: output, shape index: {}]
  // Predicated region
  $region2: #{tile.6} parent=0 // pred_check
    _
  $region3: #{tile.6} parent=0 // pred_check_branch
    %3 = sbr.rel (0) target = $region5
  $region4: #{tile.6} parent=0 // pred_region
    _
  $region5: #{tile.6} parent=0 // pred_fallthru
    _
  %v4 = vld [vmem:[%s0] sm:$0xff]
  %5 = vst [vmem:[%s1] sm:$0xff] %v4
  %s6 = scalar_lea.vmem %s1, 24
  %7 = vst [vmem:[%s6] sm:$0xff] %v4
  %s8 = scalar_lea.vmem %s0, 8
  %v9 = vld [vmem:[%s8] sm:$0xff]
  %s10 = scalar_lea.vmem %s1, 8
  %11 = vst [vmem:[%s10] sm:$0xff] %v9
  %s12 = scalar_lea.vmem %s1, 32
  %13 = vst [vmem:[%s12] sm:$0xff] %v9
  %s14 = scalar_lea.vmem %s0, 16
  %v15 = vld [vmem:[%s14] sm:$0xff]
  %s16 = scalar_lea.vmem %s1, 16
  %17 = vst [vmem:[%s16] sm:$0xff] %v15
  %s18 = scalar_lea.vmem %s1, 40
  %19 = vst [vmem:[%s18] sm:$0xff] %v15

// kernel: tile.7
$region0: #{tile.7}
  %s0 = inlined_call_operand.vmem [shape: f32[2,1,1,20,1,20], index: 0, kind: input, shape index: {}]
  %s1 = inlined_call_operand.vmem [shape: f32[1,800], index: 1, kind: output, shape index: {}]
  $region1: #{tile.7} parent=0
    #allocation0 [shape = 'u8[28672]{0}', space=vmem, size = 0x7000, scoped, tag = 'scoped mem for output reshape']
    %s2 = smov 3
    %v3 = vld [vmem:[%s0] ss:$36 sm:%s2]
    %vm4 = vcmask 162816
    %5 = vst.msk [vmem:[#allocation0] ss:$40 sm:$0x3] %vm4, %v3
    %s6 = scalar_lea.vmem %s0, 19
    %v7 = vld [vmem:[%s6] sm:$0x1]
    %s8 = scalar_lea.vmem %s0, 19
    %v9 = vld [vmem:[%s8] sm:$0x1]
    %vm10 = vcmask 31744
    %v11 = vsel %vm10, %v9, %v7
    %12 = vrot.lane.b32.xlu0 %v11, 124
    %v13 = vpop.permute.xlu0 %12
    %vm14 = vcmask 130048
    %s15 = scalar_lea.vmem [#allocation0], 24
    %16 = vst.msk [vmem:[%s15] sm:$0x1] %vm14, %v13
    %vm17 = vcmask 1048544
    %s18 = scalar_lea.vmem [#allocation0], 16
    %19 = vst.msk [vmem:[%s18] sm:$0x1] %vm17, %v13
    %s20 = scalar_lea.vmem %s0, 6
    %s21 = smov 3
    %v22 = vld [vmem:[%s20] ss:$36 sm:%s21]
    %s23 = scalar_lea.vmem %s0, 6
    %s24 = smov 3
    %v25 = vld [vmem:[%s23] ss:$36 sm:%s24]
    %vm26 = vcmask 64512
    %v27 = vsel %vm26, %v25, %v22
    %28 = vrot.lane.b32.xlu0 %v27, 120
    %v29 = vpop.permute.xlu0 %28
    %vm30 = vcmask 97280
    %s31 = scalar_lea.vmem [#allocation0], 8
    %32 = vst.msk [vmem:[%s31] ss:$40 sm:$0x3] %vm30, %v29
    %vm33 = vcmask 1048512
    %34 = vst.msk [vmem:[#allocation0] ss:$40 sm:$0x3] %vm33, %v29
    %s35 = scalar_lea.vmem %s0, 29
    %v36 = vld [vmem:[%s35] sm:$0x1]
    %s37 = scalar_lea.vmem %s0, 29
    %v38 = vld [vmem:[%s37] sm:$0x1]
    %vm39 = vcmask 97280
    %v40 = vsel %vm39, %v38, %v36
    %41 = vrot.lane.b32.xlu0 %v40, 116
    %v42 = vpop.permute.xlu0 %41
    %vm43 = vcmask 64512
    %s44 = scalar_lea.vmem [#allocation0], 32
    %45 = vst.msk [vmem:[%s44] sm:$0x1] %vm43, %v42
    %vm46 = vcmask 1048480
    %s47 = scalar_lea.vmem [#allocation0], 24
    %48 = vst.msk [vmem:[%s47] sm:$0x1] %vm46, %v42
    %s49 = scalar_lea.vmem %s0, 12
    %v50 = vld [vmem:[%s49] sm:$0x1]
    %s51 = scalar_lea.vmem %s0, 12
    %v52 = vld [vmem:[%s51] sm:$0x1]
    %vm53 = vcmask 130048
    %v54 = vsel %vm53, %v52, %v50
    %55 = vrot.lane.b32.xlu0 %v54, 112
    %v56 = vpop.permute.xlu0 %55
    %vm57 = vcmask 31744
    %s58 = scalar_lea.vmem [#allocation0], 16
    %59 = vst.msk [vmem:[%s58] sm:$0x1] %vm57, %v56
    %vm60 = vcmask 1048448
    %s61 = scalar_lea.vmem [#allocation0], 8
    %62 = vst.msk [vmem:[%s61] sm:$0x1] %vm60, %v56
    %s63 = scalar_lea.vmem %s0, 35
    %v64 = vld [vmem:[%s63] sm:$0x1]
    %65 = vrot.lane.b32.xlu0 %v64, 108
    %v66 = vpop.permute.xlu0 %65
    %vm67 = vcmask 1048416
    %s68 = scalar_lea.vmem [#allocation0], 32
    %69 = vst.msk [vmem:[%s68] sm:$0x1] %vm67, %v66
    %s70 = scalar_lea.vmem %s0, 18
    %v71 = vld [vmem:[%s70] sm:$0x1]
    %72 = vrot.lane.b32.xlu0 %v71, 104
    %v73 = vpop.permute.xlu0 %72
    %vm74 = vcmask 1015616
    %s75 = scalar_lea.vmem [#allocation0], 16
    %76 = vst.msk [vmem:[%s75] sm:$0x1] %vm74, %v73
    %s77 = scalar_lea.vmem %s0, 5
    %s78 = smov 3
    %v79 = vld [vmem:[%s77] ss:$36 sm:%s78]
    %80 = vrot.lane.b32.xlu0 %v79, 100
    %v81 = vpop.permute.xlu0 %80
    %vm82 = vcmask 982816
    %83 = vst.msk [vmem:[#allocation0] ss:$40 sm:$0x3] %vm82, %v81
    %s84 = scalar_lea.vmem %s0, 28
    %v85 = vld [vmem:[%s84] sm:$0x1]
    %86 = vrot.lane.b32.xlu0 %v85, 96
    %v87 = vpop.permute.xlu0 %86
    %vm88 = vcmask 950016
    %s89 = scalar_lea.vmem [#allocation0], 24
    %90 = vst.msk [vmem:[%s89] sm:$0x1] %vm88, %v87
    %s91 = scalar_lea.vmem %s0, 11
    %v92 = vld [vmem:[%s91] sm:$0x1]
    %93 = vrot.lane.b32.xlu0 %v92, 92
    %v94 = vpop.permute.xlu0 %93
    %vm95 = vcmask 917216
    %s96 = scalar_lea.vmem [#allocation0], 8
    %97 = vst.msk [vmem:[%s96] sm:$0x1] %vm95, %v94
    %s98 = scalar_lea.vmem %s0, 34
    %v99 = vld [vmem:[%s98] sm:$0x1]
    %100 = vrot.lane.b32.xlu0 %v99, 88
    %v101 = vpop.permute.xlu0 %100
    %vm102 = vcmask 884416
    %s103 = scalar_lea.vmem [#allocation0], 32
    %104 = vst.msk [vmem:[%s103] sm:$0x1] %vm102, %v101
    %s105 = scalar_lea.vmem %s0, 17
    %v106 = vld [vmem:[%s105] sm:$0x1]
    %107 = vrot.lane.b32.xlu0 %v106, 84
    %v108 = vpop.permute.xlu0 %107
    %vm109 = vcmask 851616
    %s110 = scalar_lea.vmem [#allocation0], 16
    %111 = vst.msk [vmem:[%s110] sm:$0x1] %vm109, %v108
    %s112 = scalar_lea.vmem %s0, 4
    %s113 = smov 3
    %v114 = vld [vmem:[%s112] ss:$36 sm:%s113]
    %115 = vrot.lane.b32.xlu0 %v114, 80
    %v116 = vpop.permute.xlu0 %115
    %vm117 = vcmask 818816
    %118 = vst.msk [vmem:[#allocation0] ss:$40 sm:$0x3] %vm117, %v116
    %s119 = scalar_lea.vmem %s0, 27
    %v120 = vld [vmem:[%s119] sm:$0x1]
    %121 = vrot.lane.b32.xlu0 %v120, 76
    %v122 = vpop.permute.xlu0 %121
    %vm123 = vcmask 786016
    %s124 = scalar_lea.vmem [#allocation0], 24
    %125 = vst.msk [vmem:[%s124] sm:$0x1] %vm123, %v122
    %s126 = scalar_lea.vmem %s0, 10
    %v127 = vld [vmem:[%s126] sm:$0x1]
    %128 = vrot.lane.b32.xlu0 %v127, 72
    %v129 = vpop.permute.xlu0 %128
    %vm130 = vcmask 753216
    %s131 = scalar_lea.vmem [#allocation0], 8
    %132 = vst.msk [vmem:[%s131] sm:$0x1] %vm130, %v129
    %s133 = scalar_lea.vmem %s0, 33
    %v134 = vld [vmem:[%s133] sm:$0x1]
    %135 = vrot.lane.b32.xlu0 %v134, 68
    %v136 = vpop.permute.xlu0 %135
    %vm137 = vcmask 720416
    %s138 = scalar_lea.vmem [#allocation0], 32
    %139 = vst.msk [vmem:[%s138] sm:$0x1] %vm137, %v136
    %s140 = scalar_lea.vmem %s0, 16
    %v141 = vld [vmem:[%s140] sm:$0x1]
    %142 = vrot.lane.b32.xlu0 %v141, 64
    %v143 = vpop.permute.xlu0 %142
    %vm144 = vcmask 687616
    %s145 = scalar_lea.vmem [#allocation0], 16
    %146 = vst.msk [vmem:[%s145] sm:$0x1] %vm144, %v143
    %s147 = scalar_lea.vmem %s0, 3
    %s148 = smov 3
    %v149 = vld [vmem:[%s147] ss:$36 sm:%s148]
    %150 = vrot.lane.b32.xlu0 %v149, 60
    %v151 = vpop.permute.xlu0 %150
    %vm152 = vcmask 654816
    %153 = vst.msk [vmem:[#allocation0] ss:$40 sm:$0x3] %vm152, %v151
    %s154 = scalar_lea.vmem %s0, 26
    %v155 = vld [vmem:[%s154] sm:$0x1]
    %156 = vrot.lane.b32.xlu0 %v155, 56
    %v157 = vpop.permute.xlu0 %156
    %vm158 = vcmask 622016
    %s159 = scalar_lea.vmem [#allocation0], 24
    %160 = vst.msk [vmem:[%s159] sm:$0x1] %vm158, %v157
    %s161 = scalar_lea.vmem %s0, 9
    %v162 = vld [vmem:[%s161] sm:$0x1]
    %163 = vrot.lane.b32.xlu0 %v162, 52
    %v164 = vpop.permute.xlu0 %163
    %vm165 = vcmask 589216
    %s166 = scalar_lea.vmem [#allocation0], 8
    %167 = vst.msk [vmem:[%s166] sm:$0x1] %vm165, %v164
    %s168 = scalar_lea.vmem %s0, 32
    %v169 = vld [vmem:[%s168] sm:$0x1]
    %170 = vrot.lane.b32.xlu0 %v169, 48
    %v171 = vpop.permute.xlu0 %170
    %vm172 = vcmask 556416
    %s173 = scalar_lea.vmem [#allocation0], 32
    %174 = vst.msk [vmem:[%s173] sm:$0x1] %vm172, %v171
    %s175 = scalar_lea.vmem %s0, 15
    %v176 = vld [vmem:[%s175] sm:$0x1]
    %177 = vrot.lane.b32.xlu0 %v176, 44
    %v178 = vpop.permute.xlu0 %177
    %vm179 = vcmask 523616
    %s180 = scalar_lea.vmem [#allocation0], 16
    %181 = vst.msk [vmem:[%s180] sm:$0x1] %vm179, %v178
    %s182 = scalar_lea.vmem %s0, 2
    %s183 = smov 3
    %v184 = vld [vmem:[%s182] ss:$36 sm:%s183]
    %185 = vrot.lane.b32.xlu0 %v184, 40
    %v186 = vpop.permute.xlu0 %185
    %vm187 = vcmask 490816
    %188 = vst.msk [vmem:[#allocation0] ss:$40 sm:$0x3] %vm187, %v186
    %s189 = scalar_lea.vmem %s0, 25
    %v190 = vld [vmem:[%s189] sm:$0x1]
    %191 = vrot.lane.b32.xlu0 %v190, 36
    %v192 = vpop.permute.xlu0 %191
    %vm193 = vcmask 458016
    %s194 = scalar_lea.vmem [#allocation0], 24
    %195 = vst.msk [vmem:[%s194] sm:$0x1] %vm193, %v192
    %s196 = scalar_lea.vmem %s0, 8
    %v197 = vld [vmem:[%s196] sm:$0x1]
    %198 = vrot.lane.b32.xlu0 %v197, 32
    %v199 = vpop.permute.xlu0 %198
    %vm200 = vcmask 425216
    %s201 = scalar_lea.vmem [#allocation0], 8
    %202 = vst.msk [vmem:[%s201] sm:$0x1] %vm200, %v199
    %s203 = scalar_lea.vmem %s0, 31
    %v204 = vld [vmem:[%s203] sm:$0x1]
    %205 = vrot.lane.b32.xlu0 %v204, 28
    %v206 = vpop.permute.xlu0 %205
    %vm207 = vcmask 392416
    %s208 = scalar_lea.vmem [#allocation0], 32
    %209 = vst.msk [vmem:[%s208] sm:$0x1] %vm207, %v206
    %s210 = scalar_lea.vmem %s0, 14
    %v211 = vld [vmem:[%s210] sm:$0x1]
    %212 = vrot.lane.b32.xlu0 %v211, 24
    %v213 = vpop.permute.xlu0 %212
    %vm214 = vcmask 359616
    %s215 = scalar_lea.vmem [#allocation0], 16
    %216 = vst.msk [vmem:[%s215] sm:$0x1] %vm214, %v213
    %s217 = scalar_lea.vmem %s0, 1
    %s218 = smov 3
    %v219 = vld [vmem:[%s217] ss:$36 sm:%s218]
    %220 = vrot.lane.b32.xlu0 %v219, 20
    %v221 = vpop.permute.xlu0 %220
    %vm222 = vcmask 326816
    %223 = vst.msk [vmem:[#allocation0] ss:$40 sm:$0x3] %vm222, %v221
    %s224 = scalar_lea.vmem %s0, 24
    %v225 = vld [vmem:[%s224] sm:$0x1]
    %226 = vrot.lane.b32.xlu0 %v225, 16
    %v227 = vpop.permute.xlu0 %226
    %vm228 = vcmask 294016
    %s229 = scalar_lea.vmem [#allocation0], 24
    %230 = vst.msk [vmem:[%s229] sm:$0x1] %vm228, %v227
    %s231 = scalar_lea.vmem %s0, 7
    %s232 = smov 3
    %v233 = vld [vmem:[%s231] ss:$36 sm:%s232]
    %234 = vrot.lane.b32.xlu0 %v233, 12
    %v235 = vpop.permute.xlu0 %234
    %vm236 = vcmask 261216
    %s237 = scalar_lea.vmem [#allocation0], 8
    %238 = vst.msk [vmem:[%s237] ss:$40 sm:$0x3] %vm236, %v235
    %s239 = scalar_lea.vmem %s0, 30
    %v240 = vld [vmem:[%s239] sm:$0x1]
    %241 = vrot.lane.b32.xlu0 %v240, 8
    %v242 = vpop.permute.xlu0 %241
    %vm243 = vcmask 228416
    %s244 = scalar_lea.vmem [#allocation0], 32
    %245 = vst.msk [vmem:[%s244] sm:$0x1] %vm243, %v242
    %s246 = scalar_lea.vmem %s0, 13
    %v247 = vld [vmem:[%s246] sm:$0x1]
    %248 = vrot.lane.b32.xlu0 %v247, 4
    %v249 = vpop.permute.xlu0 %248
    %vm250 = vcmask 195616
    %s251 = scalar_lea.vmem [#allocation0], 16
    %252 = vst.msk [vmem:[%s251] sm:$0x1] %vm250, %v249
    %s254 = sshllo.u32 0, 1
    %v256 = vld [vmem:[#allocation0] sm:%s254]
    %s257 = sshllo.u32 0, 1
    %258 = vst [vmem:[%s1] sm:%s257] %v256
    %s259 = scalar_lea.vmem [#allocation0], 8
    %v260 = vld [vmem:[%s259] sm:%s254]
    %s261 = sshllo.u32 0, 1
    %s262 = scalar_lea.vmem %s1, 1
    %263 = vst [vmem:[%s262] sm:%s261] %v260
    %s264 = scalar_lea.vmem [#allocation0], 16
    %v265 = vld [vmem:[%s264] sm:%s254]
    %s266 = sshllo.u32 0, 1
    %s267 = smul.addr 1, 2
    %s268 = scalar_lea.vmem %s1, %s267
    %269 = vst [vmem:[%s268] sm:%s266] %v265
    %s270 = scalar_lea.vmem [#allocation0], 24
    %v271 = vld [vmem:[%s270] sm:%s254]
    %s272 = sshllo.u32 0, 1
    %s273 = smul.addr 1, 3
    %s274 = scalar_lea.vmem %s1, %s273
    %275 = vst [vmem:[%s274] sm:%s272] %v271
    %s276 = scalar_lea.vmem [#allocation0], 32
    %v277 = vld [vmem:[%s276] sm:%s254]
    %s278 = sshllo.u32 0, 1
    %s279 = smul.addr 1, 4
    %s280 = scalar_lea.vmem %s1, %s279
    %281 = vst [vmem:[%s280] sm:%s278] %v277
    %s282 = scalar_lea.vmem [#allocation0], 40
    %v283 = vld [vmem:[%s282] sm:%s254]
    %s284 = sshllo.u32 0, 1
    %s285 = smul.addr 1, 5
    %s286 = scalar_lea.vmem %s1, %s285
    %287 = vst [vmem:[%s286] sm:%s284] %v283
    %s288 = scalar_lea.vmem [#allocation0], 48
    %v289 = vld [vmem:[%s288] sm:%s254]
    %s290 = sshllo.u32 0, 1
    %s291 = smul.addr 1, 6
    %s292 = scalar_lea.vmem %s1, %s291
    %293 = vst [vmem:[%s292] sm:%s290] %v289

// kernel: my_net2_forward.1
$region0: #{my_net2_forward.1}
  #allocation0 [shape = 'u32[]', space=smem, size = 0x4, offset = 0x4, fixed_abs, tag = 'smem constant byte address 0x4 - core index']
  #allocation1 [shape = 'u32[144,128]{1,0:T(1,128)}', space=vmem, size = 0x12000, scoped, tag = 'internal scratch']
  #allocation2 [shape = 'f32[4,884]{1,0:T(4,128)}', space=vmem, size = 0x3800, scoped, tag = 'scratch operand']
  #allocation3 [shape = 'f32[100,800]{1,0:T(8,128)}', space=vmem, size = 0x5b000, scoped, tag = 'scratch operand']
  %s0 = inlined_call_operand.vmem [shape: f32[4,800], index: 0, kind: input, shape index: {}]
  %s1 = inlined_call_operand.vmem [shape: f32[1,800], index: 1, kind: input, shape index: {}]
  %s2 = inlined_call_operand.vmem [shape: f32[4,4,100], index: 2, kind: input, shape index: {}]
  %s3 = inlined_call_operand.vmem [shape: f32[4,4,1], index: 3, kind: input, shape index: {}]
  %s4 = inlined_call_operand.vmem [shape: f32[4,4,1], index: 4, kind: input, shape index: {}]
  %s5 = inlined_call_operand.vmem [shape: f32[2,100], index: 5, kind: input, shape index: {}]
  %s6 = inlined_call_operand.vmem [shape: f32[2,1], index: 6, kind: input, shape index: {}]
  %s7 = inlined_call_operand.vmem [shape: f32[2,800], index: 7, kind: output, shape index: {}]
  %s8 = sld [smem:[#allocation0]]
  $region38: #{my_net2_forward.1} parent=0
    _
  %s10 = ssub.s32 1, %s8
  %s11 = scalar_select 0, %s10, %s8
  // Predicated region
  $region2: #{my_net2_forward.1} parent=0 // pred_check
    _
  $region3: #{my_net2_forward.1} parent=0 // pred_check_branch
    %13 = sbr.rel (0) target = $region5
  $region4: #{my_net2_forward.1} parent=0 // pred_region
    _
  $region5: #{my_net2_forward.1} parent=0 // pred_fallthru
    _
  // Predicated region
  $region6: #{my_net2_forward.1} parent=0 // pred_check
    _
  $region7: #{my_net2_forward.1} parent=0 // pred_check_branch
    %15 = sbr.rel (0) target = $region9
  $region8: #{my_net2_forward.1} parent=0 // pred_region
    _
  $region9: #{my_net2_forward.1} parent=0 // pred_fallthru
    _
  // Predicated region
  $region10: #{my_net2_forward.1} parent=0 // pred_check
    _
  $region11: #{my_net2_forward.1} parent=0 // pred_check_branch
    %17 = sbr.rel (0) target = $region13
  $region12: #{my_net2_forward.1} parent=0 // pred_region
    _
  $region13: #{my_net2_forward.1} parent=0 // pred_fallthru
    _
  // Predicated region
  $region14: #{my_net2_forward.1} parent=0 // pred_check
    _
  $region15: #{my_net2_forward.1} parent=0 // pred_check_branch
    %19 = sbr.rel (0) target = $region17
  $region16: #{my_net2_forward.1} parent=0 // pred_region
    _
  $region17: #{my_net2_forward.1} parent=0 // pred_fallthru
    _
  // Predicated region
  $region18: #{my_net2_forward.1} parent=0 // pred_check
    _
  $region19: #{my_net2_forward.1} parent=0 // pred_check_branch
    %21 = sbr.rel (0) target = $region21
  $region20: #{my_net2_forward.1} parent=0 // pred_region
    _
  $region21: #{my_net2_forward.1} parent=0 // pred_fallthru
    _
  // Predicated region
  $region22: #{my_net2_forward.1} parent=0 // pred_check
    _
  $region23: #{my_net2_forward.1} parent=0 // pred_check_branch
    %23 = sbr.rel (0) target = $region25
  $region24: #{my_net2_forward.1} parent=0 // pred_region
    _
  $region25: #{my_net2_forward.1} parent=0 // pred_fallthru
    _
  // Predicated region
  $region26: #{my_net2_forward.1} parent=0 // pred_check
    _
  $region27: #{my_net2_forward.1} parent=0 // pred_check_branch
    %25 = sbr.rel (0) target = $region29
  $region28: #{my_net2_forward.1} parent=0 // pred_region
    _
  $region29: #{my_net2_forward.1} parent=0 // pred_fallthru
    _
  %v26 = vld [vmem:[%s1] sm:$0x7f]
  %27 = vst [vmem:[#allocation2] sm:$0xff] 0.0
  %28 = vst [vmem:[#allocation2 + $0x8] sm:$0xff] 0.0
  %29 = vst [vmem:[#allocation2 + $0x10] sm:$0xff] 0.0
  %vm30 = vcmask 945152
  %31 = vst.msk [vmem:[#allocation2 + $0x18] sm:$0xf] %vm30, 0.0
  %v32 = vld [vmem:[%s0] sm:$0xff]
  %v33 = vld [vmem:[%s0 + $0x8] sm:$0xff]
  %v34 = vld [vmem:[%s0 + $0x10] sm:$0xff]
  %v35 = vld [vmem:[%s0 + $0x18] sm:$0xf]
  %40 = vrot.lane.b32.xlu0 %v32, 42
  %v41 = vpop.permute.xlu0 %40
  %42 = vrot.lane.b32.xlu0 %v33, 42
  %v43 = vpop.permute.xlu0 %42
  %44 = vrot.lane.b32.xlu0 %v34, 42
  %v45 = vpop.permute.xlu0 %44
  %46 = vrot.lane.b32.xlu0 %v35, 42
  %v47 = vpop.permute.xlu0 %46
  %v48 = vrot.slane %v41, 4
  %v49 = vrot.slane %v43, 4
  %v50 = vrot.slane %v45, 4
  %vm51 = vcmask 343040
  %v52 = vsel %vm51, %v48, %v41
  %vm53 = vcmask 1043456
  %v54 = vsel %vm53, %v48, %v49
  %v55 = vsel %vm51, %v54, %v43
  %v56 = vsel %vm53, %v49, %v50
  %v57 = vsel %vm51, %v56, %v45
  %v58 = vsel %vm51, %v50, %v47
  %vm63 = vcmask 1043792
  %vm64 = vcmask 1047556
  %vm65 = vmor %vm64, %vm63
  %66 = vst.msk [vmem:[#allocation2] sm:$0xff] %vm65, %v52
  %67 = vst [vmem:[#allocation2 + $0x8] sm:$0xff] %v55
  %68 = vst [vmem:[#allocation2 + $0x10] sm:$0xff] %v57
  %vm69 = vcmask 601088
  %70 = vst.msk [vmem:[#allocation2 + $0x18] sm:$0xf] %vm69, %v58
  %v71 = vld [vmem:[#allocation2] sm:$0xff]
  %v72 = vld [vmem:[#allocation2 + $0x8] sm:$0xff]
  %v73 = vld [vmem:[#allocation2 + $0x10] sm:$0xff]
  %v74 = vld [vmem:[#allocation2 + $0x18] sm:$0xf]
  %v78 = vcombine.high %v71, %v71
  %v79 = vcombine.high %v72, %v72
  %v80 = vcombine.high %v73, %v73
  %84 = vst [vmem:[#allocation3] sm:$0xf] %v71
  %85 = vst [vmem:[#allocation3 + $0x8] sm:$0xf] %v78
  %86 = vst [vmem:[#allocation3 + $0x10] sm:$0xf] %v72
  %87 = vst [vmem:[#allocation3 + $0x18] sm:$0xf] %v79
  %88 = vst [vmem:[#allocation3 + $0x20] sm:$0xf] %v73
  %89 = vst [vmem:[#allocation3 + $0x28] sm:$0xf] %v80
  %vm90 = vcmask 257024
  %91 = vst.msk [vmem:[#allocation3 + $0x30] sm:$0xf] %vm90, %v74
  %v92 = vld [vmem:[#allocation2] sm:$0xff]
  %v93 = vld [vmem:[#allocation2 + $0x8] sm:$0xff]
  %v94 = vld [vmem:[#allocation2 + $0x10] sm:$0xff]
  %v95 = vld [vmem:[#allocation2 + $0x18] sm:$0xf]
  %v100 = vcombine.low %v92, %v92
  %v101 = vcombine.low %v93, %v93
  %v102 = vcombine.low %v94, %v94
  %v103 = vcombine.low %v95, %v95
  %104 = vrot.lane.b32.xlu0 %v100, 127
  %v105 = vpop.permute.xlu0 %104
  %106 = vrot.lane.b32.xlu0 %v92, 127
  %v107 = vpop.permute.xlu0 %106
  %108 = vrot.lane.b32.xlu0 %v101, 127
  %v109 = vpop.permute.xlu0 %108
  %110 = vrot.lane.b32.xlu0 %v93, 127
  %v111 = vpop.permute.xlu0 %110
  %112 = vrot.lane.b32.xlu0 %v102, 127
  %v113 = vpop.permute.xlu0 %112
  %114 = vrot.lane.b32.xlu0 %v94, 127
  %v115 = vpop.permute.xlu0 %114
  %116 = vrot.lane.b32.xlu0 %v103, 127
  %v117 = vpop.permute.xlu0 %116
  %vm118 = vcmask 1039360
  %v119 = vsel %vm118, %v105, %v107
  %v120 = vsel %vm118, %v107, %v109
  %v121 = vsel %vm118, %v109, %v111
  %v122 = vsel %vm118, %v111, %v113
  %v123 = vsel %vm118, %v113, %v115
  %v124 = vsel %vm118, %v115, %v117
  %132 = vst [vmem:[#allocation3] sm:$0xf0] %v119
  %133 = vst [vmem:[#allocation3 + $0x8] sm:$0xf0] %v120
  %134 = vst [vmem:[#allocation3 + $0x10] sm:$0xf0] %v121
  %135 = vst [vmem:[#allocation3 + $0x18] sm:$0xf0] %v122
  %136 = vst [vmem:[#allocation3 + $0x20] sm:$0xf0] %v123
  %137 = vst [vmem:[#allocation3 + $0x28] sm:$0xf0] %v124
  %vm138 = vcmask 261124
  %139 = vst.msk [vmem:[#allocation3 + $0x30] sm:$0xf0] %vm138, %v117
  %v140 = vld [vmem:[#allocation2] sm:$0xff]
  %v141 = vld [vmem:[#allocation2 + $0x8] sm:$0xff]
  %v142 = vld [vmem:[#allocation2 + $0x10] sm:$0xff]
  %v143 = vld [vmem:[#allocation2 + $0x18] sm:$0xf]
  %v148 = vcombine.high %v140, %v140
  %v149 = vcombine.high %v141, %v141
  %v150 = vcombine.high %v142, %v142
  %151 = vrot.lane.b32.xlu0 %v140, 126
  %v152 = vpop.permute.xlu0 %151
  %153 = vrot.lane.b32.xlu0 %v148, 126
  %v154 = vpop.permute.xlu0 %153
  %155 = vrot.lane.b32.xlu0 %v141, 126
  %v156 = vpop.permute.xlu0 %155
  %157 = vrot.lane.b32.xlu0 %v149, 126
  %v158 = vpop.permute.xlu0 %157
  %159 = vrot.lane.b32.xlu0 %v142, 126
  %v160 = vpop.permute.xlu0 %159
  %161 = vrot.lane.b32.xlu0 %v150, 126
  %v162 = vpop.permute.xlu0 %161
  %163 = vrot.lane.b32.xlu0 %v143, 126
  %v164 = vpop.permute.xlu0 %163
  %vm165 = vcmask 1031168
  %v166 = vsel %vm165, %v152, %v154
  %v167 = vsel %vm165, %v154, %v156
  %v168 = vsel %vm165, %v156, %v158
  %v169 = vsel %vm165, %v158, %v160
  %v170 = vsel %vm165, %v160, %v162
  %v171 = vsel %vm165, %v162, %v164
  %179 = vst [vmem:[#allocation3 + $0x38] sm:$0xf] %v166
  %180 = vst [vmem:[#allocation3 + $0x40] sm:$0xf] %v167
  %181 = vst [vmem:[#allocation3 + $0x48] sm:$0xf] %v168
  %182 = vst [vmem:[#allocation3 + $0x50] sm:$0xf] %v169
  %183 = vst [vmem:[#allocation3 + $0x58] sm:$0xf] %v170
  %184 = vst [vmem:[#allocation3 + $0x60] sm:$0xf] %v171
  %185 = vst.msk [vmem:[#allocation3 + $0x68] sm:$0xf] %vm90, %v164
  %v186 = vld [vmem:[#allocation2] sm:$0xff]
  %v187 = vld [vmem:[#allocation2 + $0x8] sm:$0xff]
  %v188 = vld [vmem:[#allocation2 + $0x10] sm:$0xff]
  %v189 = vld [vmem:[#allocation2 + $0x18] sm:$0xf]
  %v194 = vcombine.low %v186, %v186
  %v195 = vcombine.low %v187, %v187
  %v196 = vcombine.low %v188, %v188
  %v197 = vcombine.low %v189, %v189
  %198 = vrot.lane.b32.xlu0 %v194, 125
  %v199 = vpop.permute.xlu0 %198
  %200 = vrot.lane.b32.xlu0 %v186, 125
  %v201 = vpop.permute.xlu0 %200
  %202 = vrot.lane.b32.xlu0 %v195, 125
  %v203 = vpop.permute.xlu0 %202
  %204 = vrot.lane.b32.xlu0 %v187, 125
  %v205 = vpop.permute.xlu0 %204
  %206 = vrot.lane.b32.xlu0 %v196, 125
  %v207 = vpop.permute.xlu0 %206
  %208 = vrot.lane.b32.xlu0 %v188, 125
  %v209 = vpop.permute.xlu0 %208
  %210 = vrot.lane.b32.xlu0 %v197, 125
  %v211 = vpop.permute.xlu0 %210
  %vm212 = vcmask 1022976
  %v213 = vsel %vm212, %v199, %v201
  %v214 = vsel %vm212, %v201, %v203
  %v215 = vsel %vm212, %v203, %v205
  %v216 = vsel %vm212, %v205, %v207
  %v217 = vsel %vm212, %v207, %v209
  %v218 = vsel %vm212, %v209, %v211
  %226 = vst [vmem:[#allocation3 + $0x38] sm:$0xf0] %v213
  %227 = vst [vmem:[#allocation3 + $0x40] sm:$0xf0] %v214
  %228 = vst [vmem:[#allocation3 + $0x48] sm:$0xf0] %v215
  %229 = vst [vmem:[#allocation3 + $0x50] sm:$0xf0] %v216
  %230 = vst [vmem:[#allocation3 + $0x58] sm:$0xf0] %v217
  %231 = vst [vmem:[#allocation3 + $0x60] sm:$0xf0] %v218
  %232 = vst.msk [vmem:[#allocation3 + $0x68] sm:$0xf0] %vm138, %v211
  %v233 = vld [vmem:[#allocation2] sm:$0xff]
  %v234 = vld [vmem:[#allocation2 + $0x8] sm:$0xff]
  %v235 = vld [vmem:[#allocation2 + $0x10] sm:$0xff]
  %v236 = vld [vmem:[#allocation2 + $0x18] sm:$0xf]
  %v241 = vcombine.high %v233, %v233
  %v242 = vcombine.high %v234, %v234
  %v243 = vcombine.high %v235, %v235
  %244 = vrot.lane.b32.xlu0 %v233, 124
  %v245 = vpop.permute.xlu0 %244
  %246 = vrot.lane.b32.xlu0 %v241, 124
  %v247 = vpop.permute.xlu0 %246
  %248 = vrot.lane.b32.xlu0 %v234, 124
  %v249 = vpop.permute.xlu0 %248
  %250 = vrot.lane.b32.xlu0 %v242, 124
  %v251 = vpop.permute.xlu0 %250
  %252 = vrot.lane.b32.xlu0 %v235, 124
  %v253 = vpop.permute.xlu0 %252
  %254 = vrot.lane.b32.xlu0 %v243, 124
  %v255 = vpop.permute.xlu0 %254
  %256 = vrot.lane.b32.xlu0 %v236, 124
  %v257 = vpop.permute.xlu0 %256
  %vm258 = vcmask 1014784
  %v259 = vsel %vm258, %v245, %v247
  %v260 = vsel %vm258, %v247, %v249
  %v261 = vsel %vm258, %v249, %v251
  %v262 = vsel %vm258, %v251, %v253
  %v263 = vsel %vm258, %v253, %v255
  %v264 = vsel %vm258, %v255, %v257
  %272 = vst [vmem:[#allocation3 + $0x70] sm:$0xf] %v259
  %273 = vst [vmem:[#allocation3 + $0x78] sm:$0xf] %v260
  %274 = vst [vmem:[#allocation3 + $0x80] sm:$0xf] %v261
  %275 = vst [vmem:[#allocation3 + $0x88] sm:$0xf] %v262
  %276 = vst [vmem:[#allocation3 + $0x90] sm:$0xf] %v263
  %277 = vst [vmem:[#allocation3 + $0x98] sm:$0xf] %v264
  %278 = vst.msk [vmem:[#allocation3 + $0xa0] sm:$0xf] %vm90, %v257
  %v279 = vld [vmem:[#allocation2] sm:$0xff]
  %v280 = vld [vmem:[#allocation2 + $0x8] sm:$0xff]
  %v281 = vld [vmem:[#allocation2 + $0x10] sm:$0xff]
  %v282 = vld [vmem:[#allocation2 + $0x18] sm:$0xf]
  %v287 = vcombine.low %v279, %v279
  %v288 = vcombine.low %v280, %v280
  %v289 = vcombine.low %v281, %v281
  %v290 = vcombine.low %v282, %v282
  %291 = vrot.lane.b32.xlu0 %v287, 108
  %v292 = vpop.permute.xlu0 %291
  %293 = vrot.lane.b32.xlu0 %v279, 108
  %v294 = vpop.permute.xlu0 %293
  %295 = vrot.lane.b32.xlu0 %v288, 108
  %v296 = vpop.permute.xlu0 %295
  %297 = vrot.lane.b32.xlu0 %v280, 108
  %v298 = vpop.permute.xlu0 %297
  %299 = vrot.lane.b32.xlu0 %v289, 108
  %v300 = vpop.permute.xlu0 %299
  %301 = vrot.lane.b32.xlu0 %v281, 108
  %v302 = vpop.permute.xlu0 %301
  %303 = vrot.lane.b32.xlu0 %v290, 108
  %v304 = vpop.permute.xlu0 %303
  %vm305 = vcmask 883712
  %v306 = vsel %vm305, %v292, %v294
  %v307 = vsel %vm305, %v294, %v296
  %v308 = vsel %vm305, %v296, %v298
  %v309 = vsel %vm305, %v298, %v300
  %v310 = vsel %vm305, %v300, %v302
  %v311 = vsel %vm305, %v302, %v304
  %319 = vst [vmem:[#allocation3 + $0x70] sm:$0xf0] %v306
  %320 = vst [vmem:[#allocation3 + $0x78] sm:$0xf0] %v307
  %321 = vst [vmem:[#allocation3 + $0x80] sm:$0xf0] %v308
  %322 = vst [vmem:[#allocation3 + $0x88] sm:$0xf0] %v309
  %323 = vst [vmem:[#allocation3 + $0x90] sm:$0xf0] %v310
  %324 = vst [vmem:[#allocation3 + $0x98] sm:$0xf0] %v311
  %325 = vst.msk [vmem:[#allocation3 + $0xa0] sm:$0xf0] %vm138, %v304
  %v326 = vld [vmem:[#allocation2] sm:$0xff]
  %v327 = vld [vmem:[#allocation2 + $0x8] sm:$0xff]
  %v328 = vld [vmem:[#allocation2 + $0x10] sm:$0xff]
  %v329 = vld [vmem:[#allocation2 + $0x18] sm:$0xf]
  %v334 = vcombine.high %v326, %v326
  %v335 = vcombine.high %v327, %v327
  %v336 = vcombine.high %v328, %v328
  %337 = vrot.lane.b32.xlu0 %v326, 107
  %v338 = vpop.permute.xlu0 %337
  %339 = vrot.lane.b32.xlu0 %v334, 107
  %v340 = vpop.permute.xlu0 %339
  %341 = vrot.lane.b32.xlu0 %v327, 107
  %v342 = vpop.permute.xlu0 %341
  %343 = vrot.lane.b32.xlu0 %v335, 107
  %v344 = vpop.permute.xlu0 %343
  %345 = vrot.lane.b32.xlu0 %v328, 107
  %v346 = vpop.permute.xlu0 %345
  %347 = vrot.lane.b32.xlu0 %v336, 107
  %v348 = vpop.permute.xlu0 %347
  %349 = vrot.lane.b32.xlu0 %v329, 107
  %v350 = vpop.permute.xlu0 %349
  %vm351 = vcmask 875520
  %v352 = vsel %vm351, %v338, %v340
  %v353 = vsel %vm351, %v340, %v342
  %v354 = vsel %vm351, %v342, %v344
  %v355 = vsel %vm351, %v344, %v346
  %v356 = vsel %vm351, %v346, %v348
  %v357 = vsel %vm351, %v348, %v350
  %365 = vst [vmem:[#allocation3 + $0xa8] sm:$0xf] %v352
  %366 = vst [vmem:[#allocation3 + $0xb0] sm:$0xf] %v353
  %367 = vst [vmem:[#allocation3 + $0xb8] sm:$0xf] %v354
  %368 = vst [vmem:[#allocation3 + $0xc0] sm:$0xf] %v355
  %369 = vst [vmem:[#allocation3 + $0xc8] sm:$0xf] %v356
  %370 = vst [vmem:[#allocation3 + $0xd0] sm:$0xf] %v357
  %371 = vst.msk [vmem:[#allocation3 + $0xd8] sm:$0xf] %vm90, %v350
  %v372 = vld [vmem:[#allocation2] sm:$0xff]
  %v373 = vld [vmem:[#allocation2 + $0x8] sm:$0xff]
  %v374 = vld [vmem:[#allocation2 + $0x10] sm:$0xff]
  %v375 = vld [vmem:[#allocation2 + $0x18] sm:$0xf]
  %v380 = vcombine.low %v372, %v372
  %v381 = vcombine.low %v373, %v373
  %v382 = vcombine.low %v374, %v374
  %v383 = vcombine.low %v375, %v375
  %384 = vrot.lane.b32.xlu0 %v380, 106
  %v385 = vpop.permute.xlu0 %384
  %386 = vrot.lane.b32.xlu0 %v372, 106
  %v387 = vpop.permute.xlu0 %386
  %388 = vrot.lane.b32.xlu0 %v381, 106
  %v389 = vpop.permute.xlu0 %388
  %390 = vrot.lane.b32.xlu0 %v373, 106
  %v391 = vpop.permute.xlu0 %390
  %392 = vrot.lane.b32.xlu0 %v382, 106
  %v393 = vpop.permute.xlu0 %392
  %394 = vrot.lane.b32.xlu0 %v374, 106
  %v395 = vpop.permute.xlu0 %394
  %396 = vrot.lane.b32.xlu0 %v383, 106
  %v397 = vpop.permute.xlu0 %396
  %vm398 = vcmask 867328
  %v399 = vsel %vm398, %v385, %v387
  %v400 = vsel %vm398, %v387, %v389
  %v401 = vsel %vm398, %v389, %v391
  %v402 = vsel %vm398, %v391, %v393
  %v403 = vsel %vm398, %v393, %v395
  %v404 = vsel %vm398, %v395, %v397
  %412 = vst [vmem:[#allocation3 + $0xa8] sm:$0xf0] %v399
  %413 = vst [vmem:[#allocation3 + $0xb0] sm:$0xf0] %v400
  %414 = vst [vmem:[#allocation3 + $0xb8] sm:$0xf0] %v401
  %415 = vst [vmem:[#allocation3 + $0xc0] sm:$0xf0] %v402
  %416 = vst [vmem:[#allocation3 + $0xc8] sm:$0xf0] %v403
  %417 = vst [vmem:[#allocation3 + $0xd0] sm:$0xf0] %v404
  %418 = vst.msk [vmem:[#allocation3 + $0xd8] sm:$0xf0] %vm138, %v397
  %v419 = vld [vmem:[#allocation2] sm:$0xff]
  %v420 = vld [vmem:[#allocation2 + $0x8] sm:$0xff]
  %v421 = vld [vmem:[#allocation2 + $0x10] sm:$0xff]
  %v422 = vld [vmem:[#allocation2 + $0x18] sm:$0xf]
  %v427 = vcombine.high %v419, %v419
  %v428 = vcombine.high %v420, %v420
  %v429 = vcombine.high %v421, %v421
  %430 = vrot.lane.b32.xlu0 %v419, 105
  %v431 = vpop.permute.xlu0 %430
  %432 = vrot.lane.b32.xlu0 %v427, 105
  %v433 = vpop.permute.xlu0 %432
  %434 = vrot.lane.b32.xlu0 %v420, 105
  %v435 = vpop.permute.xlu0 %434
  %436 = vrot.lane.b32.xlu0 %v428, 105
  %v437 = vpop.permute.xlu0 %436
  %438 = vrot.lane.b32.xlu0 %v421, 105
  %v439 = vpop.permute.xlu0 %438
  %440 = vrot.lane.b32.xlu0 %v429, 105
  %v441 = vpop.permute.xlu0 %440
  %442 = vrot.lane.b32.xlu0 %v422, 105
  %v443 = vpop.permute.xlu0 %442
  %vm444 = vcmask 859136
  %v445 = vsel %vm444, %v431, %v433
  %v446 = vsel %vm444, %v433, %v435
  %v447 = vsel %vm444, %v435, %v437
  %v448 = vsel %vm444, %v437, %v439
  %v449 = vsel %vm444, %v439, %v441
  %v450 = vsel %vm444, %v441, %v443
  %458 = vst [vmem:[#allocation3 + $0xe0] sm:$0xf] %v445
  %459 = vst [vmem:[#allocation3 + $0xe8] sm:$0xf] %v446
  %460 = vst [vmem:[#allocation3 + $0xf0] sm:$0xf] %v447
  %461 = vst [vmem:[#allocation3 + $0xf8] sm:$0xf] %v448
  %462 = vst [vmem:[#allocation3 + $0x100] sm:$0xf] %v449
  %463 = vst [vmem:[#allocation3 + $0x108] sm:$0xf] %v450
  %464 = vst.msk [vmem:[#allocation3 + $0x110] sm:$0xf] %vm90, %v443
  %v465 = vld [vmem:[#allocation2] sm:$0xff]
  %v466 = vld [vmem:[#allocation2 + $0x8] sm:$0xff]
  %v467 = vld [vmem:[#allocation2 + $0x10] sm:$0xff]
  %v468 = vld [vmem:[#allocation2 + $0x18] sm:$0xf]
  %v473 = vcombine.low %v465, %v465
  %v474 = vcombine.low %v466, %v466
  %v475 = vcombine.low %v467, %v467
  %v476 = vcombine.low %v468, %v468
  %477 = vrot.lane.b32.xlu0 %v473, 104
  %v478 = vpop.permute.xlu0 %477
  %479 = vrot.lane.b32.xlu0 %v465, 104
  %v480 = vpop.permute.xlu0 %479
  %481 = vrot.lane.b32.xlu0 %v474, 104
  %v482 = vpop.permute.xlu0 %481
  %483 = vrot.lane.b32.xlu0 %v466, 104
  %v484 = vpop.permute.xlu0 %483
  %485 = vrot.lane.b32.xlu0 %v475, 104
  %v486 = vpop.permute.xlu0 %485
  %487 = vrot.lane.b32.xlu0 %v467, 104
  %v488 = vpop.permute.xlu0 %487
  %489 = vrot.lane.b32.xlu0 %v476, 104
  %v490 = vpop.permute.xlu0 %489
  %vm491 = vcmask 850944
  %v492 = vsel %vm491, %v478, %v480
  %v493 = vsel %vm491, %v480, %v482
  %v494 = vsel %vm491, %v482, %v484
  %v495 = vsel %vm491, %v484, %v486
  %v496 = vsel %vm491, %v486, %v488
  %v497 = vsel %vm491, %v488, %v490
  %505 = vst [vmem:[#allocation3 + $0xe0] sm:$0xf0] %v492
  %506 = vst [vmem:[#allocation3 + $0xe8] sm:$0xf0] %v493
  %507 = vst [vmem:[#allocation3 + $0xf0] sm:$0xf0] %v494
  %508 = vst [vmem:[#allocation3 + $0xf8] sm:$0xf0] %v495
  %509 = vst [vmem:[#allocation3 + $0x100] sm:$0xf0] %v496
  %510 = vst [vmem:[#allocation3 + $0x108] sm:$0xf0] %v497
  %511 = vst.msk [vmem:[#allocation3 + $0x110] sm:$0xf0] %vm138, %v490
  %v512 = vld [vmem:[#allocation2] sm:$0xff]
  %v513 = vld [vmem:[#allocation2 + $0x8] sm:$0xff]
  %v514 = vld [vmem:[#allocation2 + $0x10] sm:$0xff]
  %v515 = vld [vmem:[#allocation2 + $0x18] sm:$0xf]
  %v520 = vcombine.high %v512, %v512
  %v521 = vcombine.high %v513, %v513
  %v522 = vcombine.high %v514, %v514
  %523 = vrot.lane.b32.xlu0 %v512, 88
  %v524 = vpop.permute.xlu0 %523
  %525 = vrot.lane.b32.xlu0 %v520, 88
  %v526 = vpop.permute.xlu0 %525
  %527 = vrot.lane.b32.xlu0 %v513, 88
  %v528 = vpop.permute.xlu0 %527
  %529 = vrot.lane.b32.xlu0 %v521, 88
  %v530 = vpop.permute.xlu0 %529
  %531 = vrot.lane.b32.xlu0 %v514, 88
  %v532 = vpop.permute.xlu0 %531
  %533 = vrot.lane.b32.xlu0 %v522, 88
  %v534 = vpop.permute.xlu0 %533
  %535 = vrot.lane.b32.xlu0 %v515, 88
  %v536 = vpop.permute.xlu0 %535
  %vm537 = vcmask 719872
  %v538 = vsel %vm537, %v524, %v526
  %v539 = vsel %vm537, %v526, %v528
  %v540 = vsel %vm537, %v528, %v530
  %v541 = vsel %vm537, %v530, %v532
  %v542 = vsel %vm537, %v532, %v534
  %v543 = vsel %vm537, %v534, %v536
  %551 = vst [vmem:[#allocation3 + $0x118] sm:$0xf] %v538
  %552 = vst [vmem:[#allocation3 + $0x120] sm:$0xf] %v539
  %553 = vst [vmem:[#allocation3 + $0x128] sm:$0xf] %v540
  %554 = vst [vmem:[#allocation3 + $0x130] sm:$0xf] %v541
  %555 = vst [vmem:[#allocation3 + $0x138] sm:$0xf] %v542
  %556 = vst [vmem:[#allocation3 + $0x140] sm:$0xf] %v543
  %557 = vst.msk [vmem:[#allocation3 + $0x148] sm:$0xf] %vm90, %v536
  %v558 = vld [vmem:[#allocation2] sm:$0xff]
  %v559 = vld [vmem:[#allocation2 + $0x8] sm:$0xff]
  %v560 = vld [vmem:[#allocation2 + $0x10] sm:$0xff]
  %v561 = vld [vmem:[#allocation2 + $0x18] sm:$0xf]
  %v566 = vcombine.low %v558, %v558
  %v567 = vcombine.low %v559, %v559
  %v568 = vcombine.low %v560, %v560
  %v569 = vcombine.low %v561, %v561
  %570 = vrot.lane.b32.xlu0 %v566, 87
  %v571 = vpop.permute.xlu0 %570
  %572 = vrot.lane.b32.xlu0 %v558, 87
  %v573 = vpop.permute.xlu0 %572
  %574 = vrot.lane.b32.xlu0 %v567, 87
  %v575 = vpop.permute.xlu0 %574
  %576 = vrot.lane.b32.xlu0 %v559, 87
  %v577 = vpop.permute.xlu0 %576
  %578 = vrot.lane.b32.xlu0 %v568, 87
  %v579 = vpop.permute.xlu0 %578
  %580 = vrot.lane.b32.xlu0 %v560, 87
  %v581 = vpop.permute.xlu0 %580
  %582 = vrot.lane.b32.xlu0 %v569, 87
  %v583 = vpop.permute.xlu0 %582
  %vm584 = vcmask 711680
  %v585 = vsel %vm584, %v571, %v573
  %v586 = vsel %vm584, %v573, %v575
  %v587 = vsel %vm584, %v575, %v577
  %v588 = vsel %vm584, %v577, %v579
  %v589 = vsel %vm584, %v579, %v581
  %v590 = vsel %vm584, %v581, %v583
  %598 = vst [vmem:[#allocation3 + $0x118] sm:$0xf0] %v585
  %599 = vst [vmem:[#allocation3 + $0x120] sm:$0xf0] %v586
  %600 = vst [vmem:[#allocation3 + $0x128] sm:$0xf0] %v587
  %601 = vst [vmem:[#allocation3 + $0x130] sm:$0xf0] %v588
  %602 = vst [vmem:[#allocation3 + $0x138] sm:$0xf0] %v589
  %603 = vst [vmem:[#allocation3 + $0x140] sm:$0xf0] %v590
  %604 = vst.msk [vmem:[#allocation3 + $0x148] sm:$0xf0] %vm138, %v583
  %v605 = vld [vmem:[#allocation2] sm:$0xff]
  %v606 = vld [vmem:[#allocation2 + $0x8] sm:$0xff]
  %v607 = vld [vmem:[#allocation2 + $0x10] sm:$0xff]
  %v608 = vld [vmem:[#allocation2 + $0x18] sm:$0xf]
  %v613 = vcombine.high %v605, %v605
  %v614 = vcombine.high %v606, %v606
  %v615 = vcombine.high %v607, %v607
  %616 = vrot.lane.b32.xlu0 %v605, 86
  %v617 = vpop.permute.xlu0 %616
  %618 = vrot.lane.b32.xlu0 %v613, 86
  %v619 = vpop.permute.xlu0 %618
  %620 = vrot.lane.b32.xlu0 %v606, 86
  %v621 = vpop.permute.xlu0 %620
  %622 = vrot.lane.b32.xlu0 %v614, 86
  %v623 = vpop.permute.xlu0 %622
  %624 = vrot.lane.b32.xlu0 %v607, 86
  %v625 = vpop.permute.xlu0 %624
  %626 = vrot.lane.b32.xlu0 %v615, 86
  %v627 = vpop.permute.xlu0 %626
  %628 = vrot.lane.b32.xlu0 %v608, 86
  %v629 = vpop.permute.xlu0 %628
  %vm630 = vcmask 703488
  %v631 = vsel %vm630, %v617, %v619
  %v632 = vsel %vm630, %v619, %v621
  %v633 = vsel %vm630, %v621, %v623
  %v634 = vsel %vm630, %v623, %v625
  %v635 = vsel %vm630, %v625, %v627
  %v636 = vsel %vm630, %v627, %v629
  %644 = vst [vmem:[#allocation3 + $0x150] sm:$0xf] %v631
  %645 = vst [vmem:[#allocation3 + $0x158] sm:$0xf] %v632
  %646 = vst [vmem:[#allocation3 + $0x160] sm:$0xf] %v633
  %647 = vst [vmem:[#allocation3 + $0x168] sm:$0xf] %v634
  %648 = vst [vmem:[#allocation3 + $0x170] sm:$0xf] %v635
  %649 = vst [vmem:[#allocation3 + $0x178] sm:$0xf] %v636
  %650 = vst.msk [vmem:[#allocation3 + $0x180] sm:$0xf] %vm90, %v629
  %v651 = vld [vmem:[#allocation2] sm:$0xff]
  %v652 = vld [vmem:[#allocation2 + $0x8] sm:$0xff]
  %v653 = vld [vmem:[#allocation2 + $0x10] sm:$0xff]
  %v654 = vld [vmem:[#allocation2 + $0x18] sm:$0xf]
  %v659 = vcombine.low %v651, %v651
  %v660 = vcombine.low %v652, %v652
  %v661 = vcombine.low %v653, %v653
  %v662 = vcombine.low %v654, %v654
  %663 = vrot.lane.b32.xlu0 %v659, 85
  %v664 = vpop.permute.xlu0 %663
  %665 = vrot.lane.b32.xlu0 %v651, 85
  %v666 = vpop.permute.xlu0 %665
  %667 = vrot.lane.b32.xlu0 %v660, 85
  %v668 = vpop.permute.xlu0 %667
  %669 = vrot.lane.b32.xlu0 %v652, 85
  %v670 = vpop.permute.xlu0 %669
  %671 = vrot.lane.b32.xlu0 %v661, 85
  %v672 = vpop.permute.xlu0 %671
  %673 = vrot.lane.b32.xlu0 %v653, 85
  %v674 = vpop.permute.xlu0 %673
  %675 = vrot.lane.b32.xlu0 %v662, 85
  %v676 = vpop.permute.xlu0 %675
  %vm677 = vcmask 695296
  %v678 = vsel %vm677, %v664, %v666
  %v679 = vsel %vm677, %v666, %v668
  %v680 = vsel %vm677, %v668, %v670
  %v681 = vsel %vm677, %v670, %v672
  %v682 = vsel %vm677, %v672, %v674
  %v683 = vsel %vm677, %v674, %v676
  %691 = vst [vmem:[#allocation3 + $0x150] sm:$0xf0] %v678
  %692 = vst [vmem:[#allocation3 + $0x158] sm:$0xf0] %v679
  %693 = vst [vmem:[#allocation3 + $0x160] sm:$0xf0] %v680
  %694 = vst [vmem:[#allocation3 + $0x168] sm:$0xf0] %v681
  %695 = vst [vmem:[#allocation3 + $0x170] sm:$0xf0] %v682
  %696 = vst [vmem:[#allocation3 + $0x178] sm:$0xf0] %v683
  %697 = vst.msk [vmem:[#allocation3 + $0x180] sm:$0xf0] %vm138, %v676
  %v698 = vld [vmem:[#allocation2] sm:$0xff]
  %v699 = vld [vmem:[#allocation2 + $0x8] sm:$0xff]
  %v700 = vld [vmem:[#allocation2 + $0x10] sm:$0xff]
  %v701 = vld [vmem:[#allocation2 + $0x18] sm:$0xf]
  %v706 = vcombine.high %v698, %v698
  %v707 = vcombine.high %v699, %v699
  %v708 = vcombine.high %v700, %v700
  %709 = vrot.lane.b32.xlu0 %v698, 84
  %v710 = vpop.permute.xlu0 %709
  %711 = vrot.lane.b32.xlu0 %v706, 84
  %v712 = vpop.permute.xlu0 %711
  %713 = vrot.lane.b32.xlu0 %v699, 84
  %v714 = vpop.permute.xlu0 %713
  %715 = vrot.lane.b32.xlu0 %v707, 84
  %v716 = vpop.permute.xlu0 %715
  %717 = vrot.lane.b32.xlu0 %v700, 84
  %v718 = vpop.permute.xlu0 %717
  %719 = vrot.lane.b32.xlu0 %v708, 84
  %v720 = vpop.permute.xlu0 %719
  %721 = vrot.lane.b32.xlu0 %v701, 84
  %v722 = vpop.permute.xlu0 %721
  %vm723 = vcmask 687104
  %v724 = vsel %vm723, %v710, %v712
  %v725 = vsel %vm723, %v712, %v714
  %v726 = vsel %vm723, %v714, %v716
  %v727 = vsel %vm723, %v716, %v718
  %v728 = vsel %vm723, %v718, %v720
  %v729 = vsel %vm723, %v720, %v722
  %737 = vst [vmem:[#allocation3 + $0x188] sm:$0xf] %v724
  %738 = vst [vmem:[#allocation3 + $0x190] sm:$0xf] %v725
  %739 = vst [vmem:[#allocation3 + $0x198] sm:$0xf] %v726
  %740 = vst [vmem:[#allocation3 + $0x1a0] sm:$0xf] %v727
  %741 = vst [vmem:[#allocation3 + $0x1a8] sm:$0xf] %v728
  %742 = vst [vmem:[#allocation3 + $0x1b0] sm:$0xf] %v729
  %743 = vst.msk [vmem:[#allocation3 + $0x1b8] sm:$0xf] %vm90, %v722
  %v744 = vld [vmem:[#allocation2] sm:$0xff]
  %v745 = vld [vmem:[#allocation2 + $0x8] sm:$0xff]
  %v746 = vld [vmem:[#allocation2 + $0x10] sm:$0xff]
  %v747 = vld [vmem:[#allocation2 + $0x18] sm:$0xf]
  %v752 = vcombine.low %v744, %v744
  %v753 = vcombine.low %v745, %v745
  %v754 = vcombine.low %v746, %v746
  %v755 = vcombine.low %v747, %v747
  %756 = vrot.lane.b32.xlu0 %v752, 68
  %v757 = vpop.permute.xlu0 %756
  %758 = vrot.lane.b32.xlu0 %v744, 68
  %v759 = vpop.permute.xlu0 %758
  %760 = vrot.lane.b32.xlu0 %v753, 68
  %v761 = vpop.permute.xlu0 %760
  %762 = vrot.lane.b32.xlu0 %v745, 68
  %v763 = vpop.permute.xlu0 %762
  %764 = vrot.lane.b32.xlu0 %v754, 68
  %v765 = vpop.permute.xlu0 %764
  %766 = vrot.lane.b32.xlu0 %v746, 68
  %v767 = vpop.permute.xlu0 %766
  %768 = vrot.lane.b32.xlu0 %v755, 68
  %v769 = vpop.permute.xlu0 %768
  %vm770 = vcmask 556032
  %v771 = vsel %vm770, %v757, %v759
  %v772 = vsel %vm770, %v759, %v761
  %v773 = vsel %vm770, %v761, %v763
  %v774 = vsel %vm770, %v763, %v765
  %v775 = vsel %vm770, %v765, %v767
  %v776 = vsel %vm770, %v767, %v769
  %784 = vst [vmem:[#allocation3 + $0x188] sm:$0xf0] %v771
  %785 = vst [vmem:[#allocation3 + $0x190] sm:$0xf0] %v772
  %786 = vst [vmem:[#allocation3 + $0x198] sm:$0xf0] %v773
  %787 = vst [vmem:[#allocation3 + $0x1a0] sm:$0xf0] %v774
  %788 = vst [vmem:[#allocation3 + $0x1a8] sm:$0xf0] %v775
  %789 = vst [vmem:[#allocation3 + $0x1b0] sm:$0xf0] %v776
  %790 = vst.msk [vmem:[#allocation3 + $0x1b8] sm:$0xf0] %vm138, %v769
  %v791 = vld [vmem:[#allocation2] sm:$0xff]
  %v792 = vld [vmem:[#allocation2 + $0x8] sm:$0xff]
  %v793 = vld [vmem:[#allocation2 + $0x10] sm:$0xff]
  %v794 = vld [vmem:[#allocation2 + $0x18] sm:$0xf]
  %v799 = vcombine.high %v791, %v791
  %v800 = vcombine.high %v792, %v792
  %v801 = vcombine.high %v793, %v793
  %802 = vrot.lane.b32.xlu0 %v791, 67
  %v803 = vpop.permute.xlu0 %802
  %804 = vrot.lane.b32.xlu0 %v799, 67
  %v805 = vpop.permute.xlu0 %804
  %806 = vrot.lane.b32.xlu0 %v792, 67
  %v807 = vpop.permute.xlu0 %806
  %808 = vrot.lane.b32.xlu0 %v800, 67
  %v809 = vpop.permute.xlu0 %808
  %810 = vrot.lane.b32.xlu0 %v793, 67
  %v811 = vpop.permute.xlu0 %810
  %812 = vrot.lane.b32.xlu0 %v801, 67
  %v813 = vpop.permute.xlu0 %812
  %814 = vrot.lane.b32.xlu0 %v794, 67
  %v815 = vpop.permute.xlu0 %814
  %vm816 = vcmask 547840
  %v817 = vsel %vm816, %v803, %v805
  %v818 = vsel %vm816, %v805, %v807
  %v819 = vsel %vm816, %v807, %v809
  %v820 = vsel %vm816, %v809, %v811
  %v821 = vsel %vm816, %v811, %v813
  %v822 = vsel %vm816, %v813, %v815
  %830 = vst [vmem:[#allocation3 + $0x1c0] sm:$0xf] %v817
  %831 = vst [vmem:[#allocation3 + $0x1c8] sm:$0xf] %v818
  %832 = vst [vmem:[#allocation3 + $0x1d0] sm:$0xf] %v819
  %833 = vst [vmem:[#allocation3 + $0x1d8] sm:$0xf] %v820
  %834 = vst [vmem:[#allocation3 + $0x1e0] sm:$0xf] %v821
  %835 = vst [vmem:[#allocation3 + $0x1e8] sm:$0xf] %v822
  %836 = vst.msk [vmem:[#allocation3 + $0x1f0] sm:$0xf] %vm90, %v815
  %v837 = vld [vmem:[#allocation2] sm:$0xff]
  %v838 = vld [vmem:[#allocation2 + $0x8] sm:$0xff]
  %v839 = vld [vmem:[#allocation2 + $0x10] sm:$0xff]
  %v840 = vld [vmem:[#allocation2 + $0x18] sm:$0xf]
  %v845 = vcombine.low %v837, %v837
  %v846 = vcombine.low %v838, %v838
  %v847 = vcombine.low %v839, %v839
  %v848 = vcombine.low %v840, %v840
  %849 = vrot.lane.b32.xlu0 %v845, 66
  %v850 = vpop.permute.xlu0 %849
  %851 = vrot.lane.b32.xlu0 %v837, 66
  %v852 = vpop.permute.xlu0 %851
  %853 = vrot.lane.b32.xlu0 %v846, 66
  %v854 = vpop.permute.xlu0 %853
  %855 = vrot.lane.b32.xlu0 %v838, 66
  %v856 = vpop.permute.xlu0 %855
  %857 = vrot.lane.b32.xlu0 %v847, 66
  %v858 = vpop.permute.xlu0 %857
  %859 = vrot.lane.b32.xlu0 %v839, 66
  %v860 = vpop.permute.xlu0 %859
  %861 = vrot.lane.b32.xlu0 %v848, 66
  %v862 = vpop.permute.xlu0 %861
  %vm863 = vcmask 539648
  %v864 = vsel %vm863, %v850, %v852
  %v865 = vsel %vm863, %v852, %v854
  %v866 = vsel %vm863, %v854, %v856
  %v867 = vsel %vm863, %v856, %v858
  %v868 = vsel %vm863, %v858, %v860
  %v869 = vsel %vm863, %v860, %v862
  %877 = vst [vmem:[#allocation3 + $0x1c0] sm:$0xf0] %v864
  %878 = vst [vmem:[#allocation3 + $0x1c8] sm:$0xf0] %v865
  %879 = vst [vmem:[#allocation3 + $0x1d0] sm:$0xf0] %v866
  %880 = vst [vmem:[#allocation3 + $0x1d8] sm:$0xf0] %v867
  %881 = vst [vmem:[#allocation3 + $0x1e0] sm:$0xf0] %v868
  %882 = vst [vmem:[#allocation3 + $0x1e8] sm:$0xf0] %v869
  %883 = vst.msk [vmem:[#allocation3 + $0x1f0] sm:$0xf0] %vm138, %v862
  %v884 = vld [vmem:[#allocation2] sm:$0xff]
  %v885 = vld [vmem:[#allocation2 + $0x8] sm:$0xff]
  %v886 = vld [vmem:[#allocation2 + $0x10] sm:$0xff]
  %v887 = vld [vmem:[#allocation2 + $0x18] sm:$0xf]
  %v892 = vcombine.high %v884, %v884
  %v893 = vcombine.high %v885, %v885
  %v894 = vcombine.high %v886, %v886
  %895 = vrot.lane.b32.xlu0 %v884, 65
  %v896 = vpop.permute.xlu0 %895
  %897 = vrot.lane.b32.xlu0 %v892, 65
  %v898 = vpop.permute.xlu0 %897
  %899 = vrot.lane.b32.xlu0 %v885, 65
  %v900 = vpop.permute.xlu0 %899
  %901 = vrot.lane.b32.xlu0 %v893, 65
  %v902 = vpop.permute.xlu0 %901
  %903 = vrot.lane.b32.xlu0 %v886, 65
  %v904 = vpop.permute.xlu0 %903
  %905 = vrot.lane.b32.xlu0 %v894, 65
  %v906 = vpop.permute.xlu0 %905
  %907 = vrot.lane.b32.xlu0 %v887, 65
  %v908 = vpop.permute.xlu0 %907
  %vm909 = vcmask 531456
  %v910 = vsel %vm909, %v896, %v898
  %v911 = vsel %vm909, %v898, %v900
  %v912 = vsel %vm909, %v900, %v902
  %v913 = vsel %vm909, %v902, %v904
  %v914 = vsel %vm909, %v904, %v906
  %v915 = vsel %vm909, %v906, %v908
  %923 = vst [vmem:[#allocation3 + $0x1f8] sm:$0xf] %v910
  %924 = vst [vmem:[#allocation3 + $0x200] sm:$0xf] %v911
  %925 = vst [vmem:[#allocation3 + $0x208] sm:$0xf] %v912
  %926 = vst [vmem:[#allocation3 + $0x210] sm:$0xf] %v913
  %927 = vst [vmem:[#allocation3 + $0x218] sm:$0xf] %v914
  %928 = vst [vmem:[#allocation3 + $0x220] sm:$0xf] %v915
  %929 = vst.msk [vmem:[#allocation3 + $0x228] sm:$0xf] %vm90, %v908
  %v930 = vld [vmem:[#allocation2] sm:$0xff]
  %v931 = vld [vmem:[#allocation2 + $0x8] sm:$0xff]
  %v932 = vld [vmem:[#allocation2 + $0x10] sm:$0xff]
  %v933 = vld [vmem:[#allocation2 + $0x18] sm:$0xf]
  %v938 = vcombine.low %v930, %v930
  %v939 = vcombine.low %v931, %v931
  %v940 = vcombine.low %v932, %v932
  %v941 = vcombine.low %v933, %v933
  %942 = vrot.lane.b32.xlu0 %v938, 64
  %v943 = vpop.permute.xlu0 %942
  %944 = vrot.lane.b32.xlu0 %v930, 64
  %v945 = vpop.permute.xlu0 %944
  %946 = vrot.lane.b32.xlu0 %v939, 64
  %v947 = vpop.permute.xlu0 %946
  %948 = vrot.lane.b32.xlu0 %v931, 64
  %v949 = vpop.permute.xlu0 %948
  %950 = vrot.lane.b32.xlu0 %v940, 64
  %v951 = vpop.permute.xlu0 %950
  %952 = vrot.lane.b32.xlu0 %v932, 64
  %v953 = vpop.permute.xlu0 %952
  %954 = vrot.lane.b32.xlu0 %v941, 64
  %v955 = vpop.permute.xlu0 %954
  %vm956 = vcmask 523264
  %v957 = vsel %vm956, %v943, %v945
  %v958 = vsel %vm956, %v945, %v947
  %v959 = vsel %vm956, %v947, %v949
  %v960 = vsel %vm956, %v949, %v951
  %v961 = vsel %vm956, %v951, %v953
  %v962 = vsel %vm956, %v953, %v955
  %970 = vst [vmem:[#allocation3 + $0x1f8] sm:$0xf0] %v957
  %971 = vst [vmem:[#allocation3 + $0x200] sm:$0xf0] %v958
  %972 = vst [vmem:[#allocation3 + $0x208] sm:$0xf0] %v959
  %973 = vst [vmem:[#allocation3 + $0x210] sm:$0xf0] %v960
  %974 = vst [vmem:[#allocation3 + $0x218] sm:$0xf0] %v961
  %975 = vst [vmem:[#allocation3 + $0x220] sm:$0xf0] %v962
  %976 = vst.msk [vmem:[#allocation3 + $0x228] sm:$0xf0] %vm138, %v955
  %v977 = vld [vmem:[#allocation2] sm:$0xff]
  %v978 = vld [vmem:[#allocation2 + $0x8] sm:$0xff]
  %v979 = vld [vmem:[#allocation2 + $0x10] sm:$0xff]
  %v980 = vld [vmem:[#allocation2 + $0x18] sm:$0xf]
  %v985 = vcombine.high %v977, %v977
  %v986 = vcombine.high %v978, %v978
  %v987 = vcombine.high %v979, %v979
  %988 = vrot.lane.b32.xlu0 %v977, 48
  %v989 = vpop.permute.xlu0 %988
  %990 = vrot.lane.b32.xlu0 %v985, 48
  %v991 = vpop.permute.xlu0 %990
  %992 = vrot.lane.b32.xlu0 %v978, 48
  %v993 = vpop.permute.xlu0 %992
  %994 = vrot.lane.b32.xlu0 %v986, 48
  %v995 = vpop.permute.xlu0 %994
  %996 = vrot.lane.b32.xlu0 %v979, 48
  %v997 = vpop.permute.xlu0 %996
  %998 = vrot.lane.b32.xlu0 %v987, 48
  %v999 = vpop.permute.xlu0 %998
  %1000 = vrot.lane.b32.xlu0 %v980, 48
  %v1001 = vpop.permute.xlu0 %1000
  %vm1002 = vcmask 392192
  %v1003 = vsel %vm1002, %v989, %v991
  %v1004 = vsel %vm1002, %v991, %v993
  %v1005 = vsel %vm1002, %v993, %v995
  %v1006 = vsel %vm1002, %v995, %v997
  %v1007 = vsel %vm1002, %v997, %v999
  %v1008 = vsel %vm1002, %v999, %v1001
  %1016 = vst [vmem:[#allocation3 + $0x230] sm:$0xf] %v1003
  %1017 = vst [vmem:[#allocation3 + $0x238] sm:$0xf] %v1004
  %1018 = vst [vmem:[#allocation3 + $0x240] sm:$0xf] %v1005
  %1019 = vst [vmem:[#allocation3 + $0x248] sm:$0xf] %v1006
  %1020 = vst [vmem:[#allocation3 + $0x250] sm:$0xf] %v1007
  %1021 = vst [vmem:[#allocation3 + $0x258] sm:$0xf] %v1008
  %1022 = vst.msk [vmem:[#allocation3 + $0x260] sm:$0xf] %vm90, %v1001
  %v1023 = vld [vmem:[#allocation2] sm:$0xff]
  %v1024 = vld [vmem:[#allocation2 + $0x8] sm:$0xff]
  %v1025 = vld [vmem:[#allocation2 + $0x10] sm:$0xff]
  %v1026 = vld [vmem:[#allocation2 + $0x18] sm:$0xf]
  %v1031 = vcombine.low %v1023, %v1023
  %v1032 = vcombine.low %v1024, %v1024
  %v1033 = vcombine.low %v1025, %v1025
  %v1034 = vcombine.low %v1026, %v1026
  %1035 = vrot.lane.b32.xlu0 %v1031, 47
  %v1036 = vpop.permute.xlu0 %1035
  %1037 = vrot.lane.b32.xlu0 %v1023, 47
  %v1038 = vpop.permute.xlu0 %1037
  %1039 = vrot.lane.b32.xlu0 %v1032, 47
  %v1040 = vpop.permute.xlu0 %1039
  %1041 = vrot.lane.b32.xlu0 %v1024, 47
  %v1042 = vpop.permute.xlu0 %1041
  %1043 = vrot.lane.b32.xlu0 %v1033, 47
  %v1044 = vpop.permute.xlu0 %1043
  %1045 = vrot.lane.b32.xlu0 %v1025, 47
  %v1046 = vpop.permute.xlu0 %1045
  %1047 = vrot.lane.b32.xlu0 %v1034, 47
  %v1048 = vpop.permute.xlu0 %1047
  %vm1049 = vcmask 384000
  %v1050 = vsel %vm1049, %v1036, %v1038
  %v1051 = vsel %vm1049, %v1038, %v1040
  %v1052 = vsel %vm1049, %v1040, %v1042
  %v1053 = vsel %vm1049, %v1042, %v1044
  %v1054 = vsel %vm1049, %v1044, %v1046
  %v1055 = vsel %vm1049, %v1046, %v1048
  %1063 = vst [vmem:[#allocation3 + $0x230] sm:$0xf0] %v1050
  %1064 = vst [vmem:[#allocation3 + $0x238] sm:$0xf0] %v1051
  %1065 = vst [vmem:[#allocation3 + $0x240] sm:$0xf0] %v1052
  %1066 = vst [vmem:[#allocation3 + $0x248] sm:$0xf0] %v1053
  %1067 = vst [vmem:[#allocation3 + $0x250] sm:$0xf0] %v1054
  %1068 = vst [vmem:[#allocation3 + $0x258] sm:$0xf0] %v1055
  %1069 = vst.msk [vmem:[#allocation3 + $0x260] sm:$0xf0] %vm138, %v1048
  %v1070 = vld [vmem:[#allocation2] sm:$0xff]
  %v1071 = vld [vmem:[#allocation2 + $0x8] sm:$0xff]
  %v1072 = vld [vmem:[#allocation2 + $0x10] sm:$0xff]
  %v1073 = vld [vmem:[#allocation2 + $0x18] sm:$0xf]
  %v1078 = vcombine.high %v1070, %v1070
  %v1079 = vcombine.high %v1071, %v1071
  %v1080 = vcombine.high %v1072, %v1072
  %1081 = vrot.lane.b32.xlu0 %v1070, 46
  %v1082 = vpop.permute.xlu0 %1081
  %1083 = vrot.lane.b32.xlu0 %v1078, 46
  %v1084 = vpop.permute.xlu0 %1083
  %1085 = vrot.lane.b32.xlu0 %v1071, 46
  %v1086 = vpop.permute.xlu0 %1085
  %1087 = vrot.lane.b32.xlu0 %v1079, 46
  %v1088 = vpop.permute.xlu0 %1087
  %1089 = vrot.lane.b32.xlu0 %v1072, 46
  %v1090 = vpop.permute.xlu0 %1089
  %1091 = vrot.lane.b32.xlu0 %v1080, 46
  %v1092 = vpop.permute.xlu0 %1091
  %1093 = vrot.lane.b32.xlu0 %v1073, 46
  %v1094 = vpop.permute.xlu0 %1093
  %vm1095 = vcmask 375808
  %v1096 = vsel %vm1095, %v1082, %v1084
  %v1097 = vsel %vm1095, %v1084, %v1086
  %v1098 = vsel %vm1095, %v1086, %v1088
  %v1099 = vsel %vm1095, %v1088, %v1090
  %v1100 = vsel %vm1095, %v1090, %v1092
  %v1101 = vsel %vm1095, %v1092, %v1094
  %1109 = vst [vmem:[#allocation3 + $0x268] sm:$0xf] %v1096
  %1110 = vst [vmem:[#allocation3 + $0x270] sm:$0xf] %v1097
  %1111 = vst [vmem:[#allocation3 + $0x278] sm:$0xf] %v1098
  %1112 = vst [vmem:[#allocation3 + $0x280] sm:$0xf] %v1099
  %1113 = vst [vmem:[#allocation3 + $0x288] sm:$0xf] %v1100
  %1114 = vst [vmem:[#allocation3 + $0x290] sm:$0xf] %v1101
  %1115 = vst.msk [vmem:[#allocation3 + $0x298] sm:$0xf] %vm90, %v1094
  %v1116 = vld [vmem:[#allocation2] sm:$0xff]
  %v1117 = vld [vmem:[#allocation2 + $0x8] sm:$0xff]
  %v1118 = vld [vmem:[#allocation2 + $0x10] sm:$0xff]
  %v1119 = vld [vmem:[#allocation2 + $0x18] sm:$0xf]
  %v1124 = vcombine.low %v1116, %v1116
  %v1125 = vcombine.low %v1117, %v1117
  %v1126 = vcombine.low %v1118, %v1118
  %v1127 = vcombine.low %v1119, %v1119
  %1128 = vrot.lane.b32.xlu0 %v1124, 45
  %v1129 = vpop.permute.xlu0 %1128
  %1130 = vrot.lane.b32.xlu0 %v1116, 45
  %v1131 = vpop.permute.xlu0 %1130
  %1132 = vrot.lane.b32.xlu0 %v1125, 45
  %v1133 = vpop.permute.xlu0 %1132
  %1134 = vrot.lane.b32.xlu0 %v1117, 45
  %v1135 = vpop.permute.xlu0 %1134
  %1136 = vrot.lane.b32.xlu0 %v1126, 45
  %v1137 = vpop.permute.xlu0 %1136
  %1138 = vrot.lane.b32.xlu0 %v1118, 45
  %v1139 = vpop.permute.xlu0 %1138
  %1140 = vrot.lane.b32.xlu0 %v1127, 45
  %v1141 = vpop.permute.xlu0 %1140
  %vm1142 = vcmask 367616
  %v1143 = vsel %vm1142, %v1129, %v1131
  %v1144 = vsel %vm1142, %v1131, %v1133
  %v1145 = vsel %vm1142, %v1133, %v1135
  %v1146 = vsel %vm1142, %v1135, %v1137
  %v1147 = vsel %vm1142, %v1137, %v1139
  %v1148 = vsel %vm1142, %v1139, %v1141
  %1156 = vst [vmem:[#allocation3 + $0x268] sm:$0xf0] %v1143
  %1157 = vst [vmem:[#allocation3 + $0x270] sm:$0xf0] %v1144
  %1158 = vst [vmem:[#allocation3 + $0x278] sm:$0xf0] %v1145
  %1159 = vst [vmem:[#allocation3 + $0x280] sm:$0xf0] %v1146
  %1160 = vst [vmem:[#allocation3 + $0x288] sm:$0xf0] %v1147
  %1161 = vst [vmem:[#allocation3 + $0x290] sm:$0xf0] %v1148
  %1162 = vst.msk [vmem:[#allocation3 + $0x298] sm:$0xf0] %vm138, %v1141
  %v1163 = vld [vmem:[#allocation2] sm:$0xff]
  %v1164 = vld [vmem:[#allocation2 + $0x8] sm:$0xff]
  %v1165 = vld [vmem:[#allocation2 + $0x10] sm:$0xff]
  %v1166 = vld [vmem:[#allocation2 + $0x18] sm:$0xf]
  %v1171 = vcombine.high %v1163, %v1163
  %v1172 = vcombine.high %v1164, %v1164
  %v1173 = vcombine.high %v1165, %v1165
  %1174 = vrot.lane.b32.xlu0 %v1163, 44
  %v1175 = vpop.permute.xlu0 %1174
  %1176 = vrot.lane.b32.xlu0 %v1171, 44
  %v1177 = vpop.permute.xlu0 %1176
  %1178 = vrot.lane.b32.xlu0 %v1164, 44
  %v1179 = vpop.permute.xlu0 %1178
  %1180 = vrot.lane.b32.xlu0 %v1172, 44
  %v1181 = vpop.permute.xlu0 %1180
  %1182 = vrot.lane.b32.xlu0 %v1165, 44
  %v1183 = vpop.permute.xlu0 %1182
  %1184 = vrot.lane.b32.xlu0 %v1173, 44
  %v1185 = vpop.permute.xlu0 %1184
  %1186 = vrot.lane.b32.xlu0 %v1166, 44
  %v1187 = vpop.permute.xlu0 %1186
  %vm1188 = vcmask 359424
  %v1189 = vsel %vm1188, %v1175, %v1177
  %v1190 = vsel %vm1188, %v1177, %v1179
  %v1191 = vsel %vm1188, %v1179, %v1181
  %v1192 = vsel %vm1188, %v1181, %v1183
  %v1193 = vsel %vm1188, %v1183, %v1185
  %v1194 = vsel %vm1188, %v1185, %v1187
  %1202 = vst [vmem:[#allocation3 + $0x2a0] sm:$0xf] %v1189
  %1203 = vst [vmem:[#allocation3 + $0x2a8] sm:$0xf] %v1190
  %1204 = vst [vmem:[#allocation3 + $0x2b0] sm:$0xf] %v1191
  %1205 = vst [vmem:[#allocation3 + $0x2b8] sm:$0xf] %v1192
  %1206 = vst [vmem:[#allocation3 + $0x2c0] sm:$0xf] %v1193
  %1207 = vst [vmem:[#allocation3 + $0x2c8] sm:$0xf] %v1194
  %1208 = vst.msk [vmem:[#allocation3 + $0x2d0] sm:$0xf] %vm90, %v1187
  %v1209 = vld [vmem:[%s2] sm:$0xf]
  %v1210 = vld [vmem:[#allocation3] sm:$0xff]
  %v1211 = vld [vmem:[#allocation3 + $0x8] sm:$0xff]
  %v1212 = vld [vmem:[#allocation3 + $0x10] sm:$0xff]
  %v1213 = vld [vmem:[#allocation3 + $0x18] sm:$0xff]
  %v1214 = vld [vmem:[#allocation3 + $0x20] sm:$0xff]
  %v1215 = vld [vmem:[#allocation3 + $0x28] sm:$0xff]
  %v1216 = vld [vmem:[#allocation3 + $0x30] sm:$0xff]
  %v1217 = vld [vmem:[#allocation3 + $0x38] sm:$0xff]
  %v1218 = vld [vmem:[#allocation3 + $0x40] sm:$0xff]
  %v1219 = vld [vmem:[#allocation3 + $0x48] sm:$0xff]
  %v1220 = vld [vmem:[#allocation3 + $0x50] sm:$0xff]
  %v1221 = vld [vmem:[#allocation3 + $0x58] sm:$0xff]
  %v1222 = vld [vmem:[#allocation3 + $0x60] sm:$0xff]
  %v1223 = vld [vmem:[#allocation3 + $0x68] sm:$0xff]
  %v1224 = vld [vmem:[#allocation3 + $0x70] sm:$0xff]
  %v1225 = vld [vmem:[#allocation3 + $0x78] sm:$0xff]
  %v1226 = vld [vmem:[#allocation3 + $0x80] sm:$0xff]
  %v1227 = vld [vmem:[#allocation3 + $0x88] sm:$0xff]
  %v1228 = vld [vmem:[#allocation3 + $0x90] sm:$0xff]
  %v1229 = vld [vmem:[#allocation3 + $0x98] sm:$0xff]
  %v1230 = vld [vmem:[#allocation3 + $0xa0] sm:$0xff]
  %v1231 = vld [vmem:[#allocation3 + $0xa8] sm:$0xff]
  %v1232 = vld [vmem:[#allocation3 + $0xb0] sm:$0xff]
  %v1233 = vld [vmem:[#allocation3 + $0xb8] sm:$0xff]
  %v1234 = vld [vmem:[#allocation3 + $0xc0] sm:$0xff]
  %v1235 = vld [vmem:[#allocation3 + $0xc8] sm:$0xff]
  %v1236 = vld [vmem:[#allocation3 + $0xd0] sm:$0xff]
  %v1237 = vld [vmem:[#allocation3 + $0xd8] sm:$0xff]
  %v1238 = vld [vmem:[#allocation3 + $0xe0] sm:$0xff]
  %v1239 = vld [vmem:[#allocation3 + $0xe8] sm:$0xff]
  %v1240 = vld [vmem:[#allocation3 + $0xf0] sm:$0xff]
  %v1241 = vld [vmem:[#allocation3 + $0xf8] sm:$0xff]
  %v1242 = vld [vmem:[#allocation3 + $0x100] sm:$0xff]
  %v1243 = vld [vmem:[#allocation3 + $0x108] sm:$0xff]
  %v1244 = vld [vmem:[#allocation3 + $0x110] sm:$0xff]
  %v1245 = vld [vmem:[#allocation3 + $0x118] sm:$0xff]
  %v1246 = vld [vmem:[#allocation3 + $0x120] sm:$0xff]
  %v1247 = vld [vmem:[#allocation3 + $0x128] sm:$0xff]
  %v1248 = vld [vmem:[#allocation3 + $0x130] sm:$0xff]
  %v1249 = vld [vmem:[#allocation3 + $0x138] sm:$0xff]
  %v1250 = vld [vmem:[#allocation3 + $0x140] sm:$0xff]
  %v1251 = vld [vmem:[#allocation3 + $0x148] sm:$0xff]
  %v1252 = vld [vmem:[#allocation3 + $0x150] sm:$0xff]
  %v1253 = vld [vmem:[#allocation3 + $0x158] sm:$0xff]
  %v1254 = vld [vmem:[#allocation3 + $0x160] sm:$0xff]
  %v1255 = vld [vmem:[#allocation3 + $0x168] sm:$0xff]
  %v1256 = vld [vmem:[#allocation3 + $0x170] sm:$0xff]
  %v1257 = vld [vmem:[#allocation3 + $0x178] sm:$0xff]
  %v1258 = vld [vmem:[#allocation3 + $0x180] sm:$0xff]
  %v1259 = vld [vmem:[#allocation3 + $0x188] sm:$0xff]
  %v1260 = vld [vmem:[#allocation3 + $0x190] sm:$0xff]
  %v1261 = vld [vmem:[#allocation3 + $0x198] sm:$0xff]
  %v1262 = vld [vmem:[#allocation3 + $0x1a0] sm:$0xff]
  %v1263 = vld [vmem:[#allocation3 + $0x1a8] sm:$0xff]
  %v1264 = vld [vmem:[#allocation3 + $0x1b0] sm:$0xff]
  %v1265 = vld [vmem:[#allocation3 + $0x1b8] sm:$0xff]
  %v1266 = vld [vmem:[#allocation3 + $0x1c0] sm:$0xff]
  %v1267 = vld [vmem:[#allocation3 + $0x1c8] sm:$0xff]
  %v1268 = vld [vmem:[#allocation3 + $0x1d0] sm:$0xff]
  %v1269 = vld [vmem:[#allocation3 + $0x1d8] sm:$0xff]
  %v1270 = vld [vmem:[#allocation3 + $0x1e0] sm:$0xff]
  %v1271 = vld [vmem:[#allocation3 + $0x1e8] sm:$0xff]
  %v1272 = vld [vmem:[#allocation3 + $0x1f0] sm:$0xff]
  %v1273 = vld [vmem:[#allocation3 + $0x1f8] sm:$0xff]
  %v1274 = vld [vmem:[#allocation3 + $0x200] sm:$0xff]
  %v1275 = vld [vmem:[#allocation3 + $0x208] sm:$0xff]
  %v1276 = vld [vmem:[#allocation3 + $0x210] sm:$0xff]
  %v1277 = vld [vmem:[#allocation3 + $0x218] sm:$0xff]
  %v1278 = vld [vmem:[#allocation3 + $0x220] sm:$0xff]
  %v1279 = vld [vmem:[#allocation3 + $0x228] sm:$0xff]
  %v1280 = vld [vmem:[#allocation3 + $0x230] sm:$0xff]
  %v1281 = vld [vmem:[#allocation3 + $0x238] sm:$0xff]
  %v1282 = vld [vmem:[#allocation3 + $0x240] sm:$0xff]
  %v1283 = vld [vmem:[#allocation3 + $0x248] sm:$0xff]
  %v1284 = vld [vmem:[#allocation3 + $0x250] sm:$0xff]
  %v1285 = vld [vmem:[#allocation3 + $0x258] sm:$0xff]
  %v1286 = vld [vmem:[#allocation3 + $0x260] sm:$0xff]
  %v1287 = vld [vmem:[#allocation3 + $0x268] sm:$0xff]
  %v1288 = vld [vmem:[#allocation3 + $0x270] sm:$0xff]
  %v1289 = vld [vmem:[#allocation3 + $0x278] sm:$0xff]
  %v1290 = vld [vmem:[#allocation3 + $0x280] sm:$0xff]
  %v1291 = vld [vmem:[#allocation3 + $0x288] sm:$0xff]
  %v1292 = vld [vmem:[#allocation3 + $0x290] sm:$0xff]
  %v1293 = vld [vmem:[#allocation3 + $0x298] sm:$0xff]
  %v1294 = vld [vmem:[#allocation3 + $0x2a0] sm:$0xf]
  %v1295 = vld [vmem:[#allocation3 + $0x2a8] sm:$0xf]
  %v1296 = vld [vmem:[#allocation3 + $0x2b0] sm:$0xf]
  %v1297 = vld [vmem:[#allocation3 + $0x2b8] sm:$0xf]
  %v1298 = vld [vmem:[#allocation3 + $0x2c0] sm:$0xf]
  %v1299 = vld [vmem:[#allocation3 + $0x2c8] sm:$0xf]
  %v1300 = vld [vmem:[#allocation3 + $0x2d0] sm:$0xf]
  %vm1301 = vcmask 818176
  %v1303 = vsel %vm1301, %v1209, 0
  %v1306 = vsel %vm53, %v1294, 0
  %v1309 = vsel %vm53, %v1295, 0
  %v1312 = vsel %vm53, %v1296, 0
  %v1315 = vsel %vm53, %v1297, 0
  %v1318 = vsel %vm53, %v1298, 0
  %v1321 = vsel %vm53, %v1299, 0
  %v1324 = vsel %vm53, %v1300, 0
  %1326 = vmatprep.subr.mxu0 %v1211
  %1327 = vmatpush1.msra.mxu0 %v1210
  %1328 = vmatprep.subr.mxu0 %v1218
  %1329 = vmatpush1.msra.mxu0 %v1217
  %1330 = vmatprep.subr.mxu0 %v1225
  %1331 = vmatpush1.msra.mxu0 %v1224
  %1332 = vmatprep.subr.mxu0 %v1232
  %1333 = vmatpush1.msra.mxu0 %v1231
  %1334 = vmatprep.subr.mxu0 %v1239
  %1335 = vmatpush1.msra.mxu0 %v1238
  %1336 = vmatprep.subr.mxu0 %v1246
  %1337 = vmatpush1.msra.mxu0 %v1245
  %1338 = vmatprep.subr.mxu0 %v1253
  %1339 = vmatpush1.msra.mxu0 %v1252
  %1340 = vmatprep.subr.mxu0 %v1260
  %1341 = vmatpush1.msra.mxu0 %v1259
  %1342 = vmatprep.subr.mxu0 %v1267
  %1343 = vmatpush1.msra.mxu0 %v1266
  %1344 = vmatprep.subr.mxu0 %v1274
  %1345 = vmatpush1.msra.mxu0 %v1273
  %1346 = vmatprep.subr.mxu0 %v1281
  %1347 = vmatpush1.msra.mxu0 %v1280
  %1348 = vmatprep.subr.mxu0 %v1288
  %1349 = vmatpush1.msra.mxu0 %v1287
  %1350 = vmatprep.subr.mxu0 %v1309
  %1351 = vmatpush1.msra.mxu0 %v1306
  %1352 = vmatprep.subr.mxu0 0.0
  %1353 = vmatpush1.msra.mxu0 0.0
  %1354 = vmatprep.subr.mxu0 0.0
  %1355 = vmatpush1.msra.mxu0 0.0
  %1356 = vmatprep.subr.mxu0 0.0
  %1357 = vmatpush1.msra.mxu0 0.0
  %1358 = vmatprep.subr.mxu0 0.0
  %1359 = vmatpush1.msra.mxu0 0.0
  %1360 = vmatprep.subr.mxu0 0.0
  %1361 = vmatpush1.msra.mxu0 0.0
  %1362 = vmatprep.subr.mxu0 0.0
  %1363 = vmatpush1.msra.mxu0 0.0
  %1364 = vmatprep.subr.mxu0 0.0
  %1365 = vmatpush1.msra.mxu0 0.0
  %1366 = vmatprep.subr.mxu0 0.0
  %1367 = vmatpush1.msra.mxu0 0.0
  %1368 = vmatprep.subr.mxu0 0.0
  %1369 = vmatpush1.msra.mxu0 0.0
  %1370 = vmatprep.subr.mxu0 0.0
  %1371 = vmatpush1.msra.mxu0 0.0
  %1372 = vmatprep.subr.mxu0 0.0
  %1373 = vmatpush1.msra.mxu0 0.0
  %1374 = vmatprep.subr.mxu0 0.0
  %1375 = vmatpush1.msra.mxu0 0.0
  %1376 = vmatprep.subr.mxu0 0.0
  %1377 = vmatpush1.msra.mxu0 0.0
  %1378 = vmatprep.subr.mxu0 0.0
  %1379 = vmatpush1.msra.mxu0 0.0
  %1380 = vmatprep.subr.mxu0 0.0
  %1381 = vmatpush1.msra.mxu0 0.0
  %1382 = vmatprep.subr.mxu0 0.0
  %1383 = vmatpush1.msra.mxu0 0.0
  %1384 = vmatprep.subr.mxu0 0.0
  %1385 = vmatpush1.msra.mxu0 0.0
  %1386 = vmatprep.subr.mxu0 0.0
  %1387 = vmatpush1.msra.mxu0 0.0
  %1388 = vmatprep.subr.mxu0 0.0
  %1389 = vmatpush1.msra.mxu0 0.0
  %1390 = vmatprep.mubr.f32.mxu0 0.0
  %1391 = vmatmul.mubr.f32.gmra.mrb[0].mxu0 %v1303
  %v1392 = vpop.f32.mrb[0].mxu0
  %v1393 = vadd.f32 0.0, %v1392
  %v1394 = vpop.f32.mrb[0].mxu0
  %v1395 = vadd.f32 0.0, %v1394
  %1396 = vdwg.mxu0
  %1397 = vmatprep.subr.mxu0 %v1213
  %1398 = vmatpush1.msra.mxu0 %v1212
  %1399 = vmatprep.subr.mxu0 %v1220
  %1400 = vmatpush1.msra.mxu0 %v1219
  %1401 = vmatprep.subr.mxu0 %v1227
  %1402 = vmatpush1.msra.mxu0 %v1226
  %1403 = vmatprep.subr.mxu0 %v1234
  %1404 = vmatpush1.msra.mxu0 %v1233
  %1405 = vmatprep.subr.mxu0 %v1241
  %1406 = vmatpush1.msra.mxu0 %v1240
  %1407 = vmatprep.subr.mxu0 %v1248
  %1408 = vmatpush1.msra.mxu0 %v1247
  %1409 = vmatprep.subr.mxu0 %v1255
  %1410 = vmatpush1.msra.mxu0 %v1254
  %1411 = vmatprep.subr.mxu0 %v1262
  %1412 = vmatpush1.msra.mxu0 %v1261
  %1413 = vmatprep.subr.mxu0 %v1269
  %1414 = vmatpush1.msra.mxu0 %v1268
  %1415 = vmatprep.subr.mxu0 %v1276
  %1416 = vmatpush1.msra.mxu0 %v1275
  %1417 = vmatprep.subr.mxu0 %v1283
  %1418 = vmatpush1.msra.mxu0 %v1282
  %1419 = vmatprep.subr.mxu0 %v1290
  %1420 = vmatpush1.msra.mxu0 %v1289
  %1421 = vmatprep.subr.mxu0 %v1315
  %1422 = vmatpush1.msra.mxu0 %v1312
  %1423 = vmatprep.subr.mxu0 0.0
  %1424 = vmatpush1.msra.mxu0 0.0
  %1425 = vmatprep.subr.mxu0 0.0
  %1426 = vmatpush1.msra.mxu0 0.0
  %1427 = vmatprep.subr.mxu0 0.0
  %1428 = vmatpush1.msra.mxu0 0.0
  %1429 = vmatprep.subr.mxu0 0.0
  %1430 = vmatpush1.msra.mxu0 0.0
  %1431 = vmatprep.subr.mxu0 0.0
  %1432 = vmatpush1.msra.mxu0 0.0
  %1433 = vmatprep.subr.mxu0 0.0
  %1434 = vmatpush1.msra.mxu0 0.0
  %1435 = vmatprep.subr.mxu0 0.0
  %1436 = vmatpush1.msra.mxu0 0.0
  %1437 = vmatprep.subr.mxu0 0.0
  %1438 = vmatpush1.msra.mxu0 0.0
  %1439 = vmatprep.subr.mxu0 0.0
  %1440 = vmatpush1.msra.mxu0 0.0
  %1441 = vmatprep.subr.mxu0 0.0
  %1442 = vmatpush1.msra.mxu0 0.0
  %1443 = vmatprep.subr.mxu0 0.0
  %1444 = vmatpush1.msra.mxu0 0.0
  %1445 = vmatprep.subr.mxu0 0.0
  %1446 = vmatpush1.msra.mxu0 0.0
  %1447 = vmatprep.subr.mxu0 0.0
  %1448 = vmatpush1.msra.mxu0 0.0
  %1449 = vmatprep.subr.mxu0 0.0
  %1450 = vmatpush1.msra.mxu0 0.0
  %1451 = vmatprep.subr.mxu0 0.0
  %1452 = vmatpush1.msra.mxu0 0.0
  %1453 = vmatprep.subr.mxu0 0.0
  %1454 = vmatpush1.msra.mxu0 0.0
  %1455 = vmatprep.subr.mxu0 0.0
  %1456 = vmatpush1.msra.mxu0 0.0
  %1457 = vmatprep.subr.mxu0 0.0
  %1458 = vmatpush1.msra.mxu0 0.0
  %1459 = vmatprep.subr.mxu0 0.0
  %1460 = vmatpush1.msra.mxu0 0.0
  %1461 = vmatprep.mubr.f32.mxu0 0.0
  %1462 = vmatmul.mubr.f32.gmra.mrb[0].mxu0 %v1303
  %v1463 = vpop.f32.mrb[0].mxu0
  %v1464 = vadd.f32 0.0, %v1463
  %v1465 = vpop.f32.mrb[0].mxu0
  %v1466 = vadd.f32 0.0, %v1465
  %1467 = vdwg.mxu0
  %1468 = vmatprep.subr.mxu0 %v1215
  %1469 = vmatpush1.msra.mxu0 %v1214
  %1470 = vmatprep.subr.mxu0 %v1222
  %1471 = vmatpush1.msra.mxu0 %v1221
  %1472 = vmatprep.subr.mxu0 %v1229
  %1473 = vmatpush1.msra.mxu0 %v1228
  %1474 = vmatprep.subr.mxu0 %v1236
  %1475 = vmatpush1.msra.mxu0 %v1235
  %1476 = vmatprep.subr.mxu0 %v1243
  %1477 = vmatpush1.msra.mxu0 %v1242
  %1478 = vmatprep.subr.mxu0 %v1250
  %1479 = vmatpush1.msra.mxu0 %v1249
  %1480 = vmatprep.subr.mxu0 %v1257
  %1481 = vmatpush1.msra.mxu0 %v1256
  %1482 = vmatprep.subr.mxu0 %v1264
  %1483 = vmatpush1.msra.mxu0 %v1263
  %1484 = vmatprep.subr.mxu0 %v1271
  %1485 = vmatpush1.msra.mxu0 %v1270
  %1486 = vmatprep.subr.mxu0 %v1278
  %1487 = vmatpush1.msra.mxu0 %v1277
  %1488 = vmatprep.subr.mxu0 %v1285
  %1489 = vmatpush1.msra.mxu0 %v1284
  %1490 = vmatprep.subr.mxu0 %v1292
  %1491 = vmatpush1.msra.mxu0 %v1291
  %1492 = vmatprep.subr.mxu0 %v1321
  %1493 = vmatpush1.msra.mxu0 %v1318
  %1494 = vmatprep.subr.mxu0 0.0
  %1495 = vmatpush1.msra.mxu0 0.0
  %1496 = vmatprep.subr.mxu0 0.0
  %1497 = vmatpush1.msra.mxu0 0.0
  %1498 = vmatprep.subr.mxu0 0.0
  %1499 = vmatpush1.msra.mxu0 0.0
  %1500 = vmatprep.subr.mxu0 0.0
  %1501 = vmatpush1.msra.mxu0 0.0
  %1502 = vmatprep.subr.mxu0 0.0
  %1503 = vmatpush1.msra.mxu0 0.0
  %1504 = vmatprep.subr.mxu0 0.0
  %1505 = vmatpush1.msra.mxu0 0.0
  %1506 = vmatprep.subr.mxu0 0.0
  %1507 = vmatpush1.msra.mxu0 0.0
  %1508 = vmatprep.subr.mxu0 0.0
  %1509 = vmatpush1.msra.mxu0 0.0
  %1510 = vmatprep.subr.mxu0 0.0
  %1511 = vmatpush1.msra.mxu0 0.0
  %1512 = vmatprep.subr.mxu0 0.0
  %1513 = vmatpush1.msra.mxu0 0.0
  %1514 = vmatprep.subr.mxu0 0.0
  %1515 = vmatpush1.msra.mxu0 0.0
  %1516 = vmatprep.subr.mxu0 0.0
  %1517 = vmatpush1.msra.mxu0 0.0
  %1518 = vmatprep.subr.mxu0 0.0
  %1519 = vmatpush1.msra.mxu0 0.0
  %1520 = vmatprep.subr.mxu0 0.0
  %1521 = vmatpush1.msra.mxu0 0.0
  %1522 = vmatprep.subr.mxu0 0.0
  %1523 = vmatpush1.msra.mxu0 0.0
  %1524 = vmatprep.subr.mxu0 0.0
  %1525 = vmatpush1.msra.mxu0 0.0
  %1526 = vmatprep.subr.mxu0 0.0
  %1527 = vmatpush1.msra.mxu0 0.0
  %1528 = vmatprep.subr.mxu0 0.0
  %1529 = vmatpush1.msra.mxu0 0.0
  %1530 = vmatprep.subr.mxu0 0.0
  %1531 = vmatpush1.msra.mxu0 0.0
  %1532 = vmatprep.mubr.f32.mxu0 0.0
  %1533 = vmatmul.mubr.f32.gmra.mrb[0].mxu0 %v1303
  %v1534 = vpop.f32.mrb[0].mxu0
  %v1535 = vadd.f32 0.0, %v1534
  %v1536 = vpop.f32.mrb[0].mxu0
  %v1537 = vadd.f32 0.0, %v1536
  %1538 = vdwg.mxu0
  %1539 = vmatprep.subr.mxu0 0.0
  %1540 = vmatpush1.msra.mxu0 %v1216
  %1541 = vmatprep.subr.mxu0 0.0
  %1542 = vmatpush1.msra.mxu0 %v1223
  %1543 = vmatprep.subr.mxu0 0.0
  %1544 = vmatpush1.msra.mxu0 %v1230
  %1545 = vmatprep.subr.mxu0 0.0
  %1546 = vmatpush1.msra.mxu0 %v1237
  %1547 = vmatprep.subr.mxu0 0.0
  %1548 = vmatpush1.msra.mxu0 %v1244
  %1549 = vmatprep.subr.mxu0 0.0
  %1550 = vmatpush1.msra.mxu0 %v1251
  %1551 = vmatprep.subr.mxu0 0.0
  %1552 = vmatpush1.msra.mxu0 %v1258
  %1553 = vmatprep.subr.mxu0 0.0
  %1554 = vmatpush1.msra.mxu0 %v1265
  %1555 = vmatprep.subr.mxu0 0.0
  %1556 = vmatpush1.msra.mxu0 %v1272
  %1557 = vmatprep.subr.mxu0 0.0
  %1558 = vmatpush1.msra.mxu0 %v1279
  %1559 = vmatprep.subr.mxu0 0.0
  %1560 = vmatpush1.msra.mxu0 %v1286
  %1561 = vmatprep.subr.mxu0 0.0
  %1562 = vmatpush1.msra.mxu0 %v1293
  %1563 = vmatprep.subr.mxu0 0.0
  %1564 = vmatpush1.msra.mxu0 %v1324
  %1565 = vmatprep.subr.mxu0 0.0
  %1566 = vmatpush1.msra.mxu0 0.0
  %1567 = vmatprep.subr.mxu0 0.0
  %1568 = vmatpush1.msra.mxu0 0.0
  %1569 = vmatprep.subr.mxu0 0.0
  %1570 = vmatpush1.msra.mxu0 0.0
  %1571 = vmatprep.subr.mxu0 0.0
  %1572 = vmatpush1.msra.mxu0 0.0
  %1573 = vmatprep.subr.mxu0 0.0
  %1574 = vmatpush1.msra.mxu0 0.0
  %1575 = vmatprep.subr.mxu0 0.0
  %1576 = vmatpush1.msra.mxu0 0.0
  %1577 = vmatprep.subr.mxu0 0.0
  %1578 = vmatpush1.msra.mxu0 0.0
  %1579 = vmatprep.subr.mxu0 0.0
  %1580 = vmatpush1.msra.mxu0 0.0
  %1581 = vmatprep.subr.mxu0 0.0
  %1582 = vmatpush1.msra.mxu0 0.0
  %1583 = vmatprep.subr.mxu0 0.0
  %1584 = vmatpush1.msra.mxu0 0.0
  %1585 = vmatprep.subr.mxu0 0.0
  %1586 = vmatpush1.msra.mxu0 0.0
  %1587 = vmatprep.subr.mxu0 0.0
  %1588 = vmatpush1.msra.mxu0 0.0
  %1589 = vmatprep.subr.mxu0 0.0
  %1590 = vmatpush1.msra.mxu0 0.0
  %1591 = vmatprep.subr.mxu0 0.0
  %1592 = vmatpush1.msra.mxu0 0.0
  %1593 = vmatprep.subr.mxu0 0.0
  %1594 = vmatpush1.msra.mxu0 0.0
  %1595 = vmatprep.subr.mxu0 0.0
  %1596 = vmatpush1.msra.mxu0 0.0
  %1597 = vmatprep.subr.mxu0 0.0
  %1598 = vmatpush1.msra.mxu0 0.0
  %1599 = vmatprep.subr.mxu0 0.0
  %1600 = vmatpush1.msra.mxu0 0.0
  %1601 = vmatprep.subr.mxu0 0.0
  %1602 = vmatpush1.msra.mxu0 0.0
  %1603 = vmatprep.mubr.f32.mxu0 0.0
  %1604 = vmatmul.mubr.f32.gmra.mrb[0].mxu0 %v1303
  %v1605 = vpop.f32.mrb[0].mxu0
  %v1606 = vadd.f32 0.0, %v1605
  %v1607 = vpop.f32.mrb[0].mxu0
  %1608 = vdwg.mxu0
  %v1610 = vlaneseq
  %v1611 = vshrl.u32 %v1610, 7
  %v1612 = vsub.s32 0, %v1611
  %v1613 = vrot.slane %v26, %v1612
  %v1614 = vlaneseq
  %v1615 = vshrl.u32 %v1614, 7
  %v1616 = vsub.s32 1, %v1615
  %v1617 = vrot.slane %v26, %v1616
  %v1618 = vlaneseq
  %v1619 = vshrl.u32 %v1618, 7
  %v1620 = vsub.s32 2, %v1619
  %v1621 = vrot.slane %v26, %v1620
  %v1622 = vlaneseq
  %v1623 = vshrl.u32 %v1622, 7
  %v1624 = vsub.s32 3, %v1623
  %v1625 = vrot.slane %v26, %v1624
  %v1626 = vlaneseq
  %v1627 = vshrl.u32 %v1626, 7
  %v1628 = vsub.s32 4, %v1627
  %v1629 = vrot.slane %v26, %v1628
  %v1630 = vlaneseq
  %v1631 = vshrl.u32 %v1630, 7
  %v1632 = vsub.s32 5, %v1631
  %v1633 = vrot.slane %v26, %v1632
  %v1634 = vlaneseq
  %v1635 = vshrl.u32 %v1634, 7
  %v1636 = vsub.s32 6, %v1635
  %v1637 = vrot.slane %v26, %v1636
  %v1645 = vmul.f32 %v1393, %v1613
  %v1646 = vmul.f32 %v1395, %v1617
  %v1647 = vmul.f32 %v1464, %v1621
  %v1648 = vmul.f32 %v1466, %v1625
  %v1649 = vmul.f32 %v1535, %v1629
  %v1650 = vmul.f32 %v1537, %v1633
  %v1651 = vmul.f32 %v1606, %v1637
  %v1652 = vsel %vm53, %v1645, 0.0
  %v1653 = vsel %vm53, %v1646, 0.0
  %v1654 = vadd.f32 %v1652, %v1653
  %v1655 = vsel %vm53, %v1647, 0.0
  %v1656 = vadd.f32 %v1654, %v1655
  %v1657 = vsel %vm53, %v1648, 0.0
  %v1658 = vadd.f32 %v1656, %v1657
  %v1659 = vsel %vm53, %v1649, 0.0
  %v1660 = vadd.f32 %v1658, %v1659
  %v1661 = vsel %vm53, %v1650, 0.0
  %v1662 = vadd.f32 %v1660, %v1661
  %v1663 = vsel %vm90, %v1651, 0.0
  %v1664 = vadd.f32 %v1662, %v1663
  %1665 = vadd.xlane.f32.xlu0 %v1664
  %v1666 = vpop.xlane.xlu0 %1665
  %v1667 = vmul.f32 %v1666, 0.001953125
  %v1668 = vsub.f32 %v1393, %v1667
  %v1669 = vsub.f32 %v1395, %v1667
  %v1670 = vsub.f32 %v1464, %v1667
  %v1671 = vsub.f32 %v1466, %v1667
  %v1672 = vsub.f32 %v1535, %v1667
  %v1673 = vsub.f32 %v1537, %v1667
  %v1674 = vsub.f32 %v1606, %v1667
  %v1675 = vmul.f32 %v1668, %v1613
  %v1676 = vmul.f32 %v1669, %v1617
  %v1677 = vmul.f32 %v1670, %v1621
  %v1678 = vmul.f32 %v1671, %v1625
  %v1679 = vmul.f32 %v1672, %v1629
  %v1680 = vmul.f32 %v1673, %v1633
  %v1681 = vmul.f32 %v1674, %v1637
  %v1682 = vmul.f32 %v1675, %v1675
  %v1683 = vmul.f32 %v1676, %v1676
  %v1684 = vmul.f32 %v1677, %v1677
  %v1685 = vmul.f32 %v1678, %v1678
  %v1686 = vmul.f32 %v1679, %v1679
  %v1687 = vmul.f32 %v1680, %v1680
  %v1688 = vmul.f32 %v1681, %v1681
  %v1689 = vsel %vm53, %v1682, 0.0
  %v1690 = vsel %vm53, %v1683, 0.0
  %v1691 = vadd.f32 %v1689, %v1690
  %v1692 = vsel %vm53, %v1684, 0.0
  %v1693 = vadd.f32 %v1691, %v1692
  %v1694 = vsel %vm53, %v1685, 0.0
  %v1695 = vadd.f32 %v1693, %v1694
  %v1696 = vsel %vm53, %v1686, 0.0
  %v1697 = vadd.f32 %v1695, %v1696
  %v1698 = vsel %vm53, %v1687, 0.0
  %v1699 = vadd.f32 %v1697, %v1698
  %v1700 = vsel %vm90, %v1688, 0.0
  %v1701 = vadd.f32 %v1699, %v1700
  %1702 = vadd.xlane.f32.xlu0 %v1701
  %v1703 = vpop.xlane.xlu0 %1702
  %v1704 = vmul.f32 %v1703, 0.001953125
  %v1705 = vadd.f32 %v1704, 1e-05
  %v1706 = vrsqrt.pop %v1705
  %v1707 = vmul.f32 %v1675, %v1706
  %v1708 = vmul.f32 %v1676, %v1706
  %v1709 = vmul.f32 %v1677, %v1706
  %v1710 = vmul.f32 %v1678, %v1706
  %v1711 = vmul.f32 %v1679, %v1706
  %v1712 = vmul.f32 %v1680, %v1706
  %v1713 = vmul.f32 %v1681, %v1706
  %v1714 = vld [vmem:[%s3] sm:$0xf]
  %1716 = vset.pattern.permute.xlu0 0
  %1717 = vperm.xlu0 %1716, %v1714
  %v1718 = vpop.permute.xlu0 %1717
  %v1720 = vmul.f32 %v1707, %v1718
  %v1721 = vmul.f32 %v1708, %v1718
  %v1722 = vmul.f32 %v1709, %v1718
  %v1723 = vmul.f32 %v1710, %v1718
  %v1724 = vmul.f32 %v1711, %v1718
  %v1725 = vmul.f32 %v1712, %v1718
  %v1726 = vmul.f32 %v1713, %v1718
  %v1727 = vld [vmem:[%s4] sm:$0xf]
  %1729 = vset.pattern.permute.xlu0 0
  %1730 = vperm.xlu0 %1729, %v1727
  %v1731 = vpop.permute.xlu0 %1730
  %v1733 = vadd.f32 %v1720, %v1731
  %v1734 = vadd.f32 %v1721, %v1731
  %v1735 = vadd.f32 %v1722, %v1731
  %v1736 = vadd.f32 %v1723, %v1731
  %v1737 = vadd.f32 %v1724, %v1731
  %v1738 = vadd.f32 %v1725, %v1731
  %v1739 = vadd.f32 %v1726, %v1731
  %vm1740 = vcmp.ge.f32.partialorder %v1733, 0.0
  %vm1741 = vcmp.ge.f32.partialorder %v1734, 0.0
  %vm1742 = vcmp.ge.f32.partialorder %v1735, 0.0
  %vm1743 = vcmp.ge.f32.partialorder %v1736, 0.0
  %vm1744 = vcmp.ge.f32.partialorder %v1737, 0.0
  %vm1745 = vcmp.ge.f32.partialorder %v1738, 0.0
  %vm1746 = vcmp.ge.f32.partialorder %v1739, 0.0
  %v1747 = vmul.f32 %v1733, 0.01
  %v1748 = vmul.f32 %v1734, 0.01
  %v1749 = vmul.f32 %v1735, 0.01
  %v1750 = vmul.f32 %v1736, 0.01
  %v1751 = vmul.f32 %v1737, 0.01
  %v1752 = vmul.f32 %v1738, 0.01
  %v1753 = vmul.f32 %v1739, 0.01
  %v1754 = vsel %vm1740, %v1733, %v1747
  %v1755 = vsel %vm1741, %v1734, %v1748
  %v1756 = vsel %vm1742, %v1735, %v1749
  %v1757 = vsel %vm1743, %v1736, %v1750
  %v1758 = vsel %vm1744, %v1737, %v1751
  %v1759 = vsel %vm1745, %v1738, %v1752
  %v1760 = vsel %vm1746, %v1739, %v1753
  %v1761 = vmul.f32 %v1754, %v1613
  %v1762 = vmul.f32 %v1755, %v1617
  %v1763 = vmul.f32 %v1756, %v1621
  %v1764 = vmul.f32 %v1757, %v1625
  %v1765 = vmul.f32 %v1758, %v1629
  %v1766 = vmul.f32 %v1759, %v1633
  %v1767 = vmul.f32 %v1760, %v1637
  %v1775 = vcombine.low %v1761, %v1762
  %v1776 = vcombine.low %v1763, %v1764
  %v1777 = vcombine.low %v1765, %v1766
  %1778 = vrot.lane.b32.xlu0 %v1775, 42
  %v1779 = vpop.permute.xlu0 %1778
  %1780 = vrot.lane.b32.xlu0 %v1776, 42
  %v1781 = vpop.permute.xlu0 %1780
  %1782 = vrot.lane.b32.xlu0 %v1777, 42
  %v1783 = vpop.permute.xlu0 %1782
  %1784 = vrot.lane.b32.xlu0 %v1767, 42
  %v1785 = vpop.permute.xlu0 %1784
  %v1786 = vrot.slane %v1779, 4
  %v1787 = vrot.slane %v1781, 4
  %v1788 = vrot.slane %v1783, 4
  %v1789 = vsel %vm51, %v1786, %v1779
  %v1790 = vsel %vm53, %v1786, %v1787
  %v1791 = vsel %vm51, %v1790, %v1781
  %v1792 = vsel %vm53, %v1787, %v1788
  %v1793 = vsel %vm51, %v1792, %v1783
  %v1794 = vsel %vm51, %v1788, %v1785
  %1799 = vst.msk [vmem:[#allocation2] sm:$0xff] %vm65, %v1789
  %1800 = vst [vmem:[#allocation2 + $0x8] sm:$0xff] %v1791
  %1801 = vst [vmem:[#allocation2 + $0x10] sm:$0xff] %v1793
  %1802 = vst.msk [vmem:[#allocation2 + $0x18] sm:$0xf] %vm69, %v1794
  %v1803 = vld [vmem:[#allocation2] sm:$0xff]
  %v1804 = vld [vmem:[#allocation2 + $0x8] sm:$0xff]
  %v1805 = vld [vmem:[#allocation2 + $0x10] sm:$0xff]
  %v1806 = vld [vmem:[#allocation2 + $0x18] sm:$0xf]
  %v1810 = vcombine.high %v1803, %v1803
  %v1811 = vcombine.high %v1804, %v1804
  %v1812 = vcombine.high %v1805, %v1805
  %1816 = vst [vmem:[#allocation3] sm:$0xf] %v1803
  %1817 = vst [vmem:[#allocation3 + $0x8] sm:$0xf] %v1810
  %1818 = vst [vmem:[#allocation3 + $0x10] sm:$0xf] %v1804
  %1819 = vst [vmem:[#allocation3 + $0x18] sm:$0xf] %v1811
  %1820 = vst [vmem:[#allocation3 + $0x20] sm:$0xf] %v1805
  %1821 = vst [vmem:[#allocation3 + $0x28] sm:$0xf] %v1812
  %1822 = vst.msk [vmem:[#allocation3 + $0x30] sm:$0xf] %vm90, %v1806
  %v1823 = vld [vmem:[#allocation2] sm:$0xff]
  %v1824 = vld [vmem:[#allocation2 + $0x8] sm:$0xff]
  %v1825 = vld [vmem:[#allocation2 + $0x10] sm:$0xff]
  %v1826 = vld [vmem:[#allocation2 + $0x18] sm:$0xf]
  %v1831 = vcombine.low %v1823, %v1823
  %v1832 = vcombine.low %v1824, %v1824
  %v1833 = vcombine.low %v1825, %v1825
  %v1834 = vcombine.low %v1826, %v1826
  %1835 = vrot.lane.b32.xlu0 %v1831, 127
  %v1836 = vpop.permute.xlu0 %1835
  %1837 = vrot.lane.b32.xlu0 %v1823, 127
  %v1838 = vpop.permute.xlu0 %1837
  %1839 = vrot.lane.b32.xlu0 %v1832, 127
  %v1840 = vpop.permute.xlu0 %1839
  %1841 = vrot.lane.b32.xlu0 %v1824, 127
  %v1842 = vpop.permute.xlu0 %1841
  %1843 = vrot.lane.b32.xlu0 %v1833, 127
  %v1844 = vpop.permute.xlu0 %1843
  %1845 = vrot.lane.b32.xlu0 %v1825, 127
  %v1846 = vpop.permute.xlu0 %1845
  %1847 = vrot.lane.b32.xlu0 %v1834, 127
  %v1848 = vpop.permute.xlu0 %1847
  %v1849 = vsel %vm118, %v1836, %v1838
  %v1850 = vsel %vm118, %v1838, %v1840
  %v1851 = vsel %vm118, %v1840, %v1842
  %v1852 = vsel %vm118, %v1842, %v1844
  %v1853 = vsel %vm118, %v1844, %v1846
  %v1854 = vsel %vm118, %v1846, %v1848
  %1862 = vst [vmem:[#allocation3] sm:$0xf0] %v1849
  %1863 = vst [vmem:[#allocation3 + $0x8] sm:$0xf0] %v1850
  %1864 = vst [vmem:[#allocation3 + $0x10] sm:$0xf0] %v1851
  %1865 = vst [vmem:[#allocation3 + $0x18] sm:$0xf0] %v1852
  %1866 = vst [vmem:[#allocation3 + $0x20] sm:$0xf0] %v1853
  %1867 = vst [vmem:[#allocation3 + $0x28] sm:$0xf0] %v1854
  %1868 = vst.msk [vmem:[#allocation3 + $0x30] sm:$0xf0] %vm138, %v1848
  %v1869 = vld [vmem:[#allocation2] sm:$0xff]
  %v1870 = vld [vmem:[#allocation2 + $0x8] sm:$0xff]
  %v1871 = vld [vmem:[#allocation2 + $0x10] sm:$0xff]
  %v1872 = vld [vmem:[#allocation2 + $0x18] sm:$0xf]
  %v1877 = vcombine.high %v1869, %v1869
  %v1878 = vcombine.high %v1870, %v1870
  %v1879 = vcombine.high %v1871, %v1871
  %1880 = vrot.lane.b32.xlu0 %v1869, 126
  %v1881 = vpop.permute.xlu0 %1880
  %1882 = vrot.lane.b32.xlu0 %v1877, 126
  %v1883 = vpop.permute.xlu0 %1882
  %1884 = vrot.lane.b32.xlu0 %v1870, 126
  %v1885 = vpop.permute.xlu0 %1884
  %1886 = vrot.lane.b32.xlu0 %v1878, 126
  %v1887 = vpop.permute.xlu0 %1886
  %1888 = vrot.lane.b32.xlu0 %v1871, 126
  %v1889 = vpop.permute.xlu0 %1888
  %1890 = vrot.lane.b32.xlu0 %v1879, 126
  %v1891 = vpop.permute.xlu0 %1890
  %1892 = vrot.lane.b32.xlu0 %v1872, 126
  %v1893 = vpop.permute.xlu0 %1892
  %v1894 = vsel %vm165, %v1881, %v1883
  %v1895 = vsel %vm165, %v1883, %v1885
  %v1896 = vsel %vm165, %v1885, %v1887
  %v1897 = vsel %vm165, %v1887, %v1889
  %v1898 = vsel %vm165, %v1889, %v1891
  %v1899 = vsel %vm165, %v1891, %v1893
  %1907 = vst [vmem:[#allocation3 + $0x38] sm:$0xf] %v1894
  %1908 = vst [vmem:[#allocation3 + $0x40] sm:$0xf] %v1895
  %1909 = vst [vmem:[#allocation3 + $0x48] sm:$0xf] %v1896
  %1910 = vst [vmem:[#allocation3 + $0x50] sm:$0xf] %v1897
  %1911 = vst [vmem:[#allocation3 + $0x58] sm:$0xf] %v1898
  %1912 = vst [vmem:[#allocation3 + $0x60] sm:$0xf] %v1899
  %1913 = vst.msk [vmem:[#allocation3 + $0x68] sm:$0xf] %vm90, %v1893
  %v1914 = vld [vmem:[#allocation2] sm:$0xff]
  %v1915 = vld [vmem:[#allocation2 + $0x8] sm:$0xff]
  %v1916 = vld [vmem:[#allocation2 + $0x10] sm:$0xff]
  %v1917 = vld [vmem:[#allocation2 + $0x18] sm:$0xf]
  %v1922 = vcombine.low %v1914, %v1914
  %v1923 = vcombine.low %v1915, %v1915
  %v1924 = vcombine.low %v1916, %v1916
  %v1925 = vcombine.low %v1917, %v1917
  %1926 = vrot.lane.b32.xlu0 %v1922, 125
  %v1927 = vpop.permute.xlu0 %1926
  %1928 = vrot.lane.b32.xlu0 %v1914, 125
  %v1929 = vpop.permute.xlu0 %1928
  %1930 = vrot.lane.b32.xlu0 %v1923, 125
  %v1931 = vpop.permute.xlu0 %1930
  %1932 = vrot.lane.b32.xlu0 %v1915, 125
  %v1933 = vpop.permute.xlu0 %1932
  %1934 = vrot.lane.b32.xlu0 %v1924, 125
  %v1935 = vpop.permute.xlu0 %1934
  %1936 = vrot.lane.b32.xlu0 %v1916, 125
  %v1937 = vpop.permute.xlu0 %1936
  %1938 = vrot.lane.b32.xlu0 %v1925, 125
  %v1939 = vpop.permute.xlu0 %1938
  %v1940 = vsel %vm212, %v1927, %v1929
  %v1941 = vsel %vm212, %v1929, %v1931
  %v1942 = vsel %vm212, %v1931, %v1933
  %v1943 = vsel %vm212, %v1933, %v1935
  %v1944 = vsel %vm212, %v1935, %v1937
  %v1945 = vsel %vm212, %v1937, %v1939
  %1953 = vst [vmem:[#allocation3 + $0x38] sm:$0xf0] %v1940
  %1954 = vst [vmem:[#allocation3 + $0x40] sm:$0xf0] %v1941
  %1955 = vst [vmem:[#allocation3 + $0x48] sm:$0xf0] %v1942
  %1956 = vst [vmem:[#allocation3 + $0x50] sm:$0xf0] %v1943
  %1957 = vst [vmem:[#allocation3 + $0x58] sm:$0xf0] %v1944
  %1958 = vst [vmem:[#allocation3 + $0x60] sm:$0xf0] %v1945
  %1959 = vst.msk [vmem:[#allocation3 + $0x68] sm:$0xf0] %vm138, %v1939
  %v1960 = vld [vmem:[#allocation2] sm:$0xff]
  %v1961 = vld [vmem:[#allocation2 + $0x8] sm:$0xff]
  %v1962 = vld [vmem:[#allocation2 + $0x10] sm:$0xff]
  %v1963 = vld [vmem:[#allocation2 + $0x18] sm:$0xf]
  %v1968 = vcombine.high %v1960, %v1960
  %v1969 = vcombine.high %v1961, %v1961
  %v1970 = vcombine.high %v1962, %v1962
  %1971 = vrot.lane.b32.xlu0 %v1960, 124
  %v1972 = vpop.permute.xlu0 %1971
  %1973 = vrot.lane.b32.xlu0 %v1968, 124
  %v1974 = vpop.permute.xlu0 %1973
  %1975 = vrot.lane.b32.xlu0 %v1961, 124
  %v1976 = vpop.permute.xlu0 %1975
  %1977 = vrot.lane.b32.xlu0 %v1969, 124
  %v1978 = vpop.permute.xlu0 %1977
  %1979 = vrot.lane.b32.xlu0 %v1962, 124
  %v1980 = vpop.permute.xlu0 %1979
  %1981 = vrot.lane.b32.xlu0 %v1970, 124
  %v1982 = vpop.permute.xlu0 %1981
  %1983 = vrot.lane.b32.xlu0 %v1963, 124
  %v1984 = vpop.permute.xlu0 %1983
  %v1985 = vsel %vm258, %v1972, %v1974
  %v1986 = vsel %vm258, %v1974, %v1976
  %v1987 = vsel %vm258, %v1976, %v1978
  %v1988 = vsel %vm258, %v1978, %v1980
  %v1989 = vsel %vm258, %v1980, %v1982
  %v1990 = vsel %vm258, %v1982, %v1984
  %1998 = vst [vmem:[#allocation3 + $0x70] sm:$0xf] %v1985
  %1999 = vst [vmem:[#allocation3 + $0x78] sm:$0xf] %v1986
  %2000 = vst [vmem:[#allocation3 + $0x80] sm:$0xf] %v1987
  %2001 = vst [vmem:[#allocation3 + $0x88] sm:$0xf] %v1988
  %2002 = vst [vmem:[#allocation3 + $0x90] sm:$0xf] %v1989
  %2003 = vst [vmem:[#allocation3 + $0x98] sm:$0xf] %v1990
  %2004 = vst.msk [vmem:[#allocation3 + $0xa0] sm:$0xf] %vm90, %v1984
  %v2005 = vld [vmem:[#allocation2] sm:$0xff]
  %v2006 = vld [vmem:[#allocation2 + $0x8] sm:$0xff]
  %v2007 = vld [vmem:[#allocation2 + $0x10] sm:$0xff]
  %v2008 = vld [vmem:[#allocation2 + $0x18] sm:$0xf]
  %v2013 = vcombine.low %v2005, %v2005
  %v2014 = vcombine.low %v2006, %v2006
  %v2015 = vcombine.low %v2007, %v2007
  %v2016 = vcombine.low %v2008, %v2008
  %2017 = vrot.lane.b32.xlu0 %v2013, 108
  %v2018 = vpop.permute.xlu0 %2017
  %2019 = vrot.lane.b32.xlu0 %v2005, 108
  %v2020 = vpop.permute.xlu0 %2019
  %2021 = vrot.lane.b32.xlu0 %v2014, 108
  %v2022 = vpop.permute.xlu0 %2021
  %2023 = vrot.lane.b32.xlu0 %v2006, 108
  %v2024 = vpop.permute.xlu0 %2023
  %2025 = vrot.lane.b32.xlu0 %v2015, 108
  %v2026 = vpop.permute.xlu0 %2025
  %2027 = vrot.lane.b32.xlu0 %v2007, 108
  %v2028 = vpop.permute.xlu0 %2027
  %2029 = vrot.lane.b32.xlu0 %v2016, 108
  %v2030 = vpop.permute.xlu0 %2029
  %v2031 = vsel %vm305, %v2018, %v2020
  %v2032 = vsel %vm305, %v2020, %v2022
  %v2033 = vsel %vm305, %v2022, %v2024
  %v2034 = vsel %vm305, %v2024, %v2026
  %v2035 = vsel %vm305, %v2026, %v2028
  %v2036 = vsel %vm305, %v2028, %v2030
  %2044 = vst [vmem:[#allocation3 + $0x70] sm:$0xf0] %v2031
  %2045 = vst [vmem:[#allocation3 + $0x78] sm:$0xf0] %v2032
  %2046 = vst [vmem:[#allocation3 + $0x80] sm:$0xf0] %v2033
  %2047 = vst [vmem:[#allocation3 + $0x88] sm:$0xf0] %v2034
  %2048 = vst [vmem:[#allocation3 + $0x90] sm:$0xf0] %v2035
  %2049 = vst [vmem:[#allocation3 + $0x98] sm:$0xf0] %v2036
  %2050 = vst.msk [vmem:[#allocation3 + $0xa0] sm:$0xf0] %vm138, %v2030
  %v2051 = vld [vmem:[#allocation2] sm:$0xff]
  %v2052 = vld [vmem:[#allocation2 + $0x8] sm:$0xff]
  %v2053 = vld [vmem:[#allocation2 + $0x10] sm:$0xff]
  %v2054 = vld [vmem:[#allocation2 + $0x18] sm:$0xf]
  %v2059 = vcombine.high %v2051, %v2051
  %v2060 = vcombine.high %v2052, %v2052
  %v2061 = vcombine.high %v2053, %v2053
  %2062 = vrot.lane.b32.xlu0 %v2051, 107
  %v2063 = vpop.permute.xlu0 %2062
  %2064 = vrot.lane.b32.xlu0 %v2059, 107
  %v2065 = vpop.permute.xlu0 %2064
  %2066 = vrot.lane.b32.xlu0 %v2052, 107
  %v2067 = vpop.permute.xlu0 %2066
  %2068 = vrot.lane.b32.xlu0 %v2060, 107
  %v2069 = vpop.permute.xlu0 %2068
  %2070 = vrot.lane.b32.xlu0 %v2053, 107
  %v2071 = vpop.permute.xlu0 %2070
  %2072 = vrot.lane.b32.xlu0 %v2061, 107
  %v2073 = vpop.permute.xlu0 %2072
  %2074 = vrot.lane.b32.xlu0 %v2054, 107
  %v2075 = vpop.permute.xlu0 %2074
  %v2076 = vsel %vm351, %v2063, %v2065
  %v2077 = vsel %vm351, %v2065, %v2067
  %v2078 = vsel %vm351, %v2067, %v2069
  %v2079 = vsel %vm351, %v2069, %v2071
  %v2080 = vsel %vm351, %v2071, %v2073
  %v2081 = vsel %vm351, %v2073, %v2075
  %2089 = vst [vmem:[#allocation3 + $0xa8] sm:$0xf] %v2076
  %2090 = vst [vmem:[#allocation3 + $0xb0] sm:$0xf] %v2077
  %2091 = vst [vmem:[#allocation3 + $0xb8] sm:$0xf] %v2078
  %2092 = vst [vmem:[#allocation3 + $0xc0] sm:$0xf] %v2079
  %2093 = vst [vmem:[#allocation3 + $0xc8] sm:$0xf] %v2080
  %2094 = vst [vmem:[#allocation3 + $0xd0] sm:$0xf] %v2081
  %2095 = vst.msk [vmem:[#allocation3 + $0xd8] sm:$0xf] %vm90, %v2075
  %v2096 = vld [vmem:[#allocation2] sm:$0xff]
  %v2097 = vld [vmem:[#allocation2 + $0x8] sm:$0xff]
  %v2098 = vld [vmem:[#allocation2 + $0x10] sm:$0xff]
  %v2099 = vld [vmem:[#allocation2 + $0x18] sm:$0xf]
  %v2104 = vcombine.low %v2096, %v2096
  %v2105 = vcombine.low %v2097, %v2097
  %v2106 = vcombine.low %v2098, %v2098
  %v2107 = vcombine.low %v2099, %v2099
  %2108 = vrot.lane.b32.xlu0 %v2104, 106
  %v2109 = vpop.permute.xlu0 %2108
  %2110 = vrot.lane.b32.xlu0 %v2096, 106
  %v2111 = vpop.permute.xlu0 %2110
  %2112 = vrot.lane.b32.xlu0 %v2105, 106
  %v2113 = vpop.permute.xlu0 %2112
  %2114 = vrot.lane.b32.xlu0 %v2097, 106
  %v2115 = vpop.permute.xlu0 %2114
  %2116 = vrot.lane.b32.xlu0 %v2106, 106
  %v2117 = vpop.permute.xlu0 %2116
  %2118 = vrot.lane.b32.xlu0 %v2098, 106
  %v2119 = vpop.permute.xlu0 %2118
  %2120 = vrot.lane.b32.xlu0 %v2107, 106
  %v2121 = vpop.permute.xlu0 %2120
  %v2122 = vsel %vm398, %v2109, %v2111
  %v2123 = vsel %vm398, %v2111, %v2113
  %v2124 = vsel %vm398, %v2113, %v2115
  %v2125 = vsel %vm398, %v2115, %v2117
  %v2126 = vsel %vm398, %v2117, %v2119
  %v2127 = vsel %vm398, %v2119, %v2121
  %2135 = vst [vmem:[#allocation3 + $0xa8] sm:$0xf0] %v2122
  %2136 = vst [vmem:[#allocation3 + $0xb0] sm:$0xf0] %v2123
  %2137 = vst [vmem:[#allocation3 + $0xb8] sm:$0xf0] %v2124
  %2138 = vst [vmem:[#allocation3 + $0xc0] sm:$0xf0] %v2125
  %2139 = vst [vmem:[#allocation3 + $0xc8] sm:$0xf0] %v2126
  %2140 = vst [vmem:[#allocation3 + $0xd0] sm:$0xf0] %v2127
  %2141 = vst.msk [vmem:[#allocation3 + $0xd8] sm:$0xf0] %vm138, %v2121
  %v2142 = vld [vmem:[#allocation2] sm:$0xff]
  %v2143 = vld [vmem:[#allocation2 + $0x8] sm:$0xff]
  %v2144 = vld [vmem:[#allocation2 + $0x10] sm:$0xff]
  %v2145 = vld [vmem:[#allocation2 + $0x18] sm:$0xf]
  %v2150 = vcombine.high %v2142, %v2142
  %v2151 = vcombine.high %v2143, %v2143
  %v2152 = vcombine.high %v2144, %v2144
  %2153 = vrot.lane.b32.xlu0 %v2142, 105
  %v2154 = vpop.permute.xlu0 %2153
  %2155 = vrot.lane.b32.xlu0 %v2150, 105
  %v2156 = vpop.permute.xlu0 %2155
  %2157 = vrot.lane.b32.xlu0 %v2143, 105
  %v2158 = vpop.permute.xlu0 %2157
  %2159 = vrot.lane.b32.xlu0 %v2151, 105
  %v2160 = vpop.permute.xlu0 %2159
  %2161 = vrot.lane.b32.xlu0 %v2144, 105
  %v2162 = vpop.permute.xlu0 %2161
  %2163 = vrot.lane.b32.xlu0 %v2152, 105
  %v2164 = vpop.permute.xlu0 %2163
  %2165 = vrot.lane.b32.xlu0 %v2145, 105
  %v2166 = vpop.permute.xlu0 %2165
  %v2167 = vsel %vm444, %v2154, %v2156
  %v2168 = vsel %vm444, %v2156, %v2158
  %v2169 = vsel %vm444, %v2158, %v2160
  %v2170 = vsel %vm444, %v2160, %v2162
  %v2171 = vsel %vm444, %v2162, %v2164
  %v2172 = vsel %vm444, %v2164, %v2166
  %2180 = vst [vmem:[#allocation3 + $0xe0] sm:$0xf] %v2167
  %2181 = vst [vmem:[#allocation3 + $0xe8] sm:$0xf] %v2168
  %2182 = vst [vmem:[#allocation3 + $0xf0] sm:$0xf] %v2169
  %2183 = vst [vmem:[#allocation3 + $0xf8] sm:$0xf] %v2170
  %2184 = vst [vmem:[#allocation3 + $0x100] sm:$0xf] %v2171
  %2185 = vst [vmem:[#allocation3 + $0x108] sm:$0xf] %v2172
  %2186 = vst.msk [vmem:[#allocation3 + $0x110] sm:$0xf] %vm90, %v2166
  %v2187 = vld [vmem:[#allocation2] sm:$0xff]
  %v2188 = vld [vmem:[#allocation2 + $0x8] sm:$0xff]
  %v2189 = vld [vmem:[#allocation2 + $0x10] sm:$0xff]
  %v2190 = vld [vmem:[#allocation2 + $0x18] sm:$0xf]
  %v2195 = vcombine.low %v2187, %v2187
  %v2196 = vcombine.low %v2188, %v2188
  %v2197 = vcombine.low %v2189, %v2189
  %v2198 = vcombine.low %v2190, %v2190
  %2199 = vrot.lane.b32.xlu0 %v2195, 104
  %v2200 = vpop.permute.xlu0 %2199
  %2201 = vrot.lane.b32.xlu0 %v2187, 104
  %v2202 = vpop.permute.xlu0 %2201
  %2203 = vrot.lane.b32.xlu0 %v2196, 104
  %v2204 = vpop.permute.xlu0 %2203
  %2205 = vrot.lane.b32.xlu0 %v2188, 104
  %v2206 = vpop.permute.xlu0 %2205
  %2207 = vrot.lane.b32.xlu0 %v2197, 104
  %v2208 = vpop.permute.xlu0 %2207
  %2209 = vrot.lane.b32.xlu0 %v2189, 104
  %v2210 = vpop.permute.xlu0 %2209
  %2211 = vrot.lane.b32.xlu0 %v2198, 104
  %v2212 = vpop.permute.xlu0 %2211
  %v2213 = vsel %vm491, %v2200, %v2202
  %v2214 = vsel %vm491, %v2202, %v2204
  %v2215 = vsel %vm491, %v2204, %v2206
  %v2216 = vsel %vm491, %v2206, %v2208
  %v2217 = vsel %vm491, %v2208, %v2210
  %v2218 = vsel %vm491, %v2210, %v2212
  %2226 = vst [vmem:[#allocation3 + $0xe0] sm:$0xf0] %v2213
  %2227 = vst [vmem:[#allocation3 + $0xe8] sm:$0xf0] %v2214
  %2228 = vst [vmem:[#allocation3 + $0xf0] sm:$0xf0] %v2215
  %2229 = vst [vmem:[#allocation3 + $0xf8] sm:$0xf0] %v2216
  %2230 = vst [vmem:[#allocation3 + $0x100] sm:$0xf0] %v2217
  %2231 = vst [vmem:[#allocation3 + $0x108] sm:$0xf0] %v2218
  %2232 = vst.msk [vmem:[#allocation3 + $0x110] sm:$0xf0] %vm138, %v2212
  %v2233 = vld [vmem:[#allocation2] sm:$0xff]
  %v2234 = vld [vmem:[#allocation2 + $0x8] sm:$0xff]
  %v2235 = vld [vmem:[#allocation2 + $0x10] sm:$0xff]
  %v2236 = vld [vmem:[#allocation2 + $0x18] sm:$0xf]
  %v2241 = vcombine.high %v2233, %v2233
  %v2242 = vcombine.high %v2234, %v2234
  %v2243 = vcombine.high %v2235, %v2235
  %2244 = vrot.lane.b32.xlu0 %v2233, 88
  %v2245 = vpop.permute.xlu0 %2244
  %2246 = vrot.lane.b32.xlu0 %v2241, 88
  %v2247 = vpop.permute.xlu0 %2246
  %2248 = vrot.lane.b32.xlu0 %v2234, 88
  %v2249 = vpop.permute.xlu0 %2248
  %2250 = vrot.lane.b32.xlu0 %v2242, 88
  %v2251 = vpop.permute.xlu0 %2250
  %2252 = vrot.lane.b32.xlu0 %v2235, 88
  %v2253 = vpop.permute.xlu0 %2252
  %2254 = vrot.lane.b32.xlu0 %v2243, 88
  %v2255 = vpop.permute.xlu0 %2254
  %2256 = vrot.lane.b32.xlu0 %v2236, 88
  %v2257 = vpop.permute.xlu0 %2256
  %v2258 = vsel %vm537, %v2245, %v2247
  %v2259 = vsel %vm537, %v2247, %v2249
  %v2260 = vsel %vm537, %v2249, %v2251
  %v2261 = vsel %vm537, %v2251, %v2253
  %v2262 = vsel %vm537, %v2253, %v2255
  %v2263 = vsel %vm537, %v2255, %v2257
  %2271 = vst [vmem:[#allocation3 + $0x118] sm:$0xf] %v2258
  %2272 = vst [vmem:[#allocation3 + $0x120] sm:$0xf] %v2259
  %2273 = vst [vmem:[#allocation3 + $0x128] sm:$0xf] %v2260
  %2274 = vst [vmem:[#allocation3 + $0x130] sm:$0xf] %v2261
  %2275 = vst [vmem:[#allocation3 + $0x138] sm:$0xf] %v2262
  %2276 = vst [vmem:[#allocation3 + $0x140] sm:$0xf] %v2263
  %2277 = vst.msk [vmem:[#allocation3 + $0x148] sm:$0xf] %vm90, %v2257
  %v2278 = vld [vmem:[#allocation2] sm:$0xff]
  %v2279 = vld [vmem:[#allocation2 + $0x8] sm:$0xff]
  %v2280 = vld [vmem:[#allocation2 + $0x10] sm:$0xff]
  %v2281 = vld [vmem:[#allocation2 + $0x18] sm:$0xf]
  %v2286 = vcombine.low %v2278, %v2278
  %v2287 = vcombine.low %v2279, %v2279
  %v2288 = vcombine.low %v2280, %v2280
  %v2289 = vcombine.low %v2281, %v2281
  %2290 = vrot.lane.b32.xlu0 %v2286, 87
  %v2291 = vpop.permute.xlu0 %2290
  %2292 = vrot.lane.b32.xlu0 %v2278, 87
  %v2293 = vpop.permute.xlu0 %2292
  %2294 = vrot.lane.b32.xlu0 %v2287, 87
  %v2295 = vpop.permute.xlu0 %2294
  %2296 = vrot.lane.b32.xlu0 %v2279, 87
  %v2297 = vpop.permute.xlu0 %2296
  %2298 = vrot.lane.b32.xlu0 %v2288, 87
  %v2299 = vpop.permute.xlu0 %2298
  %2300 = vrot.lane.b32.xlu0 %v2280, 87
  %v2301 = vpop.permute.xlu0 %2300
  %2302 = vrot.lane.b32.xlu0 %v2289, 87
  %v2303 = vpop.permute.xlu0 %2302
  %v2304 = vsel %vm584, %v2291, %v2293
  %v2305 = vsel %vm584, %v2293, %v2295
  %v2306 = vsel %vm584, %v2295, %v2297
  %v2307 = vsel %vm584, %v2297, %v2299
  %v2308 = vsel %vm584, %v2299, %v2301
  %v2309 = vsel %vm584, %v2301, %v2303
  %2317 = vst [vmem:[#allocation3 + $0x118] sm:$0xf0] %v2304
  %2318 = vst [vmem:[#allocation3 + $0x120] sm:$0xf0] %v2305
  %2319 = vst [vmem:[#allocation3 + $0x128] sm:$0xf0] %v2306
  %2320 = vst [vmem:[#allocation3 + $0x130] sm:$0xf0] %v2307
  %2321 = vst [vmem:[#allocation3 + $0x138] sm:$0xf0] %v2308
  %2322 = vst [vmem:[#allocation3 + $0x140] sm:$0xf0] %v2309
  %2323 = vst.msk [vmem:[#allocation3 + $0x148] sm:$0xf0] %vm138, %v2303
  %v2324 = vld [vmem:[#allocation2] sm:$0xff]
  %v2325 = vld [vmem:[#allocation2 + $0x8] sm:$0xff]
  %v2326 = vld [vmem:[#allocation2 + $0x10] sm:$0xff]
  %v2327 = vld [vmem:[#allocation2 + $0x18] sm:$0xf]
  %v2332 = vcombine.high %v2324, %v2324
  %v2333 = vcombine.high %v2325, %v2325
  %v2334 = vcombine.high %v2326, %v2326
  %2335 = vrot.lane.b32.xlu0 %v2324, 86
  %v2336 = vpop.permute.xlu0 %2335
  %2337 = vrot.lane.b32.xlu0 %v2332, 86
  %v2338 = vpop.permute.xlu0 %2337
  %2339 = vrot.lane.b32.xlu0 %v2325, 86
  %v2340 = vpop.permute.xlu0 %2339
  %2341 = vrot.lane.b32.xlu0 %v2333, 86
  %v2342 = vpop.permute.xlu0 %2341
  %2343 = vrot.lane.b32.xlu0 %v2326, 86
  %v2344 = vpop.permute.xlu0 %2343
  %2345 = vrot.lane.b32.xlu0 %v2334, 86
  %v2346 = vpop.permute.xlu0 %2345
  %2347 = vrot.lane.b32.xlu0 %v2327, 86
  %v2348 = vpop.permute.xlu0 %2347
  %v2349 = vsel %vm630, %v2336, %v2338
  %v2350 = vsel %vm630, %v2338, %v2340
  %v2351 = vsel %vm630, %v2340, %v2342
  %v2352 = vsel %vm630, %v2342, %v2344
  %v2353 = vsel %vm630, %v2344, %v2346
  %v2354 = vsel %vm630, %v2346, %v2348
  %2362 = vst [vmem:[#allocation3 + $0x150] sm:$0xf] %v2349
  %2363 = vst [vmem:[#allocation3 + $0x158] sm:$0xf] %v2350
  %2364 = vst [vmem:[#allocation3 + $0x160] sm:$0xf] %v2351
  %2365 = vst [vmem:[#allocation3 + $0x168] sm:$0xf] %v2352
  %2366 = vst [vmem:[#allocation3 + $0x170] sm:$0xf] %v2353
  %2367 = vst [vmem:[#allocation3 + $0x178] sm:$0xf] %v2354
  %2368 = vst.msk [vmem:[#allocation3 + $0x180] sm:$0xf] %vm90, %v2348
  %v2369 = vld [vmem:[#allocation2] sm:$0xff]
  %v2370 = vld [vmem:[#allocation2 + $0x8] sm:$0xff]
  %v2371 = vld [vmem:[#allocation2 + $0x10] sm:$0xff]
  %v2372 = vld [vmem:[#allocation2 + $0x18] sm:$0xf]
  %v2377 = vcombine.low %v2369, %v2369
  %v2378 = vcombine.low %v2370, %v2370
  %v2379 = vcombine.low %v2371, %v2371
  %v2380 = vcombine.low %v2372, %v2372
  %2381 = vrot.lane.b32.xlu0 %v2377, 85
  %v2382 = vpop.permute.xlu0 %2381
  %2383 = vrot.lane.b32.xlu0 %v2369, 85
  %v2384 = vpop.permute.xlu0 %2383
  %2385 = vrot.lane.b32.xlu0 %v2378, 85
  %v2386 = vpop.permute.xlu0 %2385
  %2387 = vrot.lane.b32.xlu0 %v2370, 85
  %v2388 = vpop.permute.xlu0 %2387
  %2389 = vrot.lane.b32.xlu0 %v2379, 85
  %v2390 = vpop.permute.xlu0 %2389
  %2391 = vrot.lane.b32.xlu0 %v2371, 85
  %v2392 = vpop.permute.xlu0 %2391
  %2393 = vrot.lane.b32.xlu0 %v2380, 85
  %v2394 = vpop.permute.xlu0 %2393
  %v2395 = vsel %vm677, %v2382, %v2384
  %v2396 = vsel %vm677, %v2384, %v2386
  %v2397 = vsel %vm677, %v2386, %v2388
  %v2398 = vsel %vm677, %v2388, %v2390
  %v2399 = vsel %vm677, %v2390, %v2392
  %v2400 = vsel %vm677, %v2392, %v2394
  %2408 = vst [vmem:[#allocation3 + $0x150] sm:$0xf0] %v2395
  %2409 = vst [vmem:[#allocation3 + $0x158] sm:$0xf0] %v2396
  %2410 = vst [vmem:[#allocation3 + $0x160] sm:$0xf0] %v2397
  %2411 = vst [vmem:[#allocation3 + $0x168] sm:$0xf0] %v2398
  %2412 = vst [vmem:[#allocation3 + $0x170] sm:$0xf0] %v2399
  %2413 = vst [vmem:[#allocation3 + $0x178] sm:$0xf0] %v2400
  %2414 = vst.msk [vmem:[#allocation3 + $0x180] sm:$0xf0] %vm138, %v2394
  %v2415 = vld [vmem:[#allocation2] sm:$0xff]
  %v2416 = vld [vmem:[#allocation2 + $0x8] sm:$0xff]
  %v2417 = vld [vmem:[#allocation2 + $0x10] sm:$0xff]
  %v2418 = vld [vmem:[#allocation2 + $0x18] sm:$0xf]
  %v2423 = vcombine.high %v2415, %v2415
  %v2424 = vcombine.high %v2416, %v2416
  %v2425 = vcombine.high %v2417, %v2417
  %2426 = vrot.lane.b32.xlu0 %v2415, 84
  %v2427 = vpop.permute.xlu0 %2426
  %2428 = vrot.lane.b32.xlu0 %v2423, 84
  %v2429 = vpop.permute.xlu0 %2428
  %2430 = vrot.lane.b32.xlu0 %v2416, 84
  %v2431 = vpop.permute.xlu0 %2430
  %2432 = vrot.lane.b32.xlu0 %v2424, 84
  %v2433 = vpop.permute.xlu0 %2432
  %2434 = vrot.lane.b32.xlu0 %v2417, 84
  %v2435 = vpop.permute.xlu0 %2434
  %2436 = vrot.lane.b32.xlu0 %v2425, 84
  %v2437 = vpop.permute.xlu0 %2436
  %2438 = vrot.lane.b32.xlu0 %v2418, 84
  %v2439 = vpop.permute.xlu0 %2438
  %v2440 = vsel %vm723, %v2427, %v2429
  %v2441 = vsel %vm723, %v2429, %v2431
  %v2442 = vsel %vm723, %v2431, %v2433
  %v2443 = vsel %vm723, %v2433, %v2435
  %v2444 = vsel %vm723, %v2435, %v2437
  %v2445 = vsel %vm723, %v2437, %v2439
  %2453 = vst [vmem:[#allocation3 + $0x188] sm:$0xf] %v2440
  %2454 = vst [vmem:[#allocation3 + $0x190] sm:$0xf] %v2441
  %2455 = vst [vmem:[#allocation3 + $0x198] sm:$0xf] %v2442
  %2456 = vst [vmem:[#allocation3 + $0x1a0] sm:$0xf] %v2443
  %2457 = vst [vmem:[#allocation3 + $0x1a8] sm:$0xf] %v2444
  %2458 = vst [vmem:[#allocation3 + $0x1b0] sm:$0xf] %v2445
  %2459 = vst.msk [vmem:[#allocation3 + $0x1b8] sm:$0xf] %vm90, %v2439
  %v2460 = vld [vmem:[#allocation2] sm:$0xff]
  %v2461 = vld [vmem:[#allocation2 + $0x8] sm:$0xff]
  %v2462 = vld [vmem:[#allocation2 + $0x10] sm:$0xff]
  %v2463 = vld [vmem:[#allocation2 + $0x18] sm:$0xf]
  %v2468 = vcombine.low %v2460, %v2460
  %v2469 = vcombine.low %v2461, %v2461
  %v2470 = vcombine.low %v2462, %v2462
  %v2471 = vcombine.low %v2463, %v2463
  %2472 = vrot.lane.b32.xlu0 %v2468, 68
  %v2473 = vpop.permute.xlu0 %2472
  %2474 = vrot.lane.b32.xlu0 %v2460, 68
  %v2475 = vpop.permute.xlu0 %2474
  %2476 = vrot.lane.b32.xlu0 %v2469, 68
  %v2477 = vpop.permute.xlu0 %2476
  %2478 = vrot.lane.b32.xlu0 %v2461, 68
  %v2479 = vpop.permute.xlu0 %2478
  %2480 = vrot.lane.b32.xlu0 %v2470, 68
  %v2481 = vpop.permute.xlu0 %2480
  %2482 = vrot.lane.b32.xlu0 %v2462, 68
  %v2483 = vpop.permute.xlu0 %2482
  %2484 = vrot.lane.b32.xlu0 %v2471, 68
  %v2485 = vpop.permute.xlu0 %2484
  %v2486 = vsel %vm770, %v2473, %v2475
  %v2487 = vsel %vm770, %v2475, %v2477
  %v2488 = vsel %vm770, %v2477, %v2479
  %v2489 = vsel %vm770, %v2479, %v2481
  %v2490 = vsel %vm770, %v2481, %v2483
  %v2491 = vsel %vm770, %v2483, %v2485
  %2499 = vst [vmem:[#allocation3 + $0x188] sm:$0xf0] %v2486
  %2500 = vst [vmem:[#allocation3 + $0x190] sm:$0xf0] %v2487
  %2501 = vst [vmem:[#allocation3 + $0x198] sm:$0xf0] %v2488
  %2502 = vst [vmem:[#allocation3 + $0x1a0] sm:$0xf0] %v2489
  %2503 = vst [vmem:[#allocation3 + $0x1a8] sm:$0xf0] %v2490
  %2504 = vst [vmem:[#allocation3 + $0x1b0] sm:$0xf0] %v2491
  %2505 = vst.msk [vmem:[#allocation3 + $0x1b8] sm:$0xf0] %vm138, %v2485
  %v2506 = vld [vmem:[#allocation2] sm:$0xff]
  %v2507 = vld [vmem:[#allocation2 + $0x8] sm:$0xff]
  %v2508 = vld [vmem:[#allocation2 + $0x10] sm:$0xff]
  %v2509 = vld [vmem:[#allocation2 + $0x18] sm:$0xf]
  %v2514 = vcombine.high %v2506, %v2506
  %v2515 = vcombine.high %v2507, %v2507
  %v2516 = vcombine.high %v2508, %v2508
  %2517 = vrot.lane.b32.xlu0 %v2506, 67
  %v2518 = vpop.permute.xlu0 %2517
  %2519 = vrot.lane.b32.xlu0 %v2514, 67
  %v2520 = vpop.permute.xlu0 %2519
  %2521 = vrot.lane.b32.xlu0 %v2507, 67
  %v2522 = vpop.permute.xlu0 %2521
  %2523 = vrot.lane.b32.xlu0 %v2515, 67
  %v2524 = vpop.permute.xlu0 %2523
  %2525 = vrot.lane.b32.xlu0 %v2508, 67
  %v2526 = vpop.permute.xlu0 %2525
  %2527 = vrot.lane.b32.xlu0 %v2516, 67
  %v2528 = vpop.permute.xlu0 %2527
  %2529 = vrot.lane.b32.xlu0 %v2509, 67
  %v2530 = vpop.permute.xlu0 %2529
  %v2531 = vsel %vm816, %v2518, %v2520
  %v2532 = vsel %vm816, %v2520, %v2522
  %v2533 = vsel %vm816, %v2522, %v2524
  %v2534 = vsel %vm816, %v2524, %v2526
  %v2535 = vsel %vm816, %v2526, %v2528
  %v2536 = vsel %vm816, %v2528, %v2530
  %2544 = vst [vmem:[#allocation3 + $0x1c0] sm:$0xf] %v2531
  %2545 = vst [vmem:[#allocation3 + $0x1c8] sm:$0xf] %v2532
  %2546 = vst [vmem:[#allocation3 + $0x1d0] sm:$0xf] %v2533
  %2547 = vst [vmem:[#allocation3 + $0x1d8] sm:$0xf] %v2534
  %2548 = vst [vmem:[#allocation3 + $0x1e0] sm:$0xf] %v2535
  %2549 = vst [vmem:[#allocation3 + $0x1e8] sm:$0xf] %v2536
  %2550 = vst.msk [vmem:[#allocation3 + $0x1f0] sm:$0xf] %vm90, %v2530
  %v2551 = vld [vmem:[#allocation2] sm:$0xff]
  %v2552 = vld [vmem:[#allocation2 + $0x8] sm:$0xff]
  %v2553 = vld [vmem:[#allocation2 + $0x10] sm:$0xff]
  %v2554 = vld [vmem:[#allocation2 + $0x18] sm:$0xf]
  %v2559 = vcombine.low %v2551, %v2551
  %v2560 = vcombine.low %v2552, %v2552
  %v2561 = vcombine.low %v2553, %v2553
  %v2562 = vcombine.low %v2554, %v2554
  %2563 = vrot.lane.b32.xlu0 %v2559, 66
  %v2564 = vpop.permute.xlu0 %2563
  %2565 = vrot.lane.b32.xlu0 %v2551, 66
  %v2566 = vpop.permute.xlu0 %2565
  %2567 = vrot.lane.b32.xlu0 %v2560, 66
  %v2568 = vpop.permute.xlu0 %2567
  %2569 = vrot.lane.b32.xlu0 %v2552, 66
  %v2570 = vpop.permute.xlu0 %2569
  %2571 = vrot.lane.b32.xlu0 %v2561, 66
  %v2572 = vpop.permute.xlu0 %2571
  %2573 = vrot.lane.b32.xlu0 %v2553, 66
  %v2574 = vpop.permute.xlu0 %2573
  %2575 = vrot.lane.b32.xlu0 %v2562, 66
  %v2576 = vpop.permute.xlu0 %2575
  %v2577 = vsel %vm863, %v2564, %v2566
  %v2578 = vsel %vm863, %v2566, %v2568
  %v2579 = vsel %vm863, %v2568, %v2570
  %v2580 = vsel %vm863, %v2570, %v2572
  %v2581 = vsel %vm863, %v2572, %v2574
  %v2582 = vsel %vm863, %v2574, %v2576
  %2590 = vst [vmem:[#allocation3 + $0x1c0] sm:$0xf0] %v2577
  %2591 = vst [vmem:[#allocation3 + $0x1c8] sm:$0xf0] %v2578
  %2592 = vst [vmem:[#allocation3 + $0x1d0] sm:$0xf0] %v2579
  %2593 = vst [vmem:[#allocation3 + $0x1d8] sm:$0xf0] %v2580
  %2594 = vst [vmem:[#allocation3 + $0x1e0] sm:$0xf0] %v2581
  %2595 = vst [vmem:[#allocation3 + $0x1e8] sm:$0xf0] %v2582
  %2596 = vst.msk [vmem:[#allocation3 + $0x1f0] sm:$0xf0] %vm138, %v2576
  %v2597 = vld [vmem:[#allocation2] sm:$0xff]
  %v2598 = vld [vmem:[#allocation2 + $0x8] sm:$0xff]
  %v2599 = vld [vmem:[#allocation2 + $0x10] sm:$0xff]
  %v2600 = vld [vmem:[#allocation2 + $0x18] sm:$0xf]
  %v2605 = vcombine.high %v2597, %v2597
  %v2606 = vcombine.high %v2598, %v2598
  %v2607 = vcombine.high %v2599, %v2599
  %2608 = vrot.lane.b32.xlu0 %v2597, 65
  %v2609 = vpop.permute.xlu0 %2608
  %2610 = vrot.lane.b32.xlu0 %v2605, 65
  %v2611 = vpop.permute.xlu0 %2610
  %2612 = vrot.lane.b32.xlu0 %v2598, 65
  %v2613 = vpop.permute.xlu0 %2612
  %2614 = vrot.lane.b32.xlu0 %v2606, 65
  %v2615 = vpop.permute.xlu0 %2614
  %2616 = vrot.lane.b32.xlu0 %v2599, 65
  %v2617 = vpop.permute.xlu0 %2616
  %2618 = vrot.lane.b32.xlu0 %v2607, 65
  %v2619 = vpop.permute.xlu0 %2618
  %2620 = vrot.lane.b32.xlu0 %v2600, 65
  %v2621 = vpop.permute.xlu0 %2620
  %v2622 = vsel %vm909, %v2609, %v2611
  %v2623 = vsel %vm909, %v2611, %v2613
  %v2624 = vsel %vm909, %v2613, %v2615
  %v2625 = vsel %vm909, %v2615, %v2617
  %v2626 = vsel %vm909, %v2617, %v2619
  %v2627 = vsel %vm909, %v2619, %v2621
  %2635 = vst [vmem:[#allocation3 + $0x1f8] sm:$0xf] %v2622
  %2636 = vst [vmem:[#allocation3 + $0x200] sm:$0xf] %v2623
  %2637 = vst [vmem:[#allocation3 + $0x208] sm:$0xf] %v2624
  %2638 = vst [vmem:[#allocation3 + $0x210] sm:$0xf] %v2625
  %2639 = vst [vmem:[#allocation3 + $0x218] sm:$0xf] %v2626
  %2640 = vst [vmem:[#allocation3 + $0x220] sm:$0xf] %v2627
  %2641 = vst.msk [vmem:[#allocation3 + $0x228] sm:$0xf] %vm90, %v2621
  %v2642 = vld [vmem:[#allocation2] sm:$0xff]
  %v2643 = vld [vmem:[#allocation2 + $0x8] sm:$0xff]
  %v2644 = vld [vmem:[#allocation2 + $0x10] sm:$0xff]
  %v2645 = vld [vmem:[#allocation2 + $0x18] sm:$0xf]
  %v2650 = vcombine.low %v2642, %v2642
  %v2651 = vcombine.low %v2643, %v2643
  %v2652 = vcombine.low %v2644, %v2644
  %v2653 = vcombine.low %v2645, %v2645
  %2654 = vrot.lane.b32.xlu0 %v2650, 64
  %v2655 = vpop.permute.xlu0 %2654
  %2656 = vrot.lane.b32.xlu0 %v2642, 64
  %v2657 = vpop.permute.xlu0 %2656
  %2658 = vrot.lane.b32.xlu0 %v2651, 64
  %v2659 = vpop.permute.xlu0 %2658
  %2660 = vrot.lane.b32.xlu0 %v2643, 64
  %v2661 = vpop.permute.xlu0 %2660
  %2662 = vrot.lane.b32.xlu0 %v2652, 64
  %v2663 = vpop.permute.xlu0 %2662
  %2664 = vrot.lane.b32.xlu0 %v2644, 64
  %v2665 = vpop.permute.xlu0 %2664
  %2666 = vrot.lane.b32.xlu0 %v2653, 64
  %v2667 = vpop.permute.xlu0 %2666
  %v2668 = vsel %vm956, %v2655, %v2657
  %v2669 = vsel %vm956, %v2657, %v2659
  %v2670 = vsel %vm956, %v2659, %v2661
  %v2671 = vsel %vm956, %v2661, %v2663
  %v2672 = vsel %vm956, %v2663, %v2665
  %v2673 = vsel %vm956, %v2665, %v2667
  %2681 = vst [vmem:[#allocation3 + $0x1f8] sm:$0xf0] %v2668
  %2682 = vst [vmem:[#allocation3 + $0x200] sm:$0xf0] %v2669
  %2683 = vst [vmem:[#allocation3 + $0x208] sm:$0xf0] %v2670
  %2684 = vst [vmem:[#allocation3 + $0x210] sm:$0xf0] %v2671
  %2685 = vst [vmem:[#allocation3 + $0x218] sm:$0xf0] %v2672
  %2686 = vst [vmem:[#allocation3 + $0x220] sm:$0xf0] %v2673
  %2687 = vst.msk [vmem:[#allocation3 + $0x228] sm:$0xf0] %vm138, %v2667
  %v2688 = vld [vmem:[#allocation2] sm:$0xff]
  %v2689 = vld [vmem:[#allocation2 + $0x8] sm:$0xff]
  %v2690 = vld [vmem:[#allocation2 + $0x10] sm:$0xff]
  %v2691 = vld [vmem:[#allocation2 + $0x18] sm:$0xf]
  %v2696 = vcombine.high %v2688, %v2688
  %v2697 = vcombine.high %v2689, %v2689
  %v2698 = vcombine.high %v2690, %v2690
  %2699 = vrot.lane.b32.xlu0 %v2688, 48
  %v2700 = vpop.permute.xlu0 %2699
  %2701 = vrot.lane.b32.xlu0 %v2696, 48
  %v2702 = vpop.permute.xlu0 %2701
  %2703 = vrot.lane.b32.xlu0 %v2689, 48
  %v2704 = vpop.permute.xlu0 %2703
  %2705 = vrot.lane.b32.xlu0 %v2697, 48
  %v2706 = vpop.permute.xlu0 %2705
  %2707 = vrot.lane.b32.xlu0 %v2690, 48
  %v2708 = vpop.permute.xlu0 %2707
  %2709 = vrot.lane.b32.xlu0 %v2698, 48
  %v2710 = vpop.permute.xlu0 %2709
  %2711 = vrot.lane.b32.xlu0 %v2691, 48
  %v2712 = vpop.permute.xlu0 %2711
  %v2713 = vsel %vm1002, %v2700, %v2702
  %v2714 = vsel %vm1002, %v2702, %v2704
  %v2715 = vsel %vm1002, %v2704, %v2706
  %v2716 = vsel %vm1002, %v2706, %v2708
  %v2717 = vsel %vm1002, %v2708, %v2710
  %v2718 = vsel %vm1002, %v2710, %v2712
  %2726 = vst [vmem:[#allocation3 + $0x230] sm:$0xf] %v2713
  %2727 = vst [vmem:[#allocation3 + $0x238] sm:$0xf] %v2714
  %2728 = vst [vmem:[#allocation3 + $0x240] sm:$0xf] %v2715
  %2729 = vst [vmem:[#allocation3 + $0x248] sm:$0xf] %v2716
  %2730 = vst [vmem:[#allocation3 + $0x250] sm:$0xf] %v2717
  %2731 = vst [vmem:[#allocation3 + $0x258] sm:$0xf] %v2718
  %2732 = vst.msk [vmem:[#allocation3 + $0x260] sm:$0xf] %vm90, %v2712
  %v2733 = vld [vmem:[#allocation2] sm:$0xff]
  %v2734 = vld [vmem:[#allocation2 + $0x8] sm:$0xff]
  %v2735 = vld [vmem:[#allocation2 + $0x10] sm:$0xff]
  %v2736 = vld [vmem:[#allocation2 + $0x18] sm:$0xf]
  %v2741 = vcombine.low %v2733, %v2733
  %v2742 = vcombine.low %v2734, %v2734
  %v2743 = vcombine.low %v2735, %v2735
  %v2744 = vcombine.low %v2736, %v2736
  %2745 = vrot.lane.b32.xlu0 %v2741, 47
  %v2746 = vpop.permute.xlu0 %2745
  %2747 = vrot.lane.b32.xlu0 %v2733, 47
  %v2748 = vpop.permute.xlu0 %2747
  %2749 = vrot.lane.b32.xlu0 %v2742, 47
  %v2750 = vpop.permute.xlu0 %2749
  %2751 = vrot.lane.b32.xlu0 %v2734, 47
  %v2752 = vpop.permute.xlu0 %2751
  %2753 = vrot.lane.b32.xlu0 %v2743, 47
  %v2754 = vpop.permute.xlu0 %2753
  %2755 = vrot.lane.b32.xlu0 %v2735, 47
  %v2756 = vpop.permute.xlu0 %2755
  %2757 = vrot.lane.b32.xlu0 %v2744, 47
  %v2758 = vpop.permute.xlu0 %2757
  %v2759 = vsel %vm1049, %v2746, %v2748
  %v2760 = vsel %vm1049, %v2748, %v2750
  %v2761 = vsel %vm1049, %v2750, %v2752
  %v2762 = vsel %vm1049, %v2752, %v2754
  %v2763 = vsel %vm1049, %v2754, %v2756
  %v2764 = vsel %vm1049, %v2756, %v2758
  %2772 = vst [vmem:[#allocation3 + $0x230] sm:$0xf0] %v2759
  %2773 = vst [vmem:[#allocation3 + $0x238] sm:$0xf0] %v2760
  %2774 = vst [vmem:[#allocation3 + $0x240] sm:$0xf0] %v2761
  %2775 = vst [vmem:[#allocation3 + $0x248] sm:$0xf0] %v2762
  %2776 = vst [vmem:[#allocation3 + $0x250] sm:$0xf0] %v2763
  %2777 = vst [vmem:[#allocation3 + $0x258] sm:$0xf0] %v2764
  %2778 = vst.msk [vmem:[#allocation3 + $0x260] sm:$0xf0] %vm138, %v2758
  %v2779 = vld [vmem:[#allocation2] sm:$0xff]
  %v2780 = vld [vmem:[#allocation2 + $0x8] sm:$0xff]
  %v2781 = vld [vmem:[#allocation2 + $0x10] sm:$0xff]
  %v2782 = vld [vmem:[#allocation2 + $0x18] sm:$0xf]
  %v2787 = vcombine.high %v2779, %v2779
  %v2788 = vcombine.high %v2780, %v2780
  %v2789 = vcombine.high %v2781, %v2781
  %2790 = vrot.lane.b32.xlu0 %v2779, 46
  %v2791 = vpop.permute.xlu0 %2790
  %2792 = vrot.lane.b32.xlu0 %v2787, 46
  %v2793 = vpop.permute.xlu0 %2792
  %2794 = vrot.lane.b32.xlu0 %v2780, 46
  %v2795 = vpop.permute.xlu0 %2794
  %2796 = vrot.lane.b32.xlu0 %v2788, 46
  %v2797 = vpop.permute.xlu0 %2796
  %2798 = vrot.lane.b32.xlu0 %v2781, 46
  %v2799 = vpop.permute.xlu0 %2798
  %2800 = vrot.lane.b32.xlu0 %v2789, 46
  %v2801 = vpop.permute.xlu0 %2800
  %2802 = vrot.lane.b32.xlu0 %v2782, 46
  %v2803 = vpop.permute.xlu0 %2802
  %v2804 = vsel %vm1095, %v2791, %v2793
  %v2805 = vsel %vm1095, %v2793, %v2795
  %v2806 = vsel %vm1095, %v2795, %v2797
  %v2807 = vsel %vm1095, %v2797, %v2799
  %v2808 = vsel %vm1095, %v2799, %v2801
  %v2809 = vsel %vm1095, %v2801, %v2803
  %2817 = vst [vmem:[#allocation3 + $0x268] sm:$0xf] %v2804
  %2818 = vst [vmem:[#allocation3 + $0x270] sm:$0xf] %v2805
  %2819 = vst [vmem:[#allocation3 + $0x278] sm:$0xf] %v2806
  %2820 = vst [vmem:[#allocation3 + $0x280] sm:$0xf] %v2807
  %2821 = vst [vmem:[#allocation3 + $0x288] sm:$0xf] %v2808
  %2822 = vst [vmem:[#allocation3 + $0x290] sm:$0xf] %v2809
  %2823 = vst.msk [vmem:[#allocation3 + $0x298] sm:$0xf] %vm90, %v2803
  %v2824 = vld [vmem:[#allocation2] sm:$0xff]
  %v2825 = vld [vmem:[#allocation2 + $0x8] sm:$0xff]
  %v2826 = vld [vmem:[#allocation2 + $0x10] sm:$0xff]
  %v2827 = vld [vmem:[#allocation2 + $0x18] sm:$0xf]
  %v2832 = vcombine.low %v2824, %v2824
  %v2833 = vcombine.low %v2825, %v2825
  %v2834 = vcombine.low %v2826, %v2826
  %v2835 = vcombine.low %v2827, %v2827
  %2836 = vrot.lane.b32.xlu0 %v2832, 45
  %v2837 = vpop.permute.xlu0 %2836
  %2838 = vrot.lane.b32.xlu0 %v2824, 45
  %v2839 = vpop.permute.xlu0 %2838
  %2840 = vrot.lane.b32.xlu0 %v2833, 45
  %v2841 = vpop.permute.xlu0 %2840
  %2842 = vrot.lane.b32.xlu0 %v2825, 45
  %v2843 = vpop.permute.xlu0 %2842
  %2844 = vrot.lane.b32.xlu0 %v2834, 45
  %v2845 = vpop.permute.xlu0 %2844
  %2846 = vrot.lane.b32.xlu0 %v2826, 45
  %v2847 = vpop.permute.xlu0 %2846
  %2848 = vrot.lane.b32.xlu0 %v2835, 45
  %v2849 = vpop.permute.xlu0 %2848
  %v2850 = vsel %vm1142, %v2837, %v2839
  %v2851 = vsel %vm1142, %v2839, %v2841
  %v2852 = vsel %vm1142, %v2841, %v2843
  %v2853 = vsel %vm1142, %v2843, %v2845
  %v2854 = vsel %vm1142, %v2845, %v2847
  %v2855 = vsel %vm1142, %v2847, %v2849
  %2863 = vst [vmem:[#allocation3 + $0x268] sm:$0xf0] %v2850
  %2864 = vst [vmem:[#allocation3 + $0x270] sm:$0xf0] %v2851
  %2865 = vst [vmem:[#allocation3 + $0x278] sm:$0xf0] %v2852
  %2866 = vst [vmem:[#allocation3 + $0x280] sm:$0xf0] %v2853
  %2867 = vst [vmem:[#allocation3 + $0x288] sm:$0xf0] %v2854
  %2868 = vst [vmem:[#allocation3 + $0x290] sm:$0xf0] %v2855
  %2869 = vst.msk [vmem:[#allocation3 + $0x298] sm:$0xf0] %vm138, %v2849
  %v2870 = vld [vmem:[#allocation2] sm:$0xff]
  %v2871 = vld [vmem:[#allocation2 + $0x8] sm:$0xff]
  %v2872 = vld [vmem:[#allocation2 + $0x10] sm:$0xff]
  %v2873 = vld [vmem:[#allocation2 + $0x18] sm:$0xf]
  %v2878 = vcombine.high %v2870, %v2870
  %v2879 = vcombine.high %v2871, %v2871
  %v2880 = vcombine.high %v2872, %v2872
  %2881 = vrot.lane.b32.xlu0 %v2870, 44
  %v2882 = vpop.permute.xlu0 %2881
  %2883 = vrot.lane.b32.xlu0 %v2878, 44
  %v2884 = vpop.permute.xlu0 %2883
  %2885 = vrot.lane.b32.xlu0 %v2871, 44
  %v2886 = vpop.permute.xlu0 %2885
  %2887 = vrot.lane.b32.xlu0 %v2879, 44
  %v2888 = vpop.permute.xlu0 %2887
  %2889 = vrot.lane.b32.xlu0 %v2872, 44
  %v2890 = vpop.permute.xlu0 %2889
  %2891 = vrot.lane.b32.xlu0 %v2880, 44
  %v2892 = vpop.permute.xlu0 %2891
  %2893 = vrot.lane.b32.xlu0 %v2873, 44
  %v2894 = vpop.permute.xlu0 %2893
  %v2895 = vsel %vm1188, %v2882, %v2884
  %v2896 = vsel %vm1188, %v2884, %v2886
  %v2897 = vsel %vm1188, %v2886, %v2888
  %v2898 = vsel %vm1188, %v2888, %v2890
  %v2899 = vsel %vm1188, %v2890, %v2892
  %v2900 = vsel %vm1188, %v2892, %v2894
  %2908 = vst [vmem:[#allocation3 + $0x2a0] sm:$0xf] %v2895
  %2909 = vst [vmem:[#allocation3 + $0x2a8] sm:$0xf] %v2896
  %2910 = vst [vmem:[#allocation3 + $0x2b0] sm:$0xf] %v2897
  %2911 = vst [vmem:[#allocation3 + $0x2b8] sm:$0xf] %v2898
  %2912 = vst [vmem:[#allocation3 + $0x2c0] sm:$0xf] %v2899
  %2913 = vst [vmem:[#allocation3 + $0x2c8] sm:$0xf] %v2900
  %2914 = vst.msk [vmem:[#allocation3 + $0x2d0] sm:$0xf] %vm90, %v2894
  %s2915 = scalar_lea.vmem %s2, 4
  %v2916 = vld [vmem:[%s2915] sm:$0xf]
  %v2917 = vld [vmem:[#allocation3] sm:$0xff]
  %v2918 = vld [vmem:[#allocation3 + $0x8] sm:$0xff]
  %v2919 = vld [vmem:[#allocation3 + $0x10] sm:$0xff]
  %v2920 = vld [vmem:[#allocation3 + $0x18] sm:$0xff]
  %v2921 = vld [vmem:[#allocation3 + $0x20] sm:$0xff]
  %v2922 = vld [vmem:[#allocation3 + $0x28] sm:$0xff]
  %v2923 = vld [vmem:[#allocation3 + $0x30] sm:$0xff]
  %v2924 = vld [vmem:[#allocation3 + $0x38] sm:$0xff]
  %v2925 = vld [vmem:[#allocation3 + $0x40] sm:$0xff]
  %v2926 = vld [vmem:[#allocation3 + $0x48] sm:$0xff]
  %v2927 = vld [vmem:[#allocation3 + $0x50] sm:$0xff]
  %v2928 = vld [vmem:[#allocation3 + $0x58] sm:$0xff]
  %v2929 = vld [vmem:[#allocation3 + $0x60] sm:$0xff]
  %v2930 = vld [vmem:[#allocation3 + $0x68] sm:$0xff]
  %v2931 = vld [vmem:[#allocation3 + $0x70] sm:$0xff]
  %v2932 = vld [vmem:[#allocation3 + $0x78] sm:$0xff]
  %v2933 = vld [vmem:[#allocation3 + $0x80] sm:$0xff]
  %v2934 = vld [vmem:[#allocation3 + $0x88] sm:$0xff]
  %v2935 = vld [vmem:[#allocation3 + $0x90] sm:$0xff]
  %v2936 = vld [vmem:[#allocation3 + $0x98] sm:$0xff]
  %v2937 = vld [vmem:[#allocation3 + $0xa0] sm:$0xff]
  %v2938 = vld [vmem:[#allocation3 + $0xa8] sm:$0xff]
  %v2939 = vld [vmem:[#allocation3 + $0xb0] sm:$0xff]
  %v2940 = vld [vmem:[#allocation3 + $0xb8] sm:$0xff]
  %v2941 = vld [vmem:[#allocation3 + $0xc0] sm:$0xff]
  %v2942 = vld [vmem:[#allocation3 + $0xc8] sm:$0xff]
  %v2943 = vld [vmem:[#allocation3 + $0xd0] sm:$0xff]
  %v2944 = vld [vmem:[#allocation3 + $0xd8] sm:$0xff]
  %v2945 = vld [vmem:[#allocation3 + $0xe0] sm:$0xff]
  %v2946 = vld [vmem:[#allocation3 + $0xe8] sm:$0xff]
  %v2947 = vld [vmem:[#allocation3 + $0xf0] sm:$0xff]
  %v2948 = vld [vmem:[#allocation3 + $0xf8] sm:$0xff]
  %v2949 = vld [vmem:[#allocation3 + $0x100] sm:$0xff]
  %v2950 = vld [vmem:[#allocation3 + $0x108] sm:$0xff]
  %v2951 = vld [vmem:[#allocation3 + $0x110] sm:$0xff]
  %v2952 = vld [vmem:[#allocation3 + $0x118] sm:$0xff]
  %v2953 = vld [vmem:[#allocation3 + $0x120] sm:$0xff]
  %v2954 = vld [vmem:[#allocation3 + $0x128] sm:$0xff]
  %v2955 = vld [vmem:[#allocation3 + $0x130] sm:$0xff]
  %v2956 = vld [vmem:[#allocation3 + $0x138] sm:$0xff]
  %v2957 = vld [vmem:[#allocation3 + $0x140] sm:$0xff]
  %v2958 = vld [vmem:[#allocation3 + $0x148] sm:$0xff]
  %v2959 = vld [vmem:[#allocation3 + $0x150] sm:$0xff]
  %v2960 = vld [vmem:[#allocation3 + $0x158] sm:$0xff]
  %v2961 = vld [vmem:[#allocation3 + $0x160] sm:$0xff]
  %v2962 = vld [vmem:[#allocation3 + $0x168] sm:$0xff]
  %v2963 = vld [vmem:[#allocation3 + $0x170] sm:$0xff]
  %v2964 = vld [vmem:[#allocation3 + $0x178] sm:$0xff]
  %v2965 = vld [vmem:[#allocation3 + $0x180] sm:$0xff]
  %v2966 = vld [vmem:[#allocation3 + $0x188] sm:$0xff]
  %v2967 = vld [vmem:[#allocation3 + $0x190] sm:$0xff]
  %v2968 = vld [vmem:[#allocation3 + $0x198] sm:$0xff]
  %v2969 = vld [vmem:[#allocation3 + $0x1a0] sm:$0xff]
  %v2970 = vld [vmem:[#allocation3 + $0x1a8] sm:$0xff]
  %v2971 = vld [vmem:[#allocation3 + $0x1b0] sm:$0xff]
  %v2972 = vld [vmem:[#allocation3 + $0x1b8] sm:$0xff]
  %v2973 = vld [vmem:[#allocation3 + $0x1c0] sm:$0xff]
  %v2974 = vld [vmem:[#allocation3 + $0x1c8] sm:$0xff]
  %v2975 = vld [vmem:[#allocation3 + $0x1d0] sm:$0xff]
  %v2976 = vld [vmem:[#allocation3 + $0x1d8] sm:$0xff]
  %v2977 = vld [vmem:[#allocation3 + $0x1e0] sm:$0xff]
  %v2978 = vld [vmem:[#allocation3 + $0x1e8] sm:$0xff]
  %v2979 = vld [vmem:[#allocation3 + $0x1f0] sm:$0xff]
  %v2980 = vld [vmem:[#allocation3 + $0x1f8] sm:$0xff]
  %v2981 = vld [vmem:[#allocation3 + $0x200] sm:$0xff]
  %v2982 = vld [vmem:[#allocation3 + $0x208] sm:$0xff]
  %v2983 = vld [vmem:[#allocation3 + $0x210] sm:$0xff]
  %v2984 = vld [vmem:[#allocation3 + $0x218] sm:$0xff]
  %v2985 = vld [vmem:[#allocation3 + $0x220] sm:$0xff]
  %v2986 = vld [vmem:[#allocation3 + $0x228] sm:$0xff]
  %v2987 = vld [vmem:[#allocation3 + $0x230] sm:$0xff]
  %v2988 = vld [vmem:[#allocation3 + $0x238] sm:$0xff]
  %v2989 = vld [vmem:[#allocation3 + $0x240] sm:$0xff]
  %v2990 = vld [vmem:[#allocation3 + $0x248] sm:$0xff]
  %v2991 = vld [vmem:[#allocation3 + $0x250] sm:$0xff]
  %v2992 = vld [vmem:[#allocation3 + $0x258] sm:$0xff]
  %v2993 = vld [vmem:[#allocation3 + $0x260] sm:$0xff]
  %v2994 = vld [vmem:[#allocation3 + $0x268] sm:$0xff]
  %v2995 = vld [vmem:[#allocation3 + $0x270] sm:$0xff]
  %v2996 = vld [vmem:[#allocation3 + $0x278] sm:$0xff]
  %v2997 = vld [vmem:[#allocation3 + $0x280] sm:$0xff]
  %v2998 = vld [vmem:[#allocation3 + $0x288] sm:$0xff]
  %v2999 = vld [vmem:[#allocation3 + $0x290] sm:$0xff]
  %v3000 = vld [vmem:[#allocation3 + $0x298] sm:$0xff]
  %v3001 = vld [vmem:[#allocation3 + $0x2a0] sm:$0xf]
  %v3002 = vld [vmem:[#allocation3 + $0x2a8] sm:$0xf]
  %v3003 = vld [vmem:[#allocation3 + $0x2b0] sm:$0xf]
  %v3004 = vld [vmem:[#allocation3 + $0x2b8] sm:$0xf]
  %v3005 = vld [vmem:[#allocation3 + $0x2c0] sm:$0xf]
  %v3006 = vld [vmem:[#allocation3 + $0x2c8] sm:$0xf]
  %v3007 = vld [vmem:[#allocation3 + $0x2d0] sm:$0xf]
  %v3009 = vsel %vm1301, %v2916, 0
  %v3012 = vsel %vm53, %v3001, 0
  %v3015 = vsel %vm53, %v3002, 0
  %v3018 = vsel %vm53, %v3003, 0
  %v3021 = vsel %vm53, %v3004, 0
  %v3024 = vsel %vm53, %v3005, 0
  %v3027 = vsel %vm53, %v3006, 0
  %v3030 = vsel %vm53, %v3007, 0
  %3032 = vmatprep.subr.mxu0 %v2918
  %3033 = vmatpush1.msra.mxu0 %v2917
  %3034 = vmatprep.subr.mxu0 %v2925
  %3035 = vmatpush1.msra.mxu0 %v2924
  %3036 = vmatprep.subr.mxu0 %v2932
  %3037 = vmatpush1.msra.mxu0 %v2931
  %3038 = vmatprep.subr.mxu0 %v2939
  %3039 = vmatpush1.msra.mxu0 %v2938
  %3040 = vmatprep.subr.mxu0 %v2946
  %3041 = vmatpush1.msra.mxu0 %v2945
  %3042 = vmatprep.subr.mxu0 %v2953
  %3043 = vmatpush1.msra.mxu0 %v2952
  %3044 = vmatprep.subr.mxu0 %v2960
  %3045 = vmatpush1.msra.mxu0 %v2959
  %3046 = vmatprep.subr.mxu0 %v2967
  %3047 = vmatpush1.msra.mxu0 %v2966
  %3048 = vmatprep.subr.mxu0 %v2974
  %3049 = vmatpush1.msra.mxu0 %v2973
  %3050 = vmatprep.subr.mxu0 %v2981
  %3051 = vmatpush1.msra.mxu0 %v2980
  %3052 = vmatprep.subr.mxu0 %v2988
  %3053 = vmatpush1.msra.mxu0 %v2987
  %3054 = vmatprep.subr.mxu0 %v2995
  %3055 = vmatpush1.msra.mxu0 %v2994
  %3056 = vmatprep.subr.mxu0 %v3015
  %3057 = vmatpush1.msra.mxu0 %v3012
  %3058 = vmatprep.subr.mxu0 0.0
  %3059 = vmatpush1.msra.mxu0 0.0
  %3060 = vmatprep.subr.mxu0 0.0
  %3061 = vmatpush1.msra.mxu0 0.0
  %3062 = vmatprep.subr.mxu0 0.0
  %3063 = vmatpush1.msra.mxu0 0.0
  %3064 = vmatprep.subr.mxu0 0.0
  %3065 = vmatpush1.msra.mxu0 0.0
  %3066 = vmatprep.subr.mxu0 0.0
  %3067 = vmatpush1.msra.mxu0 0.0
  %3068 = vmatprep.subr.mxu0 0.0
  %3069 = vmatpush1.msra.mxu0 0.0
  %3070 = vmatprep.subr.mxu0 0.0
  %3071 = vmatpush1.msra.mxu0 0.0
  %3072 = vmatprep.subr.mxu0 0.0
  %3073 = vmatpush1.msra.mxu0 0.0
  %3074 = vmatprep.subr.mxu0 0.0
  %3075 = vmatpush1.msra.mxu0 0.0
  %3076 = vmatprep.subr.mxu0 0.0
  %3077 = vmatpush1.msra.mxu0 0.0
  %3078 = vmatprep.subr.mxu0 0.0
  %3079 = vmatpush1.msra.mxu0 0.0
  %3080 = vmatprep.subr.mxu0 0.0
  %3081 = vmatpush1.msra.mxu0 0.0
  %3082 = vmatprep.subr.mxu0 0.0
  %3083 = vmatpush1.msra.mxu0 0.0
  %3084 = vmatprep.subr.mxu0 0.0
  %3085 = vmatpush1.msra.mxu0 0.0
  %3086 = vmatprep.subr.mxu0 0.0
  %3087 = vmatpush1.msra.mxu0 0.0
  %3088 = vmatprep.subr.mxu0 0.0
  %3089 = vmatpush1.msra.mxu0 0.0
  %3090 = vmatprep.subr.mxu0 0.0
  %3091 = vmatpush1.msra.mxu0 0.0
  %3092 = vmatprep.subr.mxu0 0.0
  %3093 = vmatpush1.msra.mxu0 0.0
  %3094 = vmatprep.subr.mxu0 0.0
  %3095 = vmatpush1.msra.mxu0 0.0
  %3096 = vmatprep.mubr.f32.mxu0 0.0
  %3097 = vmatmul.mubr.f32.gmra.mrb[0].mxu0 %v3009
  %v3098 = vpop.f32.mrb[0].mxu0
  %v3099 = vadd.f32 0.0, %v3098
  %v3100 = vpop.f32.mrb[0].mxu0
  %v3101 = vadd.f32 0.0, %v3100
  %3102 = vdwg.mxu0
  %3103 = vmatprep.subr.mxu0 %v2920
  %3104 = vmatpush1.msra.mxu0 %v2919
  %3105 = vmatprep.subr.mxu0 %v2927
  %3106 = vmatpush1.msra.mxu0 %v2926
  %3107 = vmatprep.subr.mxu0 %v2934
  %3108 = vmatpush1.msra.mxu0 %v2933
  %3109 = vmatprep.subr.mxu0 %v2941
  %3110 = vmatpush1.msra.mxu0 %v2940
  %3111 = vmatprep.subr.mxu0 %v2948
  %3112 = vmatpush1.msra.mxu0 %v2947
  %3113 = vmatprep.subr.mxu0 %v2955
  %3114 = vmatpush1.msra.mxu0 %v2954
  %3115 = vmatprep.subr.mxu0 %v2962
  %3116 = vmatpush1.msra.mxu0 %v2961
  %3117 = vmatprep.subr.mxu0 %v2969
  %3118 = vmatpush1.msra.mxu0 %v2968
  %3119 = vmatprep.subr.mxu0 %v2976
  %3120 = vmatpush1.msra.mxu0 %v2975
  %3121 = vmatprep.subr.mxu0 %v2983
  %3122 = vmatpush1.msra.mxu0 %v2982
  %3123 = vmatprep.subr.mxu0 %v2990
  %3124 = vmatpush1.msra.mxu0 %v2989
  %3125 = vmatprep.subr.mxu0 %v2997
  %3126 = vmatpush1.msra.mxu0 %v2996
  %3127 = vmatprep.subr.mxu0 %v3021
  %3128 = vmatpush1.msra.mxu0 %v3018
  %3129 = vmatprep.subr.mxu0 0.0
  %3130 = vmatpush1.msra.mxu0 0.0
  %3131 = vmatprep.subr.mxu0 0.0
  %3132 = vmatpush1.msra.mxu0 0.0
  %3133 = vmatprep.subr.mxu0 0.0
  %3134 = vmatpush1.msra.mxu0 0.0
  %3135 = vmatprep.subr.mxu0 0.0
  %3136 = vmatpush1.msra.mxu0 0.0
  %3137 = vmatprep.subr.mxu0 0.0
  %3138 = vmatpush1.msra.mxu0 0.0
  %3139 = vmatprep.subr.mxu0 0.0
  %3140 = vmatpush1.msra.mxu0 0.0
  %3141 = vmatprep.subr.mxu0 0.0
  %3142 = vmatpush1.msra.mxu0 0.0
  %3143 = vmatprep.subr.mxu0 0.0
  %3144 = vmatpush1.msra.mxu0 0.0
  %3145 = vmatprep.subr.mxu0 0.0
  %3146 = vmatpush1.msra.mxu0 0.0
  %3147 = vmatprep.subr.mxu0 0.0
  %3148 = vmatpush1.msra.mxu0 0.0
  %3149 = vmatprep.subr.mxu0 0.0
  %3150 = vmatpush1.msra.mxu0 0.0
  %3151 = vmatprep.subr.mxu0 0.0
  %3152 = vmatpush1.msra.mxu0 0.0
  %3153 = vmatprep.subr.mxu0 0.0
  %3154 = vmatpush1.msra.mxu0 0.0
  %3155 = vmatprep.subr.mxu0 0.0
  %3156 = vmatpush1.msra.mxu0 0.0
  %3157 = vmatprep.subr.mxu0 0.0
  %3158 = vmatpush1.msra.mxu0 0.0
  %3159 = vmatprep.subr.mxu0 0.0
  %3160 = vmatpush1.msra.mxu0 0.0
  %3161 = vmatprep.subr.mxu0 0.0
  %3162 = vmatpush1.msra.mxu0 0.0
  %3163 = vmatprep.subr.mxu0 0.0
  %3164 = vmatpush1.msra.mxu0 0.0
  %3165 = vmatprep.subr.mxu0 0.0
  %3166 = vmatpush1.msra.mxu0 0.0
  %3167 = vmatprep.mubr.f32.mxu0 0.0
  %3168 = vmatmul.mubr.f32.gmra.mrb[0].mxu0 %v3009
  %v3169 = vpop.f32.mrb[0].mxu0
  %v3170 = vadd.f32 0.0, %v3169
  %v3171 = vpop.f32.mrb[0].mxu0
  %v3172 = vadd.f32 0.0, %v3171
  %3173 = vdwg.mxu0
  %3174 = vmatprep.subr.mxu0 %v2922
  %3175 = vmatpush1.msra.mxu0 %v2921
  %3176 = vmatprep.subr.mxu0 %v2929
  %3177 = vmatpush1.msra.mxu0 %v2928
  %3178 = vmatprep.subr.mxu0 %v2936
  %3179 = vmatpush1.msra.mxu0 %v2935
  %3180 = vmatprep.subr.mxu0 %v2943
  %3181 = vmatpush1.msra.mxu0 %v2942
  %3182 = vmatprep.subr.mxu0 %v2950
  %3183 = vmatpush1.msra.mxu0 %v2949
  %3184 = vmatprep.subr.mxu0 %v2957
  %3185 = vmatpush1.msra.mxu0 %v2956
  %3186 = vmatprep.subr.mxu0 %v2964
  %3187 = vmatpush1.msra.mxu0 %v2963
  %3188 = vmatprep.subr.mxu0 %v2971
  %3189 = vmatpush1.msra.mxu0 %v2970
  %3190 = vmatprep.subr.mxu0 %v2978
  %3191 = vmatpush1.msra.mxu0 %v2977
  %3192 = vmatprep.subr.mxu0 %v2985
  %3193 = vmatpush1.msra.mxu0 %v2984
  %3194 = vmatprep.subr.mxu0 %v2992
  %3195 = vmatpush1.msra.mxu0 %v2991
  %3196 = vmatprep.subr.mxu0 %v2999
  %3197 = vmatpush1.msra.mxu0 %v2998
  %3198 = vmatprep.subr.mxu0 %v3027
  %3199 = vmatpush1.msra.mxu0 %v3024
  %3200 = vmatprep.subr.mxu0 0.0
  %3201 = vmatpush1.msra.mxu0 0.0
  %3202 = vmatprep.subr.mxu0 0.0
  %3203 = vmatpush1.msra.mxu0 0.0
  %3204 = vmatprep.subr.mxu0 0.0
  %3205 = vmatpush1.msra.mxu0 0.0
  %3206 = vmatprep.subr.mxu0 0.0
  %3207 = vmatpush1.msra.mxu0 0.0
  %3208 = vmatprep.subr.mxu0 0.0
  %3209 = vmatpush1.msra.mxu0 0.0
  %3210 = vmatprep.subr.mxu0 0.0
  %3211 = vmatpush1.msra.mxu0 0.0
  %3212 = vmatprep.subr.mxu0 0.0
  %3213 = vmatpush1.msra.mxu0 0.0
  %3214 = vmatprep.subr.mxu0 0.0
  %3215 = vmatpush1.msra.mxu0 0.0
  %3216 = vmatprep.subr.mxu0 0.0
  %3217 = vmatpush1.msra.mxu0 0.0
  %3218 = vmatprep.subr.mxu0 0.0
  %3219 = vmatpush1.msra.mxu0 0.0
  %3220 = vmatprep.subr.mxu0 0.0
  %3221 = vmatpush1.msra.mxu0 0.0
  %3222 = vmatprep.subr.mxu0 0.0
  %3223 = vmatpush1.msra.mxu0 0.0
  %3224 = vmatprep.subr.mxu0 0.0
  %3225 = vmatpush1.msra.mxu0 0.0
  %3226 = vmatprep.subr.mxu0 0.0
  %3227 = vmatpush1.msra.mxu0 0.0
  %3228 = vmatprep.subr.mxu0 0.0
  %3229 = vmatpush1.msra.mxu0 0.0
  %3230 = vmatprep.subr.mxu0 0.0
  %3231 = vmatpush1.msra.mxu0 0.0
  %3232 = vmatprep.subr.mxu0 0.0
  %3233 = vmatpush1.msra.mxu0 0.0
  %3234 = vmatprep.subr.mxu0 0.0
  %3235 = vmatpush1.msra.mxu0 0.0
  %3236 = vmatprep.subr.mxu0 0.0
  %3237 = vmatpush1.msra.mxu0 0.0
  %3238 = vmatprep.mubr.f32.mxu0 0.0
  %3239 = vmatmul.mubr.f32.gmra.mrb[0].mxu0 %v3009
  %v3240 = vpop.f32.mrb[0].mxu0
  %v3241 = vadd.f32 0.0, %v3240
  %v3242 = vpop.f32.mrb[0].mxu0
  %v3243 = vadd.f32 0.0, %v3242
  %3244 = vdwg.mxu0
  %3245 = vmatprep.subr.mxu0 0.0
  %3246 = vmatpush1.msra.mxu0 %v2923
  %3247 = vmatprep.subr.mxu0 0.0
  %3248 = vmatpush1.msra.mxu0 %v2930
  %3249 = vmatprep.subr.mxu0 0.0
  %3250 = vmatpush1.msra.mxu0 %v2937
  %3251 = vmatprep.subr.mxu0 0.0
  %3252 = vmatpush1.msra.mxu0 %v2944
  %3253 = vmatprep.subr.mxu0 0.0
  %3254 = vmatpush1.msra.mxu0 %v2951
  %3255 = vmatprep.subr.mxu0 0.0
  %3256 = vmatpush1.msra.mxu0 %v2958
  %3257 = vmatprep.subr.mxu0 0.0
  %3258 = vmatpush1.msra.mxu0 %v2965
  %3259 = vmatprep.subr.mxu0 0.0
  %3260 = vmatpush1.msra.mxu0 %v2972
  %3261 = vmatprep.subr.mxu0 0.0
  %3262 = vmatpush1.msra.mxu0 %v2979
  %3263 = vmatprep.subr.mxu0 0.0
  %3264 = vmatpush1.msra.mxu0 %v2986
  %3265 = vmatprep.subr.mxu0 0.0
  %3266 = vmatpush1.msra.mxu0 %v2993
  %3267 = vmatprep.subr.mxu0 0.0
  %3268 = vmatpush1.msra.mxu0 %v3000
  %3269 = vmatprep.subr.mxu0 0.0
  %3270 = vmatpush1.msra.mxu0 %v3030
  %3271 = vmatprep.subr.mxu0 0.0
  %3272 = vmatpush1.msra.mxu0 0.0
  %3273 = vmatprep.subr.mxu0 0.0
  %3274 = vmatpush1.msra.mxu0 0.0
  %3275 = vmatprep.subr.mxu0 0.0
  %3276 = vmatpush1.msra.mxu0 0.0
  %3277 = vmatprep.subr.mxu0 0.0
  %3278 = vmatpush1.msra.mxu0 0.0
  %3279 = vmatprep.subr.mxu0 0.0
  %3280 = vmatpush1.msra.mxu0 0.0
  %3281 = vmatprep.subr.mxu0 0.0
  %3282 = vmatpush1.msra.mxu0 0.0
  %3283 = vmatprep.subr.mxu0 0.0
  %3284 = vmatpush1.msra.mxu0 0.0
  %3285 = vmatprep.subr.mxu0 0.0
  %3286 = vmatpush1.msra.mxu0 0.0
  %3287 = vmatprep.subr.mxu0 0.0
  %3288 = vmatpush1.msra.mxu0 0.0
  %3289 = vmatprep.subr.mxu0 0.0
  %3290 = vmatpush1.msra.mxu0 0.0
  %3291 = vmatprep.subr.mxu0 0.0
  %3292 = vmatpush1.msra.mxu0 0.0
  %3293 = vmatprep.subr.mxu0 0.0
  %3294 = vmatpush1.msra.mxu0 0.0
  %3295 = vmatprep.subr.mxu0 0.0
  %3296 = vmatpush1.msra.mxu0 0.0
  %3297 = vmatprep.subr.mxu0 0.0
  %3298 = vmatpush1.msra.mxu0 0.0
  %3299 = vmatprep.subr.mxu0 0.0
  %3300 = vmatpush1.msra.mxu0 0.0
  %3301 = vmatprep.subr.mxu0 0.0
  %3302 = vmatpush1.msra.mxu0 0.0
  %3303 = vmatprep.subr.mxu0 0.0
  %3304 = vmatpush1.msra.mxu0 0.0
  %3305 = vmatprep.subr.mxu0 0.0
  %3306 = vmatpush1.msra.mxu0 0.0
  %3307 = vmatprep.subr.mxu0 0.0
  %3308 = vmatpush1.msra.mxu0 0.0
  %3309 = vmatprep.mubr.f32.mxu0 0.0
  %3310 = vmatmul.mubr.f32.gmra.mrb[0].mxu0 %v3009
  %v3311 = vpop.f32.mrb[0].mxu0
  %v3312 = vadd.f32 0.0, %v3311
  %v3313 = vpop.f32.mrb[0].mxu0
  %3314 = vdwg.mxu0
  %v3315 = vmul.f32 %v3099, %v1613
  %v3316 = vmul.f32 %v3101, %v1617
  %v3317 = vmul.f32 %v3170, %v1621
  %v3318 = vmul.f32 %v3172, %v1625
  %v3319 = vmul.f32 %v3241, %v1629
  %v3320 = vmul.f32 %v3243, %v1633
  %v3321 = vmul.f32 %v3312, %v1637
  %v3322 = vsel %vm53, %v3315, 0.0
  %v3323 = vsel %vm53, %v3316, 0.0
  %v3324 = vadd.f32 %v3322, %v3323
  %v3325 = vsel %vm53, %v3317, 0.0
  %v3326 = vadd.f32 %v3324, %v3325
  %v3327 = vsel %vm53, %v3318, 0.0
  %v3328 = vadd.f32 %v3326, %v3327
  %v3329 = vsel %vm53, %v3319, 0.0
  %v3330 = vadd.f32 %v3328, %v3329
  %v3331 = vsel %vm53, %v3320, 0.0
  %v3332 = vadd.f32 %v3330, %v3331
  %v3333 = vsel %vm90, %v3321, 0.0
  %v3334 = vadd.f32 %v3332, %v3333
  %3335 = vadd.xlane.f32.xlu0 %v3334
  %v3336 = vpop.xlane.xlu0 %3335
  %v3337 = vmul.f32 %v3336, 0.001953125
  %v3338 = vsub.f32 %v3099, %v3337
  %v3339 = vsub.f32 %v3101, %v3337
  %v3340 = vsub.f32 %v3170, %v3337
  %v3341 = vsub.f32 %v3172, %v3337
  %v3342 = vsub.f32 %v3241, %v3337
  %v3343 = vsub.f32 %v3243, %v3337
  %v3344 = vsub.f32 %v3312, %v3337
  %v3345 = vmul.f32 %v3338, %v1613
  %v3346 = vmul.f32 %v3339, %v1617
  %v3347 = vmul.f32 %v3340, %v1621
  %v3348 = vmul.f32 %v3341, %v1625
  %v3349 = vmul.f32 %v3342, %v1629
  %v3350 = vmul.f32 %v3343, %v1633
  %v3351 = vmul.f32 %v3344, %v1637
  %v3352 = vmul.f32 %v3345, %v3345
  %v3353 = vmul.f32 %v3346, %v3346
  %v3354 = vmul.f32 %v3347, %v3347
  %v3355 = vmul.f32 %v3348, %v3348
  %v3356 = vmul.f32 %v3349, %v3349
  %v3357 = vmul.f32 %v3350, %v3350
  %v3358 = vmul.f32 %v3351, %v3351
  %v3359 = vsel %vm53, %v3352, 0.0
  %v3360 = vsel %vm53, %v3353, 0.0
  %v3361 = vadd.f32 %v3359, %v3360
  %v3362 = vsel %vm53, %v3354, 0.0
  %v3363 = vadd.f32 %v3361, %v3362
  %v3364 = vsel %vm53, %v3355, 0.0
  %v3365 = vadd.f32 %v3363, %v3364
  %v3366 = vsel %vm53, %v3356, 0.0
  %v3367 = vadd.f32 %v3365, %v3366
  %v3368 = vsel %vm53, %v3357, 0.0
  %v3369 = vadd.f32 %v3367, %v3368
  %v3370 = vsel %vm90, %v3358, 0.0
  %v3371 = vadd.f32 %v3369, %v3370
  %3372 = vadd.xlane.f32.xlu0 %v3371
  %v3373 = vpop.xlane.xlu0 %3372
  %v3374 = vmul.f32 %v3373, 0.001953125
  %v3375 = vadd.f32 %v3374, 1e-05
  %v3376 = vrsqrt.pop %v3375
  %v3377 = vmul.f32 %v3345, %v3376
  %v3378 = vmul.f32 %v3346, %v3376
  %v3379 = vmul.f32 %v3347, %v3376
  %v3380 = vmul.f32 %v3348, %v3376
  %v3381 = vmul.f32 %v3349, %v3376
  %v3382 = vmul.f32 %v3350, %v3376
  %v3383 = vmul.f32 %v3351, %v3376
  %s3384 = scalar_lea.vmem %s3, 4
  %v3385 = vld [vmem:[%s3384] sm:$0xf]
  %3387 = vset.pattern.permute.xlu0 0
  %3388 = vperm.xlu0 %3387, %v3385
  %v3389 = vpop.permute.xlu0 %3388
  %v3391 = vmul.f32 %v3377, %v3389
  %v3392 = vmul.f32 %v3378, %v3389
  %v3393 = vmul.f32 %v3379, %v3389
  %v3394 = vmul.f32 %v3380, %v3389
  %v3395 = vmul.f32 %v3381, %v3389
  %v3396 = vmul.f32 %v3382, %v3389
  %v3397 = vmul.f32 %v3383, %v3389
  %s3398 = scalar_lea.vmem %s4, 4
  %v3399 = vld [vmem:[%s3398] sm:$0xf]
  %3401 = vset.pattern.permute.xlu0 0
  %3402 = vperm.xlu0 %3401, %v3399
  %v3403 = vpop.permute.xlu0 %3402
  %v3405 = vadd.f32 %v3391, %v3403
  %v3406 = vadd.f32 %v3392, %v3403
  %v3407 = vadd.f32 %v3393, %v3403
  %v3408 = vadd.f32 %v3394, %v3403
  %v3409 = vadd.f32 %v3395, %v3403
  %v3410 = vadd.f32 %v3396, %v3403
  %v3411 = vadd.f32 %v3397, %v3403
  %vm3412 = vcmp.ge.f32.partialorder %v3405, 0.0
  %vm3413 = vcmp.ge.f32.partialorder %v3406, 0.0
  %vm3414 = vcmp.ge.f32.partialorder %v3407, 0.0
  %vm3415 = vcmp.ge.f32.partialorder %v3408, 0.0
  %vm3416 = vcmp.ge.f32.partialorder %v3409, 0.0
  %vm3417 = vcmp.ge.f32.partialorder %v3410, 0.0
  %vm3418 = vcmp.ge.f32.partialorder %v3411, 0.0
  %v3419 = vmul.f32 %v3405, 0.01
  %v3420 = vmul.f32 %v3406, 0.01
  %v3421 = vmul.f32 %v3407, 0.01
  %v3422 = vmul.f32 %v3408, 0.01
  %v3423 = vmul.f32 %v3409, 0.01
  %v3424 = vmul.f32 %v3410, 0.01
  %v3425 = vmul.f32 %v3411, 0.01
  %v3426 = vsel %vm3412, %v3405, %v3419
  %v3427 = vsel %vm3413, %v3406, %v3420
  %v3428 = vsel %vm3414, %v3407, %v3421
  %v3429 = vsel %vm3415, %v3408, %v3422
  %v3430 = vsel %vm3416, %v3409, %v3423
  %v3431 = vsel %vm3417, %v3410, %v3424
  %v3432 = vsel %vm3418, %v3411, %v3425
  %v3433 = vmul.f32 %v3426, %v1613
  %v3434 = vmul.f32 %v3427, %v1617
  %v3435 = vmul.f32 %v3428, %v1621
  %v3436 = vmul.f32 %v3429, %v1625
  %v3437 = vmul.f32 %v3430, %v1629
  %v3438 = vmul.f32 %v3431, %v1633
  %v3439 = vmul.f32 %v3432, %v1637
  %v3447 = vcombine.low %v3433, %v3434
  %v3448 = vcombine.low %v3435, %v3436
  %v3449 = vcombine.low %v3437, %v3438
  %3450 = vrot.lane.b32.xlu0 %v3447, 42
  %v3451 = vpop.permute.xlu0 %3450
  %3452 = vrot.lane.b32.xlu0 %v3448, 42
  %v3453 = vpop.permute.xlu0 %3452
  %3454 = vrot.lane.b32.xlu0 %v3449, 42
  %v3455 = vpop.permute.xlu0 %3454
  %3456 = vrot.lane.b32.xlu0 %v3439, 42
  %v3457 = vpop.permute.xlu0 %3456
  %v3458 = vrot.slane %v3451, 4
  %v3459 = vrot.slane %v3453, 4
  %v3460 = vrot.slane %v3455, 4
  %v3461 = vsel %vm51, %v3458, %v3451
  %v3462 = vsel %vm53, %v3458, %v3459
  %v3463 = vsel %vm51, %v3462, %v3453
  %v3464 = vsel %vm53, %v3459, %v3460
  %v3465 = vsel %vm51, %v3464, %v3455
  %v3466 = vsel %vm51, %v3460, %v3457
  %3471 = vst.msk [vmem:[#allocation2] sm:$0xff] %vm65, %v3461
  %3472 = vst [vmem:[#allocation2 + $0x8] sm:$0xff] %v3463
  %3473 = vst [vmem:[#allocation2 + $0x10] sm:$0xff] %v3465
  %3474 = vst.msk [vmem:[#allocation2 + $0x18] sm:$0xf] %vm69, %v3466
  %v3475 = vld [vmem:[#allocation2] sm:$0xff]
  %v3476 = vld [vmem:[#allocation2 + $0x8] sm:$0xff]
  %v3477 = vld [vmem:[#allocation2 + $0x10] sm:$0xff]
  %v3478 = vld [vmem:[#allocation2 + $0x18] sm:$0xf]
  %v3482 = vcombine.high %v3475, %v3475
  %v3483 = vcombine.high %v3476, %v3476
  %v3484 = vcombine.high %v3477, %v3477
  %3488 = vst [vmem:[#allocation3] sm:$0xf] %v3475
  %3489 = vst [vmem:[#allocation3 + $0x8] sm:$0xf] %v3482
  %3490 = vst [vmem:[#allocation3 + $0x10] sm:$0xf] %v3476
  %3491 = vst [vmem:[#allocation3 + $0x18] sm:$0xf] %v3483
  %3492 = vst [vmem:[#allocation3 + $0x20] sm:$0xf] %v3477
  %3493 = vst [vmem:[#allocation3 + $0x28] sm:$0xf] %v3484
  %3494 = vst.msk [vmem:[#allocation3 + $0x30] sm:$0xf] %vm90, %v3478
  %v3495 = vld [vmem:[#allocation2] sm:$0xff]
  %v3496 = vld [vmem:[#allocation2 + $0x8] sm:$0xff]
  %v3497 = vld [vmem:[#allocation2 + $0x10] sm:$0xff]
  %v3498 = vld [vmem:[#allocation2 + $0x18] sm:$0xf]
  %v3503 = vcombine.low %v3495, %v3495
  %v3504 = vcombine.low %v3496, %v3496
  %v3505 = vcombine.low %v3497, %v3497
  %v3506 = vcombine.low %v3498, %v3498
  %3507 = vrot.lane.b32.xlu0 %v3503, 127
  %v3508 = vpop.permute.xlu0 %3507
  %3509 = vrot.lane.b32.xlu0 %v3495, 127
  %v3510 = vpop.permute.xlu0 %3509
  %3511 = vrot.lane.b32.xlu0 %v3504, 127
  %v3512 = vpop.permute.xlu0 %3511
  %3513 = vrot.lane.b32.xlu0 %v3496, 127
  %v3514 = vpop.permute.xlu0 %3513
  %3515 = vrot.lane.b32.xlu0 %v3505, 127
  %v3516 = vpop.permute.xlu0 %3515
  %3517 = vrot.lane.b32.xlu0 %v3497, 127
  %v3518 = vpop.permute.xlu0 %3517
  %3519 = vrot.lane.b32.xlu0 %v3506, 127
  %v3520 = vpop.permute.xlu0 %3519
  %v3521 = vsel %vm118, %v3508, %v3510
  %v3522 = vsel %vm118, %v3510, %v3512
  %v3523 = vsel %vm118, %v3512, %v3514
  %v3524 = vsel %vm118, %v3514, %v3516
  %v3525 = vsel %vm118, %v3516, %v3518
  %v3526 = vsel %vm118, %v3518, %v3520
  %3534 = vst [vmem:[#allocation3] sm:$0xf0] %v3521
  %3535 = vst [vmem:[#allocation3 + $0x8] sm:$0xf0] %v3522
  %3536 = vst [vmem:[#allocation3 + $0x10] sm:$0xf0] %v3523
  %3537 = vst [vmem:[#allocation3 + $0x18] sm:$0xf0] %v3524
  %3538 = vst [vmem:[#allocation3 + $0x20] sm:$0xf0] %v3525
  %3539 = vst [vmem:[#allocation3 + $0x28] sm:$0xf0] %v3526
  %3540 = vst.msk [vmem:[#allocation3 + $0x30] sm:$0xf0] %vm138, %v3520
  %v3541 = vld [vmem:[#allocation2] sm:$0xff]
  %v3542 = vld [vmem:[#allocation2 + $0x8] sm:$0xff]
  %v3543 = vld [vmem:[#allocation2 + $0x10] sm:$0xff]
  %v3544 = vld [vmem:[#allocation2 + $0x18] sm:$0xf]
  %v3549 = vcombine.high %v3541, %v3541
  %v3550 = vcombine.high %v3542, %v3542
  %v3551 = vcombine.high %v3543, %v3543
  %3552 = vrot.lane.b32.xlu0 %v3541, 126
  %v3553 = vpop.permute.xlu0 %3552
  %3554 = vrot.lane.b32.xlu0 %v3549, 126
  %v3555 = vpop.permute.xlu0 %3554
  %3556 = vrot.lane.b32.xlu0 %v3542, 126
  %v3557 = vpop.permute.xlu0 %3556
  %3558 = vrot.lane.b32.xlu0 %v3550, 126
  %v3559 = vpop.permute.xlu0 %3558
  %3560 = vrot.lane.b32.xlu0 %v3543, 126
  %v3561 = vpop.permute.xlu0 %3560
  %3562 = vrot.lane.b32.xlu0 %v3551, 126
  %v3563 = vpop.permute.xlu0 %3562
  %3564 = vrot.lane.b32.xlu0 %v3544, 126
  %v3565 = vpop.permute.xlu0 %3564
  %v3566 = vsel %vm165, %v3553, %v3555
  %v3567 = vsel %vm165, %v3555, %v3557
  %v3568 = vsel %vm165, %v3557, %v3559
  %v3569 = vsel %vm165, %v3559, %v3561
  %v3570 = vsel %vm165, %v3561, %v3563
  %v3571 = vsel %vm165, %v3563, %v3565
  %3579 = vst [vmem:[#allocation3 + $0x38] sm:$0xf] %v3566
  %3580 = vst [vmem:[#allocation3 + $0x40] sm:$0xf] %v3567
  %3581 = vst [vmem:[#allocation3 + $0x48] sm:$0xf] %v3568
  %3582 = vst [vmem:[#allocation3 + $0x50] sm:$0xf] %v3569
  %3583 = vst [vmem:[#allocation3 + $0x58] sm:$0xf] %v3570
  %3584 = vst [vmem:[#allocation3 + $0x60] sm:$0xf] %v3571
  %3585 = vst.msk [vmem:[#allocation3 + $0x68] sm:$0xf] %vm90, %v3565
  %v3586 = vld [vmem:[#allocation2] sm:$0xff]
  %v3587 = vld [vmem:[#allocation2 + $0x8] sm:$0xff]
  %v3588 = vld [vmem:[#allocation2 + $0x10] sm:$0xff]
  %v3589 = vld [vmem:[#allocation2 + $0x18] sm:$0xf]
  %v3594 = vcombine.low %v3586, %v3586
  %v3595 = vcombine.low %v3587, %v3587
  %v3596 = vcombine.low %v3588, %v3588
  %v3597 = vcombine.low %v3589, %v3589
  %3598 = vrot.lane.b32.xlu0 %v3594, 125
  %v3599 = vpop.permute.xlu0 %3598
  %3600 = vrot.lane.b32.xlu0 %v3586, 125
  %v3601 = vpop.permute.xlu0 %3600
  %3602 = vrot.lane.b32.xlu0 %v3595, 125
  %v3603 = vpop.permute.xlu0 %3602
  %3604 = vrot.lane.b32.xlu0 %v3587, 125
  %v3605 = vpop.permute.xlu0 %3604
  %3606 = vrot.lane.b32.xlu0 %v3596, 125
  %v3607 = vpop.permute.xlu0 %3606
  %3608 = vrot.lane.b32.xlu0 %v3588, 125
  %v3609 = vpop.permute.xlu0 %3608
  %3610 = vrot.lane.b32.xlu0 %v3597, 125
  %v3611 = vpop.permute.xlu0 %3610
  %v3612 = vsel %vm212, %v3599, %v3601
  %v3613 = vsel %vm212, %v3601, %v3603
  %v3614 = vsel %vm212, %v3603, %v3605
  %v3615 = vsel %vm212, %v3605, %v3607
  %v3616 = vsel %vm212, %v3607, %v3609
  %v3617 = vsel %vm212, %v3609, %v3611
  %3625 = vst [vmem:[#allocation3 + $0x38] sm:$0xf0] %v3612
  %3626 = vst [vmem:[#allocation3 + $0x40] sm:$0xf0] %v3613
  %3627 = vst [vmem:[#allocation3 + $0x48] sm:$0xf0] %v3614
  %3628 = vst [vmem:[#allocation3 + $0x50] sm:$0xf0] %v3615
  %3629 = vst [vmem:[#allocation3 + $0x58] sm:$0xf0] %v3616
  %3630 = vst [vmem:[#allocation3 + $0x60] sm:$0xf0] %v3617
  %3631 = vst.msk [vmem:[#allocation3 + $0x68] sm:$0xf0] %vm138, %v3611
  %v3632 = vld [vmem:[#allocation2] sm:$0xff]
  %v3633 = vld [vmem:[#allocation2 + $0x8] sm:$0xff]
  %v3634 = vld [vmem:[#allocation2 + $0x10] sm:$0xff]
  %v3635 = vld [vmem:[#allocation2 + $0x18] sm:$0xf]
  %v3640 = vcombine.high %v3632, %v3632
  %v3641 = vcombine.high %v3633, %v3633
  %v3642 = vcombine.high %v3634, %v3634
  %3643 = vrot.lane.b32.xlu0 %v3632, 124
  %v3644 = vpop.permute.xlu0 %3643
  %3645 = vrot.lane.b32.xlu0 %v3640, 124
  %v3646 = vpop.permute.xlu0 %3645
  %3647 = vrot.lane.b32.xlu0 %v3633, 124
  %v3648 = vpop.permute.xlu0 %3647
  %3649 = vrot.lane.b32.xlu0 %v3641, 124
  %v3650 = vpop.permute.xlu0 %3649
  %3651 = vrot.lane.b32.xlu0 %v3634, 124
  %v3652 = vpop.permute.xlu0 %3651
  %3653 = vrot.lane.b32.xlu0 %v3642, 124
  %v3654 = vpop.permute.xlu0 %3653
  %3655 = vrot.lane.b32.xlu0 %v3635, 124
  %v3656 = vpop.permute.xlu0 %3655
  %v3657 = vsel %vm258, %v3644, %v3646
  %v3658 = vsel %vm258, %v3646, %v3648
  %v3659 = vsel %vm258, %v3648, %v3650
  %v3660 = vsel %vm258, %v3650, %v3652
  %v3661 = vsel %vm258, %v3652, %v3654
  %v3662 = vsel %vm258, %v3654, %v3656
  %3670 = vst [vmem:[#allocation3 + $0x70] sm:$0xf] %v3657
  %3671 = vst [vmem:[#allocation3 + $0x78] sm:$0xf] %v3658
  %3672 = vst [vmem:[#allocation3 + $0x80] sm:$0xf] %v3659
  %3673 = vst [vmem:[#allocation3 + $0x88] sm:$0xf] %v3660
  %3674 = vst [vmem:[#allocation3 + $0x90] sm:$0xf] %v3661
  %3675 = vst [vmem:[#allocation3 + $0x98] sm:$0xf] %v3662
  %3676 = vst.msk [vmem:[#allocation3 + $0xa0] sm:$0xf] %vm90, %v3656
  %v3677 = vld [vmem:[#allocation2] sm:$0xff]
  %v3678 = vld [vmem:[#allocation2 + $0x8] sm:$0xff]
  %v3679 = vld [vmem:[#allocation2 + $0x10] sm:$0xff]
  %v3680 = vld [vmem:[#allocation2 + $0x18] sm:$0xf]
  %v3685 = vcombine.low %v3677, %v3677
  %v3686 = vcombine.low %v3678, %v3678
  %v3687 = vcombine.low %v3679, %v3679
  %v3688 = vcombine.low %v3680, %v3680
  %3689 = vrot.lane.b32.xlu0 %v3685, 108
  %v3690 = vpop.permute.xlu0 %3689
  %3691 = vrot.lane.b32.xlu0 %v3677, 108
  %v3692 = vpop.permute.xlu0 %3691
  %3693 = vrot.lane.b32.xlu0 %v3686, 108
  %v3694 = vpop.permute.xlu0 %3693
  %3695 = vrot.lane.b32.xlu0 %v3678, 108
  %v3696 = vpop.permute.xlu0 %3695
  %3697 = vrot.lane.b32.xlu0 %v3687, 108
  %v3698 = vpop.permute.xlu0 %3697
  %3699 = vrot.lane.b32.xlu0 %v3679, 108
  %v3700 = vpop.permute.xlu0 %3699
  %3701 = vrot.lane.b32.xlu0 %v3688, 108
  %v3702 = vpop.permute.xlu0 %3701
  %v3703 = vsel %vm305, %v3690, %v3692
  %v3704 = vsel %vm305, %v3692, %v3694
  %v3705 = vsel %vm305, %v3694, %v3696
  %v3706 = vsel %vm305, %v3696, %v3698
  %v3707 = vsel %vm305, %v3698, %v3700
  %v3708 = vsel %vm305, %v3700, %v3702
  %3716 = vst [vmem:[#allocation3 + $0x70] sm:$0xf0] %v3703
  %3717 = vst [vmem:[#allocation3 + $0x78] sm:$0xf0] %v3704
  %3718 = vst [vmem:[#allocation3 + $0x80] sm:$0xf0] %v3705
  %3719 = vst [vmem:[#allocation3 + $0x88] sm:$0xf0] %v3706
  %3720 = vst [vmem:[#allocation3 + $0x90] sm:$0xf0] %v3707
  %3721 = vst [vmem:[#allocation3 + $0x98] sm:$0xf0] %v3708
  %3722 = vst.msk [vmem:[#allocation3 + $0xa0] sm:$0xf0] %vm138, %v3702
  %v3723 = vld [vmem:[#allocation2] sm:$0xff]
  %v3724 = vld [vmem:[#allocation2 + $0x8] sm:$0xff]
  %v3725 = vld [vmem:[#allocation2 + $0x10] sm:$0xff]
  %v3726 = vld [vmem:[#allocation2 + $0x18] sm:$0xf]
  %v3731 = vcombine.high %v3723, %v3723
  %v3732 = vcombine.high %v3724, %v3724
  %v3733 = vcombine.high %v3725, %v3725
  %3734 = vrot.lane.b32.xlu0 %v3723, 107
  %v3735 = vpop.permute.xlu0 %3734
  %3736 = vrot.lane.b32.xlu0 %v3731, 107
  %v3737 = vpop.permute.xlu0 %3736
  %3738 = vrot.lane.b32.xlu0 %v3724, 107
  %v3739 = vpop.permute.xlu0 %3738
  %3740 = vrot.lane.b32.xlu0 %v3732, 107
  %v3741 = vpop.permute.xlu0 %3740
  %3742 = vrot.lane.b32.xlu0 %v3725, 107
  %v3743 = vpop.permute.xlu0 %3742
  %3744 = vrot.lane.b32.xlu0 %v3733, 107
  %v3745 = vpop.permute.xlu0 %3744
  %3746 = vrot.lane.b32.xlu0 %v3726, 107
  %v3747 = vpop.permute.xlu0 %3746
  %v3748 = vsel %vm351, %v3735, %v3737
  %v3749 = vsel %vm351, %v3737, %v3739
  %v3750 = vsel %vm351, %v3739, %v3741
  %v3751 = vsel %vm351, %v3741, %v3743
  %v3752 = vsel %vm351, %v3743, %v3745
  %v3753 = vsel %vm351, %v3745, %v3747
  %3761 = vst [vmem:[#allocation3 + $0xa8] sm:$0xf] %v3748
  %3762 = vst [vmem:[#allocation3 + $0xb0] sm:$0xf] %v3749
  %3763 = vst [vmem:[#allocation3 + $0xb8] sm:$0xf] %v3750
  %3764 = vst [vmem:[#allocation3 + $0xc0] sm:$0xf] %v3751
  %3765 = vst [vmem:[#allocation3 + $0xc8] sm:$0xf] %v3752
  %3766 = vst [vmem:[#allocation3 + $0xd0] sm:$0xf] %v3753
  %3767 = vst.msk [vmem:[#allocation3 + $0xd8] sm:$0xf] %vm90, %v3747
  %v3768 = vld [vmem:[#allocation2] sm:$0xff]
  %v3769 = vld [vmem:[#allocation2 + $0x8] sm:$0xff]
  %v3770 = vld [vmem:[#allocation2 + $0x10] sm:$0xff]
  %v3771 = vld [vmem:[#allocation2 + $0x18] sm:$0xf]
  %v3776 = vcombine.low %v3768, %v3768
  %v3777 = vcombine.low %v3769, %v3769
  %v3778 = vcombine.low %v3770, %v3770
  %v3779 = vcombine.low %v3771, %v3771
  %3780 = vrot.lane.b32.xlu0 %v3776, 106
  %v3781 = vpop.permute.xlu0 %3780
  %3782 = vrot.lane.b32.xlu0 %v3768, 106
  %v3783 = vpop.permute.xlu0 %3782
  %3784 = vrot.lane.b32.xlu0 %v3777, 106
  %v3785 = vpop.permute.xlu0 %3784
  %3786 = vrot.lane.b32.xlu0 %v3769, 106
  %v3787 = vpop.permute.xlu0 %3786
  %3788 = vrot.lane.b32.xlu0 %v3778, 106
  %v3789 = vpop.permute.xlu0 %3788
  %3790 = vrot.lane.b32.xlu0 %v3770, 106
  %v3791 = vpop.permute.xlu0 %3790
  %3792 = vrot.lane.b32.xlu0 %v3779, 106
  %v3793 = vpop.permute.xlu0 %3792
  %v3794 = vsel %vm398, %v3781, %v3783
  %v3795 = vsel %vm398, %v3783, %v3785
  %v3796 = vsel %vm398, %v3785, %v3787
  %v3797 = vsel %vm398, %v3787, %v3789
  %v3798 = vsel %vm398, %v3789, %v3791
  %v3799 = vsel %vm398, %v3791, %v3793
  %3807 = vst [vmem:[#allocation3 + $0xa8] sm:$0xf0] %v3794
  %3808 = vst [vmem:[#allocation3 + $0xb0] sm:$0xf0] %v3795
  %3809 = vst [vmem:[#allocation3 + $0xb8] sm:$0xf0] %v3796
  %3810 = vst [vmem:[#allocation3 + $0xc0] sm:$0xf0] %v3797
  %3811 = vst [vmem:[#allocation3 + $0xc8] sm:$0xf0] %v3798
  %3812 = vst [vmem:[#allocation3 + $0xd0] sm:$0xf0] %v3799
  %3813 = vst.msk [vmem:[#allocation3 + $0xd8] sm:$0xf0] %vm138, %v3793
  %v3814 = vld [vmem:[#allocation2] sm:$0xff]
  %v3815 = vld [vmem:[#allocation2 + $0x8] sm:$0xff]
  %v3816 = vld [vmem:[#allocation2 + $0x10] sm:$0xff]
  %v3817 = vld [vmem:[#allocation2 + $0x18] sm:$0xf]
  %v3822 = vcombine.high %v3814, %v3814
  %v3823 = vcombine.high %v3815, %v3815
  %v3824 = vcombine.high %v3816, %v3816
  %3825 = vrot.lane.b32.xlu0 %v3814, 105
  %v3826 = vpop.permute.xlu0 %3825
  %3827 = vrot.lane.b32.xlu0 %v3822, 105
  %v3828 = vpop.permute.xlu0 %3827
  %3829 = vrot.lane.b32.xlu0 %v3815, 105
  %v3830 = vpop.permute.xlu0 %3829
  %3831 = vrot.lane.b32.xlu0 %v3823, 105
  %v3832 = vpop.permute.xlu0 %3831
  %3833 = vrot.lane.b32.xlu0 %v3816, 105
  %v3834 = vpop.permute.xlu0 %3833
  %3835 = vrot.lane.b32.xlu0 %v3824, 105
  %v3836 = vpop.permute.xlu0 %3835
  %3837 = vrot.lane.b32.xlu0 %v3817, 105
  %v3838 = vpop.permute.xlu0 %3837
  %v3839 = vsel %vm444, %v3826, %v3828
  %v3840 = vsel %vm444, %v3828, %v3830
  %v3841 = vsel %vm444, %v3830, %v3832
  %v3842 = vsel %vm444, %v3832, %v3834
  %v3843 = vsel %vm444, %v3834, %v3836
  %v3844 = vsel %vm444, %v3836, %v3838
  %3852 = vst [vmem:[#allocation3 + $0xe0] sm:$0xf] %v3839
  %3853 = vst [vmem:[#allocation3 + $0xe8] sm:$0xf] %v3840
  %3854 = vst [vmem:[#allocation3 + $0xf0] sm:$0xf] %v3841
  %3855 = vst [vmem:[#allocation3 + $0xf8] sm:$0xf] %v3842
  %3856 = vst [vmem:[#allocation3 + $0x100] sm:$0xf] %v3843
  %3857 = vst [vmem:[#allocation3 + $0x108] sm:$0xf] %v3844
  %3858 = vst.msk [vmem:[#allocation3 + $0x110] sm:$0xf] %vm90, %v3838
  %v3859 = vld [vmem:[#allocation2] sm:$0xff]
  %v3860 = vld [vmem:[#allocation2 + $0x8] sm:$0xff]
  %v3861 = vld [vmem:[#allocation2 + $0x10] sm:$0xff]
  %v3862 = vld [vmem:[#allocation2 + $0x18] sm:$0xf]
  %v3867 = vcombine.low %v3859, %v3859
  %v3868 = vcombine.low %v3860, %v3860
  %v3869 = vcombine.low %v3861, %v3861
  %v3870 = vcombine.low %v3862, %v3862
  %3871 = vrot.lane.b32.xlu0 %v3867, 104
  %v3872 = vpop.permute.xlu0 %3871
  %3873 = vrot.lane.b32.xlu0 %v3859, 104
  %v3874 = vpop.permute.xlu0 %3873
  %3875 = vrot.lane.b32.xlu0 %v3868, 104
  %v3876 = vpop.permute.xlu0 %3875
  %3877 = vrot.lane.b32.xlu0 %v3860, 104
  %v3878 = vpop.permute.xlu0 %3877
  %3879 = vrot.lane.b32.xlu0 %v3869, 104
  %v3880 = vpop.permute.xlu0 %3879
  %3881 = vrot.lane.b32.xlu0 %v3861, 104
  %v3882 = vpop.permute.xlu0 %3881
  %3883 = vrot.lane.b32.xlu0 %v3870, 104
  %v3884 = vpop.permute.xlu0 %3883
  %v3885 = vsel %vm491, %v3872, %v3874
  %v3886 = vsel %vm491, %v3874, %v3876
  %v3887 = vsel %vm491, %v3876, %v3878
  %v3888 = vsel %vm491, %v3878, %v3880
  %v3889 = vsel %vm491, %v3880, %v3882
  %v3890 = vsel %vm491, %v3882, %v3884
  %3898 = vst [vmem:[#allocation3 + $0xe0] sm:$0xf0] %v3885
  %3899 = vst [vmem:[#allocation3 + $0xe8] sm:$0xf0] %v3886
  %3900 = vst [vmem:[#allocation3 + $0xf0] sm:$0xf0] %v3887
  %3901 = vst [vmem:[#allocation3 + $0xf8] sm:$0xf0] %v3888
  %3902 = vst [vmem:[#allocation3 + $0x100] sm:$0xf0] %v3889
  %3903 = vst [vmem:[#allocation3 + $0x108] sm:$0xf0] %v3890
  %3904 = vst.msk [vmem:[#allocation3 + $0x110] sm:$0xf0] %vm138, %v3884
  %v3905 = vld [vmem:[#allocation2] sm:$0xff]
  %v3906 = vld [vmem:[#allocation2 + $0x8] sm:$0xff]
  %v3907 = vld [vmem:[#allocation2 + $0x10] sm:$0xff]
  %v3908 = vld [vmem:[#allocation2 + $0x18] sm:$0xf]
  %v3913 = vcombine.high %v3905, %v3905
  %v3914 = vcombine.high %v3906, %v3906
  %v3915 = vcombine.high %v3907, %v3907
  %3916 = vrot.lane.b32.xlu0 %v3905, 88
  %v3917 = vpop.permute.xlu0 %3916
  %3918 = vrot.lane.b32.xlu0 %v3913, 88
  %v3919 = vpop.permute.xlu0 %3918
  %3920 = vrot.lane.b32.xlu0 %v3906, 88
  %v3921 = vpop.permute.xlu0 %3920
  %3922 = vrot.lane.b32.xlu0 %v3914, 88
  %v3923 = vpop.permute.xlu0 %3922
  %3924 = vrot.lane.b32.xlu0 %v3907, 88
  %v3925 = vpop.permute.xlu0 %3924
  %3926 = vrot.lane.b32.xlu0 %v3915, 88
  %v3927 = vpop.permute.xlu0 %3926
  %3928 = vrot.lane.b32.xlu0 %v3908, 88
  %v3929 = vpop.permute.xlu0 %3928
  %v3930 = vsel %vm537, %v3917, %v3919
  %v3931 = vsel %vm537, %v3919, %v3921
  %v3932 = vsel %vm537, %v3921, %v3923
  %v3933 = vsel %vm537, %v3923, %v3925
  %v3934 = vsel %vm537, %v3925, %v3927
  %v3935 = vsel %vm537, %v3927, %v3929
  %3943 = vst [vmem:[#allocation3 + $0x118] sm:$0xf] %v3930
  %3944 = vst [vmem:[#allocation3 + $0x120] sm:$0xf] %v3931
  %3945 = vst [vmem:[#allocation3 + $0x128] sm:$0xf] %v3932
  %3946 = vst [vmem:[#allocation3 + $0x130] sm:$0xf] %v3933
  %3947 = vst [vmem:[#allocation3 + $0x138] sm:$0xf] %v3934
  %3948 = vst [vmem:[#allocation3 + $0x140] sm:$0xf] %v3935
  %3949 = vst.msk [vmem:[#allocation3 + $0x148] sm:$0xf] %vm90, %v3929
  %v3950 = vld [vmem:[#allocation2] sm:$0xff]
  %v3951 = vld [vmem:[#allocation2 + $0x8] sm:$0xff]
  %v3952 = vld [vmem:[#allocation2 + $0x10] sm:$0xff]
  %v3953 = vld [vmem:[#allocation2 + $0x18] sm:$0xf]
  %v3958 = vcombine.low %v3950, %v3950
  %v3959 = vcombine.low %v3951, %v3951
  %v3960 = vcombine.low %v3952, %v3952
  %v3961 = vcombine.low %v3953, %v3953
  %3962 = vrot.lane.b32.xlu0 %v3958, 87
  %v3963 = vpop.permute.xlu0 %3962
  %3964 = vrot.lane.b32.xlu0 %v3950, 87
  %v3965 = vpop.permute.xlu0 %3964
  %3966 = vrot.lane.b32.xlu0 %v3959, 87
  %v3967 = vpop.permute.xlu0 %3966
  %3968 = vrot.lane.b32.xlu0 %v3951, 87
  %v3969 = vpop.permute.xlu0 %3968
  %3970 = vrot.lane.b32.xlu0 %v3960, 87
  %v3971 = vpop.permute.xlu0 %3970
  %3972 = vrot.lane.b32.xlu0 %v3952, 87
  %v3973 = vpop.permute.xlu0 %3972
  %3974 = vrot.lane.b32.xlu0 %v3961, 87
  %v3975 = vpop.permute.xlu0 %3974
  %v3976 = vsel %vm584, %v3963, %v3965
  %v3977 = vsel %vm584, %v3965, %v3967
  %v3978 = vsel %vm584, %v3967, %v3969
  %v3979 = vsel %vm584, %v3969, %v3971
  %v3980 = vsel %vm584, %v3971, %v3973
  %v3981 = vsel %vm584, %v3973, %v3975
  %3989 = vst [vmem:[#allocation3 + $0x118] sm:$0xf0] %v3976
  %3990 = vst [vmem:[#allocation3 + $0x120] sm:$0xf0] %v3977
  %3991 = vst [vmem:[#allocation3 + $0x128] sm:$0xf0] %v3978
  %3992 = vst [vmem:[#allocation3 + $0x130] sm:$0xf0] %v3979
  %3993 = vst [vmem:[#allocation3 + $0x138] sm:$0xf0] %v3980
  %3994 = vst [vmem:[#allocation3 + $0x140] sm:$0xf0] %v3981
  %3995 = vst.msk [vmem:[#allocation3 + $0x148] sm:$0xf0] %vm138, %v3975
  %v3996 = vld [vmem:[#allocation2] sm:$0xff]
  %v3997 = vld [vmem:[#allocation2 + $0x8] sm:$0xff]
  %v3998 = vld [vmem:[#allocation2 + $0x10] sm:$0xff]
  %v3999 = vld [vmem:[#allocation2 + $0x18] sm:$0xf]
  %v4004 = vcombine.high %v3996, %v3996
  %v4005 = vcombine.high %v3997, %v3997
  %v4006 = vcombine.high %v3998, %v3998
  %4007 = vrot.lane.b32.xlu0 %v3996, 86
  %v4008 = vpop.permute.xlu0 %4007
  %4009 = vrot.lane.b32.xlu0 %v4004, 86
  %v4010 = vpop.permute.xlu0 %4009
  %4011 = vrot.lane.b32.xlu0 %v3997, 86
  %v4012 = vpop.permute.xlu0 %4011
  %4013 = vrot.lane.b32.xlu0 %v4005, 86
  %v4014 = vpop.permute.xlu0 %4013
  %4015 = vrot.lane.b32.xlu0 %v3998, 86
  %v4016 = vpop.permute.xlu0 %4015
  %4017 = vrot.lane.b32.xlu0 %v4006, 86
  %v4018 = vpop.permute.xlu0 %4017
  %4019 = vrot.lane.b32.xlu0 %v3999, 86
  %v4020 = vpop.permute.xlu0 %4019
  %v4021 = vsel %vm630, %v4008, %v4010
  %v4022 = vsel %vm630, %v4010, %v4012
  %v4023 = vsel %vm630, %v4012, %v4014
  %v4024 = vsel %vm630, %v4014, %v4016
  %v4025 = vsel %vm630, %v4016, %v4018
  %v4026 = vsel %vm630, %v4018, %v4020
  %4034 = vst [vmem:[#allocation3 + $0x150] sm:$0xf] %v4021
  %4035 = vst [vmem:[#allocation3 + $0x158] sm:$0xf] %v4022
  %4036 = vst [vmem:[#allocation3 + $0x160] sm:$0xf] %v4023
  %4037 = vst [vmem:[#allocation3 + $0x168] sm:$0xf] %v4024
  %4038 = vst [vmem:[#allocation3 + $0x170] sm:$0xf] %v4025
  %4039 = vst [vmem:[#allocation3 + $0x178] sm:$0xf] %v4026
  %4040 = vst.msk [vmem:[#allocation3 + $0x180] sm:$0xf] %vm90, %v4020
  %v4041 = vld [vmem:[#allocation2] sm:$0xff]
  %v4042 = vld [vmem:[#allocation2 + $0x8] sm:$0xff]
  %v4043 = vld [vmem:[#allocation2 + $0x10] sm:$0xff]
  %v4044 = vld [vmem:[#allocation2 + $0x18] sm:$0xf]
  %v4049 = vcombine.low %v4041, %v4041
  %v4050 = vcombine.low %v4042, %v4042
  %v4051 = vcombine.low %v4043, %v4043
  %v4052 = vcombine.low %v4044, %v4044
  %4053 = vrot.lane.b32.xlu0 %v4049, 85
  %v4054 = vpop.permute.xlu0 %4053
  %4055 = vrot.lane.b32.xlu0 %v4041, 85
  %v4056 = vpop.permute.xlu0 %4055
  %4057 = vrot.lane.b32.xlu0 %v4050, 85
  %v4058 = vpop.permute.xlu0 %4057
  %4059 = vrot.lane.b32.xlu0 %v4042, 85
  %v4060 = vpop.permute.xlu0 %4059
  %4061 = vrot.lane.b32.xlu0 %v4051, 85
  %v4062 = vpop.permute.xlu0 %4061
  %4063 = vrot.lane.b32.xlu0 %v4043, 85
  %v4064 = vpop.permute.xlu0 %4063
  %4065 = vrot.lane.b32.xlu0 %v4052, 85
  %v4066 = vpop.permute.xlu0 %4065
  %v4067 = vsel %vm677, %v4054, %v4056
  %v4068 = vsel %vm677, %v4056, %v4058
  %v4069 = vsel %vm677, %v4058, %v4060
  %v4070 = vsel %vm677, %v4060, %v4062
  %v4071 = vsel %vm677, %v4062, %v4064
  %v4072 = vsel %vm677, %v4064, %v4066
  %4080 = vst [vmem:[#allocation3 + $0x150] sm:$0xf0] %v4067
  %4081 = vst [vmem:[#allocation3 + $0x158] sm:$0xf0] %v4068
  %4082 = vst [vmem:[#allocation3 + $0x160] sm:$0xf0] %v4069
  %4083 = vst [vmem:[#allocation3 + $0x168] sm:$0xf0] %v4070
  %4084 = vst [vmem:[#allocation3 + $0x170] sm:$0xf0] %v4071
  %4085 = vst [vmem:[#allocation3 + $0x178] sm:$0xf0] %v4072
  %4086 = vst.msk [vmem:[#allocation3 + $0x180] sm:$0xf0] %vm138, %v4066
  %v4087 = vld [vmem:[#allocation2] sm:$0xff]
  %v4088 = vld [vmem:[#allocation2 + $0x8] sm:$0xff]
  %v4089 = vld [vmem:[#allocation2 + $0x10] sm:$0xff]
  %v4090 = vld [vmem:[#allocation2 + $0x18] sm:$0xf]
  %v4095 = vcombine.high %v4087, %v4087
  %v4096 = vcombine.high %v4088, %v4088
  %v4097 = vcombine.high %v4089, %v4089
  %4098 = vrot.lane.b32.xlu0 %v4087, 84
  %v4099 = vpop.permute.xlu0 %4098
  %4100 = vrot.lane.b32.xlu0 %v4095, 84
  %v4101 = vpop.permute.xlu0 %4100
  %4102 = vrot.lane.b32.xlu0 %v4088, 84
  %v4103 = vpop.permute.xlu0 %4102
  %4104 = vrot.lane.b32.xlu0 %v4096, 84
  %v4105 = vpop.permute.xlu0 %4104
  %4106 = vrot.lane.b32.xlu0 %v4089, 84
  %v4107 = vpop.permute.xlu0 %4106
  %4108 = vrot.lane.b32.xlu0 %v4097, 84
  %v4109 = vpop.permute.xlu0 %4108
  %4110 = vrot.lane.b32.xlu0 %v4090, 84
  %v4111 = vpop.permute.xlu0 %4110
  %v4112 = vsel %vm723, %v4099, %v4101
  %v4113 = vsel %vm723, %v4101, %v4103
  %v4114 = vsel %vm723, %v4103, %v4105
  %v4115 = vsel %vm723, %v4105, %v4107
  %v4116 = vsel %vm723, %v4107, %v4109
  %v4117 = vsel %vm723, %v4109, %v4111
  %4125 = vst [vmem:[#allocation3 + $0x188] sm:$0xf] %v4112
  %4126 = vst [vmem:[#allocation3 + $0x190] sm:$0xf] %v4113
  %4127 = vst [vmem:[#allocation3 + $0x198] sm:$0xf] %v4114
  %4128 = vst [vmem:[#allocation3 + $0x1a0] sm:$0xf] %v4115
  %4129 = vst [vmem:[#allocation3 + $0x1a8] sm:$0xf] %v4116
  %4130 = vst [vmem:[#allocation3 + $0x1b0] sm:$0xf] %v4117
  %4131 = vst.msk [vmem:[#allocation3 + $0x1b8] sm:$0xf] %vm90, %v4111
  %v4132 = vld [vmem:[#allocation2] sm:$0xff]
  %v4133 = vld [vmem:[#allocation2 + $0x8] sm:$0xff]
  %v4134 = vld [vmem:[#allocation2 + $0x10] sm:$0xff]
  %v4135 = vld [vmem:[#allocation2 + $0x18] sm:$0xf]
  %v4140 = vcombine.low %v4132, %v4132
  %v4141 = vcombine.low %v4133, %v4133
  %v4142 = vcombine.low %v4134, %v4134
  %v4143 = vcombine.low %v4135, %v4135
  %4144 = vrot.lane.b32.xlu0 %v4140, 68
  %v4145 = vpop.permute.xlu0 %4144
  %4146 = vrot.lane.b32.xlu0 %v4132, 68
  %v4147 = vpop.permute.xlu0 %4146
  %4148 = vrot.lane.b32.xlu0 %v4141, 68
  %v4149 = vpop.permute.xlu0 %4148
  %4150 = vrot.lane.b32.xlu0 %v4133, 68
  %v4151 = vpop.permute.xlu0 %4150
  %4152 = vrot.lane.b32.xlu0 %v4142, 68
  %v4153 = vpop.permute.xlu0 %4152
  %4154 = vrot.lane.b32.xlu0 %v4134, 68
  %v4155 = vpop.permute.xlu0 %4154
  %4156 = vrot.lane.b32.xlu0 %v4143, 68
  %v4157 = vpop.permute.xlu0 %4156
  %v4158 = vsel %vm770, %v4145, %v4147
  %v4159 = vsel %vm770, %v4147, %v4149
  %v4160 = vsel %vm770, %v4149, %v4151
  %v4161 = vsel %vm770, %v4151, %v4153
  %v4162 = vsel %vm770, %v4153, %v4155
  %v4163 = vsel %vm770, %v4155, %v4157
  %4171 = vst [vmem:[#allocation3 + $0x188] sm:$0xf0] %v4158
  %4172 = vst [vmem:[#allocation3 + $0x190] sm:$0xf0] %v4159
  %4173 = vst [vmem:[#allocation3 + $0x198] sm:$0xf0] %v4160
  %4174 = vst [vmem:[#allocation3 + $0x1a0] sm:$0xf0] %v4161
  %4175 = vst [vmem:[#allocation3 + $0x1a8] sm:$0xf0] %v4162
  %4176 = vst [vmem:[#allocation3 + $0x1b0] sm:$0xf0] %v4163
  %4177 = vst.msk [vmem:[#allocation3 + $0x1b8] sm:$0xf0] %vm138, %v4157
  %v4178 = vld [vmem:[#allocation2] sm:$0xff]
  %v4179 = vld [vmem:[#allocation2 + $0x8] sm:$0xff]
  %v4180 = vld [vmem:[#allocation2 + $0x10] sm:$0xff]
  %v4181 = vld [vmem:[#allocation2 + $0x18] sm:$0xf]
  %v4186 = vcombine.high %v4178, %v4178
  %v4187 = vcombine.high %v4179, %v4179
  %v4188 = vcombine.high %v4180, %v4180
  %4189 = vrot.lane.b32.xlu0 %v4178, 67
  %v4190 = vpop.permute.xlu0 %4189
  %4191 = vrot.lane.b32.xlu0 %v4186, 67
  %v4192 = vpop.permute.xlu0 %4191
  %4193 = vrot.lane.b32.xlu0 %v4179, 67
  %v4194 = vpop.permute.xlu0 %4193
  %4195 = vrot.lane.b32.xlu0 %v4187, 67
  %v4196 = vpop.permute.xlu0 %4195
  %4197 = vrot.lane.b32.xlu0 %v4180, 67
  %v4198 = vpop.permute.xlu0 %4197
  %4199 = vrot.lane.b32.xlu0 %v4188, 67
  %v4200 = vpop.permute.xlu0 %4199
  %4201 = vrot.lane.b32.xlu0 %v4181, 67
  %v4202 = vpop.permute.xlu0 %4201
  %v4203 = vsel %vm816, %v4190, %v4192
  %v4204 = vsel %vm816, %v4192, %v4194
  %v4205 = vsel %vm816, %v4194, %v4196
  %v4206 = vsel %vm816, %v4196, %v4198
  %v4207 = vsel %vm816, %v4198, %v4200
  %v4208 = vsel %vm816, %v4200, %v4202
  %4216 = vst [vmem:[#allocation3 + $0x1c0] sm:$0xf] %v4203
  %4217 = vst [vmem:[#allocation3 + $0x1c8] sm:$0xf] %v4204
  %4218 = vst [vmem:[#allocation3 + $0x1d0] sm:$0xf] %v4205
  %4219 = vst [vmem:[#allocation3 + $0x1d8] sm:$0xf] %v4206
  %4220 = vst [vmem:[#allocation3 + $0x1e0] sm:$0xf] %v4207
  %4221 = vst [vmem:[#allocation3 + $0x1e8] sm:$0xf] %v4208
  %4222 = vst.msk [vmem:[#allocation3 + $0x1f0] sm:$0xf] %vm90, %v4202
  %v4223 = vld [vmem:[#allocation2] sm:$0xff]
  %v4224 = vld [vmem:[#allocation2 + $0x8] sm:$0xff]
  %v4225 = vld [vmem:[#allocation2 + $0x10] sm:$0xff]
  %v4226 = vld [vmem:[#allocation2 + $0x18] sm:$0xf]
  %v4231 = vcombine.low %v4223, %v4223
  %v4232 = vcombine.low %v4224, %v4224
  %v4233 = vcombine.low %v4225, %v4225
  %v4234 = vcombine.low %v4226, %v4226
  %4235 = vrot.lane.b32.xlu0 %v4231, 66
  %v4236 = vpop.permute.xlu0 %4235
  %4237 = vrot.lane.b32.xlu0 %v4223, 66
  %v4238 = vpop.permute.xlu0 %4237
  %4239 = vrot.lane.b32.xlu0 %v4232, 66
  %v4240 = vpop.permute.xlu0 %4239
  %4241 = vrot.lane.b32.xlu0 %v4224, 66
  %v4242 = vpop.permute.xlu0 %4241
  %4243 = vrot.lane.b32.xlu0 %v4233, 66
  %v4244 = vpop.permute.xlu0 %4243
  %4245 = vrot.lane.b32.xlu0 %v4225, 66
  %v4246 = vpop.permute.xlu0 %4245
  %4247 = vrot.lane.b32.xlu0 %v4234, 66
  %v4248 = vpop.permute.xlu0 %4247
  %v4249 = vsel %vm863, %v4236, %v4238
  %v4250 = vsel %vm863, %v4238, %v4240
  %v4251 = vsel %vm863, %v4240, %v4242
  %v4252 = vsel %vm863, %v4242, %v4244
  %v4253 = vsel %vm863, %v4244, %v4246
  %v4254 = vsel %vm863, %v4246, %v4248
  %4262 = vst [vmem:[#allocation3 + $0x1c0] sm:$0xf0] %v4249
  %4263 = vst [vmem:[#allocation3 + $0x1c8] sm:$0xf0] %v4250
  %4264 = vst [vmem:[#allocation3 + $0x1d0] sm:$0xf0] %v4251
  %4265 = vst [vmem:[#allocation3 + $0x1d8] sm:$0xf0] %v4252
  %4266 = vst [vmem:[#allocation3 + $0x1e0] sm:$0xf0] %v4253
  %4267 = vst [vmem:[#allocation3 + $0x1e8] sm:$0xf0] %v4254
  %4268 = vst.msk [vmem:[#allocation3 + $0x1f0] sm:$0xf0] %vm138, %v4248
  %v4269 = vld [vmem:[#allocation2] sm:$0xff]
  %v4270 = vld [vmem:[#allocation2 + $0x8] sm:$0xff]
  %v4271 = vld [vmem:[#allocation2 + $0x10] sm:$0xff]
  %v4272 = vld [vmem:[#allocation2 + $0x18] sm:$0xf]
  %v4277 = vcombine.high %v4269, %v4269
  %v4278 = vcombine.high %v4270, %v4270
  %v4279 = vcombine.high %v4271, %v4271
  %4280 = vrot.lane.b32.xlu0 %v4269, 65
  %v4281 = vpop.permute.xlu0 %4280
  %4282 = vrot.lane.b32.xlu0 %v4277, 65
  %v4283 = vpop.permute.xlu0 %4282
  %4284 = vrot.lane.b32.xlu0 %v4270, 65
  %v4285 = vpop.permute.xlu0 %4284
  %4286 = vrot.lane.b32.xlu0 %v4278, 65
  %v4287 = vpop.permute.xlu0 %4286
  %4288 = vrot.lane.b32.xlu0 %v4271, 65
  %v4289 = vpop.permute.xlu0 %4288
  %4290 = vrot.lane.b32.xlu0 %v4279, 65
  %v4291 = vpop.permute.xlu0 %4290
  %4292 = vrot.lane.b32.xlu0 %v4272, 65
  %v4293 = vpop.permute.xlu0 %4292
  %v4294 = vsel %vm909, %v4281, %v4283
  %v4295 = vsel %vm909, %v4283, %v4285
  %v4296 = vsel %vm909, %v4285, %v4287
  %v4297 = vsel %vm909, %v4287, %v4289
  %v4298 = vsel %vm909, %v4289, %v4291
  %v4299 = vsel %vm909, %v4291, %v4293
  %4307 = vst [vmem:[#allocation3 + $0x1f8] sm:$0xf] %v4294
  %4308 = vst [vmem:[#allocation3 + $0x200] sm:$0xf] %v4295
  %4309 = vst [vmem:[#allocation3 + $0x208] sm:$0xf] %v4296
  %4310 = vst [vmem:[#allocation3 + $0x210] sm:$0xf] %v4297
  %4311 = vst [vmem:[#allocation3 + $0x218] sm:$0xf] %v4298
  %4312 = vst [vmem:[#allocation3 + $0x220] sm:$0xf] %v4299
  %4313 = vst.msk [vmem:[#allocation3 + $0x228] sm:$0xf] %vm90, %v4293
  %v4314 = vld [vmem:[#allocation2] sm:$0xff]
  %v4315 = vld [vmem:[#allocation2 + $0x8] sm:$0xff]
  %v4316 = vld [vmem:[#allocation2 + $0x10] sm:$0xff]
  %v4317 = vld [vmem:[#allocation2 + $0x18] sm:$0xf]
  %v4322 = vcombine.low %v4314, %v4314
  %v4323 = vcombine.low %v4315, %v4315
  %v4324 = vcombine.low %v4316, %v4316
  %v4325 = vcombine.low %v4317, %v4317
  %4326 = vrot.lane.b32.xlu0 %v4322, 64
  %v4327 = vpop.permute.xlu0 %4326
  %4328 = vrot.lane.b32.xlu0 %v4314, 64
  %v4329 = vpop.permute.xlu0 %4328
  %4330 = vrot.lane.b32.xlu0 %v4323, 64
  %v4331 = vpop.permute.xlu0 %4330
  %4332 = vrot.lane.b32.xlu0 %v4315, 64
  %v4333 = vpop.permute.xlu0 %4332
  %4334 = vrot.lane.b32.xlu0 %v4324, 64
  %v4335 = vpop.permute.xlu0 %4334
  %4336 = vrot.lane.b32.xlu0 %v4316, 64
  %v4337 = vpop.permute.xlu0 %4336
  %4338 = vrot.lane.b32.xlu0 %v4325, 64
  %v4339 = vpop.permute.xlu0 %4338
  %v4340 = vsel %vm956, %v4327, %v4329
  %v4341 = vsel %vm956, %v4329, %v4331
  %v4342 = vsel %vm956, %v4331, %v4333
  %v4343 = vsel %vm956, %v4333, %v4335
  %v4344 = vsel %vm956, %v4335, %v4337
  %v4345 = vsel %vm956, %v4337, %v4339
  %4353 = vst [vmem:[#allocation3 + $0x1f8] sm:$0xf0] %v4340
  %4354 = vst [vmem:[#allocation3 + $0x200] sm:$0xf0] %v4341
  %4355 = vst [vmem:[#allocation3 + $0x208] sm:$0xf0] %v4342
  %4356 = vst [vmem:[#allocation3 + $0x210] sm:$0xf0] %v4343
  %4357 = vst [vmem:[#allocation3 + $0x218] sm:$0xf0] %v4344
  %4358 = vst [vmem:[#allocation3 + $0x220] sm:$0xf0] %v4345
  %4359 = vst.msk [vmem:[#allocation3 + $0x228] sm:$0xf0] %vm138, %v4339
  %v4360 = vld [vmem:[#allocation2] sm:$0xff]
  %v4361 = vld [vmem:[#allocation2 + $0x8] sm:$0xff]
  %v4362 = vld [vmem:[#allocation2 + $0x10] sm:$0xff]
  %v4363 = vld [vmem:[#allocation2 + $0x18] sm:$0xf]
  %v4368 = vcombine.high %v4360, %v4360
  %v4369 = vcombine.high %v4361, %v4361
  %v4370 = vcombine.high %v4362, %v4362
  %4371 = vrot.lane.b32.xlu0 %v4360, 48
  %v4372 = vpop.permute.xlu0 %4371
  %4373 = vrot.lane.b32.xlu0 %v4368, 48
  %v4374 = vpop.permute.xlu0 %4373
  %4375 = vrot.lane.b32.xlu0 %v4361, 48
  %v4376 = vpop.permute.xlu0 %4375
  %4377 = vrot.lane.b32.xlu0 %v4369, 48
  %v4378 = vpop.permute.xlu0 %4377
  %4379 = vrot.lane.b32.xlu0 %v4362, 48
  %v4380 = vpop.permute.xlu0 %4379
  %4381 = vrot.lane.b32.xlu0 %v4370, 48
  %v4382 = vpop.permute.xlu0 %4381
  %4383 = vrot.lane.b32.xlu0 %v4363, 48
  %v4384 = vpop.permute.xlu0 %4383
  %v4385 = vsel %vm1002, %v4372, %v4374
  %v4386 = vsel %vm1002, %v4374, %v4376
  %v4387 = vsel %vm1002, %v4376, %v4378
  %v4388 = vsel %vm1002, %v4378, %v4380
  %v4389 = vsel %vm1002, %v4380, %v4382
  %v4390 = vsel %vm1002, %v4382, %v4384
  %4398 = vst [vmem:[#allocation3 + $0x230] sm:$0xf] %v4385
  %4399 = vst [vmem:[#allocation3 + $0x238] sm:$0xf] %v4386
  %4400 = vst [vmem:[#allocation3 + $0x240] sm:$0xf] %v4387
  %4401 = vst [vmem:[#allocation3 + $0x248] sm:$0xf] %v4388
  %4402 = vst [vmem:[#allocation3 + $0x250] sm:$0xf] %v4389
  %4403 = vst [vmem:[#allocation3 + $0x258] sm:$0xf] %v4390
  %4404 = vst.msk [vmem:[#allocation3 + $0x260] sm:$0xf] %vm90, %v4384
  %v4405 = vld [vmem:[#allocation2] sm:$0xff]
  %v4406 = vld [vmem:[#allocation2 + $0x8] sm:$0xff]
  %v4407 = vld [vmem:[#allocation2 + $0x10] sm:$0xff]
  %v4408 = vld [vmem:[#allocation2 + $0x18] sm:$0xf]
  %v4413 = vcombine.low %v4405, %v4405
  %v4414 = vcombine.low %v4406, %v4406
  %v4415 = vcombine.low %v4407, %v4407
  %v4416 = vcombine.low %v4408, %v4408
  %4417 = vrot.lane.b32.xlu0 %v4413, 47
  %v4418 = vpop.permute.xlu0 %4417
  %4419 = vrot.lane.b32.xlu0 %v4405, 47
  %v4420 = vpop.permute.xlu0 %4419
  %4421 = vrot.lane.b32.xlu0 %v4414, 47
  %v4422 = vpop.permute.xlu0 %4421
  %4423 = vrot.lane.b32.xlu0 %v4406, 47
  %v4424 = vpop.permute.xlu0 %4423
  %4425 = vrot.lane.b32.xlu0 %v4415, 47
  %v4426 = vpop.permute.xlu0 %4425
  %4427 = vrot.lane.b32.xlu0 %v4407, 47
  %v4428 = vpop.permute.xlu0 %4427
  %4429 = vrot.lane.b32.xlu0 %v4416, 47
  %v4430 = vpop.permute.xlu0 %4429
  %v4431 = vsel %vm1049, %v4418, %v4420
  %v4432 = vsel %vm1049, %v4420, %v4422
  %v4433 = vsel %vm1049, %v4422, %v4424
  %v4434 = vsel %vm1049, %v4424, %v4426
  %v4435 = vsel %vm1049, %v4426, %v4428
  %v4436 = vsel %vm1049, %v4428, %v4430
  %4444 = vst [vmem:[#allocation3 + $0x230] sm:$0xf0] %v4431
  %4445 = vst [vmem:[#allocation3 + $0x238] sm:$0xf0] %v4432
  %4446 = vst [vmem:[#allocation3 + $0x240] sm:$0xf0] %v4433
  %4447 = vst [vmem:[#allocation3 + $0x248] sm:$0xf0] %v4434
  %4448 = vst [vmem:[#allocation3 + $0x250] sm:$0xf0] %v4435
  %4449 = vst [vmem:[#allocation3 + $0x258] sm:$0xf0] %v4436
  %4450 = vst.msk [vmem:[#allocation3 + $0x260] sm:$0xf0] %vm138, %v4430
  %v4451 = vld [vmem:[#allocation2] sm:$0xff]
  %v4452 = vld [vmem:[#allocation2 + $0x8] sm:$0xff]
  %v4453 = vld [vmem:[#allocation2 + $0x10] sm:$0xff]
  %v4454 = vld [vmem:[#allocation2 + $0x18] sm:$0xf]
  %v4459 = vcombine.high %v4451, %v4451
  %v4460 = vcombine.high %v4452, %v4452
  %v4461 = vcombine.high %v4453, %v4453
  %4462 = vrot.lane.b32.xlu0 %v4451, 46
  %v4463 = vpop.permute.xlu0 %4462
  %4464 = vrot.lane.b32.xlu0 %v4459, 46
  %v4465 = vpop.permute.xlu0 %4464
  %4466 = vrot.lane.b32.xlu0 %v4452, 46
  %v4467 = vpop.permute.xlu0 %4466
  %4468 = vrot.lane.b32.xlu0 %v4460, 46
  %v4469 = vpop.permute.xlu0 %4468
  %4470 = vrot.lane.b32.xlu0 %v4453, 46
  %v4471 = vpop.permute.xlu0 %4470
  %4472 = vrot.lane.b32.xlu0 %v4461, 46
  %v4473 = vpop.permute.xlu0 %4472
  %4474 = vrot.lane.b32.xlu0 %v4454, 46
  %v4475 = vpop.permute.xlu0 %4474
  %v4476 = vsel %vm1095, %v4463, %v4465
  %v4477 = vsel %vm1095, %v4465, %v4467
  %v4478 = vsel %vm1095, %v4467, %v4469
  %v4479 = vsel %vm1095, %v4469, %v4471
  %v4480 = vsel %vm1095, %v4471, %v4473
  %v4481 = vsel %vm1095, %v4473, %v4475
  %4489 = vst [vmem:[#allocation3 + $0x268] sm:$0xf] %v4476
  %4490 = vst [vmem:[#allocation3 + $0x270] sm:$0xf] %v4477
  %4491 = vst [vmem:[#allocation3 + $0x278] sm:$0xf] %v4478
  %4492 = vst [vmem:[#allocation3 + $0x280] sm:$0xf] %v4479
  %4493 = vst [vmem:[#allocation3 + $0x288] sm:$0xf] %v4480
  %4494 = vst [vmem:[#allocation3 + $0x290] sm:$0xf] %v4481
  %4495 = vst.msk [vmem:[#allocation3 + $0x298] sm:$0xf] %vm90, %v4475
  %v4496 = vld [vmem:[#allocation2] sm:$0xff]
  %v4497 = vld [vmem:[#allocation2 + $0x8] sm:$0xff]
  %v4498 = vld [vmem:[#allocation2 + $0x10] sm:$0xff]
  %v4499 = vld [vmem:[#allocation2 + $0x18] sm:$0xf]
  %v4504 = vcombine.low %v4496, %v4496
  %v4505 = vcombine.low %v4497, %v4497
  %v4506 = vcombine.low %v4498, %v4498
  %v4507 = vcombine.low %v4499, %v4499
  %4508 = vrot.lane.b32.xlu0 %v4504, 45
  %v4509 = vpop.permute.xlu0 %4508
  %4510 = vrot.lane.b32.xlu0 %v4496, 45
  %v4511 = vpop.permute.xlu0 %4510
  %4512 = vrot.lane.b32.xlu0 %v4505, 45
  %v4513 = vpop.permute.xlu0 %4512
  %4514 = vrot.lane.b32.xlu0 %v4497, 45
  %v4515 = vpop.permute.xlu0 %4514
  %4516 = vrot.lane.b32.xlu0 %v4506, 45
  %v4517 = vpop.permute.xlu0 %4516
  %4518 = vrot.lane.b32.xlu0 %v4498, 45
  %v4519 = vpop.permute.xlu0 %4518
  %4520 = vrot.lane.b32.xlu0 %v4507, 45
  %v4521 = vpop.permute.xlu0 %4520
  %v4522 = vsel %vm1142, %v4509, %v4511
  %v4523 = vsel %vm1142, %v4511, %v4513
  %v4524 = vsel %vm1142, %v4513, %v4515
  %v4525 = vsel %vm1142, %v4515, %v4517
  %v4526 = vsel %vm1142, %v4517, %v4519
  %v4527 = vsel %vm1142, %v4519, %v4521
  %4535 = vst [vmem:[#allocation3 + $0x268] sm:$0xf0] %v4522
  %4536 = vst [vmem:[#allocation3 + $0x270] sm:$0xf0] %v4523
  %4537 = vst [vmem:[#allocation3 + $0x278] sm:$0xf0] %v4524
  %4538 = vst [vmem:[#allocation3 + $0x280] sm:$0xf0] %v4525
  %4539 = vst [vmem:[#allocation3 + $0x288] sm:$0xf0] %v4526
  %4540 = vst [vmem:[#allocation3 + $0x290] sm:$0xf0] %v4527
  %4541 = vst.msk [vmem:[#allocation3 + $0x298] sm:$0xf0] %vm138, %v4521
  %v4542 = vld [vmem:[#allocation2] sm:$0xff]
  %v4543 = vld [vmem:[#allocation2 + $0x8] sm:$0xff]
  %v4544 = vld [vmem:[#allocation2 + $0x10] sm:$0xff]
  %v4545 = vld [vmem:[#allocation2 + $0x18] sm:$0xf]
  %v4550 = vcombine.high %v4542, %v4542
  %v4551 = vcombine.high %v4543, %v4543
  %v4552 = vcombine.high %v4544, %v4544
  %4553 = vrot.lane.b32.xlu0 %v4542, 44
  %v4554 = vpop.permute.xlu0 %4553
  %4555 = vrot.lane.b32.xlu0 %v4550, 44
  %v4556 = vpop.permute.xlu0 %4555
  %4557 = vrot.lane.b32.xlu0 %v4543, 44
  %v4558 = vpop.permute.xlu0 %4557
  %4559 = vrot.lane.b32.xlu0 %v4551, 44
  %v4560 = vpop.permute.xlu0 %4559
  %4561 = vrot.lane.b32.xlu0 %v4544, 44
  %v4562 = vpop.permute.xlu0 %4561
  %4563 = vrot.lane.b32.xlu0 %v4552, 44
  %v4564 = vpop.permute.xlu0 %4563
  %4565 = vrot.lane.b32.xlu0 %v4545, 44
  %v4566 = vpop.permute.xlu0 %4565
  %v4567 = vsel %vm1188, %v4554, %v4556
  %v4568 = vsel %vm1188, %v4556, %v4558
  %v4569 = vsel %vm1188, %v4558, %v4560
  %v4570 = vsel %vm1188, %v4560, %v4562
  %v4571 = vsel %vm1188, %v4562, %v4564
  %v4572 = vsel %vm1188, %v4564, %v4566
  %4580 = vst [vmem:[#allocation3 + $0x2a0] sm:$0xf] %v4567
  %4581 = vst [vmem:[#allocation3 + $0x2a8] sm:$0xf] %v4568
  %4582 = vst [vmem:[#allocation3 + $0x2b0] sm:$0xf] %v4569
  %4583 = vst [vmem:[#allocation3 + $0x2b8] sm:$0xf] %v4570
  %4584 = vst [vmem:[#allocation3 + $0x2c0] sm:$0xf] %v4571
  %4585 = vst [vmem:[#allocation3 + $0x2c8] sm:$0xf] %v4572
  %4586 = vst.msk [vmem:[#allocation3 + $0x2d0] sm:$0xf] %vm90, %v4566
  %s4587 = scalar_lea.vmem %s2, 8
  %v4588 = vld [vmem:[%s4587] sm:$0xf]
  %v4589 = vld [vmem:[#allocation3] sm:$0xff]
  %v4590 = vld [vmem:[#allocation3 + $0x8] sm:$0xff]
  %v4591 = vld [vmem:[#allocation3 + $0x10] sm:$0xff]
  %v4592 = vld [vmem:[#allocation3 + $0x18] sm:$0xff]
  %v4593 = vld [vmem:[#allocation3 + $0x20] sm:$0xff]
  %v4594 = vld [vmem:[#allocation3 + $0x28] sm:$0xff]
  %v4595 = vld [vmem:[#allocation3 + $0x30] sm:$0xff]
  %v4596 = vld [vmem:[#allocation3 + $0x38] sm:$0xff]
  %v4597 = vld [vmem:[#allocation3 + $0x40] sm:$0xff]
  %v4598 = vld [vmem:[#allocation3 + $0x48] sm:$0xff]
  %v4599 = vld [vmem:[#allocation3 + $0x50] sm:$0xff]
  %v4600 = vld [vmem:[#allocation3 + $0x58] sm:$0xff]
  %v4601 = vld [vmem:[#allocation3 + $0x60] sm:$0xff]
  %v4602 = vld [vmem:[#allocation3 + $0x68] sm:$0xff]
  %v4603 = vld [vmem:[#allocation3 + $0x70] sm:$0xff]
  %v4604 = vld [vmem:[#allocation3 + $0x78] sm:$0xff]
  %v4605 = vld [vmem:[#allocation3 + $0x80] sm:$0xff]
  %v4606 = vld [vmem:[#allocation3 + $0x88] sm:$0xff]
  %v4607 = vld [vmem:[#allocation3 + $0x90] sm:$0xff]
  %v4608 = vld [vmem:[#allocation3 + $0x98] sm:$0xff]
  %v4609 = vld [vmem:[#allocation3 + $0xa0] sm:$0xff]
  %v4610 = vld [vmem:[#allocation3 + $0xa8] sm:$0xff]
  %v4611 = vld [vmem:[#allocation3 + $0xb0] sm:$0xff]
  %v4612 = vld [vmem:[#allocation3 + $0xb8] sm:$0xff]
  %v4613 = vld [vmem:[#allocation3 + $0xc0] sm:$0xff]
  %v4614 = vld [vmem:[#allocation3 + $0xc8] sm:$0xff]
  %v4615 = vld [vmem:[#allocation3 + $0xd0] sm:$0xff]
  %v4616 = vld [vmem:[#allocation3 + $0xd8] sm:$0xff]
  %v4617 = vld [vmem:[#allocation3 + $0xe0] sm:$0xff]
  %v4618 = vld [vmem:[#allocation3 + $0xe8] sm:$0xff]
  %v4619 = vld [vmem:[#allocation3 + $0xf0] sm:$0xff]
  %v4620 = vld [vmem:[#allocation3 + $0xf8] sm:$0xff]
  %v4621 = vld [vmem:[#allocation3 + $0x100] sm:$0xff]
  %v4622 = vld [vmem:[#allocation3 + $0x108] sm:$0xff]
  %v4623 = vld [vmem:[#allocation3 + $0x110] sm:$0xff]
  %v4624 = vld [vmem:[#allocation3 + $0x118] sm:$0xff]
  %v4625 = vld [vmem:[#allocation3 + $0x120] sm:$0xff]
  %v4626 = vld [vmem:[#allocation3 + $0x128] sm:$0xff]
  %v4627 = vld [vmem:[#allocation3 + $0x130] sm:$0xff]
  %v4628 = vld [vmem:[#allocation3 + $0x138] sm:$0xff]
  %v4629 = vld [vmem:[#allocation3 + $0x140] sm:$0xff]
  %v4630 = vld [vmem:[#allocation3 + $0x148] sm:$0xff]
  %v4631 = vld [vmem:[#allocation3 + $0x150] sm:$0xff]
  %v4632 = vld [vmem:[#allocation3 + $0x158] sm:$0xff]
  %v4633 = vld [vmem:[#allocation3 + $0x160] sm:$0xff]
  %v4634 = vld [vmem:[#allocation3 + $0x168] sm:$0xff]
  %v4635 = vld [vmem:[#allocation3 + $0x170] sm:$0xff]
  %v4636 = vld [vmem:[#allocation3 + $0x178] sm:$0xff]
  %v4637 = vld [vmem:[#allocation3 + $0x180] sm:$0xff]
  %v4638 = vld [vmem:[#allocation3 + $0x188] sm:$0xff]
  %v4639 = vld [vmem:[#allocation3 + $0x190] sm:$0xff]
  %v4640 = vld [vmem:[#allocation3 + $0x198] sm:$0xff]
  %v4641 = vld [vmem:[#allocation3 + $0x1a0] sm:$0xff]
  %v4642 = vld [vmem:[#allocation3 + $0x1a8] sm:$0xff]
  %v4643 = vld [vmem:[#allocation3 + $0x1b0] sm:$0xff]
  %v4644 = vld [vmem:[#allocation3 + $0x1b8] sm:$0xff]
  %v4645 = vld [vmem:[#allocation3 + $0x1c0] sm:$0xff]
  %v4646 = vld [vmem:[#allocation3 + $0x1c8] sm:$0xff]
  %v4647 = vld [vmem:[#allocation3 + $0x1d0] sm:$0xff]
  %v4648 = vld [vmem:[#allocation3 + $0x1d8] sm:$0xff]
  %v4649 = vld [vmem:[#allocation3 + $0x1e0] sm:$0xff]
  %v4650 = vld [vmem:[#allocation3 + $0x1e8] sm:$0xff]
  %v4651 = vld [vmem:[#allocation3 + $0x1f0] sm:$0xff]
  %v4652 = vld [vmem:[#allocation3 + $0x1f8] sm:$0xff]
  %v4653 = vld [vmem:[#allocation3 + $0x200] sm:$0xff]
  %v4654 = vld [vmem:[#allocation3 + $0x208] sm:$0xff]
  %v4655 = vld [vmem:[#allocation3 + $0x210] sm:$0xff]
  %v4656 = vld [vmem:[#allocation3 + $0x218] sm:$0xff]
  %v4657 = vld [vmem:[#allocation3 + $0x220] sm:$0xff]
  %v4658 = vld [vmem:[#allocation3 + $0x228] sm:$0xff]
  %v4659 = vld [vmem:[#allocation3 + $0x230] sm:$0xff]
  %v4660 = vld [vmem:[#allocation3 + $0x238] sm:$0xff]
  %v4661 = vld [vmem:[#allocation3 + $0x240] sm:$0xff]
  %v4662 = vld [vmem:[#allocation3 + $0x248] sm:$0xff]
  %v4663 = vld [vmem:[#allocation3 + $0x250] sm:$0xff]
  %v4664 = vld [vmem:[#allocation3 + $0x258] sm:$0xff]
  %v4665 = vld [vmem:[#allocation3 + $0x260] sm:$0xff]
  %v4666 = vld [vmem:[#allocation3 + $0x268] sm:$0xff]
  %v4667 = vld [vmem:[#allocation3 + $0x270] sm:$0xff]
  %v4668 = vld [vmem:[#allocation3 + $0x278] sm:$0xff]
  %v4669 = vld [vmem:[#allocation3 + $0x280] sm:$0xff]
  %v4670 = vld [vmem:[#allocation3 + $0x288] sm:$0xff]
  %v4671 = vld [vmem:[#allocation3 + $0x290] sm:$0xff]
  %v4672 = vld [vmem:[#allocation3 + $0x298] sm:$0xff]
  %v4673 = vld [vmem:[#allocation3 + $0x2a0] sm:$0xf]
  %v4674 = vld [vmem:[#allocation3 + $0x2a8] sm:$0xf]
  %v4675 = vld [vmem:[#allocation3 + $0x2b0] sm:$0xf]
  %v4676 = vld [vmem:[#allocation3 + $0x2b8] sm:$0xf]
  %v4677 = vld [vmem:[#allocation3 + $0x2c0] sm:$0xf]
  %v4678 = vld [vmem:[#allocation3 + $0x2c8] sm:$0xf]
  %v4679 = vld [vmem:[#allocation3 + $0x2d0] sm:$0xf]
  %v4681 = vsel %vm1301, %v4588, 0
  %v4684 = vsel %vm53, %v4673, 0
  %v4687 = vsel %vm53, %v4674, 0
  %v4690 = vsel %vm53, %v4675, 0
  %v4693 = vsel %vm53, %v4676, 0
  %v4696 = vsel %vm53, %v4677, 0
  %v4699 = vsel %vm53, %v4678, 0
  %v4702 = vsel %vm53, %v4679, 0
  %4704 = vmatprep.subr.mxu0 %v4590
  %4705 = vmatpush1.msra.mxu0 %v4589
  %4706 = vmatprep.subr.mxu0 %v4597
  %4707 = vmatpush1.msra.mxu0 %v4596
  %4708 = vmatprep.subr.mxu0 %v4604
  %4709 = vmatpush1.msra.mxu0 %v4603
  %4710 = vmatprep.subr.mxu0 %v4611
  %4711 = vmatpush1.msra.mxu0 %v4610
  %4712 = vmatprep.subr.mxu0 %v4618
  %4713 = vmatpush1.msra.mxu0 %v4617
  %4714 = vmatprep.subr.mxu0 %v4625
  %4715 = vmatpush1.msra.mxu0 %v4624
  %4716 = vmatprep.subr.mxu0 %v4632
  %4717 = vmatpush1.msra.mxu0 %v4631
  %4718 = vmatprep.subr.mxu0 %v4639
  %4719 = vmatpush1.msra.mxu0 %v4638
  %4720 = vmatprep.subr.mxu0 %v4646
  %4721 = vmatpush1.msra.mxu0 %v4645
  %4722 = vmatprep.subr.mxu0 %v4653
  %4723 = vmatpush1.msra.mxu0 %v4652
  %4724 = vmatprep.subr.mxu0 %v4660
  %4725 = vmatpush1.msra.mxu0 %v4659
  %4726 = vmatprep.subr.mxu0 %v4667
  %4727 = vmatpush1.msra.mxu0 %v4666
  %4728 = vmatprep.subr.mxu0 %v4687
  %4729 = vmatpush1.msra.mxu0 %v4684
  %4730 = vmatprep.subr.mxu0 0.0
  %4731 = vmatpush1.msra.mxu0 0.0
  %4732 = vmatprep.subr.mxu0 0.0
  %4733 = vmatpush1.msra.mxu0 0.0
  %4734 = vmatprep.subr.mxu0 0.0
  %4735 = vmatpush1.msra.mxu0 0.0
  %4736 = vmatprep.subr.mxu0 0.0
  %4737 = vmatpush1.msra.mxu0 0.0
  %4738 = vmatprep.subr.mxu0 0.0
  %4739 = vmatpush1.msra.mxu0 0.0
  %4740 = vmatprep.subr.mxu0 0.0
  %4741 = vmatpush1.msra.mxu0 0.0
  %4742 = vmatprep.subr.mxu0 0.0
  %4743 = vmatpush1.msra.mxu0 0.0
  %4744 = vmatprep.subr.mxu0 0.0
  %4745 = vmatpush1.msra.mxu0 0.0
  %4746 = vmatprep.subr.mxu0 0.0
  %4747 = vmatpush1.msra.mxu0 0.0
  %4748 = vmatprep.subr.mxu0 0.0
  %4749 = vmatpush1.msra.mxu0 0.0
  %4750 = vmatprep.subr.mxu0 0.0
  %4751 = vmatpush1.msra.mxu0 0.0
  %4752 = vmatprep.subr.mxu0 0.0
  %4753 = vmatpush1.msra.mxu0 0.0
  %4754 = vmatprep.subr.mxu0 0.0
  %4755 = vmatpush1.msra.mxu0 0.0
  %4756 = vmatprep.subr.mxu0 0.0
  %4757 = vmatpush1.msra.mxu0 0.0
  %4758 = vmatprep.subr.mxu0 0.0
  %4759 = vmatpush1.msra.mxu0 0.0
  %4760 = vmatprep.subr.mxu0 0.0
  %4761 = vmatpush1.msra.mxu0 0.0
  %4762 = vmatprep.subr.mxu0 0.0
  %4763 = vmatpush1.msra.mxu0 0.0
  %4764 = vmatprep.subr.mxu0 0.0
  %4765 = vmatpush1.msra.mxu0 0.0
  %4766 = vmatprep.subr.mxu0 0.0
  %4767 = vmatpush1.msra.mxu0 0.0
  %4768 = vmatprep.mubr.f32.mxu0 0.0
  %4769 = vmatmul.mubr.f32.gmra.mrb[0].mxu0 %v4681
  %v4770 = vpop.f32.mrb[0].mxu0
  %v4771 = vadd.f32 0.0, %v4770
  %v4772 = vpop.f32.mrb[0].mxu0
  %v4773 = vadd.f32 0.0, %v4772
  %4774 = vdwg.mxu0
  %4775 = vmatprep.subr.mxu0 %v4592
  %4776 = vmatpush1.msra.mxu0 %v4591
  %4777 = vmatprep.subr.mxu0 %v4599
  %4778 = vmatpush1.msra.mxu0 %v4598
  %4779 = vmatprep.subr.mxu0 %v4606
  %4780 = vmatpush1.msra.mxu0 %v4605
  %4781 = vmatprep.subr.mxu0 %v4613
  %4782 = vmatpush1.msra.mxu0 %v4612
  %4783 = vmatprep.subr.mxu0 %v4620
  %4784 = vmatpush1.msra.mxu0 %v4619
  %4785 = vmatprep.subr.mxu0 %v4627
  %4786 = vmatpush1.msra.mxu0 %v4626
  %4787 = vmatprep.subr.mxu0 %v4634
  %4788 = vmatpush1.msra.mxu0 %v4633
  %4789 = vmatprep.subr.mxu0 %v4641
  %4790 = vmatpush1.msra.mxu0 %v4640
  %4791 = vmatprep.subr.mxu0 %v4648
  %4792 = vmatpush1.msra.mxu0 %v4647
  %4793 = vmatprep.subr.mxu0 %v4655
  %4794 = vmatpush1.msra.mxu0 %v4654
  %4795 = vmatprep.subr.mxu0 %v4662
  %4796 = vmatpush1.msra.mxu0 %v4661
  %4797 = vmatprep.subr.mxu0 %v4669
  %4798 = vmatpush1.msra.mxu0 %v4668
  %4799 = vmatprep.subr.mxu0 %v4693
  %4800 = vmatpush1.msra.mxu0 %v4690
  %4801 = vmatprep.subr.mxu0 0.0
  %4802 = vmatpush1.msra.mxu0 0.0
  %4803 = vmatprep.subr.mxu0 0.0
  %4804 = vmatpush1.msra.mxu0 0.0
  %4805 = vmatprep.subr.mxu0 0.0
  %4806 = vmatpush1.msra.mxu0 0.0
  %4807 = vmatprep.subr.mxu0 0.0
  %4808 = vmatpush1.msra.mxu0 0.0
  %4809 = vmatprep.subr.mxu0 0.0
  %4810 = vmatpush1.msra.mxu0 0.0
  %4811 = vmatprep.subr.mxu0 0.0
  %4812 = vmatpush1.msra.mxu0 0.0
  %4813 = vmatprep.subr.mxu0 0.0
  %4814 = vmatpush1.msra.mxu0 0.0
  %4815 = vmatprep.subr.mxu0 0.0
  %4816 = vmatpush1.msra.mxu0 0.0
  %4817 = vmatprep.subr.mxu0 0.0
  %4818 = vmatpush1.msra.mxu0 0.0
  %4819 = vmatprep.subr.mxu0 0.0
  %4820 = vmatpush1.msra.mxu0 0.0
  %4821 = vmatprep.subr.mxu0 0.0
  %4822 = vmatpush1.msra.mxu0 0.0
  %4823 = vmatprep.subr.mxu0 0.0
  %4824 = vmatpush1.msra.mxu0 0.0
  %4825 = vmatprep.subr.mxu0 0.0
  %4826 = vmatpush1.msra.mxu0 0.0
  %4827 = vmatprep.subr.mxu0 0.0
  %4828 = vmatpush1.msra.mxu0 0.0
  %4829 = vmatprep.subr.mxu0 0.0
  %4830 = vmatpush1.msra.mxu0 0.0
  %4831 = vmatprep.subr.mxu0 0.0
  %4832 = vmatpush1.msra.mxu0 0.0
  %4833 = vmatprep.subr.mxu0 0.0
  %4834 = vmatpush1.msra.mxu0 0.0
  %4835 = vmatprep.subr.mxu0 0.0
  %4836 = vmatpush1.msra.mxu0 0.0
  %4837 = vmatprep.subr.mxu0 0.0
  %4838 = vmatpush1.msra.mxu0 0.0
  %4839 = vmatprep.mubr.f32.mxu0 0.0
  %4840 = vmatmul.mubr.f32.gmra.mrb[0].mxu0 %v4681
  %v4841 = vpop.f32.mrb[0].mxu0
  %v4842 = vadd.f32 0.0, %v4841
  %v4843 = vpop.f32.mrb[0].mxu0
  %v4844 = vadd.f32 0.0, %v4843
  %4845 = vdwg.mxu0
  %4846 = vmatprep.subr.mxu0 %v4594
  %4847 = vmatpush1.msra.mxu0 %v4593
  %4848 = vmatprep.subr.mxu0 %v4601
  %4849 = vmatpush1.msra.mxu0 %v4600
  %4850 = vmatprep.subr.mxu0 %v4608
  %4851 = vmatpush1.msra.mxu0 %v4607
  %4852 = vmatprep.subr.mxu0 %v4615
  %4853 = vmatpush1.msra.mxu0 %v4614
  %4854 = vmatprep.subr.mxu0 %v4622
  %4855 = vmatpush1.msra.mxu0 %v4621
  %4856 = vmatprep.subr.mxu0 %v4629
  %4857 = vmatpush1.msra.mxu0 %v4628
  %4858 = vmatprep.subr.mxu0 %v4636
  %4859 = vmatpush1.msra.mxu0 %v4635
  %4860 = vmatprep.subr.mxu0 %v4643
  %4861 = vmatpush1.msra.mxu0 %v4642
  %4862 = vmatprep.subr.mxu0 %v4650
  %4863 = vmatpush1.msra.mxu0 %v4649
  %4864 = vmatprep.subr.mxu0 %v4657
  %4865 = vmatpush1.msra.mxu0 %v4656
  %4866 = vmatprep.subr.mxu0 %v4664
  %4867 = vmatpush1.msra.mxu0 %v4663
  %4868 = vmatprep.subr.mxu0 %v4671
  %4869 = vmatpush1.msra.mxu0 %v4670
  %4870 = vmatprep.subr.mxu0 %v4699
  %4871 = vmatpush1.msra.mxu0 %v4696
  %4872 = vmatprep.subr.mxu0 0.0
  %4873 = vmatpush1.msra.mxu0 0.0
  %4874 = vmatprep.subr.mxu0 0.0
  %4875 = vmatpush1.msra.mxu0 0.0
  %4876 = vmatprep.subr.mxu0 0.0
  %4877 = vmatpush1.msra.mxu0 0.0
  %4878 = vmatprep.subr.mxu0 0.0
  %4879 = vmatpush1.msra.mxu0 0.0
  %4880 = vmatprep.subr.mxu0 0.0
  %4881 = vmatpush1.msra.mxu0 0.0
  %4882 = vmatprep.subr.mxu0 0.0
  %4883 = vmatpush1.msra.mxu0 0.0
  %4884 = vmatprep.subr.mxu0 0.0
  %4885 = vmatpush1.msra.mxu0 0.0
  %4886 = vmatprep.subr.mxu0 0.0
  %4887 = vmatpush1.msra.mxu0 0.0
  %4888 = vmatprep.subr.mxu0 0.0
  %4889 = vmatpush1.msra.mxu0 0.0
  %4890 = vmatprep.subr.mxu0 0.0
  %4891 = vmatpush1.msra.mxu0 0.0
  %4892 = vmatprep.subr.mxu0 0.0
  %4893 = vmatpush1.msra.mxu0 0.0
  %4894 = vmatprep.subr.mxu0 0.0
  %4895 = vmatpush1.msra.mxu0 0.0
  %4896 = vmatprep.subr.mxu0 0.0
  %4897 = vmatpush1.msra.mxu0 0.0
  %4898 = vmatprep.subr.mxu0 0.0
  %4899 = vmatpush1.msra.mxu0 0.0
  %4900 = vmatprep.subr.mxu0 0.0
  %4901 = vmatpush1.msra.mxu0 0.0
  %4902 = vmatprep.subr.mxu0 0.0
  %4903 = vmatpush1.msra.mxu0 0.0
  %4904 = vmatprep.subr.mxu0 0.0
  %4905 = vmatpush1.msra.mxu0 0.0
  %4906 = vmatprep.subr.mxu0 0.0
  %4907 = vmatpush1.msra.mxu0 0.0
  %4908 = vmatprep.subr.mxu0 0.0
  %4909 = vmatpush1.msra.mxu0 0.0
  %4910 = vmatprep.mubr.f32.mxu0 0.0
  %4911 = vmatmul.mubr.f32.gmra.mrb[0].mxu0 %v4681
  %v4912 = vpop.f32.mrb[0].mxu0
  %v4913 = vadd.f32 0.0, %v4912
  %v4914 = vpop.f32.mrb[0].mxu0
  %v4915 = vadd.f32 0.0, %v4914
  %4916 = vdwg.mxu0
  %4917 = vmatprep.subr.mxu0 0.0
  %4918 = vmatpush1.msra.mxu0 %v4595
  %4919 = vmatprep.subr.mxu0 0.0
  %4920 = vmatpush1.msra.mxu0 %v4602
  %4921 = vmatprep.subr.mxu0 0.0
  %4922 = vmatpush1.msra.mxu0 %v4609
  %4923 = vmatprep.subr.mxu0 0.0
  %4924 = vmatpush1.msra.mxu0 %v4616
  %4925 = vmatprep.subr.mxu0 0.0
  %4926 = vmatpush1.msra.mxu0 %v4623
  %4927 = vmatprep.subr.mxu0 0.0
  %4928 = vmatpush1.msra.mxu0 %v4630
  %4929 = vmatprep.subr.mxu0 0.0
  %4930 = vmatpush1.msra.mxu0 %v4637
  %4931 = vmatprep.subr.mxu0 0.0
  %4932 = vmatpush1.msra.mxu0 %v4644
  %4933 = vmatprep.subr.mxu0 0.0
  %4934 = vmatpush1.msra.mxu0 %v4651
  %4935 = vmatprep.subr.mxu0 0.0
  %4936 = vmatpush1.msra.mxu0 %v4658
  %4937 = vmatprep.subr.mxu0 0.0
  %4938 = vmatpush1.msra.mxu0 %v4665
  %4939 = vmatprep.subr.mxu0 0.0
  %4940 = vmatpush1.msra.mxu0 %v4672
  %4941 = vmatprep.subr.mxu0 0.0
  %4942 = vmatpush1.msra.mxu0 %v4702
  %4943 = vmatprep.subr.mxu0 0.0
  %4944 = vmatpush1.msra.mxu0 0.0
  %4945 = vmatprep.subr.mxu0 0.0
  %4946 = vmatpush1.msra.mxu0 0.0
  %4947 = vmatprep.subr.mxu0 0.0
  %4948 = vmatpush1.msra.mxu0 0.0
  %4949 = vmatprep.subr.mxu0 0.0
  %4950 = vmatpush1.msra.mxu0 0.0
  %4951 = vmatprep.subr.mxu0 0.0
  %4952 = vmatpush1.msra.mxu0 0.0
  %4953 = vmatprep.subr.mxu0 0.0
  %4954 = vmatpush1.msra.mxu0 0.0
  %4955 = vmatprep.subr.mxu0 0.0
  %4956 = vmatpush1.msra.mxu0 0.0
  %4957 = vmatprep.subr.mxu0 0.0
  %4958 = vmatpush1.msra.mxu0 0.0
  %4959 = vmatprep.subr.mxu0 0.0
  %4960 = vmatpush1.msra.mxu0 0.0
  %4961 = vmatprep.subr.mxu0 0.0
  %4962 = vmatpush1.msra.mxu0 0.0
  %4963 = vmatprep.subr.mxu0 0.0
  %4964 = vmatpush1.msra.mxu0 0.0
  %4965 = vmatprep.subr.mxu0 0.0
  %4966 = vmatpush1.msra.mxu0 0.0
  %4967 = vmatprep.subr.mxu0 0.0
  %4968 = vmatpush1.msra.mxu0 0.0
  %4969 = vmatprep.subr.mxu0 0.0
  %4970 = vmatpush1.msra.mxu0 0.0
  %4971 = vmatprep.subr.mxu0 0.0
  %4972 = vmatpush1.msra.mxu0 0.0
  %4973 = vmatprep.subr.mxu0 0.0
  %4974 = vmatpush1.msra.mxu0 0.0
  %4975 = vmatprep.subr.mxu0 0.0
  %4976 = vmatpush1.msra.mxu0 0.0
  %4977 = vmatprep.subr.mxu0 0.0
  %4978 = vmatpush1.msra.mxu0 0.0
  %4979 = vmatprep.subr.mxu0 0.0
  %4980 = vmatpush1.msra.mxu0 0.0
  %4981 = vmatprep.mubr.f32.mxu0 0.0
  %4982 = vmatmul.mubr.f32.gmra.mrb[0].mxu0 %v4681
  %v4983 = vpop.f32.mrb[0].mxu0
  %v4984 = vadd.f32 0.0, %v4983
  %v4985 = vpop.f32.mrb[0].mxu0
  %4986 = vdwg.mxu0
  %v4987 = vmul.f32 %v4771, %v1613
  %v4988 = vmul.f32 %v4773, %v1617
  %v4989 = vmul.f32 %v4842, %v1621
  %v4990 = vmul.f32 %v4844, %v1625
  %v4991 = vmul.f32 %v4913, %v1629
  %v4992 = vmul.f32 %v4915, %v1633
  %v4993 = vmul.f32 %v4984, %v1637
  %v4994 = vsel %vm53, %v4987, 0.0
  %v4995 = vsel %vm53, %v4988, 0.0
  %v4996 = vadd.f32 %v4994, %v4995
  %v4997 = vsel %vm53, %v4989, 0.0
  %v4998 = vadd.f32 %v4996, %v4997
  %v4999 = vsel %vm53, %v4990, 0.0
  %v5000 = vadd.f32 %v4998, %v4999
  %v5001 = vsel %vm53, %v4991, 0.0
  %v5002 = vadd.f32 %v5000, %v5001
  %v5003 = vsel %vm53, %v4992, 0.0
  %v5004 = vadd.f32 %v5002, %v5003
  %v5005 = vsel %vm90, %v4993, 0.0
  %v5006 = vadd.f32 %v5004, %v5005
  %5007 = vadd.xlane.f32.xlu0 %v5006
  %v5008 = vpop.xlane.xlu0 %5007
  %v5009 = vmul.f32 %v5008, 0.001953125
  %v5010 = vsub.f32 %v4771, %v5009
  %v5011 = vsub.f32 %v4773, %v5009
  %v5012 = vsub.f32 %v4842, %v5009
  %v5013 = vsub.f32 %v4844, %v5009
  %v5014 = vsub.f32 %v4913, %v5009
  %v5015 = vsub.f32 %v4915, %v5009
  %v5016 = vsub.f32 %v4984, %v5009
  %v5017 = vmul.f32 %v5010, %v1613
  %v5018 = vmul.f32 %v5011, %v1617
  %v5019 = vmul.f32 %v5012, %v1621
  %v5020 = vmul.f32 %v5013, %v1625
  %v5021 = vmul.f32 %v5014, %v1629
  %v5022 = vmul.f32 %v5015, %v1633
  %v5023 = vmul.f32 %v5016, %v1637
  %v5024 = vmul.f32 %v5017, %v5017
  %v5025 = vmul.f32 %v5018, %v5018
  %v5026 = vmul.f32 %v5019, %v5019
  %v5027 = vmul.f32 %v5020, %v5020
  %v5028 = vmul.f32 %v5021, %v5021
  %v5029 = vmul.f32 %v5022, %v5022
  %v5030 = vmul.f32 %v5023, %v5023
  %v5031 = vsel %vm53, %v5024, 0.0
  %v5032 = vsel %vm53, %v5025, 0.0
  %v5033 = vadd.f32 %v5031, %v5032
  %v5034 = vsel %vm53, %v5026, 0.0
  %v5035 = vadd.f32 %v5033, %v5034
  %v5036 = vsel %vm53, %v5027, 0.0
  %v5037 = vadd.f32 %v5035, %v5036
  %v5038 = vsel %vm53, %v5028, 0.0
  %v5039 = vadd.f32 %v5037, %v5038
  %v5040 = vsel %vm53, %v5029, 0.0
  %v5041 = vadd.f32 %v5039, %v5040
  %v5042 = vsel %vm90, %v5030, 0.0
  %v5043 = vadd.f32 %v5041, %v5042
  %5044 = vadd.xlane.f32.xlu0 %v5043
  %v5045 = vpop.xlane.xlu0 %5044
  %v5046 = vmul.f32 %v5045, 0.001953125
  %v5047 = vadd.f32 %v5046, 1e-05
  %v5048 = vrsqrt.pop %v5047
  %v5049 = vmul.f32 %v5017, %v5048
  %v5050 = vmul.f32 %v5018, %v5048
  %v5051 = vmul.f32 %v5019, %v5048
  %v5052 = vmul.f32 %v5020, %v5048
  %v5053 = vmul.f32 %v5021, %v5048
  %v5054 = vmul.f32 %v5022, %v5048
  %v5055 = vmul.f32 %v5023, %v5048
  %s5056 = scalar_lea.vmem %s3, 8
  %v5057 = vld [vmem:[%s5056] sm:$0xf]
  %5059 = vset.pattern.permute.xlu0 0
  %5060 = vperm.xlu0 %5059, %v5057
  %v5061 = vpop.permute.xlu0 %5060
  %v5063 = vmul.f32 %v5049, %v5061
  %v5064 = vmul.f32 %v5050, %v5061
  %v5065 = vmul.f32 %v5051, %v5061
  %v5066 = vmul.f32 %v5052, %v5061
  %v5067 = vmul.f32 %v5053, %v5061
  %v5068 = vmul.f32 %v5054, %v5061
  %v5069 = vmul.f32 %v5055, %v5061
  %s5070 = scalar_lea.vmem %s4, 8
  %v5071 = vld [vmem:[%s5070] sm:$0xf]
  %5073 = vset.pattern.permute.xlu0 0
  %5074 = vperm.xlu0 %5073, %v5071
  %v5075 = vpop.permute.xlu0 %5074
  %v5077 = vadd.f32 %v5063, %v5075
  %v5078 = vadd.f32 %v5064, %v5075
  %v5079 = vadd.f32 %v5065, %v5075
  %v5080 = vadd.f32 %v5066, %v5075
  %v5081 = vadd.f32 %v5067, %v5075
  %v5082 = vadd.f32 %v5068, %v5075
  %v5083 = vadd.f32 %v5069, %v5075
  %vm5084 = vcmp.ge.f32.partialorder %v5077, 0.0
  %vm5085 = vcmp.ge.f32.partialorder %v5078, 0.0
  %vm5086 = vcmp.ge.f32.partialorder %v5079, 0.0
  %vm5087 = vcmp.ge.f32.partialorder %v5080, 0.0
  %vm5088 = vcmp.ge.f32.partialorder %v5081, 0.0
  %vm5089 = vcmp.ge.f32.partialorder %v5082, 0.0
  %vm5090 = vcmp.ge.f32.partialorder %v5083, 0.0
  %v5091 = vmul.f32 %v5077, 0.01
  %v5092 = vmul.f32 %v5078, 0.01
  %v5093 = vmul.f32 %v5079, 0.01
  %v5094 = vmul.f32 %v5080, 0.01
  %v5095 = vmul.f32 %v5081, 0.01
  %v5096 = vmul.f32 %v5082, 0.01
  %v5097 = vmul.f32 %v5083, 0.01
  %v5098 = vsel %vm5084, %v5077, %v5091
  %v5099 = vsel %vm5085, %v5078, %v5092
  %v5100 = vsel %vm5086, %v5079, %v5093
  %v5101 = vsel %vm5087, %v5080, %v5094
  %v5102 = vsel %vm5088, %v5081, %v5095
  %v5103 = vsel %vm5089, %v5082, %v5096
  %v5104 = vsel %vm5090, %v5083, %v5097
  %v5105 = vmul.f32 %v5098, %v1613
  %v5106 = vmul.f32 %v5099, %v1617
  %v5107 = vmul.f32 %v5100, %v1621
  %v5108 = vmul.f32 %v5101, %v1625
  %v5109 = vmul.f32 %v5102, %v1629
  %v5110 = vmul.f32 %v5103, %v1633
  %v5111 = vmul.f32 %v5104, %v1637
  %v5119 = vcombine.low %v5105, %v5106
  %v5120 = vcombine.low %v5107, %v5108
  %v5121 = vcombine.low %v5109, %v5110
  %5122 = vrot.lane.b32.xlu0 %v5119, 42
  %v5123 = vpop.permute.xlu0 %5122
  %5124 = vrot.lane.b32.xlu0 %v5120, 42
  %v5125 = vpop.permute.xlu0 %5124
  %5126 = vrot.lane.b32.xlu0 %v5121, 42
  %v5127 = vpop.permute.xlu0 %5126
  %5128 = vrot.lane.b32.xlu0 %v5111, 42
  %v5129 = vpop.permute.xlu0 %5128
  %v5130 = vrot.slane %v5123, 4
  %v5131 = vrot.slane %v5125, 4
  %v5132 = vrot.slane %v5127, 4
  %v5133 = vsel %vm51, %v5130, %v5123
  %v5134 = vsel %vm53, %v5130, %v5131
  %v5135 = vsel %vm51, %v5134, %v5125
  %v5136 = vsel %vm53, %v5131, %v5132
  %v5137 = vsel %vm51, %v5136, %v5127
  %v5138 = vsel %vm51, %v5132, %v5129
  %5143 = vst.msk [vmem:[#allocation2] sm:$0xff] %vm65, %v5133
  %5144 = vst [vmem:[#allocation2 + $0x8] sm:$0xff] %v5135
  %5145 = vst [vmem:[#allocation2 + $0x10] sm:$0xff] %v5137
  %5146 = vst.msk [vmem:[#allocation2 + $0x18] sm:$0xf] %vm69, %v5138
  %v5147 = vld [vmem:[#allocation2] sm:$0xff]
  %v5148 = vld [vmem:[#allocation2 + $0x8] sm:$0xff]
  %v5149 = vld [vmem:[#allocation2 + $0x10] sm:$0xff]
  %v5150 = vld [vmem:[#allocation2 + $0x18] sm:$0xf]
  %v5154 = vcombine.high %v5147, %v5147
  %v5155 = vcombine.high %v5148, %v5148
  %v5156 = vcombine.high %v5149, %v5149
  %5160 = vst [vmem:[#allocation3] sm:$0xf] %v5147
  %5161 = vst [vmem:[#allocation3 + $0x8] sm:$0xf] %v5154
  %5162 = vst [vmem:[#allocation3 + $0x10] sm:$0xf] %v5148
  %5163 = vst [vmem:[#allocation3 + $0x18] sm:$0xf] %v5155
  %5164 = vst [vmem:[#allocation3 + $0x20] sm:$0xf] %v5149
  %5165 = vst [vmem:[#allocation3 + $0x28] sm:$0xf] %v5156
  %5166 = vst.msk [vmem:[#allocation3 + $0x30] sm:$0xf] %vm90, %v5150
  %v5167 = vld [vmem:[#allocation2] sm:$0xff]
  %v5168 = vld [vmem:[#allocation2 + $0x8] sm:$0xff]
  %v5169 = vld [vmem:[#allocation2 + $0x10] sm:$0xff]
  %v5170 = vld [vmem:[#allocation2 + $0x18] sm:$0xf]
  %v5175 = vcombine.low %v5167, %v5167
  %v5176 = vcombine.low %v5168, %v5168
  %v5177 = vcombine.low %v5169, %v5169
  %v5178 = vcombine.low %v5170, %v5170
  %5179 = vrot.lane.b32.xlu0 %v5175, 127
  %v5180 = vpop.permute.xlu0 %5179
  %5181 = vrot.lane.b32.xlu0 %v5167, 127
  %v5182 = vpop.permute.xlu0 %5181
  %5183 = vrot.lane.b32.xlu0 %v5176, 127
  %v5184 = vpop.permute.xlu0 %5183
  %5185 = vrot.lane.b32.xlu0 %v5168, 127
  %v5186 = vpop.permute.xlu0 %5185
  %5187 = vrot.lane.b32.xlu0 %v5177, 127
  %v5188 = vpop.permute.xlu0 %5187
  %5189 = vrot.lane.b32.xlu0 %v5169, 127
  %v5190 = vpop.permute.xlu0 %5189
  %5191 = vrot.lane.b32.xlu0 %v5178, 127
  %v5192 = vpop.permute.xlu0 %5191
  %v5193 = vsel %vm118, %v5180, %v5182
  %v5194 = vsel %vm118, %v5182, %v5184
  %v5195 = vsel %vm118, %v5184, %v5186
  %v5196 = vsel %vm118, %v5186, %v5188
  %v5197 = vsel %vm118, %v5188, %v5190
  %v5198 = vsel %vm118, %v5190, %v5192
  %5206 = vst [vmem:[#allocation3] sm:$0xf0] %v5193
  %5207 = vst [vmem:[#allocation3 + $0x8] sm:$0xf0] %v5194
  %5208 = vst [vmem:[#allocation3 + $0x10] sm:$0xf0] %v5195
  %5209 = vst [vmem:[#allocation3 + $0x18] sm:$0xf0] %v5196
  %5210 = vst [vmem:[#allocation3 + $0x20] sm:$0xf0] %v5197
  %5211 = vst [vmem:[#allocation3 + $0x28] sm:$0xf0] %v5198
  %5212 = vst.msk [vmem:[#allocation3 + $0x30] sm:$0xf0] %vm138, %v5192
  %v5213 = vld [vmem:[#allocation2] sm:$0xff]
  %v5214 = vld [vmem:[#allocation2 + $0x8] sm:$0xff]
  %v5215 = vld [vmem:[#allocation2 + $0x10] sm:$0xff]
  %v5216 = vld [vmem:[#allocation2 + $0x18] sm:$0xf]
  %v5221 = vcombine.high %v5213, %v5213
  %v5222 = vcombine.high %v5214, %v5214
  %v5223 = vcombine.high %v5215, %v5215
  %5224 = vrot.lane.b32.xlu0 %v5213, 126
  %v5225 = vpop.permute.xlu0 %5224
  %5226 = vrot.lane.b32.xlu0 %v5221, 126
  %v5227 = vpop.permute.xlu0 %5226
  %5228 = vrot.lane.b32.xlu0 %v5214, 126
  %v5229 = vpop.permute.xlu0 %5228
  %5230 = vrot.lane.b32.xlu0 %v5222, 126
  %v5231 = vpop.permute.xlu0 %5230
  %5232 = vrot.lane.b32.xlu0 %v5215, 126
  %v5233 = vpop.permute.xlu0 %5232
  %5234 = vrot.lane.b32.xlu0 %v5223, 126
  %v5235 = vpop.permute.xlu0 %5234
  %5236 = vrot.lane.b32.xlu0 %v5216, 126
  %v5237 = vpop.permute.xlu0 %5236
  %v5238 = vsel %vm165, %v5225, %v5227
  %v5239 = vsel %vm165, %v5227, %v5229
  %v5240 = vsel %vm165, %v5229, %v5231
  %v5241 = vsel %vm165, %v5231, %v5233
  %v5242 = vsel %vm165, %v5233, %v5235
  %v5243 = vsel %vm165, %v5235, %v5237
  %5251 = vst [vmem:[#allocation3 + $0x38] sm:$0xf] %v5238
  %5252 = vst [vmem:[#allocation3 + $0x40] sm:$0xf] %v5239
  %5253 = vst [vmem:[#allocation3 + $0x48] sm:$0xf] %v5240
  %5254 = vst [vmem:[#allocation3 + $0x50] sm:$0xf] %v5241
  %5255 = vst [vmem:[#allocation3 + $0x58] sm:$0xf] %v5242
  %5256 = vst [vmem:[#allocation3 + $0x60] sm:$0xf] %v5243
  %5257 = vst.msk [vmem:[#allocation3 + $0x68] sm:$0xf] %vm90, %v5237
  %v5258 = vld [vmem:[#allocation2] sm:$0xff]
  %v5259 = vld [vmem:[#allocation2 + $0x8] sm:$0xff]
  %v5260 = vld [vmem:[#allocation2 + $0x10] sm:$0xff]
  %v5261 = vld [vmem:[#allocation2 + $0x18] sm:$0xf]
  %v5266 = vcombine.low %v5258, %v5258
  %v5267 = vcombine.low %v5259, %v5259
  %v5268 = vcombine.low %v5260, %v5260
  %v5269 = vcombine.low %v5261, %v5261
  %5270 = vrot.lane.b32.xlu0 %v5266, 125
  %v5271 = vpop.permute.xlu0 %5270
  %5272 = vrot.lane.b32.xlu0 %v5258, 125
  %v5273 = vpop.permute.xlu0 %5272
  %5274 = vrot.lane.b32.xlu0 %v5267, 125
  %v5275 = vpop.permute.xlu0 %5274
  %5276 = vrot.lane.b32.xlu0 %v5259, 125
  %v5277 = vpop.permute.xlu0 %5276
  %5278 = vrot.lane.b32.xlu0 %v5268, 125
  %v5279 = vpop.permute.xlu0 %5278
  %5280 = vrot.lane.b32.xlu0 %v5260, 125
  %v5281 = vpop.permute.xlu0 %5280
  %5282 = vrot.lane.b32.xlu0 %v5269, 125
  %v5283 = vpop.permute.xlu0 %5282
  %v5284 = vsel %vm212, %v5271, %v5273
  %v5285 = vsel %vm212, %v5273, %v5275
  %v5286 = vsel %vm212, %v5275, %v5277
  %v5287 = vsel %vm212, %v5277, %v5279
  %v5288 = vsel %vm212, %v5279, %v5281
  %v5289 = vsel %vm212, %v5281, %v5283
  %5297 = vst [vmem:[#allocation3 + $0x38] sm:$0xf0] %v5284
  %5298 = vst [vmem:[#allocation3 + $0x40] sm:$0xf0] %v5285
  %5299 = vst [vmem:[#allocation3 + $0x48] sm:$0xf0] %v5286
  %5300 = vst [vmem:[#allocation3 + $0x50] sm:$0xf0] %v5287
  %5301 = vst [vmem:[#allocation3 + $0x58] sm:$0xf0] %v5288
  %5302 = vst [vmem:[#allocation3 + $0x60] sm:$0xf0] %v5289
  %5303 = vst.msk [vmem:[#allocation3 + $0x68] sm:$0xf0] %vm138, %v5283
  %v5304 = vld [vmem:[#allocation2] sm:$0xff]
  %v5305 = vld [vmem:[#allocation2 + $0x8] sm:$0xff]
  %v5306 = vld [vmem:[#allocation2 + $0x10] sm:$0xff]
  %v5307 = vld [vmem:[#allocation2 + $0x18] sm:$0xf]
  %v5312 = vcombine.high %v5304, %v5304
  %v5313 = vcombine.high %v5305, %v5305
  %v5314 = vcombine.high %v5306, %v5306
  %5315 = vrot.lane.b32.xlu0 %v5304, 124
  %v5316 = vpop.permute.xlu0 %5315
  %5317 = vrot.lane.b32.xlu0 %v5312, 124
  %v5318 = vpop.permute.xlu0 %5317
  %5319 = vrot.lane.b32.xlu0 %v5305, 124
  %v5320 = vpop.permute.xlu0 %5319
  %5321 = vrot.lane.b32.xlu0 %v5313, 124
  %v5322 = vpop.permute.xlu0 %5321
  %5323 = vrot.lane.b32.xlu0 %v5306, 124
  %v5324 = vpop.permute.xlu0 %5323
  %5325 = vrot.lane.b32.xlu0 %v5314, 124
  %v5326 = vpop.permute.xlu0 %5325
  %5327 = vrot.lane.b32.xlu0 %v5307, 124
  %v5328 = vpop.permute.xlu0 %5327
  %v5329 = vsel %vm258, %v5316, %v5318
  %v5330 = vsel %vm258, %v5318, %v5320
  %v5331 = vsel %vm258, %v5320, %v5322
  %v5332 = vsel %vm258, %v5322, %v5324
  %v5333 = vsel %vm258, %v5324, %v5326
  %v5334 = vsel %vm258, %v5326, %v5328
  %5342 = vst [vmem:[#allocation3 + $0x70] sm:$0xf] %v5329
  %5343 = vst [vmem:[#allocation3 + $0x78] sm:$0xf] %v5330
  %5344 = vst [vmem:[#allocation3 + $0x80] sm:$0xf] %v5331
  %5345 = vst [vmem:[#allocation3 + $0x88] sm:$0xf] %v5332
  %5346 = vst [vmem:[#allocation3 + $0x90] sm:$0xf] %v5333
  %5347 = vst [vmem:[#allocation3 + $0x98] sm:$0xf] %v5334
  %5348 = vst.msk [vmem:[#allocation3 + $0xa0] sm:$0xf] %vm90, %v5328
  %v5349 = vld [vmem:[#allocation2] sm:$0xff]
  %v5350 = vld [vmem:[#allocation2 + $0x8] sm:$0xff]
  %v5351 = vld [vmem:[#allocation2 + $0x10] sm:$0xff]
  %v5352 = vld [vmem:[#allocation2 + $0x18] sm:$0xf]
  %v5357 = vcombine.low %v5349, %v5349
  %v5358 = vcombine.low %v5350, %v5350
  %v5359 = vcombine.low %v5351, %v5351
  %v5360 = vcombine.low %v5352, %v5352
  %5361 = vrot.lane.b32.xlu0 %v5357, 108
  %v5362 = vpop.permute.xlu0 %5361
  %5363 = vrot.lane.b32.xlu0 %v5349, 108
  %v5364 = vpop.permute.xlu0 %5363
  %5365 = vrot.lane.b32.xlu0 %v5358, 108
  %v5366 = vpop.permute.xlu0 %5365
  %5367 = vrot.lane.b32.xlu0 %v5350, 108
  %v5368 = vpop.permute.xlu0 %5367
  %5369 = vrot.lane.b32.xlu0 %v5359, 108
  %v5370 = vpop.permute.xlu0 %5369
  %5371 = vrot.lane.b32.xlu0 %v5351, 108
  %v5372 = vpop.permute.xlu0 %5371
  %5373 = vrot.lane.b32.xlu0 %v5360, 108
  %v5374 = vpop.permute.xlu0 %5373
  %v5375 = vsel %vm305, %v5362, %v5364
  %v5376 = vsel %vm305, %v5364, %v5366
  %v5377 = vsel %vm305, %v5366, %v5368
  %v5378 = vsel %vm305, %v5368, %v5370
  %v5379 = vsel %vm305, %v5370, %v5372
  %v5380 = vsel %vm305, %v5372, %v5374
  %5388 = vst [vmem:[#allocation3 + $0x70] sm:$0xf0] %v5375
  %5389 = vst [vmem:[#allocation3 + $0x78] sm:$0xf0] %v5376
  %5390 = vst [vmem:[#allocation3 + $0x80] sm:$0xf0] %v5377
  %5391 = vst [vmem:[#allocation3 + $0x88] sm:$0xf0] %v5378
  %5392 = vst [vmem:[#allocation3 + $0x90] sm:$0xf0] %v5379
  %5393 = vst [vmem:[#allocation3 + $0x98] sm:$0xf0] %v5380
  %5394 = vst.msk [vmem:[#allocation3 + $0xa0] sm:$0xf0] %vm138, %v5374
  %v5395 = vld [vmem:[#allocation2] sm:$0xff]
  %v5396 = vld [vmem:[#allocation2 + $0x8] sm:$0xff]
  %v5397 = vld [vmem:[#allocation2 + $0x10] sm:$0xff]
  %v5398 = vld [vmem:[#allocation2 + $0x18] sm:$0xf]
  %v5403 = vcombine.high %v5395, %v5395
  %v5404 = vcombine.high %v5396, %v5396
  %v5405 = vcombine.high %v5397, %v5397
  %5406 = vrot.lane.b32.xlu0 %v5395, 107
  %v5407 = vpop.permute.xlu0 %5406
  %5408 = vrot.lane.b32.xlu0 %v5403, 107
  %v5409 = vpop.permute.xlu0 %5408
  %5410 = vrot.lane.b32.xlu0 %v5396, 107
  %v5411 = vpop.permute.xlu0 %5410
  %5412 = vrot.lane.b32.xlu0 %v5404, 107
  %v5413 = vpop.permute.xlu0 %5412
  %5414 = vrot.lane.b32.xlu0 %v5397, 107
  %v5415 = vpop.permute.xlu0 %5414
  %5416 = vrot.lane.b32.xlu0 %v5405, 107
  %v5417 = vpop.permute.xlu0 %5416
  %5418 = vrot.lane.b32.xlu0 %v5398, 107
  %v5419 = vpop.permute.xlu0 %5418
  %v5420 = vsel %vm351, %v5407, %v5409
  %v5421 = vsel %vm351, %v5409, %v5411
  %v5422 = vsel %vm351, %v5411, %v5413
  %v5423 = vsel %vm351, %v5413, %v5415
  %v5424 = vsel %vm351, %v5415, %v5417
  %v5425 = vsel %vm351, %v5417, %v5419
  %5433 = vst [vmem:[#allocation3 + $0xa8] sm:$0xf] %v5420
  %5434 = vst [vmem:[#allocation3 + $0xb0] sm:$0xf] %v5421
  %5435 = vst [vmem:[#allocation3 + $0xb8] sm:$0xf] %v5422
  %5436 = vst [vmem:[#allocation3 + $0xc0] sm:$0xf] %v5423
  %5437 = vst [vmem:[#allocation3 + $0xc8] sm:$0xf] %v5424
  %5438 = vst [vmem:[#allocation3 + $0xd0] sm:$0xf] %v5425
  %5439 = vst.msk [vmem:[#allocation3 + $0xd8] sm:$0xf] %vm90, %v5419
  %v5440 = vld [vmem:[#allocation2] sm:$0xff]
  %v5441 = vld [vmem:[#allocation2 + $0x8] sm:$0xff]
  %v5442 = vld [vmem:[#allocation2 + $0x10] sm:$0xff]
  %v5443 = vld [vmem:[#allocation2 + $0x18] sm:$0xf]
  %v5448 = vcombine.low %v5440, %v5440
  %v5449 = vcombine.low %v5441, %v5441
  %v5450 = vcombine.low %v5442, %v5442
  %v5451 = vcombine.low %v5443, %v5443
  %5452 = vrot.lane.b32.xlu0 %v5448, 106
  %v5453 = vpop.permute.xlu0 %5452
  %5454 = vrot.lane.b32.xlu0 %v5440, 106
  %v5455 = vpop.permute.xlu0 %5454
  %5456 = vrot.lane.b32.xlu0 %v5449, 106
  %v5457 = vpop.permute.xlu0 %5456
  %5458 = vrot.lane.b32.xlu0 %v5441, 106
  %v5459 = vpop.permute.xlu0 %5458
  %5460 = vrot.lane.b32.xlu0 %v5450, 106
  %v5461 = vpop.permute.xlu0 %5460
  %5462 = vrot.lane.b32.xlu0 %v5442, 106
  %v5463 = vpop.permute.xlu0 %5462
  %5464 = vrot.lane.b32.xlu0 %v5451, 106
  %v5465 = vpop.permute.xlu0 %5464
  %v5466 = vsel %vm398, %v5453, %v5455
  %v5467 = vsel %vm398, %v5455, %v5457
  %v5468 = vsel %vm398, %v5457, %v5459
  %v5469 = vsel %vm398, %v5459, %v5461
  %v5470 = vsel %vm398, %v5461, %v5463
  %v5471 = vsel %vm398, %v5463, %v5465
  %5479 = vst [vmem:[#allocation3 + $0xa8] sm:$0xf0] %v5466
  %5480 = vst [vmem:[#allocation3 + $0xb0] sm:$0xf0] %v5467
  %5481 = vst [vmem:[#allocation3 + $0xb8] sm:$0xf0] %v5468
  %5482 = vst [vmem:[#allocation3 + $0xc0] sm:$0xf0] %v5469
  %5483 = vst [vmem:[#allocation3 + $0xc8] sm:$0xf0] %v5470
  %5484 = vst [vmem:[#allocation3 + $0xd0] sm:$0xf0] %v5471
  %5485 = vst.msk [vmem:[#allocation3 + $0xd8] sm:$0xf0] %vm138, %v5465
  %v5486 = vld [vmem:[#allocation2] sm:$0xff]
  %v5487 = vld [vmem:[#allocation2 + $0x8] sm:$0xff]
  %v5488 = vld [vmem:[#allocation2 + $0x10] sm:$0xff]
  %v5489 = vld [vmem:[#allocation2 + $0x18] sm:$0xf]
  %v5494 = vcombine.high %v5486, %v5486
  %v5495 = vcombine.high %v5487, %v5487
  %v5496 = vcombine.high %v5488, %v5488
  %5497 = vrot.lane.b32.xlu0 %v5486, 105
  %v5498 = vpop.permute.xlu0 %5497
  %5499 = vrot.lane.b32.xlu0 %v5494, 105
  %v5500 = vpop.permute.xlu0 %5499
  %5501 = vrot.lane.b32.xlu0 %v5487, 105
  %v5502 = vpop.permute.xlu0 %5501
  %5503 = vrot.lane.b32.xlu0 %v5495, 105
  %v5504 = vpop.permute.xlu0 %5503
  %5505 = vrot.lane.b32.xlu0 %v5488, 105
  %v5506 = vpop.permute.xlu0 %5505
  %5507 = vrot.lane.b32.xlu0 %v5496, 105
  %v5508 = vpop.permute.xlu0 %5507
  %5509 = vrot.lane.b32.xlu0 %v5489, 105
  %v5510 = vpop.permute.xlu0 %5509
  %v5511 = vsel %vm444, %v5498, %v5500
  %v5512 = vsel %vm444, %v5500, %v5502
  %v5513 = vsel %vm444, %v5502, %v5504
  %v5514 = vsel %vm444, %v5504, %v5506
  %v5515 = vsel %vm444, %v5506, %v5508
  %v5516 = vsel %vm444, %v5508, %v5510
  %5524 = vst [vmem:[#allocation3 + $0xe0] sm:$0xf] %v5511
  %5525 = vst [vmem:[#allocation3 + $0xe8] sm:$0xf] %v5512
  %5526 = vst [vmem:[#allocation3 + $0xf0] sm:$0xf] %v5513
  %5527 = vst [vmem:[#allocation3 + $0xf8] sm:$0xf] %v5514
  %5528 = vst [vmem:[#allocation3 + $0x100] sm:$0xf] %v5515
  %5529 = vst [vmem:[#allocation3 + $0x108] sm:$0xf] %v5516
  %5530 = vst.msk [vmem:[#allocation3 + $0x110] sm:$0xf] %vm90, %v5510
  %v5531 = vld [vmem:[#allocation2] sm:$0xff]
  %v5532 = vld [vmem:[#allocation2 + $0x8] sm:$0xff]
  %v5533 = vld [vmem:[#allocation2 + $0x10] sm:$0xff]
  %v5534 = vld [vmem:[#allocation2 + $0x18] sm:$0xf]
  %v5539 = vcombine.low %v5531, %v5531
  %v5540 = vcombine.low %v5532, %v5532
  %v5541 = vcombine.low %v5533, %v5533
  %v5542 = vcombine.low %v5534, %v5534
  %5543 = vrot.lane.b32.xlu0 %v5539, 104
  %v5544 = vpop.permute.xlu0 %5543
  %5545 = vrot.lane.b32.xlu0 %v5531, 104
  %v5546 = vpop.permute.xlu0 %5545
  %5547 = vrot.lane.b32.xlu0 %v5540, 104
  %v5548 = vpop.permute.xlu0 %5547
  %5549 = vrot.lane.b32.xlu0 %v5532, 104
  %v5550 = vpop.permute.xlu0 %5549
  %5551 = vrot.lane.b32.xlu0 %v5541, 104
  %v5552 = vpop.permute.xlu0 %5551
  %5553 = vrot.lane.b32.xlu0 %v5533, 104
  %v5554 = vpop.permute.xlu0 %5553
  %5555 = vrot.lane.b32.xlu0 %v5542, 104
  %v5556 = vpop.permute.xlu0 %5555
  %v5557 = vsel %vm491, %v5544, %v5546
  %v5558 = vsel %vm491, %v5546, %v5548
  %v5559 = vsel %vm491, %v5548, %v5550
  %v5560 = vsel %vm491, %v5550, %v5552
  %v5561 = vsel %vm491, %v5552, %v5554
  %v5562 = vsel %vm491, %v5554, %v5556
  %5570 = vst [vmem:[#allocation3 + $0xe0] sm:$0xf0] %v5557
  %5571 = vst [vmem:[#allocation3 + $0xe8] sm:$0xf0] %v5558
  %5572 = vst [vmem:[#allocation3 + $0xf0] sm:$0xf0] %v5559
  %5573 = vst [vmem:[#allocation3 + $0xf8] sm:$0xf0] %v5560
  %5574 = vst [vmem:[#allocation3 + $0x100] sm:$0xf0] %v5561
  %5575 = vst [vmem:[#allocation3 + $0x108] sm:$0xf0] %v5562
  %5576 = vst.msk [vmem:[#allocation3 + $0x110] sm:$0xf0] %vm138, %v5556
  %v5577 = vld [vmem:[#allocation2] sm:$0xff]
  %v5578 = vld [vmem:[#allocation2 + $0x8] sm:$0xff]
  %v5579 = vld [vmem:[#allocation2 + $0x10] sm:$0xff]
  %v5580 = vld [vmem:[#allocation2 + $0x18] sm:$0xf]
  %v5585 = vcombine.high %v5577, %v5577
  %v5586 = vcombine.high %v5578, %v5578
  %v5587 = vcombine.high %v5579, %v5579
  %5588 = vrot.lane.b32.xlu0 %v5577, 88
  %v5589 = vpop.permute.xlu0 %5588
  %5590 = vrot.lane.b32.xlu0 %v5585, 88
  %v5591 = vpop.permute.xlu0 %5590
  %5592 = vrot.lane.b32.xlu0 %v5578, 88
  %v5593 = vpop.permute.xlu0 %5592
  %5594 = vrot.lane.b32.xlu0 %v5586, 88
  %v5595 = vpop.permute.xlu0 %5594
  %5596 = vrot.lane.b32.xlu0 %v5579, 88
  %v5597 = vpop.permute.xlu0 %5596
  %5598 = vrot.lane.b32.xlu0 %v5587, 88
  %v5599 = vpop.permute.xlu0 %5598
  %5600 = vrot.lane.b32.xlu0 %v5580, 88
  %v5601 = vpop.permute.xlu0 %5600
  %v5602 = vsel %vm537, %v5589, %v5591
  %v5603 = vsel %vm537, %v5591, %v5593
  %v5604 = vsel %vm537, %v5593, %v5595
  %v5605 = vsel %vm537, %v5595, %v5597
  %v5606 = vsel %vm537, %v5597, %v5599
  %v5607 = vsel %vm537, %v5599, %v5601
  %5615 = vst [vmem:[#allocation3 + $0x118] sm:$0xf] %v5602
  %5616 = vst [vmem:[#allocation3 + $0x120] sm:$0xf] %v5603
  %5617 = vst [vmem:[#allocation3 + $0x128] sm:$0xf] %v5604
  %5618 = vst [vmem:[#allocation3 + $0x130] sm:$0xf] %v5605
  %5619 = vst [vmem:[#allocation3 + $0x138] sm:$0xf] %v5606
  %5620 = vst [vmem:[#allocation3 + $0x140] sm:$0xf] %v5607
  %5621 = vst.msk [vmem:[#allocation3 + $0x148] sm:$0xf] %vm90, %v5601
  %v5622 = vld [vmem:[#allocation2] sm:$0xff]
  %v5623 = vld [vmem:[#allocation2 + $0x8] sm:$0xff]
  %v5624 = vld [vmem:[#allocation2 + $0x10] sm:$0xff]
  %v5625 = vld [vmem:[#allocation2 + $0x18] sm:$0xf]
  %v5630 = vcombine.low %v5622, %v5622
  %v5631 = vcombine.low %v5623, %v5623
  %v5632 = vcombine.low %v5624, %v5624
  %v5633 = vcombine.low %v5625, %v5625
  %5634 = vrot.lane.b32.xlu0 %v5630, 87
  %v5635 = vpop.permute.xlu0 %5634
  %5636 = vrot.lane.b32.xlu0 %v5622, 87
  %v5637 = vpop.permute.xlu0 %5636
  %5638 = vrot.lane.b32.xlu0 %v5631, 87
  %v5639 = vpop.permute.xlu0 %5638
  %5640 = vrot.lane.b32.xlu0 %v5623, 87
  %v5641 = vpop.permute.xlu0 %5640
  %5642 = vrot.lane.b32.xlu0 %v5632, 87
  %v5643 = vpop.permute.xlu0 %5642
  %5644 = vrot.lane.b32.xlu0 %v5624, 87
  %v5645 = vpop.permute.xlu0 %5644
  %5646 = vrot.lane.b32.xlu0 %v5633, 87
  %v5647 = vpop.permute.xlu0 %5646
  %v5648 = vsel %vm584, %v5635, %v5637
  %v5649 = vsel %vm584, %v5637, %v5639
  %v5650 = vsel %vm584, %v5639, %v5641
  %v5651 = vsel %vm584, %v5641, %v5643
  %v5652 = vsel %vm584, %v5643, %v5645
  %v5653 = vsel %vm584, %v5645, %v5647
  %5661 = vst [vmem:[#allocation3 + $0x118] sm:$0xf0] %v5648
  %5662 = vst [vmem:[#allocation3 + $0x120] sm:$0xf0] %v5649
  %5663 = vst [vmem:[#allocation3 + $0x128] sm:$0xf0] %v5650
  %5664 = vst [vmem:[#allocation3 + $0x130] sm:$0xf0] %v5651
  %5665 = vst [vmem:[#allocation3 + $0x138] sm:$0xf0] %v5652
  %5666 = vst [vmem:[#allocation3 + $0x140] sm:$0xf0] %v5653
  %5667 = vst.msk [vmem:[#allocation3 + $0x148] sm:$0xf0] %vm138, %v5647
  %v5668 = vld [vmem:[#allocation2] sm:$0xff]
  %v5669 = vld [vmem:[#allocation2 + $0x8] sm:$0xff]
  %v5670 = vld [vmem:[#allocation2 + $0x10] sm:$0xff]
  %v5671 = vld [vmem:[#allocation2 + $0x18] sm:$0xf]
  %v5676 = vcombine.high %v5668, %v5668
  %v5677 = vcombine.high %v5669, %v5669
  %v5678 = vcombine.high %v5670, %v5670
  %5679 = vrot.lane.b32.xlu0 %v5668, 86
  %v5680 = vpop.permute.xlu0 %5679
  %5681 = vrot.lane.b32.xlu0 %v5676, 86
  %v5682 = vpop.permute.xlu0 %5681
  %5683 = vrot.lane.b32.xlu0 %v5669, 86
  %v5684 = vpop.permute.xlu0 %5683
  %5685 = vrot.lane.b32.xlu0 %v5677, 86
  %v5686 = vpop.permute.xlu0 %5685
  %5687 = vrot.lane.b32.xlu0 %v5670, 86
  %v5688 = vpop.permute.xlu0 %5687
  %5689 = vrot.lane.b32.xlu0 %v5678, 86
  %v5690 = vpop.permute.xlu0 %5689
  %5691 = vrot.lane.b32.xlu0 %v5671, 86
  %v5692 = vpop.permute.xlu0 %5691
  %v5693 = vsel %vm630, %v5680, %v5682
  %v5694 = vsel %vm630, %v5682, %v5684
  %v5695 = vsel %vm630, %v5684, %v5686
  %v5696 = vsel %vm630, %v5686, %v5688
  %v5697 = vsel %vm630, %v5688, %v5690
  %v5698 = vsel %vm630, %v5690, %v5692
  %5706 = vst [vmem:[#allocation3 + $0x150] sm:$0xf] %v5693
  %5707 = vst [vmem:[#allocation3 + $0x158] sm:$0xf] %v5694
  %5708 = vst [vmem:[#allocation3 + $0x160] sm:$0xf] %v5695
  %5709 = vst [vmem:[#allocation3 + $0x168] sm:$0xf] %v5696
  %5710 = vst [vmem:[#allocation3 + $0x170] sm:$0xf] %v5697
  %5711 = vst [vmem:[#allocation3 + $0x178] sm:$0xf] %v5698
  %5712 = vst.msk [vmem:[#allocation3 + $0x180] sm:$0xf] %vm90, %v5692
  %v5713 = vld [vmem:[#allocation2] sm:$0xff]
  %v5714 = vld [vmem:[#allocation2 + $0x8] sm:$0xff]
  %v5715 = vld [vmem:[#allocation2 + $0x10] sm:$0xff]
  %v5716 = vld [vmem:[#allocation2 + $0x18] sm:$0xf]
  %v5721 = vcombine.low %v5713, %v5713
  %v5722 = vcombine.low %v5714, %v5714
  %v5723 = vcombine.low %v5715, %v5715
  %v5724 = vcombine.low %v5716, %v5716
  %5725 = vrot.lane.b32.xlu0 %v5721, 85
  %v5726 = vpop.permute.xlu0 %5725
  %5727 = vrot.lane.b32.xlu0 %v5713, 85
  %v5728 = vpop.permute.xlu0 %5727
  %5729 = vrot.lane.b32.xlu0 %v5722, 85
  %v5730 = vpop.permute.xlu0 %5729
  %5731 = vrot.lane.b32.xlu0 %v5714, 85
  %v5732 = vpop.permute.xlu0 %5731
  %5733 = vrot.lane.b32.xlu0 %v5723, 85
  %v5734 = vpop.permute.xlu0 %5733
  %5735 = vrot.lane.b32.xlu0 %v5715, 85
  %v5736 = vpop.permute.xlu0 %5735
  %5737 = vrot.lane.b32.xlu0 %v5724, 85
  %v5738 = vpop.permute.xlu0 %5737
  %v5739 = vsel %vm677, %v5726, %v5728
  %v5740 = vsel %vm677, %v5728, %v5730
  %v5741 = vsel %vm677, %v5730, %v5732
  %v5742 = vsel %vm677, %v5732, %v5734
  %v5743 = vsel %vm677, %v5734, %v5736
  %v5744 = vsel %vm677, %v5736, %v5738
  %5752 = vst [vmem:[#allocation3 + $0x150] sm:$0xf0] %v5739
  %5753 = vst [vmem:[#allocation3 + $0x158] sm:$0xf0] %v5740
  %5754 = vst [vmem:[#allocation3 + $0x160] sm:$0xf0] %v5741
  %5755 = vst [vmem:[#allocation3 + $0x168] sm:$0xf0] %v5742
  %5756 = vst [vmem:[#allocation3 + $0x170] sm:$0xf0] %v5743
  %5757 = vst [vmem:[#allocation3 + $0x178] sm:$0xf0] %v5744
  %5758 = vst.msk [vmem:[#allocation3 + $0x180] sm:$0xf0] %vm138, %v5738
  %v5759 = vld [vmem:[#allocation2] sm:$0xff]
  %v5760 = vld [vmem:[#allocation2 + $0x8] sm:$0xff]
  %v5761 = vld [vmem:[#allocation2 + $0x10] sm:$0xff]
  %v5762 = vld [vmem:[#allocation2 + $0x18] sm:$0xf]
  %v5767 = vcombine.high %v5759, %v5759
  %v5768 = vcombine.high %v5760, %v5760
  %v5769 = vcombine.high %v5761, %v5761
  %5770 = vrot.lane.b32.xlu0 %v5759, 84
  %v5771 = vpop.permute.xlu0 %5770
  %5772 = vrot.lane.b32.xlu0 %v5767, 84
  %v5773 = vpop.permute.xlu0 %5772
  %5774 = vrot.lane.b32.xlu0 %v5760, 84
  %v5775 = vpop.permute.xlu0 %5774
  %5776 = vrot.lane.b32.xlu0 %v5768, 84
  %v5777 = vpop.permute.xlu0 %5776
  %5778 = vrot.lane.b32.xlu0 %v5761, 84
  %v5779 = vpop.permute.xlu0 %5778
  %5780 = vrot.lane.b32.xlu0 %v5769, 84
  %v5781 = vpop.permute.xlu0 %5780
  %5782 = vrot.lane.b32.xlu0 %v5762, 84
  %v5783 = vpop.permute.xlu0 %5782
  %v5784 = vsel %vm723, %v5771, %v5773
  %v5785 = vsel %vm723, %v5773, %v5775
  %v5786 = vsel %vm723, %v5775, %v5777
  %v5787 = vsel %vm723, %v5777, %v5779
  %v5788 = vsel %vm723, %v5779, %v5781
  %v5789 = vsel %vm723, %v5781, %v5783
  %5797 = vst [vmem:[#allocation3 + $0x188] sm:$0xf] %v5784
  %5798 = vst [vmem:[#allocation3 + $0x190] sm:$0xf] %v5785
  %5799 = vst [vmem:[#allocation3 + $0x198] sm:$0xf] %v5786
  %5800 = vst [vmem:[#allocation3 + $0x1a0] sm:$0xf] %v5787
  %5801 = vst [vmem:[#allocation3 + $0x1a8] sm:$0xf] %v5788
  %5802 = vst [vmem:[#allocation3 + $0x1b0] sm:$0xf] %v5789
  %5803 = vst.msk [vmem:[#allocation3 + $0x1b8] sm:$0xf] %vm90, %v5783
  %v5804 = vld [vmem:[#allocation2] sm:$0xff]
  %v5805 = vld [vmem:[#allocation2 + $0x8] sm:$0xff]
  %v5806 = vld [vmem:[#allocation2 + $0x10] sm:$0xff]
  %v5807 = vld [vmem:[#allocation2 + $0x18] sm:$0xf]
  %v5812 = vcombine.low %v5804, %v5804
  %v5813 = vcombine.low %v5805, %v5805
  %v5814 = vcombine.low %v5806, %v5806
  %v5815 = vcombine.low %v5807, %v5807
  %5816 = vrot.lane.b32.xlu0 %v5812, 68
  %v5817 = vpop.permute.xlu0 %5816
  %5818 = vrot.lane.b32.xlu0 %v5804, 68
  %v5819 = vpop.permute.xlu0 %5818
  %5820 = vrot.lane.b32.xlu0 %v5813, 68
  %v5821 = vpop.permute.xlu0 %5820
  %5822 = vrot.lane.b32.xlu0 %v5805, 68
  %v5823 = vpop.permute.xlu0 %5822
  %5824 = vrot.lane.b32.xlu0 %v5814, 68
  %v5825 = vpop.permute.xlu0 %5824
  %5826 = vrot.lane.b32.xlu0 %v5806, 68
  %v5827 = vpop.permute.xlu0 %5826
  %5828 = vrot.lane.b32.xlu0 %v5815, 68
  %v5829 = vpop.permute.xlu0 %5828
  %v5830 = vsel %vm770, %v5817, %v5819
  %v5831 = vsel %vm770, %v5819, %v5821
  %v5832 = vsel %vm770, %v5821, %v5823
  %v5833 = vsel %vm770, %v5823, %v5825
  %v5834 = vsel %vm770, %v5825, %v5827
  %v5835 = vsel %vm770, %v5827, %v5829
  %5843 = vst [vmem:[#allocation3 + $0x188] sm:$0xf0] %v5830
  %5844 = vst [vmem:[#allocation3 + $0x190] sm:$0xf0] %v5831
  %5845 = vst [vmem:[#allocation3 + $0x198] sm:$0xf0] %v5832
  %5846 = vst [vmem:[#allocation3 + $0x1a0] sm:$0xf0] %v5833
  %5847 = vst [vmem:[#allocation3 + $0x1a8] sm:$0xf0] %v5834
  %5848 = vst [vmem:[#allocation3 + $0x1b0] sm:$0xf0] %v5835
  %5849 = vst.msk [vmem:[#allocation3 + $0x1b8] sm:$0xf0] %vm138, %v5829
  %v5850 = vld [vmem:[#allocation2] sm:$0xff]
  %v5851 = vld [vmem:[#allocation2 + $0x8] sm:$0xff]
  %v5852 = vld [vmem:[#allocation2 + $0x10] sm:$0xff]
  %v5853 = vld [vmem:[#allocation2 + $0x18] sm:$0xf]
  %v5858 = vcombine.high %v5850, %v5850
  %v5859 = vcombine.high %v5851, %v5851
  %v5860 = vcombine.high %v5852, %v5852
  %5861 = vrot.lane.b32.xlu0 %v5850, 67
  %v5862 = vpop.permute.xlu0 %5861
  %5863 = vrot.lane.b32.xlu0 %v5858, 67
  %v5864 = vpop.permute.xlu0 %5863
  %5865 = vrot.lane.b32.xlu0 %v5851, 67
  %v5866 = vpop.permute.xlu0 %5865
  %5867 = vrot.lane.b32.xlu0 %v5859, 67
  %v5868 = vpop.permute.xlu0 %5867
  %5869 = vrot.lane.b32.xlu0 %v5852, 67
  %v5870 = vpop.permute.xlu0 %5869
  %5871 = vrot.lane.b32.xlu0 %v5860, 67
  %v5872 = vpop.permute.xlu0 %5871
  %5873 = vrot.lane.b32.xlu0 %v5853, 67
  %v5874 = vpop.permute.xlu0 %5873
  %v5875 = vsel %vm816, %v5862, %v5864
  %v5876 = vsel %vm816, %v5864, %v5866
  %v5877 = vsel %vm816, %v5866, %v5868
  %v5878 = vsel %vm816, %v5868, %v5870
  %v5879 = vsel %vm816, %v5870, %v5872
  %v5880 = vsel %vm816, %v5872, %v5874
  %5888 = vst [vmem:[#allocation3 + $0x1c0] sm:$0xf] %v5875
  %5889 = vst [vmem:[#allocation3 + $0x1c8] sm:$0xf] %v5876
  %5890 = vst [vmem:[#allocation3 + $0x1d0] sm:$0xf] %v5877
  %5891 = vst [vmem:[#allocation3 + $0x1d8] sm:$0xf] %v5878
  %5892 = vst [vmem:[#allocation3 + $0x1e0] sm:$0xf] %v5879
  %5893 = vst [vmem:[#allocation3 + $0x1e8] sm:$0xf] %v5880
  %5894 = vst.msk [vmem:[#allocation3 + $0x1f0] sm:$0xf] %vm90, %v5874
  %v5895 = vld [vmem:[#allocation2] sm:$0xff]
  %v5896 = vld [vmem:[#allocation2 + $0x8] sm:$0xff]
  %v5897 = vld [vmem:[#allocation2 + $0x10] sm:$0xff]
  %v5898 = vld [vmem:[#allocation2 + $0x18] sm:$0xf]
  %v5903 = vcombine.low %v5895, %v5895
  %v5904 = vcombine.low %v5896, %v5896
  %v5905 = vcombine.low %v5897, %v5897
  %v5906 = vcombine.low %v5898, %v5898
  %5907 = vrot.lane.b32.xlu0 %v5903, 66
  %v5908 = vpop.permute.xlu0 %5907
  %5909 = vrot.lane.b32.xlu0 %v5895, 66
  %v5910 = vpop.permute.xlu0 %5909
  %5911 = vrot.lane.b32.xlu0 %v5904, 66
  %v5912 = vpop.permute.xlu0 %5911
  %5913 = vrot.lane.b32.xlu0 %v5896, 66
  %v5914 = vpop.permute.xlu0 %5913
  %5915 = vrot.lane.b32.xlu0 %v5905, 66
  %v5916 = vpop.permute.xlu0 %5915
  %5917 = vrot.lane.b32.xlu0 %v5897, 66
  %v5918 = vpop.permute.xlu0 %5917
  %5919 = vrot.lane.b32.xlu0 %v5906, 66
  %v5920 = vpop.permute.xlu0 %5919
  %v5921 = vsel %vm863, %v5908, %v5910
  %v5922 = vsel %vm863, %v5910, %v5912
  %v5923 = vsel %vm863, %v5912, %v5914
  %v5924 = vsel %vm863, %v5914, %v5916
  %v5925 = vsel %vm863, %v5916, %v5918
  %v5926 = vsel %vm863, %v5918, %v5920
  %5934 = vst [vmem:[#allocation3 + $0x1c0] sm:$0xf0] %v5921
  %5935 = vst [vmem:[#allocation3 + $0x1c8] sm:$0xf0] %v5922
  %5936 = vst [vmem:[#allocation3 + $0x1d0] sm:$0xf0] %v5923
  %5937 = vst [vmem:[#allocation3 + $0x1d8] sm:$0xf0] %v5924
  %5938 = vst [vmem:[#allocation3 + $0x1e0] sm:$0xf0] %v5925
  %5939 = vst [vmem:[#allocation3 + $0x1e8] sm:$0xf0] %v5926
  %5940 = vst.msk [vmem:[#allocation3 + $0x1f0] sm:$0xf0] %vm138, %v5920
  %v5941 = vld [vmem:[#allocation2] sm:$0xff]
  %v5942 = vld [vmem:[#allocation2 + $0x8] sm:$0xff]
  %v5943 = vld [vmem:[#allocation2 + $0x10] sm:$0xff]
  %v5944 = vld [vmem:[#allocation2 + $0x18] sm:$0xf]
  %v5949 = vcombine.high %v5941, %v5941
  %v5950 = vcombine.high %v5942, %v5942
  %v5951 = vcombine.high %v5943, %v5943
  %5952 = vrot.lane.b32.xlu0 %v5941, 65
  %v5953 = vpop.permute.xlu0 %5952
  %5954 = vrot.lane.b32.xlu0 %v5949, 65
  %v5955 = vpop.permute.xlu0 %5954
  %5956 = vrot.lane.b32.xlu0 %v5942, 65
  %v5957 = vpop.permute.xlu0 %5956
  %5958 = vrot.lane.b32.xlu0 %v5950, 65
  %v5959 = vpop.permute.xlu0 %5958
  %5960 = vrot.lane.b32.xlu0 %v5943, 65
  %v5961 = vpop.permute.xlu0 %5960
  %5962 = vrot.lane.b32.xlu0 %v5951, 65
  %v5963 = vpop.permute.xlu0 %5962
  %5964 = vrot.lane.b32.xlu0 %v5944, 65
  %v5965 = vpop.permute.xlu0 %5964
  %v5966 = vsel %vm909, %v5953, %v5955
  %v5967 = vsel %vm909, %v5955, %v5957
  %v5968 = vsel %vm909, %v5957, %v5959
  %v5969 = vsel %vm909, %v5959, %v5961
  %v5970 = vsel %vm909, %v5961, %v5963
  %v5971 = vsel %vm909, %v5963, %v5965
  %5979 = vst [vmem:[#allocation3 + $0x1f8] sm:$0xf] %v5966
  %5980 = vst [vmem:[#allocation3 + $0x200] sm:$0xf] %v5967
  %5981 = vst [vmem:[#allocation3 + $0x208] sm:$0xf] %v5968
  %5982 = vst [vmem:[#allocation3 + $0x210] sm:$0xf] %v5969
  %5983 = vst [vmem:[#allocation3 + $0x218] sm:$0xf] %v5970
  %5984 = vst [vmem:[#allocation3 + $0x220] sm:$0xf] %v5971
  %5985 = vst.msk [vmem:[#allocation3 + $0x228] sm:$0xf] %vm90, %v5965
  %v5986 = vld [vmem:[#allocation2] sm:$0xff]
  %v5987 = vld [vmem:[#allocation2 + $0x8] sm:$0xff]
  %v5988 = vld [vmem:[#allocation2 + $0x10] sm:$0xff]
  %v5989 = vld [vmem:[#allocation2 + $0x18] sm:$0xf]
  %v5994 = vcombine.low %v5986, %v5986
  %v5995 = vcombine.low %v5987, %v5987
  %v5996 = vcombine.low %v5988, %v5988
  %v5997 = vcombine.low %v5989, %v5989
  %5998 = vrot.lane.b32.xlu0 %v5994, 64
  %v5999 = vpop.permute.xlu0 %5998
  %6000 = vrot.lane.b32.xlu0 %v5986, 64
  %v6001 = vpop.permute.xlu0 %6000
  %6002 = vrot.lane.b32.xlu0 %v5995, 64
  %v6003 = vpop.permute.xlu0 %6002
  %6004 = vrot.lane.b32.xlu0 %v5987, 64
  %v6005 = vpop.permute.xlu0 %6004
  %6006 = vrot.lane.b32.xlu0 %v5996, 64
  %v6007 = vpop.permute.xlu0 %6006
  %6008 = vrot.lane.b32.xlu0 %v5988, 64
  %v6009 = vpop.permute.xlu0 %6008
  %6010 = vrot.lane.b32.xlu0 %v5997, 64
  %v6011 = vpop.permute.xlu0 %6010
  %v6012 = vsel %vm956, %v5999, %v6001
  %v6013 = vsel %vm956, %v6001, %v6003
  %v6014 = vsel %vm956, %v6003, %v6005
  %v6015 = vsel %vm956, %v6005, %v6007
  %v6016 = vsel %vm956, %v6007, %v6009
  %v6017 = vsel %vm956, %v6009, %v6011
  %6025 = vst [vmem:[#allocation3 + $0x1f8] sm:$0xf0] %v6012
  %6026 = vst [vmem:[#allocation3 + $0x200] sm:$0xf0] %v6013
  %6027 = vst [vmem:[#allocation3 + $0x208] sm:$0xf0] %v6014
  %6028 = vst [vmem:[#allocation3 + $0x210] sm:$0xf0] %v6015
  %6029 = vst [vmem:[#allocation3 + $0x218] sm:$0xf0] %v6016
  %6030 = vst [vmem:[#allocation3 + $0x220] sm:$0xf0] %v6017
  %6031 = vst.msk [vmem:[#allocation3 + $0x228] sm:$0xf0] %vm138, %v6011
  %v6032 = vld [vmem:[#allocation2] sm:$0xff]
  %v6033 = vld [vmem:[#allocation2 + $0x8] sm:$0xff]
  %v6034 = vld [vmem:[#allocation2 + $0x10] sm:$0xff]
  %v6035 = vld [vmem:[#allocation2 + $0x18] sm:$0xf]
  %v6040 = vcombine.high %v6032, %v6032
  %v6041 = vcombine.high %v6033, %v6033
  %v6042 = vcombine.high %v6034, %v6034
  %6043 = vrot.lane.b32.xlu0 %v6032, 48
  %v6044 = vpop.permute.xlu0 %6043
  %6045 = vrot.lane.b32.xlu0 %v6040, 48
  %v6046 = vpop.permute.xlu0 %6045
  %6047 = vrot.lane.b32.xlu0 %v6033, 48
  %v6048 = vpop.permute.xlu0 %6047
  %6049 = vrot.lane.b32.xlu0 %v6041, 48
  %v6050 = vpop.permute.xlu0 %6049
  %6051 = vrot.lane.b32.xlu0 %v6034, 48
  %v6052 = vpop.permute.xlu0 %6051
  %6053 = vrot.lane.b32.xlu0 %v6042, 48
  %v6054 = vpop.permute.xlu0 %6053
  %6055 = vrot.lane.b32.xlu0 %v6035, 48
  %v6056 = vpop.permute.xlu0 %6055
  %v6057 = vsel %vm1002, %v6044, %v6046
  %v6058 = vsel %vm1002, %v6046, %v6048
  %v6059 = vsel %vm1002, %v6048, %v6050
  %v6060 = vsel %vm1002, %v6050, %v6052
  %v6061 = vsel %vm1002, %v6052, %v6054
  %v6062 = vsel %vm1002, %v6054, %v6056
  %6070 = vst [vmem:[#allocation3 + $0x230] sm:$0xf] %v6057
  %6071 = vst [vmem:[#allocation3 + $0x238] sm:$0xf] %v6058
  %6072 = vst [vmem:[#allocation3 + $0x240] sm:$0xf] %v6059
  %6073 = vst [vmem:[#allocation3 + $0x248] sm:$0xf] %v6060
  %6074 = vst [vmem:[#allocation3 + $0x250] sm:$0xf] %v6061
  %6075 = vst [vmem:[#allocation3 + $0x258] sm:$0xf] %v6062
  %6076 = vst.msk [vmem:[#allocation3 + $0x260] sm:$0xf] %vm90, %v6056
  %v6077 = vld [vmem:[#allocation2] sm:$0xff]
  %v6078 = vld [vmem:[#allocation2 + $0x8] sm:$0xff]
  %v6079 = vld [vmem:[#allocation2 + $0x10] sm:$0xff]
  %v6080 = vld [vmem:[#allocation2 + $0x18] sm:$0xf]
  %v6085 = vcombine.low %v6077, %v6077
  %v6086 = vcombine.low %v6078, %v6078
  %v6087 = vcombine.low %v6079, %v6079
  %v6088 = vcombine.low %v6080, %v6080
  %6089 = vrot.lane.b32.xlu0 %v6085, 47
  %v6090 = vpop.permute.xlu0 %6089
  %6091 = vrot.lane.b32.xlu0 %v6077, 47
  %v6092 = vpop.permute.xlu0 %6091
  %6093 = vrot.lane.b32.xlu0 %v6086, 47
  %v6094 = vpop.permute.xlu0 %6093
  %6095 = vrot.lane.b32.xlu0 %v6078, 47
  %v6096 = vpop.permute.xlu0 %6095
  %6097 = vrot.lane.b32.xlu0 %v6087, 47
  %v6098 = vpop.permute.xlu0 %6097
  %6099 = vrot.lane.b32.xlu0 %v6079, 47
  %v6100 = vpop.permute.xlu0 %6099
  %6101 = vrot.lane.b32.xlu0 %v6088, 47
  %v6102 = vpop.permute.xlu0 %6101
  %v6103 = vsel %vm1049, %v6090, %v6092
  %v6104 = vsel %vm1049, %v6092, %v6094
  %v6105 = vsel %vm1049, %v6094, %v6096
  %v6106 = vsel %vm1049, %v6096, %v6098
  %v6107 = vsel %vm1049, %v6098, %v6100
  %v6108 = vsel %vm1049, %v6100, %v6102
  %6116 = vst [vmem:[#allocation3 + $0x230] sm:$0xf0] %v6103
  %6117 = vst [vmem:[#allocation3 + $0x238] sm:$0xf0] %v6104
  %6118 = vst [vmem:[#allocation3 + $0x240] sm:$0xf0] %v6105
  %6119 = vst [vmem:[#allocation3 + $0x248] sm:$0xf0] %v6106
  %6120 = vst [vmem:[#allocation3 + $0x250] sm:$0xf0] %v6107
  %6121 = vst [vmem:[#allocation3 + $0x258] sm:$0xf0] %v6108
  %6122 = vst.msk [vmem:[#allocation3 + $0x260] sm:$0xf0] %vm138, %v6102
  %v6123 = vld [vmem:[#allocation2] sm:$0xff]
  %v6124 = vld [vmem:[#allocation2 + $0x8] sm:$0xff]
  %v6125 = vld [vmem:[#allocation2 + $0x10] sm:$0xff]
  %v6126 = vld [vmem:[#allocation2 + $0x18] sm:$0xf]
  %v6131 = vcombine.high %v6123, %v6123
  %v6132 = vcombine.high %v6124, %v6124
  %v6133 = vcombine.high %v6125, %v6125
  %6134 = vrot.lane.b32.xlu0 %v6123, 46
  %v6135 = vpop.permute.xlu0 %6134
  %6136 = vrot.lane.b32.xlu0 %v6131, 46
  %v6137 = vpop.permute.xlu0 %6136
  %6138 = vrot.lane.b32.xlu0 %v6124, 46
  %v6139 = vpop.permute.xlu0 %6138
  %6140 = vrot.lane.b32.xlu0 %v6132, 46
  %v6141 = vpop.permute.xlu0 %6140
  %6142 = vrot.lane.b32.xlu0 %v6125, 46
  %v6143 = vpop.permute.xlu0 %6142
  %6144 = vrot.lane.b32.xlu0 %v6133, 46
  %v6145 = vpop.permute.xlu0 %6144
  %6146 = vrot.lane.b32.xlu0 %v6126, 46
  %v6147 = vpop.permute.xlu0 %6146
  %v6148 = vsel %vm1095, %v6135, %v6137
  %v6149 = vsel %vm1095, %v6137, %v6139
  %v6150 = vsel %vm1095, %v6139, %v6141
  %v6151 = vsel %vm1095, %v6141, %v6143
  %v6152 = vsel %vm1095, %v6143, %v6145
  %v6153 = vsel %vm1095, %v6145, %v6147
  %6161 = vst [vmem:[#allocation3 + $0x268] sm:$0xf] %v6148
  %6162 = vst [vmem:[#allocation3 + $0x270] sm:$0xf] %v6149
  %6163 = vst [vmem:[#allocation3 + $0x278] sm:$0xf] %v6150
  %6164 = vst [vmem:[#allocation3 + $0x280] sm:$0xf] %v6151
  %6165 = vst [vmem:[#allocation3 + $0x288] sm:$0xf] %v6152
  %6166 = vst [vmem:[#allocation3 + $0x290] sm:$0xf] %v6153
  %6167 = vst.msk [vmem:[#allocation3 + $0x298] sm:$0xf] %vm90, %v6147
  %v6168 = vld [vmem:[#allocation2] sm:$0xff]
  %v6169 = vld [vmem:[#allocation2 + $0x8] sm:$0xff]
  %v6170 = vld [vmem:[#allocation2 + $0x10] sm:$0xff]
  %v6171 = vld [vmem:[#allocation2 + $0x18] sm:$0xf]
  %v6176 = vcombine.low %v6168, %v6168
  %v6177 = vcombine.low %v6169, %v6169
  %v6178 = vcombine.low %v6170, %v6170
  %v6179 = vcombine.low %v6171, %v6171
  %6180 = vrot.lane.b32.xlu0 %v6176, 45
  %v6181 = vpop.permute.xlu0 %6180
  %6182 = vrot.lane.b32.xlu0 %v6168, 45
  %v6183 = vpop.permute.xlu0 %6182
  %6184 = vrot.lane.b32.xlu0 %v6177, 45
  %v6185 = vpop.permute.xlu0 %6184
  %6186 = vrot.lane.b32.xlu0 %v6169, 45
  %v6187 = vpop.permute.xlu0 %6186
  %6188 = vrot.lane.b32.xlu0 %v6178, 45
  %v6189 = vpop.permute.xlu0 %6188
  %6190 = vrot.lane.b32.xlu0 %v6170, 45
  %v6191 = vpop.permute.xlu0 %6190
  %6192 = vrot.lane.b32.xlu0 %v6179, 45
  %v6193 = vpop.permute.xlu0 %6192
  %v6194 = vsel %vm1142, %v6181, %v6183
  %v6195 = vsel %vm1142, %v6183, %v6185
  %v6196 = vsel %vm1142, %v6185, %v6187
  %v6197 = vsel %vm1142, %v6187, %v6189
  %v6198 = vsel %vm1142, %v6189, %v6191
  %v6199 = vsel %vm1142, %v6191, %v6193
  %6207 = vst [vmem:[#allocation3 + $0x268] sm:$0xf0] %v6194
  %6208 = vst [vmem:[#allocation3 + $0x270] sm:$0xf0] %v6195
  %6209 = vst [vmem:[#allocation3 + $0x278] sm:$0xf0] %v6196
  %6210 = vst [vmem:[#allocation3 + $0x280] sm:$0xf0] %v6197
  %6211 = vst [vmem:[#allocation3 + $0x288] sm:$0xf0] %v6198
  %6212 = vst [vmem:[#allocation3 + $0x290] sm:$0xf0] %v6199
  %6213 = vst.msk [vmem:[#allocation3 + $0x298] sm:$0xf0] %vm138, %v6193
  %v6214 = vld [vmem:[#allocation2] sm:$0xff]
  %v6215 = vld [vmem:[#allocation2 + $0x8] sm:$0xff]
  %v6216 = vld [vmem:[#allocation2 + $0x10] sm:$0xff]
  %v6217 = vld [vmem:[#allocation2 + $0x18] sm:$0xf]
  %v6222 = vcombine.high %v6214, %v6214
  %v6223 = vcombine.high %v6215, %v6215
  %v6224 = vcombine.high %v6216, %v6216
  %6225 = vrot.lane.b32.xlu0 %v6214, 44
  %v6226 = vpop.permute.xlu0 %6225
  %6227 = vrot.lane.b32.xlu0 %v6222, 44
  %v6228 = vpop.permute.xlu0 %6227
  %6229 = vrot.lane.b32.xlu0 %v6215, 44
  %v6230 = vpop.permute.xlu0 %6229
  %6231 = vrot.lane.b32.xlu0 %v6223, 44
  %v6232 = vpop.permute.xlu0 %6231
  %6233 = vrot.lane.b32.xlu0 %v6216, 44
  %v6234 = vpop.permute.xlu0 %6233
  %6235 = vrot.lane.b32.xlu0 %v6224, 44
  %v6236 = vpop.permute.xlu0 %6235
  %6237 = vrot.lane.b32.xlu0 %v6217, 44
  %v6238 = vpop.permute.xlu0 %6237
  %v6239 = vsel %vm1188, %v6226, %v6228
  %v6240 = vsel %vm1188, %v6228, %v6230
  %v6241 = vsel %vm1188, %v6230, %v6232
  %v6242 = vsel %vm1188, %v6232, %v6234
  %v6243 = vsel %vm1188, %v6234, %v6236
  %v6244 = vsel %vm1188, %v6236, %v6238
  %6252 = vst [vmem:[#allocation3 + $0x2a0] sm:$0xf] %v6239
  %6253 = vst [vmem:[#allocation3 + $0x2a8] sm:$0xf] %v6240
  %6254 = vst [vmem:[#allocation3 + $0x2b0] sm:$0xf] %v6241
  %6255 = vst [vmem:[#allocation3 + $0x2b8] sm:$0xf] %v6242
  %6256 = vst [vmem:[#allocation3 + $0x2c0] sm:$0xf] %v6243
  %6257 = vst [vmem:[#allocation3 + $0x2c8] sm:$0xf] %v6244
  %6258 = vst.msk [vmem:[#allocation3 + $0x2d0] sm:$0xf] %vm90, %v6238
  %s6259 = scalar_lea.vmem %s2, 12
  %v6260 = vld [vmem:[%s6259] sm:$0xf]
  %v6261 = vld [vmem:[#allocation3] sm:$0xff]
  %v6262 = vld [vmem:[#allocation3 + $0x8] sm:$0xff]
  %v6263 = vld [vmem:[#allocation3 + $0x10] sm:$0xff]
  %v6264 = vld [vmem:[#allocation3 + $0x18] sm:$0xff]
  %v6265 = vld [vmem:[#allocation3 + $0x20] sm:$0xff]
  %v6266 = vld [vmem:[#allocation3 + $0x28] sm:$0xff]
  %v6267 = vld [vmem:[#allocation3 + $0x30] sm:$0xff]
  %v6268 = vld [vmem:[#allocation3 + $0x38] sm:$0xff]
  %v6269 = vld [vmem:[#allocation3 + $0x40] sm:$0xff]
  %v6270 = vld [vmem:[#allocation3 + $0x48] sm:$0xff]
  %v6271 = vld [vmem:[#allocation3 + $0x50] sm:$0xff]
  %v6272 = vld [vmem:[#allocation3 + $0x58] sm:$0xff]
  %v6273 = vld [vmem:[#allocation3 + $0x60] sm:$0xff]
  %v6274 = vld [vmem:[#allocation3 + $0x68] sm:$0xff]
  %v6275 = vld [vmem:[#allocation3 + $0x70] sm:$0xff]
  %v6276 = vld [vmem:[#allocation3 + $0x78] sm:$0xff]
  %v6277 = vld [vmem:[#allocation3 + $0x80] sm:$0xff]
  %v6278 = vld [vmem:[#allocation3 + $0x88] sm:$0xff]
  %v6279 = vld [vmem:[#allocation3 + $0x90] sm:$0xff]
  %v6280 = vld [vmem:[#allocation3 + $0x98] sm:$0xff]
  %v6281 = vld [vmem:[#allocation3 + $0xa0] sm:$0xff]
  %v6282 = vld [vmem:[#allocation3 + $0xa8] sm:$0xff]
  %v6283 = vld [vmem:[#allocation3 + $0xb0] sm:$0xff]
  %v6284 = vld [vmem:[#allocation3 + $0xb8] sm:$0xff]
  %v6285 = vld [vmem:[#allocation3 + $0xc0] sm:$0xff]
  %v6286 = vld [vmem:[#allocation3 + $0xc8] sm:$0xff]
  %v6287 = vld [vmem:[#allocation3 + $0xd0] sm:$0xff]
  %v6288 = vld [vmem:[#allocation3 + $0xd8] sm:$0xff]
  %v6289 = vld [vmem:[#allocation3 + $0xe0] sm:$0xff]
  %v6290 = vld [vmem:[#allocation3 + $0xe8] sm:$0xff]
  %v6291 = vld [vmem:[#allocation3 + $0xf0] sm:$0xff]
  %v6292 = vld [vmem:[#allocation3 + $0xf8] sm:$0xff]
  %v6293 = vld [vmem:[#allocation3 + $0x100] sm:$0xff]
  %v6294 = vld [vmem:[#allocation3 + $0x108] sm:$0xff]
  %v6295 = vld [vmem:[#allocation3 + $0x110] sm:$0xff]
  %v6296 = vld [vmem:[#allocation3 + $0x118] sm:$0xff]
  %v6297 = vld [vmem:[#allocation3 + $0x120] sm:$0xff]
  %v6298 = vld [vmem:[#allocation3 + $0x128] sm:$0xff]
  %v6299 = vld [vmem:[#allocation3 + $0x130] sm:$0xff]
  %v6300 = vld [vmem:[#allocation3 + $0x138] sm:$0xff]
  %v6301 = vld [vmem:[#allocation3 + $0x140] sm:$0xff]
  %v6302 = vld [vmem:[#allocation3 + $0x148] sm:$0xff]
  %v6303 = vld [vmem:[#allocation3 + $0x150] sm:$0xff]
  %v6304 = vld [vmem:[#allocation3 + $0x158] sm:$0xff]
  %v6305 = vld [vmem:[#allocation3 + $0x160] sm:$0xff]
  %v6306 = vld [vmem:[#allocation3 + $0x168] sm:$0xff]
  %v6307 = vld [vmem:[#allocation3 + $0x170] sm:$0xff]
  %v6308 = vld [vmem:[#allocation3 + $0x178] sm:$0xff]
  %v6309 = vld [vmem:[#allocation3 + $0x180] sm:$0xff]
  %v6310 = vld [vmem:[#allocation3 + $0x188] sm:$0xff]
  %v6311 = vld [vmem:[#allocation3 + $0x190] sm:$0xff]
  %v6312 = vld [vmem:[#allocation3 + $0x198] sm:$0xff]
  %v6313 = vld [vmem:[#allocation3 + $0x1a0] sm:$0xff]
  %v6314 = vld [vmem:[#allocation3 + $0x1a8] sm:$0xff]
  %v6315 = vld [vmem:[#allocation3 + $0x1b0] sm:$0xff]
  %v6316 = vld [vmem:[#allocation3 + $0x1b8] sm:$0xff]
  %v6317 = vld [vmem:[#allocation3 + $0x1c0] sm:$0xff]
  %v6318 = vld [vmem:[#allocation3 + $0x1c8] sm:$0xff]
  %v6319 = vld [vmem:[#allocation3 + $0x1d0] sm:$0xff]
  %v6320 = vld [vmem:[#allocation3 + $0x1d8] sm:$0xff]
  %v6321 = vld [vmem:[#allocation3 + $0x1e0] sm:$0xff]
  %v6322 = vld [vmem:[#allocation3 + $0x1e8] sm:$0xff]
  %v6323 = vld [vmem:[#allocation3 + $0x1f0] sm:$0xff]
  %v6324 = vld [vmem:[#allocation3 + $0x1f8] sm:$0xff]
  %v6325 = vld [vmem:[#allocation3 + $0x200] sm:$0xff]
  %v6326 = vld [vmem:[#allocation3 + $0x208] sm:$0xff]
  %v6327 = vld [vmem:[#allocation3 + $0x210] sm:$0xff]
  %v6328 = vld [vmem:[#allocation3 + $0x218] sm:$0xff]
  %v6329 = vld [vmem:[#allocation3 + $0x220] sm:$0xff]
  %v6330 = vld [vmem:[#allocation3 + $0x228] sm:$0xff]
  %v6331 = vld [vmem:[#allocation3 + $0x230] sm:$0xff]
  %v6332 = vld [vmem:[#allocation3 + $0x238] sm:$0xff]
  %v6333 = vld [vmem:[#allocation3 + $0x240] sm:$0xff]
  %v6334 = vld [vmem:[#allocation3 + $0x248] sm:$0xff]
  %v6335 = vld [vmem:[#allocation3 + $0x250] sm:$0xff]
  %v6336 = vld [vmem:[#allocation3 + $0x258] sm:$0xff]
  %v6337 = vld [vmem:[#allocation3 + $0x260] sm:$0xff]
  %v6338 = vld [vmem:[#allocation3 + $0x268] sm:$0xff]
  %v6339 = vld [vmem:[#allocation3 + $0x270] sm:$0xff]
  %v6340 = vld [vmem:[#allocation3 + $0x278] sm:$0xff]
  %v6341 = vld [vmem:[#allocation3 + $0x280] sm:$0xff]
  %v6342 = vld [vmem:[#allocation3 + $0x288] sm:$0xff]
  %v6343 = vld [vmem:[#allocation3 + $0x290] sm:$0xff]
  %v6344 = vld [vmem:[#allocation3 + $0x298] sm:$0xff]
  %v6345 = vld [vmem:[#allocation3 + $0x2a0] sm:$0xf]
  %v6346 = vld [vmem:[#allocation3 + $0x2a8] sm:$0xf]
  %v6347 = vld [vmem:[#allocation3 + $0x2b0] sm:$0xf]
  %v6348 = vld [vmem:[#allocation3 + $0x2b8] sm:$0xf]
  %v6349 = vld [vmem:[#allocation3 + $0x2c0] sm:$0xf]
  %v6350 = vld [vmem:[#allocation3 + $0x2c8] sm:$0xf]
  %v6351 = vld [vmem:[#allocation3 + $0x2d0] sm:$0xf]
  %v6353 = vsel %vm1301, %v6260, 0
  %v6356 = vsel %vm53, %v6345, 0
  %v6359 = vsel %vm53, %v6346, 0
  %v6362 = vsel %vm53, %v6347, 0
  %v6365 = vsel %vm53, %v6348, 0
  %v6368 = vsel %vm53, %v6349, 0
  %v6371 = vsel %vm53, %v6350, 0
  %v6374 = vsel %vm53, %v6351, 0
  %6376 = vmatprep.subr.mxu0 %v6262
  %6377 = vmatpush1.msra.mxu0 %v6261
  %6378 = vmatprep.subr.mxu0 %v6269
  %6379 = vmatpush1.msra.mxu0 %v6268
  %6380 = vmatprep.subr.mxu0 %v6276
  %6381 = vmatpush1.msra.mxu0 %v6275
  %6382 = vmatprep.subr.mxu0 %v6283
  %6383 = vmatpush1.msra.mxu0 %v6282
  %6384 = vmatprep.subr.mxu0 %v6290
  %6385 = vmatpush1.msra.mxu0 %v6289
  %6386 = vmatprep.subr.mxu0 %v6297
  %6387 = vmatpush1.msra.mxu0 %v6296
  %6388 = vmatprep.subr.mxu0 %v6304
  %6389 = vmatpush1.msra.mxu0 %v6303
  %6390 = vmatprep.subr.mxu0 %v6311
  %6391 = vmatpush1.msra.mxu0 %v6310
  %6392 = vmatprep.subr.mxu0 %v6318
  %6393 = vmatpush1.msra.mxu0 %v6317
  %6394 = vmatprep.subr.mxu0 %v6325
  %6395 = vmatpush1.msra.mxu0 %v6324
  %6396 = vmatprep.subr.mxu0 %v6332
  %6397 = vmatpush1.msra.mxu0 %v6331
  %6398 = vmatprep.subr.mxu0 %v6339
  %6399 = vmatpush1.msra.mxu0 %v6338
  %6400 = vmatprep.subr.mxu0 %v6359
  %6401 = vmatpush1.msra.mxu0 %v6356
  %6402 = vmatprep.subr.mxu0 0.0
  %6403 = vmatpush1.msra.mxu0 0.0
  %6404 = vmatprep.subr.mxu0 0.0
  %6405 = vmatpush1.msra.mxu0 0.0
  %6406 = vmatprep.subr.mxu0 0.0
  %6407 = vmatpush1.msra.mxu0 0.0
  %6408 = vmatprep.subr.mxu0 0.0
  %6409 = vmatpush1.msra.mxu0 0.0
  %6410 = vmatprep.subr.mxu0 0.0
  %6411 = vmatpush1.msra.mxu0 0.0
  %6412 = vmatprep.subr.mxu0 0.0
  %6413 = vmatpush1.msra.mxu0 0.0
  %6414 = vmatprep.subr.mxu0 0.0
  %6415 = vmatpush1.msra.mxu0 0.0
  %6416 = vmatprep.subr.mxu0 0.0
  %6417 = vmatpush1.msra.mxu0 0.0
  %6418 = vmatprep.subr.mxu0 0.0
  %6419 = vmatpush1.msra.mxu0 0.0
  %6420 = vmatprep.subr.mxu0 0.0
  %6421 = vmatpush1.msra.mxu0 0.0
  %6422 = vmatprep.subr.mxu0 0.0
  %6423 = vmatpush1.msra.mxu0 0.0
  %6424 = vmatprep.subr.mxu0 0.0
  %6425 = vmatpush1.msra.mxu0 0.0
  %6426 = vmatprep.subr.mxu0 0.0
  %6427 = vmatpush1.msra.mxu0 0.0
  %6428 = vmatprep.subr.mxu0 0.0
  %6429 = vmatpush1.msra.mxu0 0.0
  %6430 = vmatprep.subr.mxu0 0.0
  %6431 = vmatpush1.msra.mxu0 0.0
  %6432 = vmatprep.subr.mxu0 0.0
  %6433 = vmatpush1.msra.mxu0 0.0
  %6434 = vmatprep.subr.mxu0 0.0
  %6435 = vmatpush1.msra.mxu0 0.0
  %6436 = vmatprep.subr.mxu0 0.0
  %6437 = vmatpush1.msra.mxu0 0.0
  %6438 = vmatprep.subr.mxu0 0.0
  %6439 = vmatpush1.msra.mxu0 0.0
  %6440 = vmatprep.mubr.f32.mxu0 0.0
  %6441 = vmatmul.mubr.f32.gmra.mrb[0].mxu0 %v6353
  %v6442 = vpop.f32.mrb[0].mxu0
  %v6443 = vadd.f32 0.0, %v6442
  %v6444 = vpop.f32.mrb[0].mxu0
  %v6445 = vadd.f32 0.0, %v6444
  %6446 = vdwg.mxu0
  %6447 = vmatprep.subr.mxu0 %v6264
  %6448 = vmatpush1.msra.mxu0 %v6263
  %6449 = vmatprep.subr.mxu0 %v6271
  %6450 = vmatpush1.msra.mxu0 %v6270
  %6451 = vmatprep.subr.mxu0 %v6278
  %6452 = vmatpush1.msra.mxu0 %v6277
  %6453 = vmatprep.subr.mxu0 %v6285
  %6454 = vmatpush1.msra.mxu0 %v6284
  %6455 = vmatprep.subr.mxu0 %v6292
  %6456 = vmatpush1.msra.mxu0 %v6291
  %6457 = vmatprep.subr.mxu0 %v6299
  %6458 = vmatpush1.msra.mxu0 %v6298
  %6459 = vmatprep.subr.mxu0 %v6306
  %6460 = vmatpush1.msra.mxu0 %v6305
  %6461 = vmatprep.subr.mxu0 %v6313
  %6462 = vmatpush1.msra.mxu0 %v6312
  %6463 = vmatprep.subr.mxu0 %v6320
  %6464 = vmatpush1.msra.mxu0 %v6319
  %6465 = vmatprep.subr.mxu0 %v6327
  %6466 = vmatpush1.msra.mxu0 %v6326
  %6467 = vmatprep.subr.mxu0 %v6334
  %6468 = vmatpush1.msra.mxu0 %v6333
  %6469 = vmatprep.subr.mxu0 %v6341
  %6470 = vmatpush1.msra.mxu0 %v6340
  %6471 = vmatprep.subr.mxu0 %v6365
  %6472 = vmatpush1.msra.mxu0 %v6362
  %6473 = vmatprep.subr.mxu0 0.0
  %6474 = vmatpush1.msra.mxu0 0.0
  %6475 = vmatprep.subr.mxu0 0.0
  %6476 = vmatpush1.msra.mxu0 0.0
  %6477 = vmatprep.subr.mxu0 0.0
  %6478 = vmatpush1.msra.mxu0 0.0
  %6479 = vmatprep.subr.mxu0 0.0
  %6480 = vmatpush1.msra.mxu0 0.0
  %6481 = vmatprep.subr.mxu0 0.0
  %6482 = vmatpush1.msra.mxu0 0.0
  %6483 = vmatprep.subr.mxu0 0.0
  %6484 = vmatpush1.msra.mxu0 0.0
  %6485 = vmatprep.subr.mxu0 0.0
  %6486 = vmatpush1.msra.mxu0 0.0
  %6487 = vmatprep.subr.mxu0 0.0
  %6488 = vmatpush1.msra.mxu0 0.0
  %6489 = vmatprep.subr.mxu0 0.0
  %6490 = vmatpush1.msra.mxu0 0.0
  %6491 = vmatprep.subr.mxu0 0.0
  %6492 = vmatpush1.msra.mxu0 0.0
  %6493 = vmatprep.subr.mxu0 0.0
  %6494 = vmatpush1.msra.mxu0 0.0
  %6495 = vmatprep.subr.mxu0 0.0
  %6496 = vmatpush1.msra.mxu0 0.0
  %6497 = vmatprep.subr.mxu0 0.0
  %6498 = vmatpush1.msra.mxu0 0.0
  %6499 = vmatprep.subr.mxu0 0.0
  %6500 = vmatpush1.msra.mxu0 0.0
  %6501 = vmatprep.subr.mxu0 0.0
  %6502 = vmatpush1.msra.mxu0 0.0
  %6503 = vmatprep.subr.mxu0 0.0
  %6504 = vmatpush1.msra.mxu0 0.0
  %6505 = vmatprep.subr.mxu0 0.0
  %6506 = vmatpush1.msra.mxu0 0.0
  %6507 = vmatprep.subr.mxu0 0.0
  %6508 = vmatpush1.msra.mxu0 0.0
  %6509 = vmatprep.subr.mxu0 0.0
  %6510 = vmatpush1.msra.mxu0 0.0
  %6511 = vmatprep.mubr.f32.mxu0 0.0
  %6512 = vmatmul.mubr.f32.gmra.mrb[0].mxu0 %v6353
  %v6513 = vpop.f32.mrb[0].mxu0
  %v6514 = vadd.f32 0.0, %v6513
  %v6515 = vpop.f32.mrb[0].mxu0
  %v6516 = vadd.f32 0.0, %v6515
  %6517 = vdwg.mxu0
  %6518 = vmatprep.subr.mxu0 %v6266
  %6519 = vmatpush1.msra.mxu0 %v6265
  %6520 = vmatprep.subr.mxu0 %v6273
  %6521 = vmatpush1.msra.mxu0 %v6272
  %6522 = vmatprep.subr.mxu0 %v6280
  %6523 = vmatpush1.msra.mxu0 %v6279
  %6524 = vmatprep.subr.mxu0 %v6287
  %6525 = vmatpush1.msra.mxu0 %v6286
  %6526 = vmatprep.subr.mxu0 %v6294
  %6527 = vmatpush1.msra.mxu0 %v6293
  %6528 = vmatprep.subr.mxu0 %v6301
  %6529 = vmatpush1.msra.mxu0 %v6300
  %6530 = vmatprep.subr.mxu0 %v6308
  %6531 = vmatpush1.msra.mxu0 %v6307
  %6532 = vmatprep.subr.mxu0 %v6315
  %6533 = vmatpush1.msra.mxu0 %v6314
  %6534 = vmatprep.subr.mxu0 %v6322
  %6535 = vmatpush1.msra.mxu0 %v6321
  %6536 = vmatprep.subr.mxu0 %v6329
  %6537 = vmatpush1.msra.mxu0 %v6328
  %6538 = vmatprep.subr.mxu0 %v6336
  %6539 = vmatpush1.msra.mxu0 %v6335
  %6540 = vmatprep.subr.mxu0 %v6343
  %6541 = vmatpush1.msra.mxu0 %v6342
  %6542 = vmatprep.subr.mxu0 %v6371
  %6543 = vmatpush1.msra.mxu0 %v6368
  %6544 = vmatprep.subr.mxu0 0.0
  %6545 = vmatpush1.msra.mxu0 0.0
  %6546 = vmatprep.subr.mxu0 0.0
  %6547 = vmatpush1.msra.mxu0 0.0
  %6548 = vmatprep.subr.mxu0 0.0
  %6549 = vmatpush1.msra.mxu0 0.0
  %6550 = vmatprep.subr.mxu0 0.0
  %6551 = vmatpush1.msra.mxu0 0.0
  %6552 = vmatprep.subr.mxu0 0.0
  %6553 = vmatpush1.msra.mxu0 0.0
  %6554 = vmatprep.subr.mxu0 0.0
  %6555 = vmatpush1.msra.mxu0 0.0
  %6556 = vmatprep.subr.mxu0 0.0
  %6557 = vmatpush1.msra.mxu0 0.0
  %6558 = vmatprep.subr.mxu0 0.0
  %6559 = vmatpush1.msra.mxu0 0.0
  %6560 = vmatprep.subr.mxu0 0.0
  %6561 = vmatpush1.msra.mxu0 0.0
  %6562 = vmatprep.subr.mxu0 0.0
  %6563 = vmatpush1.msra.mxu0 0.0
  %6564 = vmatprep.subr.mxu0 0.0
  %6565 = vmatpush1.msra.mxu0 0.0
  %6566 = vmatprep.subr.mxu0 0.0
  %6567 = vmatpush1.msra.mxu0 0.0
  %6568 = vmatprep.subr.mxu0 0.0
  %6569 = vmatpush1.msra.mxu0 0.0
  %6570 = vmatprep.subr.mxu0 0.0
  %6571 = vmatpush1.msra.mxu0 0.0
  %6572 = vmatprep.subr.mxu0 0.0
  %6573 = vmatpush1.msra.mxu0 0.0
  %6574 = vmatprep.subr.mxu0 0.0
  %6575 = vmatpush1.msra.mxu0 0.0
  %6576 = vmatprep.subr.mxu0 0.0
  %6577 = vmatpush1.msra.mxu0 0.0
  %6578 = vmatprep.subr.mxu0 0.0
  %6579 = vmatpush1.msra.mxu0 0.0
  %6580 = vmatprep.subr.mxu0 0.0
  %6581 = vmatpush1.msra.mxu0 0.0
  %6582 = vmatprep.mubr.f32.mxu0 0.0
  %6583 = vmatmul.mubr.f32.gmra.mrb[0].mxu0 %v6353
  %v6584 = vpop.f32.mrb[0].mxu0
  %v6585 = vadd.f32 0.0, %v6584
  %v6586 = vpop.f32.mrb[0].mxu0
  %v6587 = vadd.f32 0.0, %v6586
  %6588 = vdwg.mxu0
  %6589 = vmatprep.subr.mxu0 0.0
  %6590 = vmatpush1.msra.mxu0 %v6267
  %6591 = vmatprep.subr.mxu0 0.0
  %6592 = vmatpush1.msra.mxu0 %v6274
  %6593 = vmatprep.subr.mxu0 0.0
  %6594 = vmatpush1.msra.mxu0 %v6281
  %6595 = vmatprep.subr.mxu0 0.0
  %6596 = vmatpush1.msra.mxu0 %v6288
  %6597 = vmatprep.subr.mxu0 0.0
  %6598 = vmatpush1.msra.mxu0 %v6295
  %6599 = vmatprep.subr.mxu0 0.0
  %6600 = vmatpush1.msra.mxu0 %v6302
  %6601 = vmatprep.subr.mxu0 0.0
  %6602 = vmatpush1.msra.mxu0 %v6309
  %6603 = vmatprep.subr.mxu0 0.0
  %6604 = vmatpush1.msra.mxu0 %v6316
  %6605 = vmatprep.subr.mxu0 0.0
  %6606 = vmatpush1.msra.mxu0 %v6323
  %6607 = vmatprep.subr.mxu0 0.0
  %6608 = vmatpush1.msra.mxu0 %v6330
  %6609 = vmatprep.subr.mxu0 0.0
  %6610 = vmatpush1.msra.mxu0 %v6337
  %6611 = vmatprep.subr.mxu0 0.0
  %6612 = vmatpush1.msra.mxu0 %v6344
  %6613 = vmatprep.subr.mxu0 0.0
  %6614 = vmatpush1.msra.mxu0 %v6374
  %6615 = vmatprep.subr.mxu0 0.0
  %6616 = vmatpush1.msra.mxu0 0.0
  %6617 = vmatprep.subr.mxu0 0.0
  %6618 = vmatpush1.msra.mxu0 0.0
  %6619 = vmatprep.subr.mxu0 0.0
  %6620 = vmatpush1.msra.mxu0 0.0
  %6621 = vmatprep.subr.mxu0 0.0
  %6622 = vmatpush1.msra.mxu0 0.0
  %6623 = vmatprep.subr.mxu0 0.0
  %6624 = vmatpush1.msra.mxu0 0.0
  %6625 = vmatprep.subr.mxu0 0.0
  %6626 = vmatpush1.msra.mxu0 0.0
  %6627 = vmatprep.subr.mxu0 0.0
  %6628 = vmatpush1.msra.mxu0 0.0
  %6629 = vmatprep.subr.mxu0 0.0
  %6630 = vmatpush1.msra.mxu0 0.0
  %6631 = vmatprep.subr.mxu0 0.0
  %6632 = vmatpush1.msra.mxu0 0.0
  %6633 = vmatprep.subr.mxu0 0.0
  %6634 = vmatpush1.msra.mxu0 0.0
  %6635 = vmatprep.subr.mxu0 0.0
  %6636 = vmatpush1.msra.mxu0 0.0
  %6637 = vmatprep.subr.mxu0 0.0
  %6638 = vmatpush1.msra.mxu0 0.0
  %6639 = vmatprep.subr.mxu0 0.0
  %6640 = vmatpush1.msra.mxu0 0.0
  %6641 = vmatprep.subr.mxu0 0.0
  %6642 = vmatpush1.msra.mxu0 0.0
  %6643 = vmatprep.subr.mxu0 0.0
  %6644 = vmatpush1.msra.mxu0 0.0
  %6645 = vmatprep.subr.mxu0 0.0
  %6646 = vmatpush1.msra.mxu0 0.0
  %6647 = vmatprep.subr.mxu0 0.0
  %6648 = vmatpush1.msra.mxu0 0.0
  %6649 = vmatprep.subr.mxu0 0.0
  %6650 = vmatpush1.msra.mxu0 0.0
  %6651 = vmatprep.subr.mxu0 0.0
  %6652 = vmatpush1.msra.mxu0 0.0
  %6653 = vmatprep.mubr.f32.mxu0 0.0
  %6654 = vmatmul.mubr.f32.gmra.mrb[0].mxu0 %v6353
  %v6655 = vpop.f32.mrb[0].mxu0
  %v6656 = vadd.f32 0.0, %v6655
  %v6657 = vpop.f32.mrb[0].mxu0
  %6658 = vdwg.mxu0
  %v6659 = vmul.f32 %v6443, %v1613
  %v6660 = vmul.f32 %v6445, %v1617
  %v6661 = vmul.f32 %v6514, %v1621
  %v6662 = vmul.f32 %v6516, %v1625
  %v6663 = vmul.f32 %v6585, %v1629
  %v6664 = vmul.f32 %v6587, %v1633
  %v6665 = vmul.f32 %v6656, %v1637
  %v6666 = vsel %vm53, %v6659, 0.0
  %v6667 = vsel %vm53, %v6660, 0.0
  %v6668 = vadd.f32 %v6666, %v6667
  %v6669 = vsel %vm53, %v6661, 0.0
  %v6670 = vadd.f32 %v6668, %v6669
  %v6671 = vsel %vm53, %v6662, 0.0
  %v6672 = vadd.f32 %v6670, %v6671
  %v6673 = vsel %vm53, %v6663, 0.0
  %v6674 = vadd.f32 %v6672, %v6673
  %v6675 = vsel %vm53, %v6664, 0.0
  %v6676 = vadd.f32 %v6674, %v6675
  %v6677 = vsel %vm90, %v6665, 0.0
  %v6678 = vadd.f32 %v6676, %v6677
  %6679 = vadd.xlane.f32.xlu0 %v6678
  %v6680 = vpop.xlane.xlu0 %6679
  %v6681 = vmul.f32 %v6680, 0.001953125
  %v6682 = vsub.f32 %v6443, %v6681
  %v6683 = vsub.f32 %v6445, %v6681
  %v6684 = vsub.f32 %v6514, %v6681
  %v6685 = vsub.f32 %v6516, %v6681
  %v6686 = vsub.f32 %v6585, %v6681
  %v6687 = vsub.f32 %v6587, %v6681
  %v6688 = vsub.f32 %v6656, %v6681
  %v6689 = vmul.f32 %v6682, %v1613
  %v6690 = vmul.f32 %v6683, %v1617
  %v6691 = vmul.f32 %v6684, %v1621
  %v6692 = vmul.f32 %v6685, %v1625
  %v6693 = vmul.f32 %v6686, %v1629
  %v6694 = vmul.f32 %v6687, %v1633
  %v6695 = vmul.f32 %v6688, %v1637
  %v6696 = vmul.f32 %v6689, %v6689
  %v6697 = vmul.f32 %v6690, %v6690
  %v6698 = vmul.f32 %v6691, %v6691
  %v6699 = vmul.f32 %v6692, %v6692
  %v6700 = vmul.f32 %v6693, %v6693
  %v6701 = vmul.f32 %v6694, %v6694
  %v6702 = vmul.f32 %v6695, %v6695
  %v6703 = vsel %vm53, %v6696, 0.0
  %v6704 = vsel %vm53, %v6697, 0.0
  %v6705 = vadd.f32 %v6703, %v6704
  %v6706 = vsel %vm53, %v6698, 0.0
  %v6707 = vadd.f32 %v6705, %v6706
  %v6708 = vsel %vm53, %v6699, 0.0
  %v6709 = vadd.f32 %v6707, %v6708
  %v6710 = vsel %vm53, %v6700, 0.0
  %v6711 = vadd.f32 %v6709, %v6710
  %v6712 = vsel %vm53, %v6701, 0.0
  %v6713 = vadd.f32 %v6711, %v6712
  %v6714 = vsel %vm90, %v6702, 0.0
  %v6715 = vadd.f32 %v6713, %v6714
  %6716 = vadd.xlane.f32.xlu0 %v6715
  %v6717 = vpop.xlane.xlu0 %6716
  %v6718 = vmul.f32 %v6717, 0.001953125
  %v6719 = vadd.f32 %v6718, 1e-05
  %v6720 = vrsqrt.pop %v6719
  %v6721 = vmul.f32 %v6689, %v6720
  %v6722 = vmul.f32 %v6690, %v6720
  %v6723 = vmul.f32 %v6691, %v6720
  %v6724 = vmul.f32 %v6692, %v6720
  %v6725 = vmul.f32 %v6693, %v6720
  %v6726 = vmul.f32 %v6694, %v6720
  %v6727 = vmul.f32 %v6695, %v6720
  %s6728 = scalar_lea.vmem %s3, 12
  %v6729 = vld [vmem:[%s6728] sm:$0xf]
  %6731 = vset.pattern.permute.xlu0 0
  %6732 = vperm.xlu0 %6731, %v6729
  %v6733 = vpop.permute.xlu0 %6732
  %v6735 = vmul.f32 %v6721, %v6733
  %v6736 = vmul.f32 %v6722, %v6733
  %v6737 = vmul.f32 %v6723, %v6733
  %v6738 = vmul.f32 %v6724, %v6733
  %v6739 = vmul.f32 %v6725, %v6733
  %v6740 = vmul.f32 %v6726, %v6733
  %v6741 = vmul.f32 %v6727, %v6733
  %s6742 = scalar_lea.vmem %s4, 12
  %v6743 = vld [vmem:[%s6742] sm:$0xf]
  %6745 = vset.pattern.permute.xlu0 0
  %6746 = vperm.xlu0 %6745, %v6743
  %v6747 = vpop.permute.xlu0 %6746
  %v6749 = vadd.f32 %v6735, %v6747
  %v6750 = vadd.f32 %v6736, %v6747
  %v6751 = vadd.f32 %v6737, %v6747
  %v6752 = vadd.f32 %v6738, %v6747
  %v6753 = vadd.f32 %v6739, %v6747
  %v6754 = vadd.f32 %v6740, %v6747
  %v6755 = vadd.f32 %v6741, %v6747
  %vm6756 = vcmp.ge.f32.partialorder %v6749, 0.0
  %vm6757 = vcmp.ge.f32.partialorder %v6750, 0.0
  %vm6758 = vcmp.ge.f32.partialorder %v6751, 0.0
  %vm6759 = vcmp.ge.f32.partialorder %v6752, 0.0
  %vm6760 = vcmp.ge.f32.partialorder %v6753, 0.0
  %vm6761 = vcmp.ge.f32.partialorder %v6754, 0.0
  %vm6762 = vcmp.ge.f32.partialorder %v6755, 0.0
  %v6763 = vmul.f32 %v6749, 0.01
  %v6764 = vmul.f32 %v6750, 0.01
  %v6765 = vmul.f32 %v6751, 0.01
  %v6766 = vmul.f32 %v6752, 0.01
  %v6767 = vmul.f32 %v6753, 0.01
  %v6768 = vmul.f32 %v6754, 0.01
  %v6769 = vmul.f32 %v6755, 0.01
  %v6770 = vsel %vm6756, %v6749, %v6763
  %v6771 = vsel %vm6757, %v6750, %v6764
  %v6772 = vsel %vm6758, %v6751, %v6765
  %v6773 = vsel %vm6759, %v6752, %v6766
  %v6774 = vsel %vm6760, %v6753, %v6767
  %v6775 = vsel %vm6761, %v6754, %v6768
  %v6776 = vsel %vm6762, %v6755, %v6769
  %v6777 = vmul.f32 %v6770, %v1613
  %v6778 = vmul.f32 %v6771, %v1617
  %v6779 = vmul.f32 %v6772, %v1621
  %v6780 = vmul.f32 %v6773, %v1625
  %v6781 = vmul.f32 %v6774, %v1629
  %v6782 = vmul.f32 %v6775, %v1633
  %v6783 = vmul.f32 %v6776, %v1637
  %v6791 = vcombine.low %v6777, %v6778
  %v6792 = vcombine.low %v6779, %v6780
  %v6793 = vcombine.low %v6781, %v6782
  %6794 = vrot.lane.b32.xlu0 %v6791, 42
  %v6795 = vpop.permute.xlu0 %6794
  %6796 = vrot.lane.b32.xlu0 %v6792, 42
  %v6797 = vpop.permute.xlu0 %6796
  %6798 = vrot.lane.b32.xlu0 %v6793, 42
  %v6799 = vpop.permute.xlu0 %6798
  %6800 = vrot.lane.b32.xlu0 %v6783, 42
  %v6801 = vpop.permute.xlu0 %6800
  %v6802 = vrot.slane %v6795, 4
  %v6803 = vrot.slane %v6797, 4
  %v6804 = vrot.slane %v6799, 4
  %v6805 = vsel %vm51, %v6802, %v6795
  %v6806 = vsel %vm53, %v6802, %v6803
  %v6807 = vsel %vm51, %v6806, %v6797
  %v6808 = vsel %vm53, %v6803, %v6804
  %v6809 = vsel %vm51, %v6808, %v6799
  %v6810 = vsel %vm51, %v6804, %v6801
  %6815 = vst.msk [vmem:[#allocation2] sm:$0xff] %vm65, %v6805
  %6816 = vst [vmem:[#allocation2 + $0x8] sm:$0xff] %v6807
  %6817 = vst [vmem:[#allocation2 + $0x10] sm:$0xff] %v6809
  %6818 = vst.msk [vmem:[#allocation2 + $0x18] sm:$0xf] %vm69, %v6810
  %v6819 = vld [vmem:[#allocation2] sm:$0xff]
  %v6820 = vld [vmem:[#allocation2 + $0x8] sm:$0xff]
  %v6821 = vld [vmem:[#allocation2 + $0x10] sm:$0xff]
  %v6822 = vld [vmem:[#allocation2 + $0x18] sm:$0xf]
  %v6826 = vcombine.high %v6819, %v6819
  %v6827 = vcombine.high %v6820, %v6820
  %v6828 = vcombine.high %v6821, %v6821
  %6832 = vst [vmem:[#allocation3] sm:$0xf] %v6819
  %6833 = vst [vmem:[#allocation3 + $0x8] sm:$0xf] %v6826
  %6834 = vst [vmem:[#allocation3 + $0x10] sm:$0xf] %v6820
  %6835 = vst [vmem:[#allocation3 + $0x18] sm:$0xf] %v6827
  %6836 = vst [vmem:[#allocation3 + $0x20] sm:$0xf] %v6821
  %6837 = vst [vmem:[#allocation3 + $0x28] sm:$0xf] %v6828
  %6838 = vst.msk [vmem:[#allocation3 + $0x30] sm:$0xf] %vm90, %v6822
  %v6839 = vld [vmem:[#allocation2] sm:$0xff]
  %v6840 = vld [vmem:[#allocation2 + $0x8] sm:$0xff]
  %v6841 = vld [vmem:[#allocation2 + $0x10] sm:$0xff]
  %v6842 = vld [vmem:[#allocation2 + $0x18] sm:$0xf]
  %v6847 = vcombine.low %v6839, %v6839
  %v6848 = vcombine.low %v6840, %v6840
  %v6849 = vcombine.low %v6841, %v6841
  %v6850 = vcombine.low %v6842, %v6842
  %6851 = vrot.lane.b32.xlu0 %v6847, 127
  %v6852 = vpop.permute.xlu0 %6851
  %6853 = vrot.lane.b32.xlu0 %v6839, 127
  %v6854 = vpop.permute.xlu0 %6853
  %6855 = vrot.lane.b32.xlu0 %v6848, 127
  %v6856 = vpop.permute.xlu0 %6855
  %6857 = vrot.lane.b32.xlu0 %v6840, 127
  %v6858 = vpop.permute.xlu0 %6857
  %6859 = vrot.lane.b32.xlu0 %v6849, 127
  %v6860 = vpop.permute.xlu0 %6859
  %6861 = vrot.lane.b32.xlu0 %v6841, 127
  %v6862 = vpop.permute.xlu0 %6861
  %6863 = vrot.lane.b32.xlu0 %v6850, 127
  %v6864 = vpop.permute.xlu0 %6863
  %v6865 = vsel %vm118, %v6852, %v6854
  %v6866 = vsel %vm118, %v6854, %v6856
  %v6867 = vsel %vm118, %v6856, %v6858
  %v6868 = vsel %vm118, %v6858, %v6860
  %v6869 = vsel %vm118, %v6860, %v6862
  %v6870 = vsel %vm118, %v6862, %v6864
  %6878 = vst [vmem:[#allocation3] sm:$0xf0] %v6865
  %6879 = vst [vmem:[#allocation3 + $0x8] sm:$0xf0] %v6866
  %6880 = vst [vmem:[#allocation3 + $0x10] sm:$0xf0] %v6867
  %6881 = vst [vmem:[#allocation3 + $0x18] sm:$0xf0] %v6868
  %6882 = vst [vmem:[#allocation3 + $0x20] sm:$0xf0] %v6869
  %6883 = vst [vmem:[#allocation3 + $0x28] sm:$0xf0] %v6870
  %6884 = vst.msk [vmem:[#allocation3 + $0x30] sm:$0xf0] %vm138, %v6864
  %v6885 = vld [vmem:[#allocation2] sm:$0xff]
  %v6886 = vld [vmem:[#allocation2 + $0x8] sm:$0xff]
  %v6887 = vld [vmem:[#allocation2 + $0x10] sm:$0xff]
  %v6888 = vld [vmem:[#allocation2 + $0x18] sm:$0xf]
  %v6893 = vcombine.high %v6885, %v6885
  %v6894 = vcombine.high %v6886, %v6886
  %v6895 = vcombine.high %v6887, %v6887
  %6896 = vrot.lane.b32.xlu0 %v6885, 126
  %v6897 = vpop.permute.xlu0 %6896
  %6898 = vrot.lane.b32.xlu0 %v6893, 126
  %v6899 = vpop.permute.xlu0 %6898
  %6900 = vrot.lane.b32.xlu0 %v6886, 126
  %v6901 = vpop.permute.xlu0 %6900
  %6902 = vrot.lane.b32.xlu0 %v6894, 126
  %v6903 = vpop.permute.xlu0 %6902
  %6904 = vrot.lane.b32.xlu0 %v6887, 126
  %v6905 = vpop.permute.xlu0 %6904
  %6906 = vrot.lane.b32.xlu0 %v6895, 126
  %v6907 = vpop.permute.xlu0 %6906
  %6908 = vrot.lane.b32.xlu0 %v6888, 126
  %v6909 = vpop.permute.xlu0 %6908
  %v6910 = vsel %vm165, %v6897, %v6899
  %v6911 = vsel %vm165, %v6899, %v6901
  %v6912 = vsel %vm165, %v6901, %v6903
  %v6913 = vsel %vm165, %v6903, %v6905
  %v6914 = vsel %vm165, %v6905, %v6907
  %v6915 = vsel %vm165, %v6907, %v6909
  %6923 = vst [vmem:[#allocation3 + $0x38] sm:$0xf] %v6910
  %6924 = vst [vmem:[#allocation3 + $0x40] sm:$0xf] %v6911
  %6925 = vst [vmem:[#allocation3 + $0x48] sm:$0xf] %v6912
  %6926 = vst [vmem:[#allocation3 + $0x50] sm:$0xf] %v6913
  %6927 = vst [vmem:[#allocation3 + $0x58] sm:$0xf] %v6914
  %6928 = vst [vmem:[#allocation3 + $0x60] sm:$0xf] %v6915
  %6929 = vst.msk [vmem:[#allocation3 + $0x68] sm:$0xf] %vm90, %v6909
  %v6930 = vld [vmem:[#allocation2] sm:$0xff]
  %v6931 = vld [vmem:[#allocation2 + $0x8] sm:$0xff]
  %v6932 = vld [vmem:[#allocation2 + $0x10] sm:$0xff]
  %v6933 = vld [vmem:[#allocation2 + $0x18] sm:$0xf]
  %v6938 = vcombine.low %v6930, %v6930
  %v6939 = vcombine.low %v6931, %v6931
  %v6940 = vcombine.low %v6932, %v6932
  %v6941 = vcombine.low %v6933, %v6933
  %6942 = vrot.lane.b32.xlu0 %v6938, 125
  %v6943 = vpop.permute.xlu0 %6942
  %6944 = vrot.lane.b32.xlu0 %v6930, 125
  %v6945 = vpop.permute.xlu0 %6944
  %6946 = vrot.lane.b32.xlu0 %v6939, 125
  %v6947 = vpop.permute.xlu0 %6946
  %6948 = vrot.lane.b32.xlu0 %v6931, 125
  %v6949 = vpop.permute.xlu0 %6948
  %6950 = vrot.lane.b32.xlu0 %v6940, 125
  %v6951 = vpop.permute.xlu0 %6950
  %6952 = vrot.lane.b32.xlu0 %v6932, 125
  %v6953 = vpop.permute.xlu0 %6952
  %6954 = vrot.lane.b32.xlu0 %v6941, 125
  %v6955 = vpop.permute.xlu0 %6954
  %v6956 = vsel %vm212, %v6943, %v6945
  %v6957 = vsel %vm212, %v6945, %v6947
  %v6958 = vsel %vm212, %v6947, %v6949
  %v6959 = vsel %vm212, %v6949, %v6951
  %v6960 = vsel %vm212, %v6951, %v6953
  %v6961 = vsel %vm212, %v6953, %v6955
  %6969 = vst [vmem:[#allocation3 + $0x38] sm:$0xf0] %v6956
  %6970 = vst [vmem:[#allocation3 + $0x40] sm:$0xf0] %v6957
  %6971 = vst [vmem:[#allocation3 + $0x48] sm:$0xf0] %v6958
  %6972 = vst [vmem:[#allocation3 + $0x50] sm:$0xf0] %v6959
  %6973 = vst [vmem:[#allocation3 + $0x58] sm:$0xf0] %v6960
  %6974 = vst [vmem:[#allocation3 + $0x60] sm:$0xf0] %v6961
  %6975 = vst.msk [vmem:[#allocation3 + $0x68] sm:$0xf0] %vm138, %v6955
  %v6976 = vld [vmem:[#allocation2] sm:$0xff]
  %v6977 = vld [vmem:[#allocation2 + $0x8] sm:$0xff]
  %v6978 = vld [vmem:[#allocation2 + $0x10] sm:$0xff]
  %v6979 = vld [vmem:[#allocation2 + $0x18] sm:$0xf]
  %v6984 = vcombine.high %v6976, %v6976
  %v6985 = vcombine.high %v6977, %v6977
  %v6986 = vcombine.high %v6978, %v6978
  %6987 = vrot.lane.b32.xlu0 %v6976, 124
  %v6988 = vpop.permute.xlu0 %6987
  %6989 = vrot.lane.b32.xlu0 %v6984, 124
  %v6990 = vpop.permute.xlu0 %6989
  %6991 = vrot.lane.b32.xlu0 %v6977, 124
  %v6992 = vpop.permute.xlu0 %6991
  %6993 = vrot.lane.b32.xlu0 %v6985, 124
  %v6994 = vpop.permute.xlu0 %6993
  %6995 = vrot.lane.b32.xlu0 %v6978, 124
  %v6996 = vpop.permute.xlu0 %6995
  %6997 = vrot.lane.b32.xlu0 %v6986, 124
  %v6998 = vpop.permute.xlu0 %6997
  %6999 = vrot.lane.b32.xlu0 %v6979, 124
  %v7000 = vpop.permute.xlu0 %6999
  %v7001 = vsel %vm258, %v6988, %v6990
  %v7002 = vsel %vm258, %v6990, %v6992
  %v7003 = vsel %vm258, %v6992, %v6994
  %v7004 = vsel %vm258, %v6994, %v6996
  %v7005 = vsel %vm258, %v6996, %v6998
  %v7006 = vsel %vm258, %v6998, %v7000
  %7014 = vst [vmem:[#allocation3 + $0x70] sm:$0xf] %v7001
  %7015 = vst [vmem:[#allocation3 + $0x78] sm:$0xf] %v7002
  %7016 = vst [vmem:[#allocation3 + $0x80] sm:$0xf] %v7003
  %7017 = vst [vmem:[#allocation3 + $0x88] sm:$0xf] %v7004
  %7018 = vst [vmem:[#allocation3 + $0x90] sm:$0xf] %v7005
  %7019 = vst [vmem:[#allocation3 + $0x98] sm:$0xf] %v7006
  %7020 = vst.msk [vmem:[#allocation3 + $0xa0] sm:$0xf] %vm90, %v7000
  %v7021 = vld [vmem:[#allocation2] sm:$0xff]
  %v7022 = vld [vmem:[#allocation2 + $0x8] sm:$0xff]
  %v7023 = vld [vmem:[#allocation2 + $0x10] sm:$0xff]
  %v7024 = vld [vmem:[#allocation2 + $0x18] sm:$0xf]
  %v7029 = vcombine.low %v7021, %v7021
  %v7030 = vcombine.low %v7022, %v7022
  %v7031 = vcombine.low %v7023, %v7023
  %v7032 = vcombine.low %v7024, %v7024
  %7033 = vrot.lane.b32.xlu0 %v7029, 108
  %v7034 = vpop.permute.xlu0 %7033
  %7035 = vrot.lane.b32.xlu0 %v7021, 108
  %v7036 = vpop.permute.xlu0 %7035
  %7037 = vrot.lane.b32.xlu0 %v7030, 108
  %v7038 = vpop.permute.xlu0 %7037
  %7039 = vrot.lane.b32.xlu0 %v7022, 108
  %v7040 = vpop.permute.xlu0 %7039
  %7041 = vrot.lane.b32.xlu0 %v7031, 108
  %v7042 = vpop.permute.xlu0 %7041
  %7043 = vrot.lane.b32.xlu0 %v7023, 108
  %v7044 = vpop.permute.xlu0 %7043
  %7045 = vrot.lane.b32.xlu0 %v7032, 108
  %v7046 = vpop.permute.xlu0 %7045
  %v7047 = vsel %vm305, %v7034, %v7036
  %v7048 = vsel %vm305, %v7036, %v7038
  %v7049 = vsel %vm305, %v7038, %v7040
  %v7050 = vsel %vm305, %v7040, %v7042
  %v7051 = vsel %vm305, %v7042, %v7044
  %v7052 = vsel %vm305, %v7044, %v7046
  %7060 = vst [vmem:[#allocation3 + $0x70] sm:$0xf0] %v7047
  %7061 = vst [vmem:[#allocation3 + $0x78] sm:$0xf0] %v7048
  %7062 = vst [vmem:[#allocation3 + $0x80] sm:$0xf0] %v7049
  %7063 = vst [vmem:[#allocation3 + $0x88] sm:$0xf0] %v7050
  %7064 = vst [vmem:[#allocation3 + $0x90] sm:$0xf0] %v7051
  %7065 = vst [vmem:[#allocation3 + $0x98] sm:$0xf0] %v7052
  %7066 = vst.msk [vmem:[#allocation3 + $0xa0] sm:$0xf0] %vm138, %v7046
  %v7067 = vld [vmem:[#allocation2] sm:$0xff]
  %v7068 = vld [vmem:[#allocation2 + $0x8] sm:$0xff]
  %v7069 = vld [vmem:[#allocation2 + $0x10] sm:$0xff]
  %v7070 = vld [vmem:[#allocation2 + $0x18] sm:$0xf]
  %v7075 = vcombine.high %v7067, %v7067
  %v7076 = vcombine.high %v7068, %v7068
  %v7077 = vcombine.high %v7069, %v7069
  %7078 = vrot.lane.b32.xlu0 %v7067, 107
  %v7079 = vpop.permute.xlu0 %7078
  %7080 = vrot.lane.b32.xlu0 %v7075, 107
  %v7081 = vpop.permute.xlu0 %7080
  %7082 = vrot.lane.b32.xlu0 %v7068, 107
  %v7083 = vpop.permute.xlu0 %7082
  %7084 = vrot.lane.b32.xlu0 %v7076, 107
  %v7085 = vpop.permute.xlu0 %7084
  %7086 = vrot.lane.b32.xlu0 %v7069, 107
  %v7087 = vpop.permute.xlu0 %7086
  %7088 = vrot.lane.b32.xlu0 %v7077, 107
  %v7089 = vpop.permute.xlu0 %7088
  %7090 = vrot.lane.b32.xlu0 %v7070, 107
  %v7091 = vpop.permute.xlu0 %7090
  %v7092 = vsel %vm351, %v7079, %v7081
  %v7093 = vsel %vm351, %v7081, %v7083
  %v7094 = vsel %vm351, %v7083, %v7085
  %v7095 = vsel %vm351, %v7085, %v7087
  %v7096 = vsel %vm351, %v7087, %v7089
  %v7097 = vsel %vm351, %v7089, %v7091
  %7105 = vst [vmem:[#allocation3 + $0xa8] sm:$0xf] %v7092
  %7106 = vst [vmem:[#allocation3 + $0xb0] sm:$0xf] %v7093
  %7107 = vst [vmem:[#allocation3 + $0xb8] sm:$0xf] %v7094
  %7108 = vst [vmem:[#allocation3 + $0xc0] sm:$0xf] %v7095
  %7109 = vst [vmem:[#allocation3 + $0xc8] sm:$0xf] %v7096
  %7110 = vst [vmem:[#allocation3 + $0xd0] sm:$0xf] %v7097
  %7111 = vst.msk [vmem:[#allocation3 + $0xd8] sm:$0xf] %vm90, %v7091
  %v7112 = vld [vmem:[#allocation2] sm:$0xff]
  %v7113 = vld [vmem:[#allocation2 + $0x8] sm:$0xff]
  %v7114 = vld [vmem:[#allocation2 + $0x10] sm:$0xff]
  %v7115 = vld [vmem:[#allocation2 + $0x18] sm:$0xf]
  %v7120 = vcombine.low %v7112, %v7112
  %v7121 = vcombine.low %v7113, %v7113
  %v7122 = vcombine.low %v7114, %v7114
  %v7123 = vcombine.low %v7115, %v7115
  %7124 = vrot.lane.b32.xlu0 %v7120, 106
  %v7125 = vpop.permute.xlu0 %7124
  %7126 = vrot.lane.b32.xlu0 %v7112, 106
  %v7127 = vpop.permute.xlu0 %7126
  %7128 = vrot.lane.b32.xlu0 %v7121, 106
  %v7129 = vpop.permute.xlu0 %7128
  %7130 = vrot.lane.b32.xlu0 %v7113, 106
  %v7131 = vpop.permute.xlu0 %7130
  %7132 = vrot.lane.b32.xlu0 %v7122, 106
  %v7133 = vpop.permute.xlu0 %7132
  %7134 = vrot.lane.b32.xlu0 %v7114, 106
  %v7135 = vpop.permute.xlu0 %7134
  %7136 = vrot.lane.b32.xlu0 %v7123, 106
  %v7137 = vpop.permute.xlu0 %7136
  %v7138 = vsel %vm398, %v7125, %v7127
  %v7139 = vsel %vm398, %v7127, %v7129
  %v7140 = vsel %vm398, %v7129, %v7131
  %v7141 = vsel %vm398, %v7131, %v7133
  %v7142 = vsel %vm398, %v7133, %v7135
  %v7143 = vsel %vm398, %v7135, %v7137
  %7151 = vst [vmem:[#allocation3 + $0xa8] sm:$0xf0] %v7138
  %7152 = vst [vmem:[#allocation3 + $0xb0] sm:$0xf0] %v7139
  %7153 = vst [vmem:[#allocation3 + $0xb8] sm:$0xf0] %v7140
  %7154 = vst [vmem:[#allocation3 + $0xc0] sm:$0xf0] %v7141
  %7155 = vst [vmem:[#allocation3 + $0xc8] sm:$0xf0] %v7142
  %7156 = vst [vmem:[#allocation3 + $0xd0] sm:$0xf0] %v7143
  %7157 = vst.msk [vmem:[#allocation3 + $0xd8] sm:$0xf0] %vm138, %v7137
  %v7158 = vld [vmem:[#allocation2] sm:$0xff]
  %v7159 = vld [vmem:[#allocation2 + $0x8] sm:$0xff]
  %v7160 = vld [vmem:[#allocation2 + $0x10] sm:$0xff]
  %v7161 = vld [vmem:[#allocation2 + $0x18] sm:$0xf]
  %v7166 = vcombine.high %v7158, %v7158
  %v7167 = vcombine.high %v7159, %v7159
  %v7168 = vcombine.high %v7160, %v7160
  %7169 = vrot.lane.b32.xlu0 %v7158, 105
  %v7170 = vpop.permute.xlu0 %7169
  %7171 = vrot.lane.b32.xlu0 %v7166, 105
  %v7172 = vpop.permute.xlu0 %7171
  %7173 = vrot.lane.b32.xlu0 %v7159, 105
  %v7174 = vpop.permute.xlu0 %7173
  %7175 = vrot.lane.b32.xlu0 %v7167, 105
  %v7176 = vpop.permute.xlu0 %7175
  %7177 = vrot.lane.b32.xlu0 %v7160, 105
  %v7178 = vpop.permute.xlu0 %7177
  %7179 = vrot.lane.b32.xlu0 %v7168, 105
  %v7180 = vpop.permute.xlu0 %7179
  %7181 = vrot.lane.b32.xlu0 %v7161, 105
  %v7182 = vpop.permute.xlu0 %7181
  %v7183 = vsel %vm444, %v7170, %v7172
  %v7184 = vsel %vm444, %v7172, %v7174
  %v7185 = vsel %vm444, %v7174, %v7176
  %v7186 = vsel %vm444, %v7176, %v7178
  %v7187 = vsel %vm444, %v7178, %v7180
  %v7188 = vsel %vm444, %v7180, %v7182
  %7196 = vst [vmem:[#allocation3 + $0xe0] sm:$0xf] %v7183
  %7197 = vst [vmem:[#allocation3 + $0xe8] sm:$0xf] %v7184
  %7198 = vst [vmem:[#allocation3 + $0xf0] sm:$0xf] %v7185
  %7199 = vst [vmem:[#allocation3 + $0xf8] sm:$0xf] %v7186
  %7200 = vst [vmem:[#allocation3 + $0x100] sm:$0xf] %v7187
  %7201 = vst [vmem:[#allocation3 + $0x108] sm:$0xf] %v7188
  %7202 = vst.msk [vmem:[#allocation3 + $0x110] sm:$0xf] %vm90, %v7182
  %v7203 = vld [vmem:[#allocation2] sm:$0xff]
  %v7204 = vld [vmem:[#allocation2 + $0x8] sm:$0xff]
  %v7205 = vld [vmem:[#allocation2 + $0x10] sm:$0xff]
  %v7206 = vld [vmem:[#allocation2 + $0x18] sm:$0xf]
  %v7211 = vcombine.low %v7203, %v7203
  %v7212 = vcombine.low %v7204, %v7204
  %v7213 = vcombine.low %v7205, %v7205
  %v7214 = vcombine.low %v7206, %v7206
  %7215 = vrot.lane.b32.xlu0 %v7211, 104
  %v7216 = vpop.permute.xlu0 %7215
  %7217 = vrot.lane.b32.xlu0 %v7203, 104
  %v7218 = vpop.permute.xlu0 %7217
  %7219 = vrot.lane.b32.xlu0 %v7212, 104
  %v7220 = vpop.permute.xlu0 %7219
  %7221 = vrot.lane.b32.xlu0 %v7204, 104
  %v7222 = vpop.permute.xlu0 %7221
  %7223 = vrot.lane.b32.xlu0 %v7213, 104
  %v7224 = vpop.permute.xlu0 %7223
  %7225 = vrot.lane.b32.xlu0 %v7205, 104
  %v7226 = vpop.permute.xlu0 %7225
  %7227 = vrot.lane.b32.xlu0 %v7214, 104
  %v7228 = vpop.permute.xlu0 %7227
  %v7229 = vsel %vm491, %v7216, %v7218
  %v7230 = vsel %vm491, %v7218, %v7220
  %v7231 = vsel %vm491, %v7220, %v7222
  %v7232 = vsel %vm491, %v7222, %v7224
  %v7233 = vsel %vm491, %v7224, %v7226
  %v7234 = vsel %vm491, %v7226, %v7228
  %7242 = vst [vmem:[#allocation3 + $0xe0] sm:$0xf0] %v7229
  %7243 = vst [vmem:[#allocation3 + $0xe8] sm:$0xf0] %v7230
  %7244 = vst [vmem:[#allocation3 + $0xf0] sm:$0xf0] %v7231
  %7245 = vst [vmem:[#allocation3 + $0xf8] sm:$0xf0] %v7232
  %7246 = vst [vmem:[#allocation3 + $0x100] sm:$0xf0] %v7233
  %7247 = vst [vmem:[#allocation3 + $0x108] sm:$0xf0] %v7234
  %7248 = vst.msk [vmem:[#allocation3 + $0x110] sm:$0xf0] %vm138, %v7228
  %v7249 = vld [vmem:[#allocation2] sm:$0xff]
  %v7250 = vld [vmem:[#allocation2 + $0x8] sm:$0xff]
  %v7251 = vld [vmem:[#allocation2 + $0x10] sm:$0xff]
  %v7252 = vld [vmem:[#allocation2 + $0x18] sm:$0xf]
  %v7257 = vcombine.high %v7249, %v7249
  %v7258 = vcombine.high %v7250, %v7250
  %v7259 = vcombine.high %v7251, %v7251
  %7260 = vrot.lane.b32.xlu0 %v7249, 88
  %v7261 = vpop.permute.xlu0 %7260
  %7262 = vrot.lane.b32.xlu0 %v7257, 88
  %v7263 = vpop.permute.xlu0 %7262
  %7264 = vrot.lane.b32.xlu0 %v7250, 88
  %v7265 = vpop.permute.xlu0 %7264
  %7266 = vrot.lane.b32.xlu0 %v7258, 88
  %v7267 = vpop.permute.xlu0 %7266
  %7268 = vrot.lane.b32.xlu0 %v7251, 88
  %v7269 = vpop.permute.xlu0 %7268
  %7270 = vrot.lane.b32.xlu0 %v7259, 88
  %v7271 = vpop.permute.xlu0 %7270
  %7272 = vrot.lane.b32.xlu0 %v7252, 88
  %v7273 = vpop.permute.xlu0 %7272
  %v7274 = vsel %vm537, %v7261, %v7263
  %v7275 = vsel %vm537, %v7263, %v7265
  %v7276 = vsel %vm537, %v7265, %v7267
  %v7277 = vsel %vm537, %v7267, %v7269
  %v7278 = vsel %vm537, %v7269, %v7271
  %v7279 = vsel %vm537, %v7271, %v7273
  %7287 = vst [vmem:[#allocation3 + $0x118] sm:$0xf] %v7274
  %7288 = vst [vmem:[#allocation3 + $0x120] sm:$0xf] %v7275
  %7289 = vst [vmem:[#allocation3 + $0x128] sm:$0xf] %v7276
  %7290 = vst [vmem:[#allocation3 + $0x130] sm:$0xf] %v7277
  %7291 = vst [vmem:[#allocation3 + $0x138] sm:$0xf] %v7278
  %7292 = vst [vmem:[#allocation3 + $0x140] sm:$0xf] %v7279
  %7293 = vst.msk [vmem:[#allocation3 + $0x148] sm:$0xf] %vm90, %v7273
  %v7294 = vld [vmem:[#allocation2] sm:$0xff]
  %v7295 = vld [vmem:[#allocation2 + $0x8] sm:$0xff]
  %v7296 = vld [vmem:[#allocation2 + $0x10] sm:$0xff]
  %v7297 = vld [vmem:[#allocation2 + $0x18] sm:$0xf]
  %v7302 = vcombine.low %v7294, %v7294
  %v7303 = vcombine.low %v7295, %v7295
  %v7304 = vcombine.low %v7296, %v7296
  %v7305 = vcombine.low %v7297, %v7297
  %7306 = vrot.lane.b32.xlu0 %v7302, 87
  %v7307 = vpop.permute.xlu0 %7306
  %7308 = vrot.lane.b32.xlu0 %v7294, 87
  %v7309 = vpop.permute.xlu0 %7308
  %7310 = vrot.lane.b32.xlu0 %v7303, 87
  %v7311 = vpop.permute.xlu0 %7310
  %7312 = vrot.lane.b32.xlu0 %v7295, 87
  %v7313 = vpop.permute.xlu0 %7312
  %7314 = vrot.lane.b32.xlu0 %v7304, 87
  %v7315 = vpop.permute.xlu0 %7314
  %7316 = vrot.lane.b32.xlu0 %v7296, 87
  %v7317 = vpop.permute.xlu0 %7316
  %7318 = vrot.lane.b32.xlu0 %v7305, 87
  %v7319 = vpop.permute.xlu0 %7318
  %v7320 = vsel %vm584, %v7307, %v7309
  %v7321 = vsel %vm584, %v7309, %v7311
  %v7322 = vsel %vm584, %v7311, %v7313
  %v7323 = vsel %vm584, %v7313, %v7315
  %v7324 = vsel %vm584, %v7315, %v7317
  %v7325 = vsel %vm584, %v7317, %v7319
  %7333 = vst [vmem:[#allocation3 + $0x118] sm:$0xf0] %v7320
  %7334 = vst [vmem:[#allocation3 + $0x120] sm:$0xf0] %v7321
  %7335 = vst [vmem:[#allocation3 + $0x128] sm:$0xf0] %v7322
  %7336 = vst [vmem:[#allocation3 + $0x130] sm:$0xf0] %v7323
  %7337 = vst [vmem:[#allocation3 + $0x138] sm:$0xf0] %v7324
  %7338 = vst [vmem:[#allocation3 + $0x140] sm:$0xf0] %v7325
  %7339 = vst.msk [vmem:[#allocation3 + $0x148] sm:$0xf0] %vm138, %v7319
  %v7340 = vld [vmem:[#allocation2] sm:$0xff]
  %v7341 = vld [vmem:[#allocation2 + $0x8] sm:$0xff]
  %v7342 = vld [vmem:[#allocation2 + $0x10] sm:$0xff]
  %v7343 = vld [vmem:[#allocation2 + $0x18] sm:$0xf]
  %v7348 = vcombine.high %v7340, %v7340
  %v7349 = vcombine.high %v7341, %v7341
  %v7350 = vcombine.high %v7342, %v7342
  %7351 = vrot.lane.b32.xlu0 %v7340, 86
  %v7352 = vpop.permute.xlu0 %7351
  %7353 = vrot.lane.b32.xlu0 %v7348, 86
  %v7354 = vpop.permute.xlu0 %7353
  %7355 = vrot.lane.b32.xlu0 %v7341, 86
  %v7356 = vpop.permute.xlu0 %7355
  %7357 = vrot.lane.b32.xlu0 %v7349, 86
  %v7358 = vpop.permute.xlu0 %7357
  %7359 = vrot.lane.b32.xlu0 %v7342, 86
  %v7360 = vpop.permute.xlu0 %7359
  %7361 = vrot.lane.b32.xlu0 %v7350, 86
  %v7362 = vpop.permute.xlu0 %7361
  %7363 = vrot.lane.b32.xlu0 %v7343, 86
  %v7364 = vpop.permute.xlu0 %7363
  %v7365 = vsel %vm630, %v7352, %v7354
  %v7366 = vsel %vm630, %v7354, %v7356
  %v7367 = vsel %vm630, %v7356, %v7358
  %v7368 = vsel %vm630, %v7358, %v7360
  %v7369 = vsel %vm630, %v7360, %v7362
  %v7370 = vsel %vm630, %v7362, %v7364
  %7378 = vst [vmem:[#allocation3 + $0x150] sm:$0xf] %v7365
  %7379 = vst [vmem:[#allocation3 + $0x158] sm:$0xf] %v7366
  %7380 = vst [vmem:[#allocation3 + $0x160] sm:$0xf] %v7367
  %7381 = vst [vmem:[#allocation3 + $0x168] sm:$0xf] %v7368
  %7382 = vst [vmem:[#allocation3 + $0x170] sm:$0xf] %v7369
  %7383 = vst [vmem:[#allocation3 + $0x178] sm:$0xf] %v7370
  %7384 = vst.msk [vmem:[#allocation3 + $0x180] sm:$0xf] %vm90, %v7364
  %v7385 = vld [vmem:[#allocation2] sm:$0xff]
  %v7386 = vld [vmem:[#allocation2 + $0x8] sm:$0xff]
  %v7387 = vld [vmem:[#allocation2 + $0x10] sm:$0xff]
  %v7388 = vld [vmem:[#allocation2 + $0x18] sm:$0xf]
  %v7393 = vcombine.low %v7385, %v7385
  %v7394 = vcombine.low %v7386, %v7386
  %v7395 = vcombine.low %v7387, %v7387
  %v7396 = vcombine.low %v7388, %v7388
  %7397 = vrot.lane.b32.xlu0 %v7393, 85
  %v7398 = vpop.permute.xlu0 %7397
  %7399 = vrot.lane.b32.xlu0 %v7385, 85
  %v7400 = vpop.permute.xlu0 %7399
  %7401 = vrot.lane.b32.xlu0 %v7394, 85
  %v7402 = vpop.permute.xlu0 %7401
  %7403 = vrot.lane.b32.xlu0 %v7386, 85
  %v7404 = vpop.permute.xlu0 %7403
  %7405 = vrot.lane.b32.xlu0 %v7395, 85
  %v7406 = vpop.permute.xlu0 %7405
  %7407 = vrot.lane.b32.xlu0 %v7387, 85
  %v7408 = vpop.permute.xlu0 %7407
  %7409 = vrot.lane.b32.xlu0 %v7396, 85
  %v7410 = vpop.permute.xlu0 %7409
  %v7411 = vsel %vm677, %v7398, %v7400
  %v7412 = vsel %vm677, %v7400, %v7402
  %v7413 = vsel %vm677, %v7402, %v7404
  %v7414 = vsel %vm677, %v7404, %v7406
  %v7415 = vsel %vm677, %v7406, %v7408
  %v7416 = vsel %vm677, %v7408, %v7410
  %7424 = vst [vmem:[#allocation3 + $0x150] sm:$0xf0] %v7411
  %7425 = vst [vmem:[#allocation3 + $0x158] sm:$0xf0] %v7412
  %7426 = vst [vmem:[#allocation3 + $0x160] sm:$0xf0] %v7413
  %7427 = vst [vmem:[#allocation3 + $0x168] sm:$0xf0] %v7414
  %7428 = vst [vmem:[#allocation3 + $0x170] sm:$0xf0] %v7415
  %7429 = vst [vmem:[#allocation3 + $0x178] sm:$0xf0] %v7416
  %7430 = vst.msk [vmem:[#allocation3 + $0x180] sm:$0xf0] %vm138, %v7410
  %v7431 = vld [vmem:[#allocation2] sm:$0xff]
  %v7432 = vld [vmem:[#allocation2 + $0x8] sm:$0xff]
  %v7433 = vld [vmem:[#allocation2 + $0x10] sm:$0xff]
  %v7434 = vld [vmem:[#allocation2 + $0x18] sm:$0xf]
  %v7439 = vcombine.high %v7431, %v7431
  %v7440 = vcombine.high %v7432, %v7432
  %v7441 = vcombine.high %v7433, %v7433
  %7442 = vrot.lane.b32.xlu0 %v7431, 84
  %v7443 = vpop.permute.xlu0 %7442
  %7444 = vrot.lane.b32.xlu0 %v7439, 84
  %v7445 = vpop.permute.xlu0 %7444
  %7446 = vrot.lane.b32.xlu0 %v7432, 84
  %v7447 = vpop.permute.xlu0 %7446
  %7448 = vrot.lane.b32.xlu0 %v7440, 84
  %v7449 = vpop.permute.xlu0 %7448
  %7450 = vrot.lane.b32.xlu0 %v7433, 84
  %v7451 = vpop.permute.xlu0 %7450
  %7452 = vrot.lane.b32.xlu0 %v7441, 84
  %v7453 = vpop.permute.xlu0 %7452
  %7454 = vrot.lane.b32.xlu0 %v7434, 84
  %v7455 = vpop.permute.xlu0 %7454
  %v7456 = vsel %vm723, %v7443, %v7445
  %v7457 = vsel %vm723, %v7445, %v7447
  %v7458 = vsel %vm723, %v7447, %v7449
  %v7459 = vsel %vm723, %v7449, %v7451
  %v7460 = vsel %vm723, %v7451, %v7453
  %v7461 = vsel %vm723, %v7453, %v7455
  %7469 = vst [vmem:[#allocation3 + $0x188] sm:$0xf] %v7456
  %7470 = vst [vmem:[#allocation3 + $0x190] sm:$0xf] %v7457
  %7471 = vst [vmem:[#allocation3 + $0x198] sm:$0xf] %v7458
  %7472 = vst [vmem:[#allocation3 + $0x1a0] sm:$0xf] %v7459
  %7473 = vst [vmem:[#allocation3 + $0x1a8] sm:$0xf] %v7460
  %7474 = vst [vmem:[#allocation3 + $0x1b0] sm:$0xf] %v7461
  %7475 = vst.msk [vmem:[#allocation3 + $0x1b8] sm:$0xf] %vm90, %v7455
  %v7476 = vld [vmem:[#allocation2] sm:$0xff]
  %v7477 = vld [vmem:[#allocation2 + $0x8] sm:$0xff]
  %v7478 = vld [vmem:[#allocation2 + $0x10] sm:$0xff]
  %v7479 = vld [vmem:[#allocation2 + $0x18] sm:$0xf]
  %v7484 = vcombine.low %v7476, %v7476
  %v7485 = vcombine.low %v7477, %v7477
  %v7486 = vcombine.low %v7478, %v7478
  %v7487 = vcombine.low %v7479, %v7479
  %7488 = vrot.lane.b32.xlu0 %v7484, 68
  %v7489 = vpop.permute.xlu0 %7488
  %7490 = vrot.lane.b32.xlu0 %v7476, 68
  %v7491 = vpop.permute.xlu0 %7490
  %7492 = vrot.lane.b32.xlu0 %v7485, 68
  %v7493 = vpop.permute.xlu0 %7492
  %7494 = vrot.lane.b32.xlu0 %v7477, 68
  %v7495 = vpop.permute.xlu0 %7494
  %7496 = vrot.lane.b32.xlu0 %v7486, 68
  %v7497 = vpop.permute.xlu0 %7496
  %7498 = vrot.lane.b32.xlu0 %v7478, 68
  %v7499 = vpop.permute.xlu0 %7498
  %7500 = vrot.lane.b32.xlu0 %v7487, 68
  %v7501 = vpop.permute.xlu0 %7500
  %v7502 = vsel %vm770, %v7489, %v7491
  %v7503 = vsel %vm770, %v7491, %v7493
  %v7504 = vsel %vm770, %v7493, %v7495
  %v7505 = vsel %vm770, %v7495, %v7497
  %v7506 = vsel %vm770, %v7497, %v7499
  %v7507 = vsel %vm770, %v7499, %v7501
  %7515 = vst [vmem:[#allocation3 + $0x188] sm:$0xf0] %v7502
  %7516 = vst [vmem:[#allocation3 + $0x190] sm:$0xf0] %v7503
  %7517 = vst [vmem:[#allocation3 + $0x198] sm:$0xf0] %v7504
  %7518 = vst [vmem:[#allocation3 + $0x1a0] sm:$0xf0] %v7505
  %7519 = vst [vmem:[#allocation3 + $0x1a8] sm:$0xf0] %v7506
  %7520 = vst [vmem:[#allocation3 + $0x1b0] sm:$0xf0] %v7507
  %7521 = vst.msk [vmem:[#allocation3 + $0x1b8] sm:$0xf0] %vm138, %v7501
  %v7522 = vld [vmem:[#allocation2] sm:$0xff]
  %v7523 = vld [vmem:[#allocation2 + $0x8] sm:$0xff]
  %v7524 = vld [vmem:[#allocation2 + $0x10] sm:$0xff]
  %v7525 = vld [vmem:[#allocation2 + $0x18] sm:$0xf]
  %v7530 = vcombine.high %v7522, %v7522
  %v7531 = vcombine.high %v7523, %v7523
  %v7532 = vcombine.high %v7524, %v7524
  %7533 = vrot.lane.b32.xlu0 %v7522, 67
  %v7534 = vpop.permute.xlu0 %7533
  %7535 = vrot.lane.b32.xlu0 %v7530, 67
  %v7536 = vpop.permute.xlu0 %7535
  %7537 = vrot.lane.b32.xlu0 %v7523, 67
  %v7538 = vpop.permute.xlu0 %7537
  %7539 = vrot.lane.b32.xlu0 %v7531, 67
  %v7540 = vpop.permute.xlu0 %7539
  %7541 = vrot.lane.b32.xlu0 %v7524, 67
  %v7542 = vpop.permute.xlu0 %7541
  %7543 = vrot.lane.b32.xlu0 %v7532, 67
  %v7544 = vpop.permute.xlu0 %7543
  %7545 = vrot.lane.b32.xlu0 %v7525, 67
  %v7546 = vpop.permute.xlu0 %7545
  %v7547 = vsel %vm816, %v7534, %v7536
  %v7548 = vsel %vm816, %v7536, %v7538
  %v7549 = vsel %vm816, %v7538, %v7540
  %v7550 = vsel %vm816, %v7540, %v7542
  %v7551 = vsel %vm816, %v7542, %v7544
  %v7552 = vsel %vm816, %v7544, %v7546
  %7560 = vst [vmem:[#allocation3 + $0x1c0] sm:$0xf] %v7547
  %7561 = vst [vmem:[#allocation3 + $0x1c8] sm:$0xf] %v7548
  %7562 = vst [vmem:[#allocation3 + $0x1d0] sm:$0xf] %v7549
  %7563 = vst [vmem:[#allocation3 + $0x1d8] sm:$0xf] %v7550
  %7564 = vst [vmem:[#allocation3 + $0x1e0] sm:$0xf] %v7551
  %7565 = vst [vmem:[#allocation3 + $0x1e8] sm:$0xf] %v7552
  %7566 = vst.msk [vmem:[#allocation3 + $0x1f0] sm:$0xf] %vm90, %v7546
  %v7567 = vld [vmem:[#allocation2] sm:$0xff]
  %v7568 = vld [vmem:[#allocation2 + $0x8] sm:$0xff]
  %v7569 = vld [vmem:[#allocation2 + $0x10] sm:$0xff]
  %v7570 = vld [vmem:[#allocation2 + $0x18] sm:$0xf]
  %v7575 = vcombine.low %v7567, %v7567
  %v7576 = vcombine.low %v7568, %v7568
  %v7577 = vcombine.low %v7569, %v7569
  %v7578 = vcombine.low %v7570, %v7570
  %7579 = vrot.lane.b32.xlu0 %v7575, 66
  %v7580 = vpop.permute.xlu0 %7579
  %7581 = vrot.lane.b32.xlu0 %v7567, 66
  %v7582 = vpop.permute.xlu0 %7581
  %7583 = vrot.lane.b32.xlu0 %v7576, 66
  %v7584 = vpop.permute.xlu0 %7583
  %7585 = vrot.lane.b32.xlu0 %v7568, 66
  %v7586 = vpop.permute.xlu0 %7585
  %7587 = vrot.lane.b32.xlu0 %v7577, 66
  %v7588 = vpop.permute.xlu0 %7587
  %7589 = vrot.lane.b32.xlu0 %v7569, 66
  %v7590 = vpop.permute.xlu0 %7589
  %7591 = vrot.lane.b32.xlu0 %v7578, 66
  %v7592 = vpop.permute.xlu0 %7591
  %v7593 = vsel %vm863, %v7580, %v7582
  %v7594 = vsel %vm863, %v7582, %v7584
  %v7595 = vsel %vm863, %v7584, %v7586
  %v7596 = vsel %vm863, %v7586, %v7588
  %v7597 = vsel %vm863, %v7588, %v7590
  %v7598 = vsel %vm863, %v7590, %v7592
  %7606 = vst [vmem:[#allocation3 + $0x1c0] sm:$0xf0] %v7593
  %7607 = vst [vmem:[#allocation3 + $0x1c8] sm:$0xf0] %v7594
  %7608 = vst [vmem:[#allocation3 + $0x1d0] sm:$0xf0] %v7595
  %7609 = vst [vmem:[#allocation3 + $0x1d8] sm:$0xf0] %v7596
  %7610 = vst [vmem:[#allocation3 + $0x1e0] sm:$0xf0] %v7597
  %7611 = vst [vmem:[#allocation3 + $0x1e8] sm:$0xf0] %v7598
  %7612 = vst.msk [vmem:[#allocation3 + $0x1f0] sm:$0xf0] %vm138, %v7592
  %v7613 = vld [vmem:[#allocation2] sm:$0xff]
  %v7614 = vld [vmem:[#allocation2 + $0x8] sm:$0xff]
  %v7615 = vld [vmem:[#allocation2 + $0x10] sm:$0xff]
  %v7616 = vld [vmem:[#allocation2 + $0x18] sm:$0xf]
  %v7621 = vcombine.high %v7613, %v7613
  %v7622 = vcombine.high %v7614, %v7614
  %v7623 = vcombine.high %v7615, %v7615
  %7624 = vrot.lane.b32.xlu0 %v7613, 65
  %v7625 = vpop.permute.xlu0 %7624
  %7626 = vrot.lane.b32.xlu0 %v7621, 65
  %v7627 = vpop.permute.xlu0 %7626
  %7628 = vrot.lane.b32.xlu0 %v7614, 65
  %v7629 = vpop.permute.xlu0 %7628
  %7630 = vrot.lane.b32.xlu0 %v7622, 65
  %v7631 = vpop.permute.xlu0 %7630
  %7632 = vrot.lane.b32.xlu0 %v7615, 65
  %v7633 = vpop.permute.xlu0 %7632
  %7634 = vrot.lane.b32.xlu0 %v7623, 65
  %v7635 = vpop.permute.xlu0 %7634
  %7636 = vrot.lane.b32.xlu0 %v7616, 65
  %v7637 = vpop.permute.xlu0 %7636
  %v7638 = vsel %vm909, %v7625, %v7627
  %v7639 = vsel %vm909, %v7627, %v7629
  %v7640 = vsel %vm909, %v7629, %v7631
  %v7641 = vsel %vm909, %v7631, %v7633
  %v7642 = vsel %vm909, %v7633, %v7635
  %v7643 = vsel %vm909, %v7635, %v7637
  %7651 = vst [vmem:[#allocation3 + $0x1f8] sm:$0xf] %v7638
  %7652 = vst [vmem:[#allocation3 + $0x200] sm:$0xf] %v7639
  %7653 = vst [vmem:[#allocation3 + $0x208] sm:$0xf] %v7640
  %7654 = vst [vmem:[#allocation3 + $0x210] sm:$0xf] %v7641
  %7655 = vst [vmem:[#allocation3 + $0x218] sm:$0xf] %v7642
  %7656 = vst [vmem:[#allocation3 + $0x220] sm:$0xf] %v7643
  %7657 = vst.msk [vmem:[#allocation3 + $0x228] sm:$0xf] %vm90, %v7637
  %v7658 = vld [vmem:[#allocation2] sm:$0xff]
  %v7659 = vld [vmem:[#allocation2 + $0x8] sm:$0xff]
  %v7660 = vld [vmem:[#allocation2 + $0x10] sm:$0xff]
  %v7661 = vld [vmem:[#allocation2 + $0x18] sm:$0xf]
  %v7666 = vcombine.low %v7658, %v7658
  %v7667 = vcombine.low %v7659, %v7659
  %v7668 = vcombine.low %v7660, %v7660
  %v7669 = vcombine.low %v7661, %v7661
  %7670 = vrot.lane.b32.xlu0 %v7666, 64
  %v7671 = vpop.permute.xlu0 %7670
  %7672 = vrot.lane.b32.xlu0 %v7658, 64
  %v7673 = vpop.permute.xlu0 %7672
  %7674 = vrot.lane.b32.xlu0 %v7667, 64
  %v7675 = vpop.permute.xlu0 %7674
  %7676 = vrot.lane.b32.xlu0 %v7659, 64
  %v7677 = vpop.permute.xlu0 %7676
  %7678 = vrot.lane.b32.xlu0 %v7668, 64
  %v7679 = vpop.permute.xlu0 %7678
  %7680 = vrot.lane.b32.xlu0 %v7660, 64
  %v7681 = vpop.permute.xlu0 %7680
  %7682 = vrot.lane.b32.xlu0 %v7669, 64
  %v7683 = vpop.permute.xlu0 %7682
  %v7684 = vsel %vm956, %v7671, %v7673
  %v7685 = vsel %vm956, %v7673, %v7675
  %v7686 = vsel %vm956, %v7675, %v7677
  %v7687 = vsel %vm956, %v7677, %v7679
  %v7688 = vsel %vm956, %v7679, %v7681
  %v7689 = vsel %vm956, %v7681, %v7683
  %7697 = vst [vmem:[#allocation3 + $0x1f8] sm:$0xf0] %v7684
  %7698 = vst [vmem:[#allocation3 + $0x200] sm:$0xf0] %v7685
  %7699 = vst [vmem:[#allocation3 + $0x208] sm:$0xf0] %v7686
  %7700 = vst [vmem:[#allocation3 + $0x210] sm:$0xf0] %v7687
  %7701 = vst [vmem:[#allocation3 + $0x218] sm:$0xf0] %v7688
  %7702 = vst [vmem:[#allocation3 + $0x220] sm:$0xf0] %v7689
  %7703 = vst.msk [vmem:[#allocation3 + $0x228] sm:$0xf0] %vm138, %v7683
  %v7704 = vld [vmem:[#allocation2] sm:$0xff]
  %v7705 = vld [vmem:[#allocation2 + $0x8] sm:$0xff]
  %v7706 = vld [vmem:[#allocation2 + $0x10] sm:$0xff]
  %v7707 = vld [vmem:[#allocation2 + $0x18] sm:$0xf]
  %v7712 = vcombine.high %v7704, %v7704
  %v7713 = vcombine.high %v7705, %v7705
  %v7714 = vcombine.high %v7706, %v7706
  %7715 = vrot.lane.b32.xlu0 %v7704, 48
  %v7716 = vpop.permute.xlu0 %7715
  %7717 = vrot.lane.b32.xlu0 %v7712, 48
  %v7718 = vpop.permute.xlu0 %7717
  %7719 = vrot.lane.b32.xlu0 %v7705, 48
  %v7720 = vpop.permute.xlu0 %7719
  %7721 = vrot.lane.b32.xlu0 %v7713, 48
  %v7722 = vpop.permute.xlu0 %7721
  %7723 = vrot.lane.b32.xlu0 %v7706, 48
  %v7724 = vpop.permute.xlu0 %7723
  %7725 = vrot.lane.b32.xlu0 %v7714, 48
  %v7726 = vpop.permute.xlu0 %7725
  %7727 = vrot.lane.b32.xlu0 %v7707, 48
  %v7728 = vpop.permute.xlu0 %7727
  %v7729 = vsel %vm1002, %v7716, %v7718
  %v7730 = vsel %vm1002, %v7718, %v7720
  %v7731 = vsel %vm1002, %v7720, %v7722
  %v7732 = vsel %vm1002, %v7722, %v7724
  %v7733 = vsel %vm1002, %v7724, %v7726
  %v7734 = vsel %vm1002, %v7726, %v7728
  %7742 = vst [vmem:[#allocation3 + $0x230] sm:$0xf] %v7729
  %7743 = vst [vmem:[#allocation3 + $0x238] sm:$0xf] %v7730
  %7744 = vst [vmem:[#allocation3 + $0x240] sm:$0xf] %v7731
  %7745 = vst [vmem:[#allocation3 + $0x248] sm:$0xf] %v7732
  %7746 = vst [vmem:[#allocation3 + $0x250] sm:$0xf] %v7733
  %7747 = vst [vmem:[#allocation3 + $0x258] sm:$0xf] %v7734
  %7748 = vst.msk [vmem:[#allocation3 + $0x260] sm:$0xf] %vm90, %v7728
  %v7749 = vld [vmem:[#allocation2] sm:$0xff]
  %v7750 = vld [vmem:[#allocation2 + $0x8] sm:$0xff]
  %v7751 = vld [vmem:[#allocation2 + $0x10] sm:$0xff]
  %v7752 = vld [vmem:[#allocation2 + $0x18] sm:$0xf]
  %v7757 = vcombine.low %v7749, %v7749
  %v7758 = vcombine.low %v7750, %v7750
  %v7759 = vcombine.low %v7751, %v7751
  %v7760 = vcombine.low %v7752, %v7752
  %7761 = vrot.lane.b32.xlu0 %v7757, 47
  %v7762 = vpop.permute.xlu0 %7761
  %7763 = vrot.lane.b32.xlu0 %v7749, 47
  %v7764 = vpop.permute.xlu0 %7763
  %7765 = vrot.lane.b32.xlu0 %v7758, 47
  %v7766 = vpop.permute.xlu0 %7765
  %7767 = vrot.lane.b32.xlu0 %v7750, 47
  %v7768 = vpop.permute.xlu0 %7767
  %7769 = vrot.lane.b32.xlu0 %v7759, 47
  %v7770 = vpop.permute.xlu0 %7769
  %7771 = vrot.lane.b32.xlu0 %v7751, 47
  %v7772 = vpop.permute.xlu0 %7771
  %7773 = vrot.lane.b32.xlu0 %v7760, 47
  %v7774 = vpop.permute.xlu0 %7773
  %v7775 = vsel %vm1049, %v7762, %v7764
  %v7776 = vsel %vm1049, %v7764, %v7766
  %v7777 = vsel %vm1049, %v7766, %v7768
  %v7778 = vsel %vm1049, %v7768, %v7770
  %v7779 = vsel %vm1049, %v7770, %v7772
  %v7780 = vsel %vm1049, %v7772, %v7774
  %7788 = vst [vmem:[#allocation3 + $0x230] sm:$0xf0] %v7775
  %7789 = vst [vmem:[#allocation3 + $0x238] sm:$0xf0] %v7776
  %7790 = vst [vmem:[#allocation3 + $0x240] sm:$0xf0] %v7777
  %7791 = vst [vmem:[#allocation3 + $0x248] sm:$0xf0] %v7778
  %7792 = vst [vmem:[#allocation3 + $0x250] sm:$0xf0] %v7779
  %7793 = vst [vmem:[#allocation3 + $0x258] sm:$0xf0] %v7780
  %7794 = vst.msk [vmem:[#allocation3 + $0x260] sm:$0xf0] %vm138, %v7774
  %v7795 = vld [vmem:[#allocation2] sm:$0xff]
  %v7796 = vld [vmem:[#allocation2 + $0x8] sm:$0xff]
  %v7797 = vld [vmem:[#allocation2 + $0x10] sm:$0xff]
  %v7798 = vld [vmem:[#allocation2 + $0x18] sm:$0xf]
  %v7803 = vcombine.high %v7795, %v7795
  %v7804 = vcombine.high %v7796, %v7796
  %v7805 = vcombine.high %v7797, %v7797
  %7806 = vrot.lane.b32.xlu0 %v7795, 46
  %v7807 = vpop.permute.xlu0 %7806
  %7808 = vrot.lane.b32.xlu0 %v7803, 46
  %v7809 = vpop.permute.xlu0 %7808
  %7810 = vrot.lane.b32.xlu0 %v7796, 46
  %v7811 = vpop.permute.xlu0 %7810
  %7812 = vrot.lane.b32.xlu0 %v7804, 46
  %v7813 = vpop.permute.xlu0 %7812
  %7814 = vrot.lane.b32.xlu0 %v7797, 46
  %v7815 = vpop.permute.xlu0 %7814
  %7816 = vrot.lane.b32.xlu0 %v7805, 46
  %v7817 = vpop.permute.xlu0 %7816
  %7818 = vrot.lane.b32.xlu0 %v7798, 46
  %v7819 = vpop.permute.xlu0 %7818
  %v7820 = vsel %vm1095, %v7807, %v7809
  %v7821 = vsel %vm1095, %v7809, %v7811
  %v7822 = vsel %vm1095, %v7811, %v7813
  %v7823 = vsel %vm1095, %v7813, %v7815
  %v7824 = vsel %vm1095, %v7815, %v7817
  %v7825 = vsel %vm1095, %v7817, %v7819
  %7833 = vst [vmem:[#allocation3 + $0x268] sm:$0xf] %v7820
  %7834 = vst [vmem:[#allocation3 + $0x270] sm:$0xf] %v7821
  %7835 = vst [vmem:[#allocation3 + $0x278] sm:$0xf] %v7822
  %7836 = vst [vmem:[#allocation3 + $0x280] sm:$0xf] %v7823
  %7837 = vst [vmem:[#allocation3 + $0x288] sm:$0xf] %v7824
  %7838 = vst [vmem:[#allocation3 + $0x290] sm:$0xf] %v7825
  %7839 = vst.msk [vmem:[#allocation3 + $0x298] sm:$0xf] %vm90, %v7819
  %v7840 = vld [vmem:[#allocation2] sm:$0xff]
  %v7841 = vld [vmem:[#allocation2 + $0x8] sm:$0xff]
  %v7842 = vld [vmem:[#allocation2 + $0x10] sm:$0xff]
  %v7843 = vld [vmem:[#allocation2 + $0x18] sm:$0xf]
  %v7848 = vcombine.low %v7840, %v7840
  %v7849 = vcombine.low %v7841, %v7841
  %v7850 = vcombine.low %v7842, %v7842
  %v7851 = vcombine.low %v7843, %v7843
  %7852 = vrot.lane.b32.xlu0 %v7848, 45
  %v7853 = vpop.permute.xlu0 %7852
  %7854 = vrot.lane.b32.xlu0 %v7840, 45
  %v7855 = vpop.permute.xlu0 %7854
  %7856 = vrot.lane.b32.xlu0 %v7849, 45
  %v7857 = vpop.permute.xlu0 %7856
  %7858 = vrot.lane.b32.xlu0 %v7841, 45
  %v7859 = vpop.permute.xlu0 %7858
  %7860 = vrot.lane.b32.xlu0 %v7850, 45
  %v7861 = vpop.permute.xlu0 %7860
  %7862 = vrot.lane.b32.xlu0 %v7842, 45
  %v7863 = vpop.permute.xlu0 %7862
  %7864 = vrot.lane.b32.xlu0 %v7851, 45
  %v7865 = vpop.permute.xlu0 %7864
  %v7866 = vsel %vm1142, %v7853, %v7855
  %v7867 = vsel %vm1142, %v7855, %v7857
  %v7868 = vsel %vm1142, %v7857, %v7859
  %v7869 = vsel %vm1142, %v7859, %v7861
  %v7870 = vsel %vm1142, %v7861, %v7863
  %v7871 = vsel %vm1142, %v7863, %v7865
  %7879 = vst [vmem:[#allocation3 + $0x268] sm:$0xf0] %v7866
  %7880 = vst [vmem:[#allocation3 + $0x270] sm:$0xf0] %v7867
  %7881 = vst [vmem:[#allocation3 + $0x278] sm:$0xf0] %v7868
  %7882 = vst [vmem:[#allocation3 + $0x280] sm:$0xf0] %v7869
  %7883 = vst [vmem:[#allocation3 + $0x288] sm:$0xf0] %v7870
  %7884 = vst [vmem:[#allocation3 + $0x290] sm:$0xf0] %v7871
  %7885 = vst.msk [vmem:[#allocation3 + $0x298] sm:$0xf0] %vm138, %v7865
  %v7886 = vld [vmem:[#allocation2] sm:$0xff]
  %v7887 = vld [vmem:[#allocation2 + $0x8] sm:$0xff]
  %v7888 = vld [vmem:[#allocation2 + $0x10] sm:$0xff]
  %v7889 = vld [vmem:[#allocation2 + $0x18] sm:$0xf]
  %v7894 = vcombine.high %v7886, %v7886
  %v7895 = vcombine.high %v7887, %v7887
  %v7896 = vcombine.high %v7888, %v7888
  %7897 = vrot.lane.b32.xlu0 %v7886, 44
  %v7898 = vpop.permute.xlu0 %7897
  %7899 = vrot.lane.b32.xlu0 %v7894, 44
  %v7900 = vpop.permute.xlu0 %7899
  %7901 = vrot.lane.b32.xlu0 %v7887, 44
  %v7902 = vpop.permute.xlu0 %7901
  %7903 = vrot.lane.b32.xlu0 %v7895, 44
  %v7904 = vpop.permute.xlu0 %7903
  %7905 = vrot.lane.b32.xlu0 %v7888, 44
  %v7906 = vpop.permute.xlu0 %7905
  %7907 = vrot.lane.b32.xlu0 %v7896, 44
  %v7908 = vpop.permute.xlu0 %7907
  %7909 = vrot.lane.b32.xlu0 %v7889, 44
  %v7910 = vpop.permute.xlu0 %7909
  %v7911 = vsel %vm1188, %v7898, %v7900
  %v7912 = vsel %vm1188, %v7900, %v7902
  %v7913 = vsel %vm1188, %v7902, %v7904
  %v7914 = vsel %vm1188, %v7904, %v7906
  %v7915 = vsel %vm1188, %v7906, %v7908
  %v7916 = vsel %vm1188, %v7908, %v7910
  %7924 = vst [vmem:[#allocation3 + $0x2a0] sm:$0xf] %v7911
  %7925 = vst [vmem:[#allocation3 + $0x2a8] sm:$0xf] %v7912
  %7926 = vst [vmem:[#allocation3 + $0x2b0] sm:$0xf] %v7913
  %7927 = vst [vmem:[#allocation3 + $0x2b8] sm:$0xf] %v7914
  %7928 = vst [vmem:[#allocation3 + $0x2c0] sm:$0xf] %v7915
  %7929 = vst [vmem:[#allocation3 + $0x2c8] sm:$0xf] %v7916
  %7930 = vst.msk [vmem:[#allocation3 + $0x2d0] sm:$0xf] %vm90, %v7910
  %v7931 = vld [vmem:[%s5] sm:$0x3]
  %v7932 = vld [vmem:[#allocation3] sm:$0xff]
  %v7933 = vld [vmem:[#allocation3 + $0x8] sm:$0xff]
  %v7934 = vld [vmem:[#allocation3 + $0x10] sm:$0xff]
  %v7935 = vld [vmem:[#allocation3 + $0x18] sm:$0xff]
  %v7936 = vld [vmem:[#allocation3 + $0x20] sm:$0xff]
  %v7937 = vld [vmem:[#allocation3 + $0x28] sm:$0xff]
  %v7938 = vld [vmem:[#allocation3 + $0x30] sm:$0xff]
  %v7939 = vld [vmem:[#allocation3 + $0x38] sm:$0xff]
  %v7940 = vld [vmem:[#allocation3 + $0x40] sm:$0xff]
  %v7941 = vld [vmem:[#allocation3 + $0x48] sm:$0xff]
  %v7942 = vld [vmem:[#allocation3 + $0x50] sm:$0xff]
  %v7943 = vld [vmem:[#allocation3 + $0x58] sm:$0xff]
  %v7944 = vld [vmem:[#allocation3 + $0x60] sm:$0xff]
  %v7945 = vld [vmem:[#allocation3 + $0x68] sm:$0xff]
  %v7946 = vld [vmem:[#allocation3 + $0x70] sm:$0xff]
  %v7947 = vld [vmem:[#allocation3 + $0x78] sm:$0xff]
  %v7948 = vld [vmem:[#allocation3 + $0x80] sm:$0xff]
  %v7949 = vld [vmem:[#allocation3 + $0x88] sm:$0xff]
  %v7950 = vld [vmem:[#allocation3 + $0x90] sm:$0xff]
  %v7951 = vld [vmem:[#allocation3 + $0x98] sm:$0xff]
  %v7952 = vld [vmem:[#allocation3 + $0xa0] sm:$0xff]
  %v7953 = vld [vmem:[#allocation3 + $0xa8] sm:$0xff]
  %v7954 = vld [vmem:[#allocation3 + $0xb0] sm:$0xff]
  %v7955 = vld [vmem:[#allocation3 + $0xb8] sm:$0xff]
  %v7956 = vld [vmem:[#allocation3 + $0xc0] sm:$0xff]
  %v7957 = vld [vmem:[#allocation3 + $0xc8] sm:$0xff]
  %v7958 = vld [vmem:[#allocation3 + $0xd0] sm:$0xff]
  %v7959 = vld [vmem:[#allocation3 + $0xd8] sm:$0xff]
  %v7960 = vld [vmem:[#allocation3 + $0xe0] sm:$0xff]
  %v7961 = vld [vmem:[#allocation3 + $0xe8] sm:$0xff]
  %v7962 = vld [vmem:[#allocation3 + $0xf0] sm:$0xff]
  %v7963 = vld [vmem:[#allocation3 + $0xf8] sm:$0xff]
  %v7964 = vld [vmem:[#allocation3 + $0x100] sm:$0xff]
  %v7965 = vld [vmem:[#allocation3 + $0x108] sm:$0xff]
  %v7966 = vld [vmem:[#allocation3 + $0x110] sm:$0xff]
  %v7967 = vld [vmem:[#allocation3 + $0x118] sm:$0xff]
  %v7968 = vld [vmem:[#allocation3 + $0x120] sm:$0xff]
  %v7969 = vld [vmem:[#allocation3 + $0x128] sm:$0xff]
  %v7970 = vld [vmem:[#allocation3 + $0x130] sm:$0xff]
  %v7971 = vld [vmem:[#allocation3 + $0x138] sm:$0xff]
  %v7972 = vld [vmem:[#allocation3 + $0x140] sm:$0xff]
  %v7973 = vld [vmem:[#allocation3 + $0x148] sm:$0xff]
  %v7974 = vld [vmem:[#allocation3 + $0x150] sm:$0xff]
  %v7975 = vld [vmem:[#allocation3 + $0x158] sm:$0xff]
  %v7976 = vld [vmem:[#allocation3 + $0x160] sm:$0xff]
  %v7977 = vld [vmem:[#allocation3 + $0x168] sm:$0xff]
  %v7978 = vld [vmem:[#allocation3 + $0x170] sm:$0xff]
  %v7979 = vld [vmem:[#allocation3 + $0x178] sm:$0xff]
  %v7980 = vld [vmem:[#allocation3 + $0x180] sm:$0xff]
  %v7981 = vld [vmem:[#allocation3 + $0x188] sm:$0xff]
  %v7982 = vld [vmem:[#allocation3 + $0x190] sm:$0xff]
  %v7983 = vld [vmem:[#allocation3 + $0x198] sm:$0xff]
  %v7984 = vld [vmem:[#allocation3 + $0x1a0] sm:$0xff]
  %v7985 = vld [vmem:[#allocation3 + $0x1a8] sm:$0xff]
  %v7986 = vld [vmem:[#allocation3 + $0x1b0] sm:$0xff]
  %v7987 = vld [vmem:[#allocation3 + $0x1b8] sm:$0xff]
  %v7988 = vld [vmem:[#allocation3 + $0x1c0] sm:$0xff]
  %v7989 = vld [vmem:[#allocation3 + $0x1c8] sm:$0xff]
  %v7990 = vld [vmem:[#allocation3 + $0x1d0] sm:$0xff]
  %v7991 = vld [vmem:[#allocation3 + $0x1d8] sm:$0xff]
  %v7992 = vld [vmem:[#allocation3 + $0x1e0] sm:$0xff]
  %v7993 = vld [vmem:[#allocation3 + $0x1e8] sm:$0xff]
  %v7994 = vld [vmem:[#allocation3 + $0x1f0] sm:$0xff]
  %v7995 = vld [vmem:[#allocation3 + $0x1f8] sm:$0xff]
  %v7996 = vld [vmem:[#allocation3 + $0x200] sm:$0xff]
  %v7997 = vld [vmem:[#allocation3 + $0x208] sm:$0xff]
  %v7998 = vld [vmem:[#allocation3 + $0x210] sm:$0xff]
  %v7999 = vld [vmem:[#allocation3 + $0x218] sm:$0xff]
  %v8000 = vld [vmem:[#allocation3 + $0x220] sm:$0xff]
  %v8001 = vld [vmem:[#allocation3 + $0x228] sm:$0xff]
  %v8002 = vld [vmem:[#allocation3 + $0x230] sm:$0xff]
  %v8003 = vld [vmem:[#allocation3 + $0x238] sm:$0xff]
  %v8004 = vld [vmem:[#allocation3 + $0x240] sm:$0xff]
  %v8005 = vld [vmem:[#allocation3 + $0x248] sm:$0xff]
  %v8006 = vld [vmem:[#allocation3 + $0x250] sm:$0xff]
  %v8007 = vld [vmem:[#allocation3 + $0x258] sm:$0xff]
  %v8008 = vld [vmem:[#allocation3 + $0x260] sm:$0xff]
  %v8009 = vld [vmem:[#allocation3 + $0x268] sm:$0xff]
  %v8010 = vld [vmem:[#allocation3 + $0x270] sm:$0xff]
  %v8011 = vld [vmem:[#allocation3 + $0x278] sm:$0xff]
  %v8012 = vld [vmem:[#allocation3 + $0x280] sm:$0xff]
  %v8013 = vld [vmem:[#allocation3 + $0x288] sm:$0xff]
  %v8014 = vld [vmem:[#allocation3 + $0x290] sm:$0xff]
  %v8015 = vld [vmem:[#allocation3 + $0x298] sm:$0xff]
  %v8016 = vld [vmem:[#allocation3 + $0x2a0] sm:$0xf]
  %v8017 = vld [vmem:[#allocation3 + $0x2a8] sm:$0xf]
  %v8018 = vld [vmem:[#allocation3 + $0x2b0] sm:$0xf]
  %v8019 = vld [vmem:[#allocation3 + $0x2b8] sm:$0xf]
  %v8020 = vld [vmem:[#allocation3 + $0x2c0] sm:$0xf]
  %v8021 = vld [vmem:[#allocation3 + $0x2c8] sm:$0xf]
  %v8022 = vld [vmem:[#allocation3 + $0x2d0] sm:$0xf]
  %v8023 = vld [vmem:[%s6] sm:$0x3]
  %8025 = vset.pattern.permute.xlu0 0
  %8026 = vperm.xlu0 %8025, %v8023
  %v8027 = vpop.permute.xlu0 %8026
  %v8030 = vsel %vm1301, %v7931, 0
  %v8033 = vsel %vm53, %v8016, 0
  %v8036 = vsel %vm53, %v8017, 0
  %v8039 = vsel %vm53, %v8018, 0
  %v8042 = vsel %vm53, %v8019, 0
  %v8045 = vsel %vm53, %v8020, 0
  %v8048 = vsel %vm53, %v8021, 0
  %v8051 = vsel %vm53, %v8022, 0
  %8053 = vmatprep.subr.mxu0 %v7933
  %8054 = vmatpush1.msra.mxu0 %v7932
  %8055 = vmatprep.subr.mxu0 %v7940
  %8056 = vmatpush1.msra.mxu0 %v7939
  %8057 = vmatprep.subr.mxu0 %v7947
  %8058 = vmatpush1.msra.mxu0 %v7946
  %8059 = vmatprep.subr.mxu0 %v7954
  %8060 = vmatpush1.msra.mxu0 %v7953
  %8061 = vmatprep.subr.mxu0 %v7961
  %8062 = vmatpush1.msra.mxu0 %v7960
  %8063 = vmatprep.subr.mxu0 %v7968
  %8064 = vmatpush1.msra.mxu0 %v7967
  %8065 = vmatprep.subr.mxu0 %v7975
  %8066 = vmatpush1.msra.mxu0 %v7974
  %8067 = vmatprep.subr.mxu0 %v7982
  %8068 = vmatpush1.msra.mxu0 %v7981
  %8069 = vmatprep.subr.mxu0 %v7989
  %8070 = vmatpush1.msra.mxu0 %v7988
  %8071 = vmatprep.subr.mxu0 %v7996
  %8072 = vmatpush1.msra.mxu0 %v7995
  %8073 = vmatprep.subr.mxu0 %v8003
  %8074 = vmatpush1.msra.mxu0 %v8002
  %8075 = vmatprep.subr.mxu0 %v8010
  %8076 = vmatpush1.msra.mxu0 %v8009
  %8077 = vmatprep.subr.mxu0 %v8036
  %8078 = vmatpush1.msra.mxu0 %v8033
  %8079 = vmatprep.subr.mxu0 0.0
  %8080 = vmatpush1.msra.mxu0 0.0
  %8081 = vmatprep.subr.mxu0 0.0
  %8082 = vmatpush1.msra.mxu0 0.0
  %8083 = vmatprep.subr.mxu0 0.0
  %8084 = vmatpush1.msra.mxu0 0.0
  %8085 = vmatprep.subr.mxu0 0.0
  %8086 = vmatpush1.msra.mxu0 0.0
  %8087 = vmatprep.subr.mxu0 0.0
  %8088 = vmatpush1.msra.mxu0 0.0
  %8089 = vmatprep.subr.mxu0 0.0
  %8090 = vmatpush1.msra.mxu0 0.0
  %8091 = vmatprep.subr.mxu0 0.0
  %8092 = vmatpush1.msra.mxu0 0.0
  %8093 = vmatprep.subr.mxu0 0.0
  %8094 = vmatpush1.msra.mxu0 0.0
  %8095 = vmatprep.subr.mxu0 0.0
  %8096 = vmatpush1.msra.mxu0 0.0
  %8097 = vmatprep.subr.mxu0 0.0
  %8098 = vmatpush1.msra.mxu0 0.0
  %8099 = vmatprep.subr.mxu0 0.0
  %8100 = vmatpush1.msra.mxu0 0.0
  %8101 = vmatprep.subr.mxu0 0.0
  %8102 = vmatpush1.msra.mxu0 0.0
  %8103 = vmatprep.subr.mxu0 0.0
  %8104 = vmatpush1.msra.mxu0 0.0
  %8105 = vmatprep.subr.mxu0 0.0
  %8106 = vmatpush1.msra.mxu0 0.0
  %8107 = vmatprep.subr.mxu0 0.0
  %8108 = vmatpush1.msra.mxu0 0.0
  %8109 = vmatprep.subr.mxu0 0.0
  %8110 = vmatpush1.msra.mxu0 0.0
  %8111 = vmatprep.subr.mxu0 0.0
  %8112 = vmatpush1.msra.mxu0 0.0
  %8113 = vmatprep.subr.mxu0 0.0
  %8114 = vmatpush1.msra.mxu0 0.0
  %8115 = vmatprep.subr.mxu0 0.0
  %8116 = vmatpush1.msra.mxu0 0.0
  %8117 = vmatprep.mubr.f32.mxu0 0.0
  %8118 = vmatmul.mubr.f32.gmra.mrb[0].mxu0 %v8030
  %v8119 = vpop.f32.mrb[0].mxu0
  %v8120 = vadd.f32 %v8027, %v8119
  %v8121 = vpop.f32.mrb[0].mxu0
  %v8122 = vadd.f32 %v8027, %v8121
  %8123 = vdwg.mxu0
  %8124 = vmatprep.subr.mxu0 %v7935
  %8125 = vmatpush1.msra.mxu0 %v7934
  %8126 = vmatprep.subr.mxu0 %v7942
  %8127 = vmatpush1.msra.mxu0 %v7941
  %8128 = vmatprep.subr.mxu0 %v7949
  %8129 = vmatpush1.msra.mxu0 %v7948
  %8130 = vmatprep.subr.mxu0 %v7956
  %8131 = vmatpush1.msra.mxu0 %v7955
  %8132 = vmatprep.subr.mxu0 %v7963
  %8133 = vmatpush1.msra.mxu0 %v7962
  %8134 = vmatprep.subr.mxu0 %v7970
  %8135 = vmatpush1.msra.mxu0 %v7969
  %8136 = vmatprep.subr.mxu0 %v7977
  %8137 = vmatpush1.msra.mxu0 %v7976
  %8138 = vmatprep.subr.mxu0 %v7984
  %8139 = vmatpush1.msra.mxu0 %v7983
  %8140 = vmatprep.subr.mxu0 %v7991
  %8141 = vmatpush1.msra.mxu0 %v7990
  %8142 = vmatprep.subr.mxu0 %v7998
  %8143 = vmatpush1.msra.mxu0 %v7997
  %8144 = vmatprep.subr.mxu0 %v8005
  %8145 = vmatpush1.msra.mxu0 %v8004
  %8146 = vmatprep.subr.mxu0 %v8012
  %8147 = vmatpush1.msra.mxu0 %v8011
  %8148 = vmatprep.subr.mxu0 %v8042
  %8149 = vmatpush1.msra.mxu0 %v8039
  %8150 = vmatprep.subr.mxu0 0.0
  %8151 = vmatpush1.msra.mxu0 0.0
  %8152 = vmatprep.subr.mxu0 0.0
  %8153 = vmatpush1.msra.mxu0 0.0
  %8154 = vmatprep.subr.mxu0 0.0
  %8155 = vmatpush1.msra.mxu0 0.0
  %8156 = vmatprep.subr.mxu0 0.0
  %8157 = vmatpush1.msra.mxu0 0.0
  %8158 = vmatprep.subr.mxu0 0.0
  %8159 = vmatpush1.msra.mxu0 0.0
  %8160 = vmatprep.subr.mxu0 0.0
  %8161 = vmatpush1.msra.mxu0 0.0
  %8162 = vmatprep.subr.mxu0 0.0
  %8163 = vmatpush1.msra.mxu0 0.0
  %8164 = vmatprep.subr.mxu0 0.0
  %8165 = vmatpush1.msra.mxu0 0.0
  %8166 = vmatprep.subr.mxu0 0.0
  %8167 = vmatpush1.msra.mxu0 0.0
  %8168 = vmatprep.subr.mxu0 0.0
  %8169 = vmatpush1.msra.mxu0 0.0
  %8170 = vmatprep.subr.mxu0 0.0
  %8171 = vmatpush1.msra.mxu0 0.0
  %8172 = vmatprep.subr.mxu0 0.0
  %8173 = vmatpush1.msra.mxu0 0.0
  %8174 = vmatprep.subr.mxu0 0.0
  %8175 = vmatpush1.msra.mxu0 0.0
  %8176 = vmatprep.subr.mxu0 0.0
  %8177 = vmatpush1.msra.mxu0 0.0
  %8178 = vmatprep.subr.mxu0 0.0
  %8179 = vmatpush1.msra.mxu0 0.0
  %8180 = vmatprep.subr.mxu0 0.0
  %8181 = vmatpush1.msra.mxu0 0.0
  %8182 = vmatprep.subr.mxu0 0.0
  %8183 = vmatpush1.msra.mxu0 0.0
  %8184 = vmatprep.subr.mxu0 0.0
  %8185 = vmatpush1.msra.mxu0 0.0
  %8186 = vmatprep.subr.mxu0 0.0
  %8187 = vmatpush1.msra.mxu0 0.0
  %8188 = vmatprep.mubr.f32.mxu0 0.0
  %8189 = vmatmul.mubr.f32.gmra.mrb[0].mxu0 %v8030
  %v8190 = vpop.f32.mrb[0].mxu0
  %v8191 = vadd.f32 %v8027, %v8190
  %v8192 = vpop.f32.mrb[0].mxu0
  %v8193 = vadd.f32 %v8027, %v8192
  %8194 = vdwg.mxu0
  %8195 = vmatprep.subr.mxu0 %v7937
  %8196 = vmatpush1.msra.mxu0 %v7936
  %8197 = vmatprep.subr.mxu0 %v7944
  %8198 = vmatpush1.msra.mxu0 %v7943
  %8199 = vmatprep.subr.mxu0 %v7951
  %8200 = vmatpush1.msra.mxu0 %v7950
  %8201 = vmatprep.subr.mxu0 %v7958
  %8202 = vmatpush1.msra.mxu0 %v7957
  %8203 = vmatprep.subr.mxu0 %v7965
  %8204 = vmatpush1.msra.mxu0 %v7964
  %8205 = vmatprep.subr.mxu0 %v7972
  %8206 = vmatpush1.msra.mxu0 %v7971
  %8207 = vmatprep.subr.mxu0 %v7979
  %8208 = vmatpush1.msra.mxu0 %v7978
  %8209 = vmatprep.subr.mxu0 %v7986
  %8210 = vmatpush1.msra.mxu0 %v7985
  %8211 = vmatprep.subr.mxu0 %v7993
  %8212 = vmatpush1.msra.mxu0 %v7992
  %8213 = vmatprep.subr.mxu0 %v8000
  %8214 = vmatpush1.msra.mxu0 %v7999
  %8215 = vmatprep.subr.mxu0 %v8007
  %8216 = vmatpush1.msra.mxu0 %v8006
  %8217 = vmatprep.subr.mxu0 %v8014
  %8218 = vmatpush1.msra.mxu0 %v8013
  %8219 = vmatprep.subr.mxu0 %v8048
  %8220 = vmatpush1.msra.mxu0 %v8045
  %8221 = vmatprep.subr.mxu0 0.0
  %8222 = vmatpush1.msra.mxu0 0.0
  %8223 = vmatprep.subr.mxu0 0.0
  %8224 = vmatpush1.msra.mxu0 0.0
  %8225 = vmatprep.subr.mxu0 0.0
  %8226 = vmatpush1.msra.mxu0 0.0
  %8227 = vmatprep.subr.mxu0 0.0
  %8228 = vmatpush1.msra.mxu0 0.0
  %8229 = vmatprep.subr.mxu0 0.0
  %8230 = vmatpush1.msra.mxu0 0.0
  %8231 = vmatprep.subr.mxu0 0.0
  %8232 = vmatpush1.msra.mxu0 0.0
  %8233 = vmatprep.subr.mxu0 0.0
  %8234 = vmatpush1.msra.mxu0 0.0
  %8235 = vmatprep.subr.mxu0 0.0
  %8236 = vmatpush1.msra.mxu0 0.0
  %8237 = vmatprep.subr.mxu0 0.0
  %8238 = vmatpush1.msra.mxu0 0.0
  %8239 = vmatprep.subr.mxu0 0.0
  %8240 = vmatpush1.msra.mxu0 0.0
  %8241 = vmatprep.subr.mxu0 0.0
  %8242 = vmatpush1.msra.mxu0 0.0
  %8243 = vmatprep.subr.mxu0 0.0
  %8244 = vmatpush1.msra.mxu0 0.0
  %8245 = vmatprep.subr.mxu0 0.0
  %8246 = vmatpush1.msra.mxu0 0.0
  %8247 = vmatprep.subr.mxu0 0.0
  %8248 = vmatpush1.msra.mxu0 0.0
  %8249 = vmatprep.subr.mxu0 0.0
  %8250 = vmatpush1.msra.mxu0 0.0
  %8251 = vmatprep.subr.mxu0 0.0
  %8252 = vmatpush1.msra.mxu0 0.0
  %8253 = vmatprep.subr.mxu0 0.0
  %8254 = vmatpush1.msra.mxu0 0.0
  %8255 = vmatprep.subr.mxu0 0.0
  %8256 = vmatpush1.msra.mxu0 0.0
  %8257 = vmatprep.subr.mxu0 0.0
  %8258 = vmatpush1.msra.mxu0 0.0
  %8259 = vmatprep.mubr.f32.mxu0 0.0
  %8260 = vmatmul.mubr.f32.gmra.mrb[0].mxu0 %v8030
  %v8261 = vpop.f32.mrb[0].mxu0
  %v8262 = vadd.f32 %v8027, %v8261
  %v8263 = vpop.f32.mrb[0].mxu0
  %v8264 = vadd.f32 %v8027, %v8263
  %8265 = vdwg.mxu0
  %8266 = vmatprep.subr.mxu0 0.0
  %8267 = vmatpush1.msra.mxu0 %v7938
  %8268 = vmatprep.subr.mxu0 0.0
  %8269 = vmatpush1.msra.mxu0 %v7945
  %8270 = vmatprep.subr.mxu0 0.0
  %8271 = vmatpush1.msra.mxu0 %v7952
  %8272 = vmatprep.subr.mxu0 0.0
  %8273 = vmatpush1.msra.mxu0 %v7959
  %8274 = vmatprep.subr.mxu0 0.0
  %8275 = vmatpush1.msra.mxu0 %v7966
  %8276 = vmatprep.subr.mxu0 0.0
  %8277 = vmatpush1.msra.mxu0 %v7973
  %8278 = vmatprep.subr.mxu0 0.0
  %8279 = vmatpush1.msra.mxu0 %v7980
  %8280 = vmatprep.subr.mxu0 0.0
  %8281 = vmatpush1.msra.mxu0 %v7987
  %8282 = vmatprep.subr.mxu0 0.0
  %8283 = vmatpush1.msra.mxu0 %v7994
  %8284 = vmatprep.subr.mxu0 0.0
  %8285 = vmatpush1.msra.mxu0 %v8001
  %8286 = vmatprep.subr.mxu0 0.0
  %8287 = vmatpush1.msra.mxu0 %v8008
  %8288 = vmatprep.subr.mxu0 0.0
  %8289 = vmatpush1.msra.mxu0 %v8015
  %8290 = vmatprep.subr.mxu0 0.0
  %8291 = vmatpush1.msra.mxu0 %v8051
  %8292 = vmatprep.subr.mxu0 0.0
  %8293 = vmatpush1.msra.mxu0 0.0
  %8294 = vmatprep.subr.mxu0 0.0
  %8295 = vmatpush1.msra.mxu0 0.0
  %8296 = vmatprep.subr.mxu0 0.0
  %8297 = vmatpush1.msra.mxu0 0.0
  %8298 = vmatprep.subr.mxu0 0.0
  %8299 = vmatpush1.msra.mxu0 0.0
  %8300 = vmatprep.subr.mxu0 0.0
  %8301 = vmatpush1.msra.mxu0 0.0
  %8302 = vmatprep.subr.mxu0 0.0
  %8303 = vmatpush1.msra.mxu0 0.0
  %8304 = vmatprep.subr.mxu0 0.0
  %8305 = vmatpush1.msra.mxu0 0.0
  %8306 = vmatprep.subr.mxu0 0.0
  %8307 = vmatpush1.msra.mxu0 0.0
  %8308 = vmatprep.subr.mxu0 0.0
  %8309 = vmatpush1.msra.mxu0 0.0
  %8310 = vmatprep.subr.mxu0 0.0
  %8311 = vmatpush1.msra.mxu0 0.0
  %8312 = vmatprep.subr.mxu0 0.0
  %8313 = vmatpush1.msra.mxu0 0.0
  %8314 = vmatprep.subr.mxu0 0.0
  %8315 = vmatpush1.msra.mxu0 0.0
  %8316 = vmatprep.subr.mxu0 0.0
  %8317 = vmatpush1.msra.mxu0 0.0
  %8318 = vmatprep.subr.mxu0 0.0
  %8319 = vmatpush1.msra.mxu0 0.0
  %8320 = vmatprep.subr.mxu0 0.0
  %8321 = vmatpush1.msra.mxu0 0.0
  %8322 = vmatprep.subr.mxu0 0.0
  %8323 = vmatpush1.msra.mxu0 0.0
  %8324 = vmatprep.subr.mxu0 0.0
  %8325 = vmatpush1.msra.mxu0 0.0
  %8326 = vmatprep.subr.mxu0 0.0
  %8327 = vmatpush1.msra.mxu0 0.0
  %8328 = vmatprep.subr.mxu0 0.0
  %8329 = vmatpush1.msra.mxu0 0.0
  %8330 = vmatprep.mubr.f32.mxu0 0.0
  %8331 = vmatmul.mubr.f32.gmra.mrb[0].mxu0 %v8030
  %v8332 = vpop.f32.mrb[0].mxu0
  %v8333 = vadd.f32 %v8027, %v8332
  %v8334 = vpop.f32.mrb[0].mxu0
  %8335 = vdwg.mxu0
  %v8336 = vxor.u32 %v8120, 2147483648
  %v8337 = vxor.u32 %v8122, 2147483648
  %v8338 = vxor.u32 %v8191, 2147483648
  %v8339 = vxor.u32 %v8193, 2147483648
  %v8340 = vxor.u32 %v8262, 2147483648
  %v8341 = vxor.u32 %v8264, 2147483648
  %v8342 = vxor.u32 %v8333, 2147483648
  %v8343 = vmul.f32 %v8336, 1.442695
  %v8344 = vpow.pop %v8343
  %v8345 = vmul.f32 %v8337, 1.442695
  %v8346 = vpow.pop %v8345
  %v8347 = vmul.f32 %v8338, 1.442695
  %v8348 = vpow.pop %v8347
  %v8349 = vmul.f32 %v8339, 1.442695
  %v8350 = vpow.pop %v8349
  %v8351 = vmul.f32 %v8340, 1.442695
  %v8352 = vpow.pop %v8351
  %v8353 = vmul.f32 %v8341, 1.442695
  %v8354 = vpow.pop %v8353
  %v8355 = vmul.f32 %v8342, 1.442695
  %v8356 = vpow.pop %v8355
  %v8357 = vadd.f32 %v8344, 1.0
  %v8358 = vadd.f32 %v8346, 1.0
  %v8359 = vadd.f32 %v8348, 1.0
  %v8360 = vadd.f32 %v8350, 1.0
  %v8361 = vadd.f32 %v8352, 1.0
  %v8362 = vadd.f32 %v8354, 1.0
  %v8363 = vadd.f32 %v8356, 1.0
  %v8364 = vrcp.pop %v8357
  %v8365 = vmul.f32 1.0, %v8364
  %v8366 = vrcp.pop %v8358
  %v8367 = vmul.f32 1.0, %v8366
  %v8368 = vrcp.pop %v8359
  %v8369 = vmul.f32 1.0, %v8368
  %v8370 = vrcp.pop %v8360
  %v8371 = vmul.f32 1.0, %v8370
  %v8372 = vrcp.pop %v8361
  %v8373 = vmul.f32 1.0, %v8372
  %v8374 = vrcp.pop %v8362
  %v8375 = vmul.f32 1.0, %v8374
  %v8376 = vrcp.pop %v8363
  %v8377 = vmul.f32 1.0, %v8376
  %v8385 = vcombine.low %v8365, %v8367
  %v8386 = vcombine.low %v8369, %v8371
  %v8388 = vunpack.c.l.s4 1983009808
  %v8389 = vunpack.c.0.s8 %v8388
  %v8390 = vlaneseq
  %v8391 = vshrl.u32 %v8390, 7
  %v8392 = vsub.s32 %v8389, %v8391
  %v8393 = vrot.slane %v8385, %v8392
  %v8395 = vunpack.c.l.s4 1983009808
  %v8396 = vunpack.c.0.s8 %v8395
  %v8397 = vlaneseq
  %v8398 = vshrl.u32 %v8397, 7
  %v8399 = vsub.s32 %v8396, %v8398
  %v8400 = vrot.slane %v8386, %v8399
  %v8401 = vcombine.low %v8393, %v8400
  %v8402 = vcombine.low %v8373, %v8375
  %v8404 = vunpack.c.l.s4 1983009808
  %v8405 = vunpack.c.0.s8 %v8404
  %v8406 = vlaneseq
  %v8407 = vshrl.u32 %v8406, 7
  %v8408 = vsub.s32 %v8405, %v8407
  %v8409 = vrot.slane %v8402, %v8408
  %v8411 = vunpack.c.l.s4 1983009808
  %v8412 = vunpack.c.0.s8 %v8411
  %v8413 = vlaneseq
  %v8414 = vshrl.u32 %v8413, 7
  %v8415 = vsub.s32 %v8412, %v8414
  %v8416 = vrot.slane %v8377, %v8415
  %v8417 = vcombine.low %v8409, %v8416
  %8420 = vst [vmem:[%s7] sm:$0xff] %v8401
  %vm8421 = vcmask 1041408
  %vm8422 = vcmask 1043458
  %vm8423 = vmor %vm8422, %vm8421
  %vm8424 = vcmask 259076
  %vm8425 = vmor %vm8424, %vm8423
  %8426 = vst.msk [vmem:[%s7 + $0x8] sm:$0x3f] %vm8425, %v8417
  // Predicated region
  $region30: #{my_net2_forward.1} parent=0 // pred_check
    _
  $region31: #{my_net2_forward.1} parent=0 // pred_check_branch
    %8428 = sbr.rel (0) target = $region33
  $region32: #{my_net2_forward.1} parent=0 // pred_region
    _
  $region33: #{my_net2_forward.1} parent=0 // pred_fallthru
    _
  // Predicated region
  $region34: #{my_net2_forward.1} parent=0 // pred_check
    _
  $region35: #{my_net2_forward.1} parent=0 // pred_check_branch
    %8430 = sbr.rel (0) target = $region37
  $region36: #{my_net2_forward.1} parent=0 // pred_region
    _
  $region37: #{my_net2_forward.1} parent=0 // pred_fallthru
    _

</llo_original>
